<compile_context>
chip_gen: v7x
topology: tpu7x:2x2x1
jax: 0.10.0
libtpu: 0.0.40
codegen_flags: <defaults>
</compile_context>

<pallas_src>
import functools

import jax
import jax.numpy as jnp
from jax.experimental import pallas as pl
from jax.experimental.pallas import tpu as pltpu


def _gcn_kernel(sigma, eps,
                h_full_ref, h_dst_ref, h_flat_ref, e_ref, adj_ref,
                w_bds1_ref, b_bds1_ref, ws2_ref, bs2_ref, wm_ref, bm_ref,
                wae_bd_ref, bae_ref, c_bd_ref, cb_rep_ref,
                tile_rep_ref, node_rep_ref,
                bnh_scale_ref, bnh_shift_ref, bne_scale_ref, bne_shift_ref,
                h_out_ref, e_out_ref, sh_out_ref):
    f32 = jnp.float32
    Dout = tile_rep_ref.shape[0]          # tile_rep: (Dout, T*Dout)
    TDo = tile_rep_ref.shape[1]

    h_full = h_full_ref[...]              # (N, Din)   all (source) nodes
    h_dst = h_dst_ref[...]                # (T, Din)   dst tile
    h_flat = h_flat_ref[...]              # (1, T*Din) dst tile, flattened (lane dense)
    e_flat = e_ref[...]                   # (N, T*Din) edge block, lane dense
    adj = adj_ref[0]                      # (N, T)     adj[i, j] = 1 if edge i -> j

    def dot(a, b):
        return jnp.dot(a, b, preferred_element_type=f32)

    def sigmoid(x):
        return pl.reciprocal(1.0 + jnp.exp(-x), approx=True)

    def softmax_rows(x):
        x = x - jnp.max(x, axis=1, keepdims=True)
        ex = jnp.exp(x)
        return ex * pl.reciprocal(jnp.sum(ex, axis=1, keepdims=True), approx=True)

    # ---- fused node-side linears over ALL nodes: [B | D | s1] ----
    z = dot(h_full, w_bds1_ref[...]) + b_bds1_ref[...]                 # (N, 3*Dout)
    Bh = z[:, 0:Dout]
    Dh = z[:, Dout:2 * Dout]
    s1h = jnp.maximum(z[:, 2 * Dout:3 * Dout], 0.0)
    Sh_full = softmax_rows(dot(s1h, ws2_ref[...]) + bs2_ref[...])      # (N, A)

    # ---- dst-tile node linears (recomputed per tile; tiny) ----
    z_t = dot(h_dst, w_bds1_ref[...]) + b_bds1_ref[...]                # (T, 3*Dout)
    s1_t = jnp.maximum(z_t[:, 2 * Dout:3 * Dout], 0.0)
    Sh_t = softmax_rows(dot(s1_t, ws2_ref[...]) + bs2_ref[...])        # (T, A)
    sh_out_ref[...] = Sh_t

    # A(h), E(h) for the dst tile directly in flat (1, T*Dout) layout (block-diag matmul)
    ae = dot(h_flat, wae_bd_ref[...]) + bae_ref[...]                   # (1, 2*T*Dout)
    Ah_flat = ae[:, 0:TDo]
    Eh_flat = ae[:, TDo:2 * TDo]

    # ---- edge features: e_new[i, j, :] = Dh[i] + Eh[j] + C(e[i, j]) ----
    Ce = dot(e_flat, c_bd_ref[...]) + cb_rep_ref[...]                  # (N, T*Dout)
    Dh_rep = dot(Dh, tile_rep_ref[...])                                # (N, T*Dout)
    e_new = Ce + Dh_rep + Eh_flat
    sigma_e = sigmoid(e_new)

    # ---- gaussian distance gate: ||metric(Sh_i - Sh_j)||, via the Gram trick ----
    P = dot(Sh_full, wm_ref[...]) + bm_ref[...]                        # (N, A)
    Q = dot(Sh_t, wm_ref[...])                                         # (T, A)  (bias cancels)
    QT = Q.T                                                           # (A, T)
    cross = dot(P, QT)                                                 # (N, T)
    pn = jnp.sum(P * P, axis=1, keepdims=True)                         # (N, 1)
    qn = jnp.sum(QT * QT, axis=0, keepdims=True)                       # (1, T)
    dist = jnp.sqrt(jnp.maximum(pn + qn - 2.0 * cross, 0.0))           # (N, T)
    GD = jnp.exp(-dist * (1.0 / (2.0 * sigma * sigma)))
    sigma_GD = sigmoid(GD)                                             # (N, T)

    # ---- aggregation over incoming edges (sum over source axis 0) ----
    adj_rep = dot(adj, node_rep_ref[...])                              # (N, T*Dout) exact 0/1
    sgd_rep = dot(sigma_GD, node_rep_ref[...])                         # (N, T*Dout)
    Bh_rep = dot(Bh, tile_rep_ref[...])                                # (N, T*Dout)
    masked_e = adj_rep * sigma_e
    sum_sigma_e = jnp.sum(masked_e, axis=0, keepdims=True)             # (1, T*Dout)
    sum_sigma_h = jnp.sum(masked_e * sgd_rep * Bh_rep, axis=0, keepdims=True)
    ssgd = jnp.sum(adj * sigma_GD, axis=0, keepdims=True)              # (1, T)
    sum_sigma_GD = dot(ssgd, node_rep_ref[...])                        # (1, T*Dout)

    denom = (sum_sigma_e + eps) * (sum_sigma_GD + eps)
    h_new = Ah_flat + sum_sigma_h * pl.reciprocal(denom, approx=True)  # (1, T*Dout)

    # BatchNorm (eval, folded to scale/shift) + ReLU ; dropout = identity (eval)
    h_out_ref[0] = jnp.maximum(h_new * bnh_scale_ref[...] + bnh_shift_ref[...], 0.0)
    e_out_ref[...] = jnp.maximum(e_new * bne_scale_ref[...] + bne_shift_ref[...], 0.0)


def bi_gated_gcn4_forward(h, e, adj, params, *, sigma=1.0, tile=16):
    """h: (N, Din); e: (N, N, Din) dense edge features (slot (i, j) = edge i->j);
    adj: (N, N) float {0,1} mask; returns (h_out (N, Dout), e_out (N, N, Dout), Sh (N, A))."""
    N, Din = h.shape
    Dout = params["A_w"].shape[1]
    A = params["s2_w"].shape[1]
    assert N % tile == 0 and tile % 8 == 0
    G = N // tile
    TDi, TDo = tile * Din, tile * Dout
    f32 = jnp.float32

    # ---- wrapper-side (XLA) packing; in a real model the weight packing is done once ----
    e_flat = e.reshape(N, N * Din)                       # lane-dense edge input
    h_flat = h.reshape(1, N * Din)                       # flattened dst-node features
    adj3 = adj.reshape(N, G, tile).transpose(1, 0, 2)    # (G, N, tile) per-tile adj columns

    w_bds1 = jnp.concatenate([params["B_w"], params["D_w"], params["s1_w"]], axis=1)
    b_bds1 = jnp.concatenate([params["B_b"], params["D_b"], params["s1_b"]], axis=1)

    eye_t = jnp.eye(tile, dtype=f32)
    ae_bd = jnp.concatenate([jnp.kron(eye_t, params["A_w"]),
                             jnp.kron(eye_t, params["E_w"])], axis=1)   # (T*Din, 2*T*Dout)
    bae = jnp.concatenate([jnp.tile(params["A_b"], (1, tile)),
                           jnp.tile(params["E_b"], (1, tile))], axis=1)
    c_bd = jnp.kron(eye_t, params["C_w"])                               # (T*Din, T*Dout)
    cb_rep = jnp.tile(params["C_b"], (1, tile))
    tile_rep = jnp.tile(jnp.eye(Dout, dtype=f32), (1, tile))            # (Dout, T*Dout)
    node_rep = jnp.kron(eye_t, jnp.ones((1, Dout), f32))                # (tile, T*Dout)
    bnh_scale = jnp.tile(params["bnh_scale"], (1, tile))
    bnh_shift = jnp.tile(params["bnh_shift"], (1, tile))
    bne_scale = jnp.tile(params["bne_scale"], (1, tile))
    bne_shift = jnp.tile(params["bne_shift"], (1, tile))

    inputs = (h, h, h_flat, e_flat, adj3,
              w_bds1, b_bds1, params["s2_w"], params["s2_b"],
              params["m_w"], params["m_b"],
              ae_bd, bae, c_bd, cb_rep, tile_rep, node_rep,
              bnh_scale, bnh_shift, bne_scale, bne_shift)

    def const_spec(x):
        n = x.ndim
        return pl.BlockSpec(x.shape, lambda j, n=n: (0,) * n)

    in_specs = [
        pl.BlockSpec((N, Din), lambda j: (0, 0)),          # h, all nodes (resident)
        pl.BlockSpec((tile, Din), lambda j: (j, 0)),       # h, dst tile
        pl.BlockSpec((1, TDi), lambda j: (0, j)),          # h, dst tile flattened
        pl.BlockSpec((N, TDi), lambda j: (0, j)),          # e, lane-dense dst slab
        pl.BlockSpec((1, N, tile), lambda j: (j, 0, 0)),   # adj columns of the dst tile
    ] + [const_spec(x) for x in inputs[5:]]

    out_shape = (
        jax.ShapeDtypeStruct((G, 1, TDo), f32),            # h_out, flat per-tile rows
        jax.ShapeDtypeStruct((N, N * Dout), f32),          # e_out, lane-dense
        jax.ShapeDtypeStruct((N, A), f32),                 # Sh
    )
    out_specs = (
        pl.BlockSpec((1, 1, TDo), lambda j: (j, 0, 0)),
        pl.BlockSpec((N, TDo), lambda j: (0, j)),
        pl.BlockSpec((tile, A), lambda j: (j, 0)),
    )

    kernel = functools.partial(_gcn_kernel, float(sigma), 1e-6)
    h_out_flat, e_out_flat, sh_out = pl.pallas_call(
        kernel,
        grid=(G,),
        in_specs=in_specs,
        out_specs=out_specs,
        out_shape=out_shape,
        compiler_params=pltpu.CompilerParams(
            dimension_semantics=("parallel",),      # dst tiles are independent (v7x megacore)
            vmem_limit_bytes=48 * 1024 * 1024,      # explicit budget; safe on v5e/v6e/v7x
        ),
    )(*inputs)

    h_out = h_out_flat.reshape(N, Dout)
    e_out = e_out_flat.reshape(N, N, Dout)
    return h_out, e_out, sh_out


def init_params(key, din, dout, adim):
    """Deterministic PyTorch-style (uniform +-1/sqrt(fan_in)) initialisation.
    Weights stored transposed as (in, out) so the kernel does x @ W."""
    names_shapes = [("A", din, dout), ("B", din, dout), ("C", din, dout),
                    ("D", din, dout), ("E", din, dout), ("s1", din, dout),
                    ("s2", dout, adim), ("m", adim, adim)]
    keys = jax.random.split(key, 2 * len(names_shapes))
    params = {}
    for idx, (name, fi, fo) in enumerate(names_shapes):
        bound = 1.0 / (fi ** 0.5)
        params[f"{name}_w"] = jax.random.uniform(
            keys[2 * idx], (fi, fo), jnp.float32, -bound, bound)
        params[f"{name}_b"] = jax.random.uniform(
            keys[2 * idx + 1], (1, fo), jnp.float32, -bound, bound)
    # BatchNorm1d eval: gamma=1, beta=0, running_mean=0, running_var=1, eps=1e-5
    bn_eps = 1e-5
    bn_scale = jnp.full((1, dout), 1.0 / (1.0 + bn_eps) ** 0.5, jnp.float32)
    bn_shift = jnp.zeros((1, dout), jnp.float32)
    params["bnh_scale"] = bn_scale
    params["bnh_shift"] = bn_shift
    params["bne_scale"] = bn_scale
    params["bne_shift"] = bn_shift
    return params


def reference_forward(h, e, adj, p, sigma=1.0):
    """Pure-JAX reference (mirrors the PyTorch/DGL forward, eval mode)."""
    lin = lambda x, w, b: x @ w + b
    Ah, Bh = lin(h, p["A_w"], p["A_b"]), lin(h, p["B_w"], p["B_b"])
    Dh, Eh = lin(h, p["D_w"], p["D_b"]), lin(h, p["E_w"], p["E_b"])
    Sh = jax.nn.softmax(lin(jax.nn.relu(lin(h, p["s1_w"], p["s1_b"])),
                            p["s2_w"], p["s2_b"]), axis=1)
    Ce = jnp.einsum("ijd,do->ijo", e, p["C_w"]) + p["C_b"]
    e_new = Dh[:, None, :] + Eh[None, :, :] + Ce
    sigma_e = jax.nn.sigmoid(e_new)
    Sd = Sh[:, None, :] - Sh[None, :, :]
    Sd_h = jnp.einsum("ija,ab->ijb", Sd, p["m_w"]) + p["m_b"]
    dist = jnp.sqrt(jnp.sum(Sd_h * Sd_h, axis=-1, keepdims=True))
    GD = jnp.exp(-dist / (2.0 * sigma ** 2))
    sigma_GD = jax.nn.sigmoid(GD)
    sig = sigma_e * sigma_GD
    adjm = adj[:, :, None]
    sum_sigma_h = jnp.sum(adjm * sig * Bh[:, None, :], axis=0)
    sum_sigma_e = jnp.sum(adjm * sigma_e, axis=0)
    sum_sigma_GD = jnp.sum(adjm * sigma_GD, axis=0)
    h_new = Ah + sum_sigma_h / ((sum_sigma_e + 1e-6) * (sum_sigma_GD + 1e-6))
    h_out = jax.nn.relu(h_new * p["bnh_scale"] + p["bnh_shift"])
    e_out = jax.nn.relu(e_new * p["bne_scale"] + p["bne_shift"])
    return h_out, e_out, Sh


if __name__ == "__main__":
    N, DIN, DOUT, ADIM, TILE = 64, 32, 32, 16, 16   # grid of N/TILE = 4 dst tiles

    key = jax.random.PRNGKey(0)
    k_h, k_e, k_a, k_p = jax.random.split(key, 4)
    h = jax.random.normal(k_h, (N, DIN), jnp.float32)
    e = jax.random.normal(k_e, (N, N, DIN), jnp.float32)
    adj = (jax.random.uniform(k_a, (N, N)) < 0.6).astype(jnp.float32)
    params = init_params(k_p, DIN, DOUT, ADIM)

    h_out, e_out, sh_out = bi_gated_gcn4_forward(h, e, adj, params, sigma=1.0, tile=TILE)
    jax.block_until_ready((h_out, e_out, sh_out))

    h_ref, e_ref, sh_ref = reference_forward(h, e, adj, params, sigma=1.0)
    # Tolerance accounts for approximate reciprocals (EUP vrcp) and MXU default precision.
    assert jnp.allclose(h_out, h_ref, atol=2e-2, rtol=2e-2)
    assert jnp.allclose(e_out, e_ref, atol=2e-2, rtol=2e-2)
    assert jnp.allclose(sh_out, sh_ref, atol=2e-2, rtol=2e-2)

    print("KERNEL_OK")
</pallas_src>

<mosaic_0001>
module attributes {stable_mosaic.version = 11 : i64} {
  func.func @_gcn_kernel(%arg0: i32, %arg1: memref<64x32xf32, #tpu.memory_space<vmem>>, %arg2: memref<16x32xf32, #tpu.memory_space<vmem>>, %arg3: memref<1x512xf32, #tpu.memory_space<vmem>>, %arg4: memref<64x512xf32, #tpu.memory_space<vmem>>, %arg5: memref<1x64x16xf32, #tpu.memory_space<vmem>>, %arg6: memref<32x96xf32, #tpu.memory_space<vmem>>, %arg7: memref<1x96xf32, #tpu.memory_space<vmem>>, %arg8: memref<32x16xf32, #tpu.memory_space<vmem>>, %arg9: memref<1x16xf32, #tpu.memory_space<vmem>>, %arg10: memref<16x16xf32, #tpu.memory_space<vmem>>, %arg11: memref<1x16xf32, #tpu.memory_space<vmem>>, %arg12: memref<512x1024xf32, #tpu.memory_space<vmem>>, %arg13: memref<1x1024xf32, #tpu.memory_space<vmem>>, %arg14: memref<512x512xf32, #tpu.memory_space<vmem>>, %arg15: memref<1x512xf32, #tpu.memory_space<vmem>>, %arg16: memref<32x512xf32, #tpu.memory_space<vmem>>, %arg17: memref<16x512xf32, #tpu.memory_space<vmem>>, %arg18: memref<1x512xf32, #tpu.memory_space<vmem>>, %arg19: memref<1x512xf32, #tpu.memory_space<vmem>>, %arg20: memref<1x512xf32, #tpu.memory_space<vmem>>, %arg21: memref<1x512xf32, #tpu.memory_space<vmem>>, %arg22: memref<1x1x512xf32, #tpu.memory_space<vmem>>, %arg23: memref<64x512xf32, #tpu.memory_space<vmem>>, %arg24: memref<16x16xf32, #tpu.memory_space<vmem>>) attributes {dimension_semantics = [#tpu.dimension_semantics<parallel>], iteration_bounds = array<i64: 4>, scalar_prefetch = 0 : i64, scratch_operands = 0 : i64, tpu.core_type = #tpu.core_type<tc>, window_params = [{pipeline_mode = #tpu.pipeline_mode<synchronous>, transform_indices = @transform_0, window_bounds = array<i64: 64, 32>}, {transform_indices = @transform_1, window_bounds = array<i64: 16, 32>}, {transform_indices = @transform_2, window_bounds = array<i64: 1, 512>}, {transform_indices = @transform_3, window_bounds = array<i64: 64, 512>}, {transform_indices = @transform_4, window_bounds = array<i64: 1, 64, 16>}, {pipeline_mode = #tpu.pipeline_mode<synchronous>, transform_indices = @transform_5, window_bounds = array<i64: 32, 96>}, {pipeline_mode = #tpu.pipeline_mode<synchronous>, transform_indices = @transform_6, window_bounds = array<i64: 1, 96>}, {pipeline_mode = #tpu.pipeline_mode<synchronous>, transform_indices = @transform_7, window_bounds = array<i64: 32, 16>}, {pipeline_mode = #tpu.pipeline_mode<synchronous>, transform_indices = @transform_8, window_bounds = array<i64: 1, 16>}, {pipeline_mode = #tpu.pipeline_mode<synchronous>, transform_indices = @transform_9, window_bounds = array<i64: 16, 16>}, {pipeline_mode = #tpu.pipeline_mode<synchronous>, transform_indices = @transform_10, window_bounds = array<i64: 1, 16>}, {pipeline_mode = #tpu.pipeline_mode<synchronous>, transform_indices = @transform_11, window_bounds = array<i64: 512, 1024>}, {pipeline_mode = #tpu.pipeline_mode<synchronous>, transform_indices = @transform_12, window_bounds = array<i64: 1, 1024>}, {pipeline_mode = #tpu.pipeline_mode<synchronous>, transform_indices = @transform_13, window_bounds = array<i64: 512, 512>}, {pipeline_mode = #tpu.pipeline_mode<synchronous>, transform_indices = @transform_14, window_bounds = array<i64: 1, 512>}, {pipeline_mode = #tpu.pipeline_mode<synchronous>, transform_indices = @transform_15, window_bounds = array<i64: 32, 512>}, {pipeline_mode = #tpu.pipeline_mode<synchronous>, transform_indices = @transform_16, window_bounds = array<i64: 16, 512>}, {pipeline_mode = #tpu.pipeline_mode<synchronous>, transform_indices = @transform_17, window_bounds = array<i64: 1, 512>}, {pipeline_mode = #tpu.pipeline_mode<synchronous>, transform_indices = @transform_18, window_bounds = array<i64: 1, 512>}, {pipeline_mode = #tpu.pipeline_mode<synchronous>, transform_indices = @transform_19, window_bounds = array<i64: 1, 512>}, {pipeline_mode = #tpu.pipeline_mode<synchronous>, transform_indices = @transform_20, window_bounds = array<i64: 1, 512>}, {transform_indices = @transform_21, window_bounds = array<i64: 1, 1, 512>}, {transform_indices = @transform_22, window_bounds = array<i64: 64, 512>}, {transform_indices = @transform_23, window_bounds = array<i64: 16, 16>}]} {
    %c0 = arith.constant 0 : index
    %c0_0 = arith.constant 0 : index
    %0 = vector.load %arg1[%c0, %c0_0] : memref<64x32xf32, #tpu.memory_space<vmem>>, vector<64x32xf32>
    %c0_1 = arith.constant 0 : index
    %c0_2 = arith.constant 0 : index
    %1 = vector.load %arg2[%c0_1, %c0_2] : memref<16x32xf32, #tpu.memory_space<vmem>>, vector<16x32xf32>
    %c0_3 = arith.constant 0 : index
    %c0_4 = arith.constant 0 : index
    %2 = vector.load %arg3[%c0_3, %c0_4] : memref<1x512xf32, #tpu.memory_space<vmem>>, vector<1x512xf32>
    %c0_5 = arith.constant 0 : index
    %c0_6 = arith.constant 0 : index
    %3 = vector.load %arg4[%c0_5, %c0_6] : memref<64x512xf32, #tpu.memory_space<vmem>>, vector<64x512xf32>
    %c0_7 = arith.constant 0 : index
    %c0_8 = arith.constant 0 : index
    %c0_9 = arith.constant 0 : index
    %4 = vector.load %arg5[%c0_7, %c0_8, %c0_9] : memref<1x64x16xf32, #tpu.memory_space<vmem>>, vector<1x64x16xf32>
    %5 = vector.shape_cast %4 : vector<1x64x16xf32> to vector<64x16xf32>
    %c0_10 = arith.constant 0 : index
    %c0_11 = arith.constant 0 : index
    %6 = vector.load %arg6[%c0_10, %c0_11] : memref<32x96xf32, #tpu.memory_space<vmem>>, vector<32x96xf32>
    %cst = arith.constant dense<0.000000e+00> : vector<64x96xf32>
    %7 = tpu.matmul %0, %6, %cst {dimension_numbers = #tpu.dot_dimension_numbers<[1], [0], [0], [1], [0, 0, 1, 1], [], []>} : vector<64x32xf32>, vector<32x96xf32>, vector<64x96xf32> -> vector<64x96xf32>
    %c0_12 = arith.constant 0 : index
    %c0_13 = arith.constant 0 : index
    %8 = vector.load %arg7[%c0_12, %c0_13] : memref<1x96xf32, #tpu.memory_space<vmem>>, vector<1x96xf32>
    %9 = vector.broadcast %8 : vector<1x96xf32> to vector<64x96xf32>
    %10 = arith.addf %7, %9 : vector<64x96xf32>
    %11 = vector.extract_strided_slice %10 {offsets = [0, 0], sizes = [64, 32], strides = [1, 1]} : vector<64x96xf32> to vector<64x32xf32>
    %12 = vector.extract_strided_slice %10 {offsets = [0, 32], sizes = [64, 32], strides = [1, 1]} : vector<64x96xf32> to vector<64x32xf32>
    %13 = vector.extract_strided_slice %10 {offsets = [0, 64], sizes = [64, 32], strides = [1, 1]} : vector<64x96xf32> to vector<64x32xf32>
    %cst_14 = arith.constant 0.000000e+00 : f32
    %14 = vector.broadcast %cst_14 : f32 to vector<64x32xf32>
    %15 = arith.maximumf %13, %14 : vector<64x32xf32>
    %c0_15 = arith.constant 0 : index
    %c0_16 = arith.constant 0 : index
    %16 = vector.load %arg8[%c0_15, %c0_16] : memref<32x16xf32, #tpu.memory_space<vmem>>, vector<32x16xf32>
    %cst_17 = arith.constant dense<0.000000e+00> : vector<64x16xf32>
    %17 = tpu.matmul %15, %16, %cst_17 {dimension_numbers = #tpu.dot_dimension_numbers<[1], [0], [0], [1], [0, 0, 1, 1], [], []>} : vector<64x32xf32>, vector<32x16xf32>, vector<64x16xf32> -> vector<64x16xf32>
    %c0_18 = arith.constant 0 : index
    %c0_19 = arith.constant 0 : index
    %18 = vector.load %arg9[%c0_18, %c0_19] : memref<1x16xf32, #tpu.memory_space<vmem>>, vector<1x16xf32>
    %19 = vector.broadcast %18 : vector<1x16xf32> to vector<64x16xf32>
    %20 = arith.addf %17, %19 : vector<64x16xf32>
    %cst_20 = arith.constant dense<0xFF800000> : vector<64xf32>
    %21 = vector.multi_reduction <maximumf>, %20, %cst_20 [1] : vector<64x16xf32> to vector<64xf32>
    %22 = vector.shape_cast %21 : vector<64xf32> to vector<64x1xf32>
    %23 = vector.broadcast %22 : vector<64x1xf32> to vector<64x16xf32>
    %24 = arith.subf %20, %23 : vector<64x16xf32>
    %25 = math.exp %24 : vector<64x16xf32>
    %cst_21 = arith.constant dense<0.000000e+00> : vector<64xf32>
    %26 = vector.multi_reduction <add>, %25, %cst_21 [1] : vector<64x16xf32> to vector<64xf32>
    %27 = vector.shape_cast %26 : vector<64xf32> to vector<64x1xf32>
    %28 = tpu.reciprocal %27 {approx = true} : vector<64x1xf32> -> vector<64x1xf32>
    %29 = vector.broadcast %28 : vector<64x1xf32> to vector<64x16xf32>
    %30 = arith.mulf %25, %29 : vector<64x16xf32>
    %c0_22 = arith.constant 0 : index
    %c0_23 = arith.constant 0 : index
    %31 = vector.load %arg6[%c0_22, %c0_23] : memref<32x96xf32, #tpu.memory_space<vmem>>, vector<32x96xf32>
    %cst_24 = arith.constant dense<0.000000e+00> : vector<16x96xf32>
    %32 = tpu.matmul %1, %31, %cst_24 {dimension_numbers = #tpu.dot_dimension_numbers<[1], [0], [0], [1], [0, 0, 1, 1], [], []>} : vector<16x32xf32>, vector<32x96xf32>, vector<16x96xf32> -> vector<16x96xf32>
    %c0_25 = arith.constant 0 : index
    %c0_26 = arith.constant 0 : index
    %33 = vector.load %arg7[%c0_25, %c0_26] : memref<1x96xf32, #tpu.memory_space<vmem>>, vector<1x96xf32>
    %34 = vector.broadcast %33 : vector<1x96xf32> to vector<16x96xf32>
    %35 = arith.addf %32, %34 : vector<16x96xf32>
    %36 = vector.extract_strided_slice %35 {offsets = [0, 64], sizes = [16, 32], strides = [1, 1]} : vector<16x96xf32> to vector<16x32xf32>
    %cst_27 = arith.constant 0.000000e+00 : f32
    %37 = vector.broadcast %cst_27 : f32 to vector<16x32xf32>
    %38 = arith.maximumf %36, %37 : vector<16x32xf32>
    %c0_28 = arith.constant 0 : index
    %c0_29 = arith.constant 0 : index
    %39 = vector.load %arg8[%c0_28, %c0_29] : memref<32x16xf32, #tpu.memory_space<vmem>>, vector<32x16xf32>
    %cst_30 = arith.constant dense<0.000000e+00> : vector<16x16xf32>
    %40 = tpu.matmul %38, %39, %cst_30 {dimension_numbers = #tpu.dot_dimension_numbers<[1], [0], [0], [1], [0, 0, 1, 1], [], []>} : vector<16x32xf32>, vector<32x16xf32>, vector<16x16xf32> -> vector<16x16xf32>
    %c0_31 = arith.constant 0 : index
    %c0_32 = arith.constant 0 : index
    %41 = vector.load %arg9[%c0_31, %c0_32] : memref<1x16xf32, #tpu.memory_space<vmem>>, vector<1x16xf32>
    %42 = vector.broadcast %41 : vector<1x16xf32> to vector<16x16xf32>
    %43 = arith.addf %40, %42 : vector<16x16xf32>
    %cst_33 = arith.constant dense<0xFF800000> : vector<16xf32>
    %44 = vector.multi_reduction <maximumf>, %43, %cst_33 [1] : vector<16x16xf32> to vector<16xf32>
    %45 = vector.shape_cast %44 : vector<16xf32> to vector<16x1xf32>
    %46 = vector.broadcast %45 : vector<16x1xf32> to vector<16x16xf32>
    %47 = arith.subf %43, %46 : vector<16x16xf32>
    %48 = math.exp %47 : vector<16x16xf32>
    %cst_34 = arith.constant dense<0.000000e+00> : vector<16xf32>
    %49 = vector.multi_reduction <add>, %48, %cst_34 [1] : vector<16x16xf32> to vector<16xf32>
    %50 = vector.shape_cast %49 : vector<16xf32> to vector<16x1xf32>
    %51 = tpu.reciprocal %50 {approx = true} : vector<16x1xf32> -> vector<16x1xf32>
    %52 = vector.broadcast %51 : vector<16x1xf32> to vector<16x16xf32>
    %53 = arith.mulf %48, %52 : vector<16x16xf32>
    %c0_35 = arith.constant 0 : index
    %c0_36 = arith.constant 0 : index
    %54 = vector.load %arg24[%c0_35, %c0_36] : memref<16x16xf32, #tpu.memory_space<vmem>>, vector<16x16xf32>
    tpu.vector_store %arg24[%c0_35, %c0_36], %53 {strides = array<i32>} : memref<16x16xf32, #tpu.memory_space<vmem>>, vector<16x16xf32>,
    %c0_37 = arith.constant 0 : index
    %c0_38 = arith.constant 0 : index
    %55 = vector.load %arg12[%c0_37, %c0_38] : memref<512x1024xf32, #tpu.memory_space<vmem>>, vector<512x1024xf32>
    %cst_39 = arith.constant dense<0.000000e+00> : vector<1x1024xf32>
    %56 = tpu.matmul %2, %55, %cst_39 {dimension_numbers = #tpu.dot_dimension_numbers<[1], [0], [0], [1], [0, 0, 1, 1], [], []>} : vector<1x512xf32>, vector<512x1024xf32>, vector<1x1024xf32> -> vector<1x1024xf32>
    %c0_40 = arith.constant 0 : index
    %c0_41 = arith.constant 0 : index
    %57 = vector.load %arg13[%c0_40, %c0_41] : memref<1x1024xf32, #tpu.memory_space<vmem>>, vector<1x1024xf32>
    %58 = arith.addf %56, %57 : vector<1x1024xf32>
    %59 = vector.extract_strided_slice %58 {offsets = [0, 0], sizes = [1, 512], strides = [1, 1]} : vector<1x1024xf32> to vector<1x512xf32>
    %60 = vector.extract_strided_slice %58 {offsets = [0, 512], sizes = [1, 512], strides = [1, 1]} : vector<1x1024xf32> to vector<1x512xf32>
    %c0_42 = arith.constant 0 : index
    %c0_43 = arith.constant 0 : index
    %61 = vector.load %arg14[%c0_42, %c0_43] : memref<512x512xf32, #tpu.memory_space<vmem>>, vector<512x512xf32>
    %cst_44 = arith.constant dense<0.000000e+00> : vector<64x512xf32>
    %62 = tpu.matmul %3, %61, %cst_44 {dimension_numbers = #tpu.dot_dimension_numbers<[1], [0], [0], [1], [0, 0, 1, 1], [], []>} : vector<64x512xf32>, vector<512x512xf32>, vector<64x512xf32> -> vector<64x512xf32>
    %c0_45 = arith.constant 0 : index
    %c0_46 = arith.constant 0 : index
    %63 = vector.load %arg15[%c0_45, %c0_46] : memref<1x512xf32, #tpu.memory_space<vmem>>, vector<1x512xf32>
    %64 = vector.broadcast %63 : vector<1x512xf32> to vector<64x512xf32>
    %65 = arith.addf %62, %64 : vector<64x512xf32>
    %c0_47 = arith.constant 0 : index
    %c0_48 = arith.constant 0 : index
    %66 = vector.load %arg16[%c0_47, %c0_48] : memref<32x512xf32, #tpu.memory_space<vmem>>, vector<32x512xf32>
    %cst_49 = arith.constant dense<0.000000e+00> : vector<64x512xf32>
    %67 = tpu.matmul %12, %66, %cst_49 {dimension_numbers = #tpu.dot_dimension_numbers<[1], [0], [0], [1], [0, 0, 1, 1], [], []>} : vector<64x32xf32>, vector<32x512xf32>, vector<64x512xf32> -> vector<64x512xf32>
    %68 = arith.addf %65, %67 : vector<64x512xf32>
    %69 = vector.broadcast %60 : vector<1x512xf32> to vector<64x512xf32>
    %70 = arith.addf %68, %69 : vector<64x512xf32>
    %cst_50 = arith.constant 0.000000e+00 : f32
    %71 = vector.broadcast %cst_50 : f32 to vector<64x512xf32>
    %72 = arith.subf %71, %70 : vector<64x512xf32>
    %73 = math.exp %72 : vector<64x512xf32>
    %cst_51 = arith.constant 1.000000e+00 : f32
    %74 = vector.broadcast %cst_51 : f32 to vector<64x512xf32>
    %75 = arith.addf %74, %73 : vector<64x512xf32>
    %76 = tpu.reciprocal %75 {approx = true} : vector<64x512xf32> -> vector<64x512xf32>
    %c0_52 = arith.constant 0 : index
    %c0_53 = arith.constant 0 : index
    %77 = vector.load %arg10[%c0_52, %c0_53] : memref<16x16xf32, #tpu.memory_space<vmem>>, vector<16x16xf32>
    %cst_54 = arith.constant dense<0.000000e+00> : vector<64x16xf32>
    %78 = tpu.matmul %30, %77, %cst_54 {dimension_numbers = #tpu.dot_dimension_numbers<[1], [0], [0], [1], [0, 0, 1, 1], [], []>} : vector<64x16xf32>, vector<16x16xf32>, vector<64x16xf32> -> vector<64x16xf32>
    %c0_55 = arith.constant 0 : index
    %c0_56 = arith.constant 0 : index
    %79 = vector.load %arg11[%c0_55, %c0_56] : memref<1x16xf32, #tpu.memory_space<vmem>>, vector<1x16xf32>
    %80 = vector.broadcast %79 : vector<1x16xf32> to vector<64x16xf32>
    %81 = arith.addf %78, %80 : vector<64x16xf32>
    %c0_57 = arith.constant 0 : index
    %c0_58 = arith.constant 0 : index
    %82 = vector.load %arg10[%c0_57, %c0_58] : memref<16x16xf32, #tpu.memory_space<vmem>>, vector<16x16xf32>
    %cst_59 = arith.constant dense<0.000000e+00> : vector<16x16xf32>
    %83 = tpu.matmul %53, %82, %cst_59 {dimension_numbers = #tpu.dot_dimension_numbers<[1], [0], [0], [1], [0, 0, 1, 1], [], []>} : vector<16x16xf32>, vector<16x16xf32>, vector<16x16xf32> -> vector<16x16xf32>
    %84 = tpu.transpose %83, [1, 0] : vector<16x16xf32> -> vector<16x16xf32>
    %cst_60 = arith.constant dense<0.000000e+00> : vector<64x16xf32>
    %85 = tpu.matmul %81, %84, %cst_60 {dimension_numbers = #tpu.dot_dimension_numbers<[1], [0], [0], [1], [0, 0, 1, 1], [], []>} : vector<64x16xf32>, vector<16x16xf32>, vector<64x16xf32> -> vector<64x16xf32>
    %86 = arith.mulf %81, %81 : vector<64x16xf32>
    %cst_61 = arith.constant dense<0.000000e+00> : vector<64xf32>
    %87 = vector.multi_reduction <add>, %86, %cst_61 [1] : vector<64x16xf32> to vector<64xf32>
    %88 = vector.shape_cast %87 : vector<64xf32> to vector<64x1xf32>
    %89 = arith.mulf %84, %84 : vector<16x16xf32>
    %cst_62 = arith.constant dense<0.000000e+00> : vector<16xf32>
    %90 = vector.multi_reduction <add>, %89, %cst_62 [0] : vector<16x16xf32> to vector<16xf32>
    %91 = vector.shape_cast %90 : vector<16xf32> to vector<1x16xf32>
    %92 = vector.broadcast %88 : vector<64x1xf32> to vector<64x16xf32>
    %93 = vector.broadcast %91 : vector<1x16xf32> to vector<64x16xf32>
    %94 = arith.addf %92, %93 : vector<64x16xf32>
    %cst_63 = arith.constant 2.000000e+00 : f32
    %95 = vector.broadcast %cst_63 : f32 to vector<64x16xf32>
    %96 = arith.mulf %95, %85 : vector<64x16xf32>
    %97 = arith.subf %94, %96 : vector<64x16xf32>
    %cst_64 = arith.constant 0.000000e+00 : f32
    %98 = vector.broadcast %cst_64 : f32 to vector<64x16xf32>
    %99 = arith.maximumf %97, %98 : vector<64x16xf32>
    %100 = math.sqrt %99 : vector<64x16xf32>
    %cst_65 = arith.constant 0.000000e+00 : f32
    %101 = vector.broadcast %cst_65 : f32 to vector<64x16xf32>
    %102 = arith.subf %101, %100 : vector<64x16xf32>
    %cst_66 = arith.constant 5.000000e-01 : f32
    %103 = vector.broadcast %cst_66 : f32 to vector<64x16xf32>
    %104 = arith.mulf %102, %103 : vector<64x16xf32>
    %105 = math.exp %104 : vector<64x16xf32>
    %cst_67 = arith.constant 0.000000e+00 : f32
    %106 = vector.broadcast %cst_67 : f32 to vector<64x16xf32>
    %107 = arith.subf %106, %105 : vector<64x16xf32>
    %108 = math.exp %107 : vector<64x16xf32>
    %cst_68 = arith.constant 1.000000e+00 : f32
    %109 = vector.broadcast %cst_68 : f32 to vector<64x16xf32>
    %110 = arith.addf %109, %108 : vector<64x16xf32>
    %111 = tpu.reciprocal %110 {approx = true} : vector<64x16xf32> -> vector<64x16xf32>
    %c0_69 = arith.constant 0 : index
    %c0_70 = arith.constant 0 : index
    %112 = vector.load %arg17[%c0_69, %c0_70] : memref<16x512xf32, #tpu.memory_space<vmem>>, vector<16x512xf32>
    %cst_71 = arith.constant dense<0.000000e+00> : vector<64x512xf32>
    %113 = tpu.matmul %5, %112, %cst_71 {dimension_numbers = #tpu.dot_dimension_numbers<[1], [0], [0], [1], [0, 0, 1, 1], [], []>} : vector<64x16xf32>, vector<16x512xf32>, vector<64x512xf32> -> vector<64x512xf32>
    %c0_72 = arith.constant 0 : index
    %c0_73 = arith.constant 0 : index
    %114 = vector.load %arg17[%c0_72, %c0_73] : memref<16x512xf32, #tpu.memory_space<vmem>>, vector<16x512xf32>
    %cst_74 = arith.constant dense<0.000000e+00> : vector<64x512xf32>
    %115 = tpu.matmul %111, %114, %cst_74 {dimension_numbers = #tpu.dot_dimension_numbers<[1], [0], [0], [1], [0, 0, 1, 1], [], []>} : vector<64x16xf32>, vector<16x512xf32>, vector<64x512xf32> -> vector<64x512xf32>
    %c0_75 = arith.constant 0 : index
    %c0_76 = arith.constant 0 : index
    %116 = vector.load %arg16[%c0_75, %c0_76] : memref<32x512xf32, #tpu.memory_space<vmem>>, vector<32x512xf32>
    %cst_77 = arith.constant dense<0.000000e+00> : vector<64x512xf32>
    %117 = tpu.matmul %11, %116, %cst_77 {dimension_numbers = #tpu.dot_dimension_numbers<[1], [0], [0], [1], [0, 0, 1, 1], [], []>} : vector<64x32xf32>, vector<32x512xf32>, vector<64x512xf32> -> vector<64x512xf32>
    %118 = arith.mulf %113, %76 : vector<64x512xf32>
    %cst_78 = arith.constant dense<0.000000e+00> : vector<512xf32>
    %119 = vector.multi_reduction <add>, %118, %cst_78 [0] : vector<64x512xf32> to vector<512xf32>
    %120 = vector.shape_cast %119 : vector<512xf32> to vector<1x512xf32>
    %121 = arith.mulf %118, %115 : vector<64x512xf32>
    %122 = arith.mulf %121, %117 : vector<64x512xf32>
    %cst_79 = arith.constant dense<0.000000e+00> : vector<512xf32>
    %123 = vector.multi_reduction <add>, %122, %cst_79 [0] : vector<64x512xf32> to vector<512xf32>
    %124 = vector.shape_cast %123 : vector<512xf32> to vector<1x512xf32>
    %125 = arith.mulf %5, %111 : vector<64x16xf32>
    %cst_80 = arith.constant dense<0.000000e+00> : vector<16xf32>
    %126 = vector.multi_reduction <add>, %125, %cst_80 [0] : vector<64x16xf32> to vector<16xf32>
    %127 = vector.shape_cast %126 : vector<16xf32> to vector<1x16xf32>
    %c0_81 = arith.constant 0 : index
    %c0_82 = arith.constant 0 : index
    %128 = vector.load %arg17[%c0_81, %c0_82] : memref<16x512xf32, #tpu.memory_space<vmem>>, vector<16x512xf32>
    %cst_83 = arith.constant dense<0.000000e+00> : vector<1x512xf32>
    %129 = tpu.matmul %127, %128, %cst_83 {dimension_numbers = #tpu.dot_dimension_numbers<[1], [0], [0], [1], [0, 0, 1, 1], [], []>} : vector<1x16xf32>, vector<16x512xf32>, vector<1x512xf32> -> vector<1x512xf32>
    %cst_84 = arith.constant 9.99999997E-7 : f32
    %130 = vector.broadcast %cst_84 : f32 to vector<1x512xf32>
    %131 = arith.addf %120, %130 : vector<1x512xf32>
    %cst_85 = arith.constant 9.99999997E-7 : f32
    %132 = vector.broadcast %cst_85 : f32 to vector<1x512xf32>
    %133 = arith.addf %129, %132 : vector<1x512xf32>
    %134 = arith.mulf %131, %133 : vector<1x512xf32>
    %135 = tpu.reciprocal %134 {approx = true} : vector<1x512xf32> -> vector<1x512xf32>
    %136 = arith.mulf %124, %135 : vector<1x512xf32>
    %137 = arith.addf %59, %136 : vector<1x512xf32>
    %c0_86 = arith.constant 0 : index
    %c0_87 = arith.constant 0 : index
    %138 = vector.load %arg18[%c0_86, %c0_87] : memref<1x512xf32, #tpu.memory_space<vmem>>, vector<1x512xf32>
    %139 = arith.mulf %137, %138 : vector<1x512xf32>
    %c0_88 = arith.constant 0 : index
    %c0_89 = arith.constant 0 : index
    %140 = vector.load %arg19[%c0_88, %c0_89] : memref<1x512xf32, #tpu.memory_space<vmem>>, vector<1x512xf32>
    %141 = arith.addf %139, %140 : vector<1x512xf32>
    %cst_90 = arith.constant 0.000000e+00 : f32
    %142 = vector.broadcast %cst_90 : f32 to vector<1x512xf32>
    %143 = arith.maximumf %141, %142 : vector<1x512xf32>
    %c0_91 = arith.constant 0 : index
    %c0_92 = arith.constant 0 : index
    %c0_93 = arith.constant 0 : index
    %144 = vector.load %arg22[%c0_91, %c0_92, %c0_93] : memref<1x1x512xf32, #tpu.memory_space<vmem>>, vector<1x1x512xf32>
    %145 = vector.shape_cast %144 : vector<1x1x512xf32> to vector<1x512xf32>
    %146 = vector.shape_cast %143 : vector<1x512xf32> to vector<1x1x512xf32>
    tpu.vector_store %arg22[%c0_91, %c0_92, %c0_93], %146 {strides = array<i32>} : memref<1x1x512xf32, #tpu.memory_space<vmem>>, vector<1x1x512xf32>,
    %c0_94 = arith.constant 0 : index
    %c0_95 = arith.constant 0 : index
    %147 = vector.load %arg20[%c0_94, %c0_95] : memref<1x512xf32, #tpu.memory_space<vmem>>, vector<1x512xf32>
    %148 = vector.broadcast %147 : vector<1x512xf32> to vector<64x512xf32>
    %149 = arith.mulf %70, %148 : vector<64x512xf32>
    %c0_96 = arith.constant 0 : index
    %c0_97 = arith.constant 0 : index
    %150 = vector.load %arg21[%c0_96, %c0_97] : memref<1x512xf32, #tpu.memory_space<vmem>>, vector<1x512xf32>
    %151 = vector.broadcast %150 : vector<1x512xf32> to vector<64x512xf32>
    %152 = arith.addf %149, %151 : vector<64x512xf32>
    %cst_98 = arith.constant 0.000000e+00 : f32
    %153 = vector.broadcast %cst_98 : f32 to vector<64x512xf32>
    %154 = arith.maximumf %152, %153 : vector<64x512xf32>
    %c0_99 = arith.constant 0 : index
    %c0_100 = arith.constant 0 : index
    %155 = vector.load %arg23[%c0_99, %c0_100] : memref<64x512xf32, #tpu.memory_space<vmem>>, vector<64x512xf32>
    tpu.vector_store %arg23[%c0_99, %c0_100], %154 {strides = array<i32>} : memref<64x512xf32, #tpu.memory_space<vmem>>, vector<64x512xf32>,
    return
  }
  func.func @transform_0(%arg0: i32) -> (i32, i32) {
    %c0_i32 = arith.constant 0 : i32
    %c0_i32_0 = arith.constant 0 : i32
    %c0_i32_1 = arith.constant 0 : i32
    return %c0_i32, %c0_i32_0 : i32, i32
  }
  func.func @transform_1(%arg0: i32) -> (i32, i32) {
    %c0_i32 = arith.constant 0 : i32
    %c0_i32_0 = arith.constant 0 : i32
    return %arg0, %c0_i32 : i32, i32
  }
  func.func @transform_2(%arg0: i32) -> (i32, i32) {
    %c0_i32 = arith.constant 0 : i32
    %c0_i32_0 = arith.constant 0 : i32
    return %c0_i32, %arg0 : i32, i32
  }
  func.func @transform_3(%arg0: i32) -> (i32, i32) {
    %c0_i32 = arith.constant 0 : i32
    %c0_i32_0 = arith.constant 0 : i32
    return %c0_i32, %arg0 : i32, i32
  }
  func.func @transform_4(%arg0: i32) -> (i32, i32, i32) {
    %c0_i32 = arith.constant 0 : i32
    %c0_i32_0 = arith.constant 0 : i32
    %c0_i32_1 = arith.constant 0 : i32
    return %arg0, %c0_i32, %c0_i32_0 : i32, i32, i32
  }
  func.func @transform_5(%arg0: i32) -> (i32, i32) {
    %c0_i32 = arith.constant 0 : i32
    %c0_i32_0 = arith.constant 0 : i32
    %c0_i32_1 = arith.constant 0 : i32
    return %c0_i32, %c0_i32_0 : i32, i32
  }
  func.func @transform_6(%arg0: i32) -> (i32, i32) {
    %c0_i32 = arith.constant 0 : i32
    %c0_i32_0 = arith.constant 0 : i32
    %c0_i32_1 = arith.constant 0 : i32
    return %c0_i32, %c0_i32_0 : i32, i32
  }
  func.func @transform_7(%arg0: i32) -> (i32, i32) {
    %c0_i32 = arith.constant 0 : i32
    %c0_i32_0 = arith.constant 0 : i32
    %c0_i32_1 = arith.constant 0 : i32
    return %c0_i32, %c0_i32_0 : i32, i32
  }
  func.func @transform_8(%arg0: i32) -> (i32, i32) {
    %c0_i32 = arith.constant 0 : i32
    %c0_i32_0 = arith.constant 0 : i32
    %c0_i32_1 = arith.constant 0 : i32
    return %c0_i32, %c0_i32_0 : i32, i32
  }
  func.func @transform_9(%arg0: i32) -> (i32, i32) {
    %c0_i32 = arith.constant 0 : i32
    %c0_i32_0 = arith.constant 0 : i32
    %c0_i32_1 = arith.constant 0 : i32
    return %c0_i32, %c0_i32_0 : i32, i32
  }
  func.func @transform_10(%arg0: i32) -> (i32, i32) {
    %c0_i32 = arith.constant 0 : i32
    %c0_i32_0 = arith.constant 0 : i32
    %c0_i32_1 = arith.constant 0 : i32
    return %c0_i32, %c0_i32_0 : i32, i32
  }
  func.func @transform_11(%arg0: i32) -> (i32, i32) {
    %c0_i32 = arith.constant 0 : i32
    %c0_i32_0 = arith.constant 0 : i32
    %c0_i32_1 = arith.constant 0 : i32
    return %c0_i32, %c0_i32_0 : i32, i32
  }
  func.func @transform_12(%arg0: i32) -> (i32, i32) {
    %c0_i32 = arith.constant 0 : i32
    %c0_i32_0 = arith.constant 0 : i32
    %c0_i32_1 = arith.constant 0 : i32
    return %c0_i32, %c0_i32_0 : i32, i32
  }
  func.func @transform_13(%arg0: i32) -> (i32, i32) {
    %c0_i32 = arith.constant 0 : i32
    %c0_i32_0 = arith.constant 0 : i32
    %c0_i32_1 = arith.constant 0 : i32
    return %c0_i32, %c0_i32_0 : i32, i32
  }
  func.func @transform_14(%arg0: i32) -> (i32, i32) {
    %c0_i32 = arith.constant 0 : i32
    %c0_i32_0 = arith.constant 0 : i32
    %c0_i32_1 = arith.constant 0 : i32
    return %c0_i32, %c0_i32_0 : i32, i32
  }
  func.func @transform_15(%arg0: i32) -> (i32, i32) {
    %c0_i32 = arith.constant 0 : i32
    %c0_i32_0 = arith.constant 0 : i32
    %c0_i32_1 = arith.constant 0 : i32
    return %c0_i32, %c0_i32_0 : i32, i32
  }
  func.func @transform_16(%arg0: i32) -> (i32, i32) {
    %c0_i32 = arith.constant 0 : i32
    %c0_i32_0 = arith.constant 0 : i32
    %c0_i32_1 = arith.constant 0 : i32
    return %c0_i32, %c0_i32_0 : i32, i32
  }
  func.func @transform_17(%arg0: i32) -> (i32, i32) {
    %c0_i32 = arith.constant 0 : i32
    %c0_i32_0 = arith.constant 0 : i32
    %c0_i32_1 = arith.constant 0 : i32
    return %c0_i32, %c0_i32_0 : i32, i32
  }
  func.func @transform_18(%arg0: i32) -> (i32, i32) {
    %c0_i32 = arith.constant 0 : i32
    %c0_i32_0 = arith.constant 0 : i32
    %c0_i32_1 = arith.constant 0 : i32
    return %c0_i32, %c0_i32_0 : i32, i32
  }
  func.func @transform_19(%arg0: i32) -> (i32, i32) {
    %c0_i32 = arith.constant 0 : i32
    %c0_i32_0 = arith.constant 0 : i32
    %c0_i32_1 = arith.constant 0 : i32
    return %c0_i32, %c0_i32_0 : i32, i32
  }
  func.func @transform_20(%arg0: i32) -> (i32, i32) {
    %c0_i32 = arith.constant 0 : i32
    %c0_i32_0 = arith.constant 0 : i32
    %c0_i32_1 = arith.constant 0 : i32
    return %c0_i32, %c0_i32_0 : i32, i32
  }
  func.func @transform_21(%arg0: i32) -> (i32, i32, i32) {
    %c0_i32 = arith.constant 0 : i32
    %c0_i32_0 = arith.constant 0 : i32
    %c0_i32_1 = arith.constant 0 : i32
    return %arg0, %c0_i32, %c0_i32_0 : i32, i32, i32
  }
  func.func @transform_22(%arg0: i32) -> (i32, i32) {
    %c0_i32 = arith.constant 0 : i32
    %c0_i32_0 = arith.constant 0 : i32
    return %c0_i32, %arg0 : i32, i32
  }
  func.func @transform_23(%arg0: i32) -> (i32, i32) {
    %c0_i32 = arith.constant 0 : i32
    %c0_i32_0 = arith.constant 0 : i32
    return %arg0, %c0_i32 : i32, i32
  }
}

</mosaic_0001>

<llo_original>
// kernel: tpu_custom_call.1
$region0: #{tpu_custom_call.1}
  #allocation0 [shape = 'u32[]', space=smem, size = 0x4, offset = 0x4, fixed_abs, tag = 'smem constant byte address 0x4 - core index']
  #allocation1 [shape = 'u32[144,128]{1,0:T(1,128)}', space=vmem, size = 0x12000, scoped, tag = 'internal scratch']
  %s0 = inlined_call_operand.vmem [shape: f32[64,32], index: 0, kind: input, shape index: {}]
  %s1 = inlined_call_operand.vmem [shape: f32[64,32], index: 1, kind: input, shape index: {}]
  %s2 = inlined_call_operand.hbm [shape: f32[1,2048], index: 2, kind: input, shape index: {}]
  %s3 = inlined_call_operand.hbm [shape: f32[64,2048], index: 3, kind: input, shape index: {}]
  %s4 = inlined_call_operand.vmem [shape: f32[4,64,16], index: 4, kind: input, shape index: {}]
  %s5 = inlined_call_operand.hbm [shape: f32[32,96], index: 5, kind: input, shape index: {}]
  %s6 = inlined_call_operand.hbm [shape: f32[1,96], index: 6, kind: input, shape index: {}]
  %s7 = inlined_call_operand.vmem [shape: f32[32,16], index: 7, kind: input, shape index: {}]
  %s8 = inlined_call_operand.hbm [shape: f32[1,16], index: 8, kind: input, shape index: {}]
  %s9 = inlined_call_operand.hbm [shape: f32[16,16], index: 9, kind: input, shape index: {}]
  %s10 = inlined_call_operand.hbm [shape: f32[1,16], index: 10, kind: input, shape index: {}]
  %s11 = inlined_call_operand.hbm [shape: f32[512,1024], index: 11, kind: input, shape index: {}]
  %s12 = inlined_call_operand.hbm [shape: f32[1,1024], index: 12, kind: input, shape index: {}]
  %s13 = inlined_call_operand.hbm [shape: f32[512,512], index: 13, kind: input, shape index: {}]
  %s14 = inlined_call_operand.hbm [shape: f32[1,512], index: 14, kind: input, shape index: {}]
  %s15 = inlined_call_operand.hbm [shape: f32[32,512], index: 15, kind: input, shape index: {}]
  %s16 = inlined_call_operand.hbm [shape: f32[16,512], index: 16, kind: input, shape index: {}]
  %s17 = inlined_call_operand.hbm [shape: f32[1,512], index: 17, kind: input, shape index: {}]
  %s18 = inlined_call_operand.hbm [shape: f32[1,512], index: 18, kind: input, shape index: {}]
  %s19 = inlined_call_operand.hbm [shape: f32[1,512], index: 19, kind: input, shape index: {}]
  %s20 = inlined_call_operand.hbm [shape: f32[1,512], index: 20, kind: input, shape index: {}]
  %s21 = inlined_call_operand.hbm [shape: f32[4,1,512], index: 21, kind: output, shape index: {0}]
  %s22 = inlined_call_operand.hbm [shape: f32[64,2048], index: 22, kind: output, shape index: {1}]
  %s23 = inlined_call_operand.vmem [shape: f32[64,16], index: 23, kind: output, shape index: {2}]
  %24 = xla_tuple %s21, %s22, %s23
  %s25 = sld [smem:[#allocation0]]
  $region201: #{tpu_custom_call.1} parent=0
    _
  %s27 = ssub.s32 1, %s25
  %s28 = scalar_select 0, %s27, %s25
  $region1: #{tpu_custom_call.1} parent=0
    #allocation2 [shape = 'u8[4096]{0}', space=vmem, size = 0x1000, scoped, tag = 'input window, operand 2']
    #allocation3 [shape = 's32[2]{0}', space=sflag, size = 0x8, scoped, tag = 'scoped memory for tpu_custom_call.1']
    #allocation4 [shape = 's32[2]{0}', space=sflag, size = 0x8, scoped, tag = 'scoped memory for tpu_custom_call.1']
    #allocation5 [shape = 'u8[262144]{0}', space=vmem, size = 0x40000, scoped, tag = 'input window, operand 3']
    #allocation6 [shape = 's32[2]{0}', space=sflag, size = 0x8, scoped, tag = 'scoped memory for tpu_custom_call.1']
    #allocation7 [shape = 'u8[16384]{0}', space=vmem, size = 0x4000, scoped, tag = 'input window, operand 5, single buffered']
    #allocation8 [shape = 'u8[512]{0}', space=vmem, size = 0x400, scoped, tag = 'input window, operand 6, single buffered']
    #allocation9 [shape = 's32[1]{0}', space=sflag, size = 0x4, scoped, tag = 'scoped memory for tpu_custom_call.1']
    #allocation10 [shape = 'u8[512]{0}', space=vmem, size = 0x400, scoped, tag = 'input window, operand 8, single buffered']
    #allocation11 [shape = 'u8[8192]{0}', space=vmem, size = 0x2000, scoped, tag = 'input window, operand 9, single buffered']
    #allocation12 [shape = 's32[1]{0}', space=sflag, size = 0x4, scoped, tag = 'scoped memory for tpu_custom_call.1']
    #allocation13 [shape = 'u8[512]{0}', space=vmem, size = 0x400, scoped, tag = 'input window, operand 10, single buffered']
    #allocation14 [shape = 'u8[2097152]{0}', space=vmem, size = 0x200000, scoped, tag = 'input window, operand 11, single buffered']
    #allocation15 [shape = 's32[1]{0}', space=sflag, size = 0x4, scoped, tag = 'scoped memory for tpu_custom_call.1']
    #allocation16 [shape = 'u8[4096]{0}', space=vmem, size = 0x1000, scoped, tag = 'input window, operand 12, single buffered']
    #allocation17 [shape = 'u8[1048576]{0}', space=vmem, size = 0x100000, scoped, tag = 'input window, operand 13, single buffered']
    #allocation18 [shape = 's32[1]{0}', space=sflag, size = 0x4, scoped, tag = 'scoped memory for tpu_custom_call.1']
    #allocation19 [shape = 'u8[2048]{0}', space=vmem, size = 0x800, scoped, tag = 'input window, operand 14, single buffered']
    #allocation20 [shape = 'u8[65536]{0}', space=vmem, size = 0x10000, scoped, tag = 'input window, operand 15, single buffered']
    #allocation21 [shape = 's32[1]{0}', space=sflag, size = 0x4, scoped, tag = 'scoped memory for tpu_custom_call.1']
    #allocation22 [shape = 'u8[32768]{0}', space=vmem, size = 0x8000, scoped, tag = 'input window, operand 16, single buffered']
    #allocation23 [shape = 'u8[2048]{0}', space=vmem, size = 0x800, scoped, tag = 'input window, operand 17, single buffered']
    #allocation24 [shape = 's32[1]{0}', space=sflag, size = 0x4, scoped, tag = 'scoped memory for tpu_custom_call.1']
    #allocation25 [shape = 'u8[2048]{0}', space=vmem, size = 0x800, scoped, tag = 'input window, operand 18, single buffered']
    #allocation26 [shape = 'u8[2048]{0}', space=vmem, size = 0x800, scoped, tag = 'input window, operand 19, single buffered']
    #allocation27 [shape = 's32[1]{0}', space=sflag, size = 0x4, scoped, tag = 'scoped memory for tpu_custom_call.1']
    #allocation28 [shape = 'u8[2048]{0}', space=vmem, size = 0x800, scoped, tag = 'input window, operand 20, single buffered']
    #allocation29 [shape = 'u8[4096]{0}', space=vmem, size = 0x1000, scoped, tag = 'output window, operand 0']
    #allocation30 [shape = 'u8[262144]{0}', space=vmem, size = 0x40000, scoped, tag = 'output window, operand 1']
    #allocation31 [shape = 's32[2]{0}', space=sflag, size = 0x8, scoped, tag = 'scoped memory for tpu_custom_call.1']
    %29 = vsyncpa [#allocation3], 0
    %s30 = scalar_lea.sflag [#allocation3], 1
    %31 = vsyncpa %s30, 0
    %32 = vsyncpa [#allocation6], 0
    %s33 = scalar_lea.sflag [#allocation6], 1
    %34 = vsyncpa %s33, 0
    %35 = vsyncpa [#allocation9], 0
    %36 = vsyncpa [#allocation12], 0
    %37 = vsyncpa [#allocation15], 0
    %38 = vsyncpa [#allocation18], 0
    %39 = vsyncpa [#allocation21], 0
    %40 = vsyncpa [#allocation24], 0
    %41 = vsyncpa [#allocation27], 0
    %42 = vsyncpa [#allocation4], 0
    %s43 = scalar_lea.sflag [#allocation4], 1
    %44 = vsyncpa %s43, 0
    %45 = vsyncpa [#allocation31], 0
    %s46 = scalar_lea.sflag [#allocation31], 1
    %47 = vsyncpa %s46, 0
    loop: start=0, step=1, limit=6
    $region2: #{tpu_custom_call.1} parent=1 // loop_pre_header
      _
    $region3: #{tpu_custom_call.1} parent=1 // loop_header
      %s49 = sphi 0, %s53
      %p50 = scmp.ge.s32.totalorder %s49, 6
      %s57 = sphi 0, %s57
      %s59 = sphi 0, %s57
      %s60 = sphi 0, %s59
      %s74 = sphi 0, %s60
      %s80 = sphi 0, %s82
      %s83 = sphi 0, %s80
      %s84 = sphi 0, %s83
      %s100 = sphi 0, %s84
      %s106 = sphi 0, %s108
      %s109 = sphi 0, %s106
      %s110 = sphi 0, %s109
      %s126 = sphi 0, %s110
      %s132 = sphi 0, %s134
      %s135 = sphi 0, %s132
      %s136 = sphi 0, %s135
      %s152 = sphi 0, %s136
      %s158 = sphi 0, %s160
      %s161 = sphi 0, %s158
      %s162 = sphi 0, %s161
      %s178 = sphi 0, %s162
      %s182 = sphi 0, %s182
      %s184 = sphi 0, %s182
      %s185 = sphi 0, %s184
      %s199 = sphi 0, %s185
      %s203 = sphi 0, %s203
      %s205 = sphi 0, %s203
      %s206 = sphi 0, %s205
      %s220 = sphi 0, %s206
      %s224 = sphi 0, %s224
      %s226 = sphi 0, %s224
      %s227 = sphi 0, %s226
      %s241 = sphi 0, %s227
      %s245 = sphi 0, %s245
      %s247 = sphi 0, %s245
      %s248 = sphi 0, %s247
      %s262 = sphi 0, %s248
      %s266 = sphi 0, %s266
      %s268 = sphi 0, %s266
      %s269 = sphi 0, %s268
      %s283 = sphi 0, %s269
      %s287 = sphi 0, %s287
      %s289 = sphi 0, %s287
      %s290 = sphi 0, %s289
      %s304 = sphi 0, %s290
      %s308 = sphi 0, %s308
      %s310 = sphi 0, %s308
      %s311 = sphi 0, %s310
      %s325 = sphi 0, %s311
      %s329 = sphi 0, %s329
      %s331 = sphi 0, %s329
      %s332 = sphi 0, %s331
      %s346 = sphi 0, %s332
      %s350 = sphi 0, %s350
      %s352 = sphi 0, %s350
      %s353 = sphi 0, %s352
      %s367 = sphi 0, %s353
      %s371 = sphi 0, %s371
      %s373 = sphi 0, %s371
      %s374 = sphi 0, %s373
      %s388 = sphi 0, %s374
      %s392 = sphi 0, %s392
      %s394 = sphi 0, %s392
      %s395 = sphi 0, %s394
      %s409 = sphi 0, %s395
      %s413 = sphi 0, %s413
      %s415 = sphi 0, %s413
      %s416 = sphi 0, %s415
      %s430 = sphi 0, %s416
      %s434 = sphi 0, %s434
      %s436 = sphi 0, %s434
      %s437 = sphi 0, %s436
      %s451 = sphi 0, %s437
      %s455 = sphi 0, %s455
      %s457 = sphi 0, %s455
      %s458 = sphi 0, %s457
      %s472 = sphi 0, %s458
      %s476 = sphi 0, %s476
      %s478 = sphi 0, %s476
      %s479 = sphi 0, %s478
      %s493 = sphi 0, %s479
      %s497 = sphi 0, %s497
      %s499 = sphi 0, %s497
      %s500 = sphi 0, %s499
      %s514 = sphi 0, %s500
      %s520 = sphi 0, %s522
      %s523 = sphi 0, %s520
      %s524 = sphi 0, %s523
      %s540 = sphi 0, %s524
      %s546 = sphi 0, %s548
      %s549 = sphi 0, %s546
      %s550 = sphi 0, %s549
      %s566 = sphi 0, %s550
      %s572 = sphi 0, %s574
      %s575 = sphi 0, %s572
      %s576 = sphi 0, %s575
      %s592 = sphi 0, %s576
    $region4: #{tpu_custom_call.1} parent=1 // loop_header_branch
      %52 = sbr.rel (%p50) target = $region8
    $region5: #{tpu_custom_call.1} parent=1 // loop_body
      %s54 = ssub.s32 %s49, 1
      %s55 = ssub.s32 %s49, 2
      %s56 = sadd.s32 %s49, 1
      %s58 = sadd.s32 %s57, 1
      %p61 = scmp.eq.s32.totalorder %s49, 3
      %p62 = scmp.ne.s32.totalorder %s57, %s59
      %p63 = scmp.eq.s32.totalorder %s49, 0
      %p64 = por %p62, %p63
      %p65 = scmp.ne.s32.totalorder %s57, %s59
      %p66 = scmp.eq.s32.totalorder %s54, 3
      %p67 = por %p65, %p66
      %p68 = scmp.ne.s32.totalorder %s59, %s60
      %p69 = scmp.eq.s32.totalorder %s54, 0
      %p70 = por %p68, %p69
      %p71 = scmp.ne.s32.totalorder %s59, %s60
      %p72 = scmp.eq.s32.totalorder %s55, 3
      %p73 = por %p71, %p72
      %p75 = scmp.ne.s32.totalorder %s60, %s74
      %p76 = scmp.eq.s32.totalorder %s55, 0
      %p77 = por %p75, %p76
      %s78 = ssub.s32 %s49, %s56
      %p79 = scmp.eq.s32.totalorder %s78, 0
      %s81 = sadd.s32 %s80, 1
      %s82 = scalar_select %p79, %s80, %s81
      %p85 = pneg %p79
      %p86 = scmp.eq.s32.totalorder %s49, 3
      %p87 = por %p85, %p86
      %p88 = scmp.ne.s32.totalorder %s80, %s83
      %p89 = scmp.eq.s32.totalorder %s49, 0
      %p90 = por %p88, %p89
      %p91 = scmp.ne.s32.totalorder %s80, %s83
      %p92 = scmp.eq.s32.totalorder %s54, 3
      %p93 = por %p91, %p92
      %p94 = scmp.ne.s32.totalorder %s83, %s84
      %p95 = scmp.eq.s32.totalorder %s54, 0
      %p96 = por %p94, %p95
      %p97 = scmp.ne.s32.totalorder %s83, %s84
      %p98 = scmp.eq.s32.totalorder %s55, 3
      %p99 = por %p97, %p98
      %p101 = scmp.ne.s32.totalorder %s84, %s100
      %p102 = scmp.eq.s32.totalorder %s55, 0
      %p103 = por %p101, %p102
      %s104 = ssub.s32 %s49, %s56
      %p105 = scmp.eq.s32.totalorder %s104, 0
      %s107 = sadd.s32 %s106, 1
      %s108 = scalar_select %p105, %s106, %s107
      %p111 = pneg %p105
      %p112 = scmp.eq.s32.totalorder %s49, 3
      %p113 = por %p111, %p112
      %p114 = scmp.ne.s32.totalorder %s106, %s109
      %p115 = scmp.eq.s32.totalorder %s49, 0
      %p116 = por %p114, %p115
      %p117 = scmp.ne.s32.totalorder %s106, %s109
      %p118 = scmp.eq.s32.totalorder %s54, 3
      %p119 = por %p117, %p118
      %p120 = scmp.ne.s32.totalorder %s109, %s110
      %p121 = scmp.eq.s32.totalorder %s54, 0
      %p122 = por %p120, %p121
      %p123 = scmp.ne.s32.totalorder %s109, %s110
      %p124 = scmp.eq.s32.totalorder %s55, 3
      %p125 = por %p123, %p124
      %p127 = scmp.ne.s32.totalorder %s110, %s126
      %p128 = scmp.eq.s32.totalorder %s55, 0
      %p129 = por %p127, %p128
      %s130 = ssub.s32 %s49, %s56
      %p131 = scmp.eq.s32.totalorder %s130, 0
      %s133 = sadd.s32 %s132, 1
      %s134 = scalar_select %p131, %s132, %s133
      %p137 = pneg %p131
      %p138 = scmp.eq.s32.totalorder %s49, 3
      %p139 = por %p137, %p138
      %p140 = scmp.ne.s32.totalorder %s132, %s135
      %p141 = scmp.eq.s32.totalorder %s49, 0
      %p142 = por %p140, %p141
      %p143 = scmp.ne.s32.totalorder %s132, %s135
      %p144 = scmp.eq.s32.totalorder %s54, 3
      %p145 = por %p143, %p144
      %p146 = scmp.ne.s32.totalorder %s135, %s136
      %p147 = scmp.eq.s32.totalorder %s54, 0
      %p148 = por %p146, %p147
      %p149 = scmp.ne.s32.totalorder %s135, %s136
      %p150 = scmp.eq.s32.totalorder %s55, 3
      %p151 = por %p149, %p150
      %p153 = scmp.ne.s32.totalorder %s136, %s152
      %p154 = scmp.eq.s32.totalorder %s55, 0
      %p155 = por %p153, %p154
      %s156 = ssub.s32 %s49, %s56
      %p157 = scmp.eq.s32.totalorder %s156, 0
      %s159 = sadd.s32 %s158, 1
      %s160 = scalar_select %p157, %s158, %s159
      %p163 = pneg %p157
      %p164 = scmp.eq.s32.totalorder %s49, 3
      %p165 = por %p163, %p164
      %p166 = scmp.ne.s32.totalorder %s158, %s161
      %p167 = scmp.eq.s32.totalorder %s49, 0
      %p168 = por %p166, %p167
      %p169 = scmp.ne.s32.totalorder %s158, %s161
      %p170 = scmp.eq.s32.totalorder %s54, 3
      %p171 = por %p169, %p170
      %p172 = scmp.ne.s32.totalorder %s161, %s162
      %p173 = scmp.eq.s32.totalorder %s54, 0
      %p174 = por %p172, %p173
      %p175 = scmp.ne.s32.totalorder %s161, %s162
      %p176 = scmp.eq.s32.totalorder %s55, 3
      %p177 = por %p175, %p176
      %p179 = scmp.ne.s32.totalorder %s162, %s178
      %p180 = scmp.eq.s32.totalorder %s55, 0
      %p181 = por %p179, %p180
      %s183 = sadd.s32 %s182, 1
      %p186 = scmp.eq.s32.totalorder %s49, 3
      %p187 = scmp.ne.s32.totalorder %s182, %s184
      %p188 = scmp.eq.s32.totalorder %s49, 0
      %p189 = por %p187, %p188
      %p190 = scmp.ne.s32.totalorder %s182, %s184
      %p191 = scmp.eq.s32.totalorder %s54, 3
      %p192 = por %p190, %p191
      %p193 = scmp.ne.s32.totalorder %s184, %s185
      %p194 = scmp.eq.s32.totalorder %s54, 0
      %p195 = por %p193, %p194
      %p196 = scmp.ne.s32.totalorder %s184, %s185
      %p197 = scmp.eq.s32.totalorder %s55, 3
      %p198 = por %p196, %p197
      %p200 = scmp.ne.s32.totalorder %s185, %s199
      %p201 = scmp.eq.s32.totalorder %s55, 0
      %p202 = por %p200, %p201
      %s204 = sadd.s32 %s203, 1
      %p207 = scmp.eq.s32.totalorder %s49, 3
      %p208 = scmp.ne.s32.totalorder %s203, %s205
      %p209 = scmp.eq.s32.totalorder %s49, 0
      %p210 = por %p208, %p209
      %p211 = scmp.ne.s32.totalorder %s203, %s205
      %p212 = scmp.eq.s32.totalorder %s54, 3
      %p213 = por %p211, %p212
      %p214 = scmp.ne.s32.totalorder %s205, %s206
      %p215 = scmp.eq.s32.totalorder %s54, 0
      %p216 = por %p214, %p215
      %p217 = scmp.ne.s32.totalorder %s205, %s206
      %p218 = scmp.eq.s32.totalorder %s55, 3
      %p219 = por %p217, %p218
      %p221 = scmp.ne.s32.totalorder %s206, %s220
      %p222 = scmp.eq.s32.totalorder %s55, 0
      %p223 = por %p221, %p222
      %s225 = sadd.s32 %s224, 1
      %p228 = scmp.eq.s32.totalorder %s49, 3
      %p229 = scmp.ne.s32.totalorder %s224, %s226
      %p230 = scmp.eq.s32.totalorder %s49, 0
      %p231 = por %p229, %p230
      %p232 = scmp.ne.s32.totalorder %s224, %s226
      %p233 = scmp.eq.s32.totalorder %s54, 3
      %p234 = por %p232, %p233
      %p235 = scmp.ne.s32.totalorder %s226, %s227
      %p236 = scmp.eq.s32.totalorder %s54, 0
      %p237 = por %p235, %p236
      %p238 = scmp.ne.s32.totalorder %s226, %s227
      %p239 = scmp.eq.s32.totalorder %s55, 3
      %p240 = por %p238, %p239
      %p242 = scmp.ne.s32.totalorder %s227, %s241
      %p243 = scmp.eq.s32.totalorder %s55, 0
      %p244 = por %p242, %p243
      %s246 = sadd.s32 %s245, 1
      %p249 = scmp.eq.s32.totalorder %s49, 3
      %p250 = scmp.ne.s32.totalorder %s245, %s247
      %p251 = scmp.eq.s32.totalorder %s49, 0
      %p252 = por %p250, %p251
      %p253 = scmp.ne.s32.totalorder %s245, %s247
      %p254 = scmp.eq.s32.totalorder %s54, 3
      %p255 = por %p253, %p254
      %p256 = scmp.ne.s32.totalorder %s247, %s248
      %p257 = scmp.eq.s32.totalorder %s54, 0
      %p258 = por %p256, %p257
      %p259 = scmp.ne.s32.totalorder %s247, %s248
      %p260 = scmp.eq.s32.totalorder %s55, 3
      %p261 = por %p259, %p260
      %p263 = scmp.ne.s32.totalorder %s248, %s262
      %p264 = scmp.eq.s32.totalorder %s55, 0
      %p265 = por %p263, %p264
      %s267 = sadd.s32 %s266, 1
      %p270 = scmp.eq.s32.totalorder %s49, 3
      %p271 = scmp.ne.s32.totalorder %s266, %s268
      %p272 = scmp.eq.s32.totalorder %s49, 0
      %p273 = por %p271, %p272
      %p274 = scmp.ne.s32.totalorder %s266, %s268
      %p275 = scmp.eq.s32.totalorder %s54, 3
      %p276 = por %p274, %p275
      %p277 = scmp.ne.s32.totalorder %s268, %s269
      %p278 = scmp.eq.s32.totalorder %s54, 0
      %p279 = por %p277, %p278
      %p280 = scmp.ne.s32.totalorder %s268, %s269
      %p281 = scmp.eq.s32.totalorder %s55, 3
      %p282 = por %p280, %p281
      %p284 = scmp.ne.s32.totalorder %s269, %s283
      %p285 = scmp.eq.s32.totalorder %s55, 0
      %p286 = por %p284, %p285
      %s288 = sadd.s32 %s287, 1
      %p291 = scmp.eq.s32.totalorder %s49, 3
      %p292 = scmp.ne.s32.totalorder %s287, %s289
      %p293 = scmp.eq.s32.totalorder %s49, 0
      %p294 = por %p292, %p293
      %p295 = scmp.ne.s32.totalorder %s287, %s289
      %p296 = scmp.eq.s32.totalorder %s54, 3
      %p297 = por %p295, %p296
      %p298 = scmp.ne.s32.totalorder %s289, %s290
      %p299 = scmp.eq.s32.totalorder %s54, 0
      %p300 = por %p298, %p299
      %p301 = scmp.ne.s32.totalorder %s289, %s290
      %p302 = scmp.eq.s32.totalorder %s55, 3
      %p303 = por %p301, %p302
      %p305 = scmp.ne.s32.totalorder %s290, %s304
      %p306 = scmp.eq.s32.totalorder %s55, 0
      %p307 = por %p305, %p306
      %s309 = sadd.s32 %s308, 1
      %p312 = scmp.eq.s32.totalorder %s49, 3
      %p313 = scmp.ne.s32.totalorder %s308, %s310
      %p314 = scmp.eq.s32.totalorder %s49, 0
      %p315 = por %p313, %p314
      %p316 = scmp.ne.s32.totalorder %s308, %s310
      %p317 = scmp.eq.s32.totalorder %s54, 3
      %p318 = por %p316, %p317
      %p319 = scmp.ne.s32.totalorder %s310, %s311
      %p320 = scmp.eq.s32.totalorder %s54, 0
      %p321 = por %p319, %p320
      %p322 = scmp.ne.s32.totalorder %s310, %s311
      %p323 = scmp.eq.s32.totalorder %s55, 3
      %p324 = por %p322, %p323
      %p326 = scmp.ne.s32.totalorder %s311, %s325
      %p327 = scmp.eq.s32.totalorder %s55, 0
      %p328 = por %p326, %p327
      %s330 = sadd.s32 %s329, 1
      %p333 = scmp.eq.s32.totalorder %s49, 3
      %p334 = scmp.ne.s32.totalorder %s329, %s331
      %p335 = scmp.eq.s32.totalorder %s49, 0
      %p336 = por %p334, %p335
      %p337 = scmp.ne.s32.totalorder %s329, %s331
      %p338 = scmp.eq.s32.totalorder %s54, 3
      %p339 = por %p337, %p338
      %p340 = scmp.ne.s32.totalorder %s331, %s332
      %p341 = scmp.eq.s32.totalorder %s54, 0
      %p342 = por %p340, %p341
      %p343 = scmp.ne.s32.totalorder %s331, %s332
      %p344 = scmp.eq.s32.totalorder %s55, 3
      %p345 = por %p343, %p344
      %p347 = scmp.ne.s32.totalorder %s332, %s346
      %p348 = scmp.eq.s32.totalorder %s55, 0
      %p349 = por %p347, %p348
      %s351 = sadd.s32 %s350, 1
      %p354 = scmp.eq.s32.totalorder %s49, 3
      %p355 = scmp.ne.s32.totalorder %s350, %s352
      %p356 = scmp.eq.s32.totalorder %s49, 0
      %p357 = por %p355, %p356
      %p358 = scmp.ne.s32.totalorder %s350, %s352
      %p359 = scmp.eq.s32.totalorder %s54, 3
      %p360 = por %p358, %p359
      %p361 = scmp.ne.s32.totalorder %s352, %s353
      %p362 = scmp.eq.s32.totalorder %s54, 0
      %p363 = por %p361, %p362
      %p364 = scmp.ne.s32.totalorder %s352, %s353
      %p365 = scmp.eq.s32.totalorder %s55, 3
      %p366 = por %p364, %p365
      %p368 = scmp.ne.s32.totalorder %s353, %s367
      %p369 = scmp.eq.s32.totalorder %s55, 0
      %p370 = por %p368, %p369
      %s372 = sadd.s32 %s371, 1
      %p375 = scmp.eq.s32.totalorder %s49, 3
      %p376 = scmp.ne.s32.totalorder %s371, %s373
      %p377 = scmp.eq.s32.totalorder %s49, 0
      %p378 = por %p376, %p377
      %p379 = scmp.ne.s32.totalorder %s371, %s373
      %p380 = scmp.eq.s32.totalorder %s54, 3
      %p381 = por %p379, %p380
      %p382 = scmp.ne.s32.totalorder %s373, %s374
      %p383 = scmp.eq.s32.totalorder %s54, 0
      %p384 = por %p382, %p383
      %p385 = scmp.ne.s32.totalorder %s373, %s374
      %p386 = scmp.eq.s32.totalorder %s55, 3
      %p387 = por %p385, %p386
      %p389 = scmp.ne.s32.totalorder %s374, %s388
      %p390 = scmp.eq.s32.totalorder %s55, 0
      %p391 = por %p389, %p390
      %s393 = sadd.s32 %s392, 1
      %p396 = scmp.eq.s32.totalorder %s49, 3
      %p397 = scmp.ne.s32.totalorder %s392, %s394
      %p398 = scmp.eq.s32.totalorder %s49, 0
      %p399 = por %p397, %p398
      %p400 = scmp.ne.s32.totalorder %s392, %s394
      %p401 = scmp.eq.s32.totalorder %s54, 3
      %p402 = por %p400, %p401
      %p403 = scmp.ne.s32.totalorder %s394, %s395
      %p404 = scmp.eq.s32.totalorder %s54, 0
      %p405 = por %p403, %p404
      %p406 = scmp.ne.s32.totalorder %s394, %s395
      %p407 = scmp.eq.s32.totalorder %s55, 3
      %p408 = por %p406, %p407
      %p410 = scmp.ne.s32.totalorder %s395, %s409
      %p411 = scmp.eq.s32.totalorder %s55, 0
      %p412 = por %p410, %p411
      %s414 = sadd.s32 %s413, 1
      %p417 = scmp.eq.s32.totalorder %s49, 3
      %p418 = scmp.ne.s32.totalorder %s413, %s415
      %p419 = scmp.eq.s32.totalorder %s49, 0
      %p420 = por %p418, %p419
      %p421 = scmp.ne.s32.totalorder %s413, %s415
      %p422 = scmp.eq.s32.totalorder %s54, 3
      %p423 = por %p421, %p422
      %p424 = scmp.ne.s32.totalorder %s415, %s416
      %p425 = scmp.eq.s32.totalorder %s54, 0
      %p426 = por %p424, %p425
      %p427 = scmp.ne.s32.totalorder %s415, %s416
      %p428 = scmp.eq.s32.totalorder %s55, 3
      %p429 = por %p427, %p428
      %p431 = scmp.ne.s32.totalorder %s416, %s430
      %p432 = scmp.eq.s32.totalorder %s55, 0
      %p433 = por %p431, %p432
      %s435 = sadd.s32 %s434, 1
      %p438 = scmp.eq.s32.totalorder %s49, 3
      %p439 = scmp.ne.s32.totalorder %s434, %s436
      %p440 = scmp.eq.s32.totalorder %s49, 0
      %p441 = por %p439, %p440
      %p442 = scmp.ne.s32.totalorder %s434, %s436
      %p443 = scmp.eq.s32.totalorder %s54, 3
      %p444 = por %p442, %p443
      %p445 = scmp.ne.s32.totalorder %s436, %s437
      %p446 = scmp.eq.s32.totalorder %s54, 0
      %p447 = por %p445, %p446
      %p448 = scmp.ne.s32.totalorder %s436, %s437
      %p449 = scmp.eq.s32.totalorder %s55, 3
      %p450 = por %p448, %p449
      %p452 = scmp.ne.s32.totalorder %s437, %s451
      %p453 = scmp.eq.s32.totalorder %s55, 0
      %p454 = por %p452, %p453
      %s456 = sadd.s32 %s455, 1
      %p459 = scmp.eq.s32.totalorder %s49, 3
      %p460 = scmp.ne.s32.totalorder %s455, %s457
      %p461 = scmp.eq.s32.totalorder %s49, 0
      %p462 = por %p460, %p461
      %p463 = scmp.ne.s32.totalorder %s455, %s457
      %p464 = scmp.eq.s32.totalorder %s54, 3
      %p465 = por %p463, %p464
      %p466 = scmp.ne.s32.totalorder %s457, %s458
      %p467 = scmp.eq.s32.totalorder %s54, 0
      %p468 = por %p466, %p467
      %p469 = scmp.ne.s32.totalorder %s457, %s458
      %p470 = scmp.eq.s32.totalorder %s55, 3
      %p471 = por %p469, %p470
      %p473 = scmp.ne.s32.totalorder %s458, %s472
      %p474 = scmp.eq.s32.totalorder %s55, 0
      %p475 = por %p473, %p474
      %s477 = sadd.s32 %s476, 1
      %p480 = scmp.eq.s32.totalorder %s49, 3
      %p481 = scmp.ne.s32.totalorder %s476, %s478
      %p482 = scmp.eq.s32.totalorder %s49, 0
      %p483 = por %p481, %p482
      %p484 = scmp.ne.s32.totalorder %s476, %s478
      %p485 = scmp.eq.s32.totalorder %s54, 3
      %p486 = por %p484, %p485
      %p487 = scmp.ne.s32.totalorder %s478, %s479
      %p488 = scmp.eq.s32.totalorder %s54, 0
      %p489 = por %p487, %p488
      %p490 = scmp.ne.s32.totalorder %s478, %s479
      %p491 = scmp.eq.s32.totalorder %s55, 3
      %p492 = por %p490, %p491
      %p494 = scmp.ne.s32.totalorder %s479, %s493
      %p495 = scmp.eq.s32.totalorder %s55, 0
      %p496 = por %p494, %p495
      %s498 = sadd.s32 %s497, 1
      %p501 = scmp.eq.s32.totalorder %s49, 3
      %p502 = scmp.ne.s32.totalorder %s497, %s499
      %p503 = scmp.eq.s32.totalorder %s49, 0
      %p504 = por %p502, %p503
      %p505 = scmp.ne.s32.totalorder %s497, %s499
      %p506 = scmp.eq.s32.totalorder %s54, 3
      %p507 = por %p505, %p506
      %p508 = scmp.ne.s32.totalorder %s499, %s500
      %p509 = scmp.eq.s32.totalorder %s54, 0
      %p510 = por %p508, %p509
      %p511 = scmp.ne.s32.totalorder %s499, %s500
      %p512 = scmp.eq.s32.totalorder %s55, 3
      %p513 = por %p511, %p512
      %p515 = scmp.ne.s32.totalorder %s500, %s514
      %p516 = scmp.eq.s32.totalorder %s55, 0
      %p517 = por %p515, %p516
      %s518 = ssub.s32 %s49, %s56
      %p519 = scmp.eq.s32.totalorder %s518, 0
      %s521 = sadd.s32 %s520, 1
      %s522 = scalar_select %p519, %s520, %s521
      %p525 = pneg %p519
      %p526 = scmp.eq.s32.totalorder %s49, 3
      %p527 = por %p525, %p526
      %p528 = scmp.ne.s32.totalorder %s520, %s523
      %p529 = scmp.eq.s32.totalorder %s49, 0
      %p530 = por %p528, %p529
      %p531 = scmp.ne.s32.totalorder %s520, %s523
      %p532 = scmp.eq.s32.totalorder %s54, 3
      %p533 = por %p531, %p532
      %p534 = scmp.ne.s32.totalorder %s523, %s524
      %p535 = scmp.eq.s32.totalorder %s54, 0
      %p536 = por %p534, %p535
      %p537 = scmp.ne.s32.totalorder %s523, %s524
      %p538 = scmp.eq.s32.totalorder %s55, 3
      %p539 = por %p537, %p538
      %p541 = scmp.ne.s32.totalorder %s524, %s540
      %p542 = scmp.eq.s32.totalorder %s55, 0
      %p543 = por %p541, %p542
      %s544 = ssub.s32 %s49, %s56
      %p545 = scmp.eq.s32.totalorder %s544, 0
      %s547 = sadd.s32 %s546, 1
      %s548 = scalar_select %p545, %s546, %s547
      %p551 = pneg %p545
      %p552 = scmp.eq.s32.totalorder %s49, 3
      %p553 = por %p551, %p552
      %p554 = scmp.ne.s32.totalorder %s546, %s549
      %p555 = scmp.eq.s32.totalorder %s49, 0
      %p556 = por %p554, %p555
      %p557 = scmp.ne.s32.totalorder %s546, %s549
      %p558 = scmp.eq.s32.totalorder %s54, 3
      %p559 = por %p557, %p558
      %p560 = scmp.ne.s32.totalorder %s549, %s550
      %p561 = scmp.eq.s32.totalorder %s54, 0
      %p562 = por %p560, %p561
      %p563 = scmp.ne.s32.totalorder %s549, %s550
      %p564 = scmp.eq.s32.totalorder %s55, 3
      %p565 = por %p563, %p564
      %p567 = scmp.ne.s32.totalorder %s550, %s566
      %p568 = scmp.eq.s32.totalorder %s55, 0
      %p569 = por %p567, %p568
      %s570 = ssub.s32 %s49, %s56
      %p571 = scmp.eq.s32.totalorder %s570, 0
      %s573 = sadd.s32 %s572, 1
      %s574 = scalar_select %p571, %s572, %s573
      %p577 = pneg %p571
      %p578 = scmp.eq.s32.totalorder %s49, 3
      %p579 = por %p577, %p578
      %p580 = scmp.ne.s32.totalorder %s572, %s575
      %p581 = scmp.eq.s32.totalorder %s49, 0
      %p582 = por %p580, %p581
      %p583 = scmp.ne.s32.totalorder %s572, %s575
      %p584 = scmp.eq.s32.totalorder %s54, 3
      %p585 = por %p583, %p584
      %p586 = scmp.ne.s32.totalorder %s575, %s576
      %p587 = scmp.eq.s32.totalorder %s54, 0
      %p588 = por %p586, %p587
      %p589 = scmp.ne.s32.totalorder %s575, %s576
      %p590 = scmp.eq.s32.totalorder %s55, 3
      %p591 = por %p589, %p590
      %p593 = scmp.ne.s32.totalorder %s576, %s592
      %p594 = scmp.eq.s32.totalorder %s55, 0
      %p595 = por %p593, %p594
      %p596 = scmp.le.s32.totalorder 1, %s49
      %p597 = scmp.lt.s32.totalorder %s49, 5
      %p598 = pnand %p596, %p597
      %p599 = pneg %p598
      // Predicated region
      $region9: #{tpu_custom_call.1} parent=5 // pred_check
        _
      $region10: #{tpu_custom_call.1} parent=5 // pred_check_branch
        %601 = sbr.rel (%p598) target = $region12
      $region11: #{tpu_custom_call.1} parent=5 // pred_region
        %s602 = ssub.s32 %s49, 1
        // Predicated region
        $region13: #{tpu_custom_call.1} parent=11 // pred_check
          %p603 = pneg %p70
        $region14: #{tpu_custom_call.1} parent=11 // pred_check_branch
          %605 = sbr.rel (%p603) target = $region16
        $region15: #{tpu_custom_call.1} parent=11 // pred_region
          _
        $region16: #{tpu_custom_call.1} parent=11 // pred_fallthru
          _
        // Predicated region
        $region17: #{tpu_custom_call.1} parent=11 // pred_check
          %p606 = pneg %p195
        $region18: #{tpu_custom_call.1} parent=11 // pred_check_branch
          %608 = sbr.rel (%p606) target = $region20
        $region19: #{tpu_custom_call.1} parent=11 // pred_region
          %s610 = ssub.s32 512, 512
          %611 = vsyncadd [#allocation6], %s610
          %s612 = sshll.u32 [#allocation7], 4
          %s613 = int_to_ptr.vmem [resolvable:$true] %s612
          %618 = dma.hbm_to_vmem [thread:$0]  %s5, 512, %s613, [#allocation6], 128, 128, 8
        $region20: #{tpu_custom_call.1} parent=11 // pred_fallthru
          _
        // Predicated region
        $region21: #{tpu_custom_call.1} parent=11 // pred_check
          %p619 = pneg %p216
        $region22: #{tpu_custom_call.1} parent=11 // pred_check_branch
          %621 = sbr.rel (%p619) target = $region24
        $region23: #{tpu_custom_call.1} parent=11 // pred_region
          %s623 = ssub.s32 16, 16
          %624 = vsyncadd [#allocation9], %s623
          %s626 = sshll.u32 [#allocation8], 4
          %s627 = int_to_ptr.vmem [resolvable:$true] %s626
          %629 = dma.hbm_to_vmem [thread:$0]  %s6, 16, %s627, [#allocation9]
        $region24: #{tpu_custom_call.1} parent=11 // pred_fallthru
          _
        // Predicated region
        $region25: #{tpu_custom_call.1} parent=11 // pred_check
          %p630 = pneg %p237
        $region26: #{tpu_custom_call.1} parent=11 // pred_check_branch
          %632 = sbr.rel (%p630) target = $region28
        $region27: #{tpu_custom_call.1} parent=11 // pred_region
          _
        $region28: #{tpu_custom_call.1} parent=11 // pred_fallthru
          _
        // Predicated region
        $region29: #{tpu_custom_call.1} parent=11 // pred_check
          %p633 = pneg %p258
        $region30: #{tpu_custom_call.1} parent=11 // pred_check_branch
          %635 = sbr.rel (%p633) target = $region32
        $region31: #{tpu_custom_call.1} parent=11 // pred_region
          %s637 = ssub.s32 16, 16
          %638 = vsyncadd [#allocation9], %s637
          %s640 = sshll.u32 [#allocation10], 4
          %s641 = int_to_ptr.vmem [resolvable:$true] %s640
          %643 = dma.hbm_to_vmem [thread:$0]  %s8, 16, %s641, [#allocation9]
        $region32: #{tpu_custom_call.1} parent=11 // pred_fallthru
          _
        // Predicated region
        $region33: #{tpu_custom_call.1} parent=11 // pred_check
          %p644 = pneg %p279
        $region34: #{tpu_custom_call.1} parent=11 // pred_check_branch
          %646 = sbr.rel (%p644) target = $region36
        $region35: #{tpu_custom_call.1} parent=11 // pred_region
          %s648 = ssub.s32 256, 256
          %649 = vsyncadd [#allocation12], %s648
          %s650 = sshll.u32 [#allocation11], 4
          %s651 = int_to_ptr.vmem [resolvable:$true] %s650
          %656 = dma.hbm_to_vmem [thread:$0]  %s9, 256, %s651, [#allocation12], 128, 128, 8
        $region36: #{tpu_custom_call.1} parent=11 // pred_fallthru
          _
        // Predicated region
        $region37: #{tpu_custom_call.1} parent=11 // pred_check
          %p657 = pneg %p300
        $region38: #{tpu_custom_call.1} parent=11 // pred_check_branch
          %659 = sbr.rel (%p657) target = $region40
        $region39: #{tpu_custom_call.1} parent=11 // pred_region
          %s661 = ssub.s32 16, 16
          %662 = vsyncadd [#allocation12], %s661
          %s664 = sshll.u32 [#allocation13], 4
          %s665 = int_to_ptr.vmem [resolvable:$true] %s664
          %667 = dma.hbm_to_vmem [thread:$0]  %s10, 16, %s665, [#allocation12]
        $region40: #{tpu_custom_call.1} parent=11 // pred_fallthru
          _
        // Predicated region
        $region41: #{tpu_custom_call.1} parent=11 // pred_check
          %p668 = pneg %p321
        $region42: #{tpu_custom_call.1} parent=11 // pred_check_branch
          %670 = sbr.rel (%p668) target = $region44
        $region43: #{tpu_custom_call.1} parent=11 // pred_region
          %s672 = ssub.s32 65536, 65536
          %673 = vsyncadd [#allocation15], %s672
          %s674 = sshll.u32 [#allocation14], 4
          %s675 = int_to_ptr.vmem [resolvable:$true] %s674
          %680 = dma.hbm_to_vmem [thread:$0]  %s11, 65536, %s675, [#allocation15], 1024, 1024, 64
        $region44: #{tpu_custom_call.1} parent=11 // pred_fallthru
          _
        // Predicated region
        $region45: #{tpu_custom_call.1} parent=11 // pred_check
          %p681 = pneg %p342
        $region46: #{tpu_custom_call.1} parent=11 // pred_check_branch
          %683 = sbr.rel (%p681) target = $region48
        $region47: #{tpu_custom_call.1} parent=11 // pred_region
          %s685 = ssub.s32 128, 128
          %686 = vsyncadd [#allocation15], %s685
          %s688 = sshll.u32 [#allocation16], 4
          %s689 = int_to_ptr.vmem [resolvable:$true] %s688
          %691 = dma.hbm_to_vmem [thread:$0]  %s12, 128, %s689, [#allocation15]
        $region48: #{tpu_custom_call.1} parent=11 // pred_fallthru
          _
        // Predicated region
        $region49: #{tpu_custom_call.1} parent=11 // pred_check
          %p692 = pneg %p363
        $region50: #{tpu_custom_call.1} parent=11 // pred_check_branch
          %694 = sbr.rel (%p692) target = $region52
        $region51: #{tpu_custom_call.1} parent=11 // pred_region
          %s696 = ssub.s32 32768, 32768
          %697 = vsyncadd [#allocation18], %s696
          %s698 = sshll.u32 [#allocation17], 4
          %s699 = int_to_ptr.vmem [resolvable:$true] %s698
          %704 = dma.hbm_to_vmem [thread:$0]  %s13, 32768, %s699, [#allocation18], 512, 512, 32
        $region52: #{tpu_custom_call.1} parent=11 // pred_fallthru
          _
        // Predicated region
        $region53: #{tpu_custom_call.1} parent=11 // pred_check
          %p705 = pneg %p384
        $region54: #{tpu_custom_call.1} parent=11 // pred_check_branch
          %707 = sbr.rel (%p705) target = $region56
        $region55: #{tpu_custom_call.1} parent=11 // pred_region
          %s709 = ssub.s32 64, 64
          %710 = vsyncadd [#allocation18], %s709
          %s712 = sshll.u32 [#allocation19], 4
          %s713 = int_to_ptr.vmem [resolvable:$true] %s712
          %715 = dma.hbm_to_vmem [thread:$0]  %s14, 64, %s713, [#allocation18]
        $region56: #{tpu_custom_call.1} parent=11 // pred_fallthru
          _
        // Predicated region
        $region57: #{tpu_custom_call.1} parent=11 // pred_check
          %p716 = pneg %p405
        $region58: #{tpu_custom_call.1} parent=11 // pred_check_branch
          %718 = sbr.rel (%p716) target = $region60
        $region59: #{tpu_custom_call.1} parent=11 // pred_region
          %s720 = ssub.s32 2048, 2048
          %721 = vsyncadd [#allocation21], %s720
          %s722 = sshll.u32 [#allocation20], 4
          %s723 = int_to_ptr.vmem [resolvable:$true] %s722
          %728 = dma.hbm_to_vmem [thread:$0]  %s15, 2048, %s723, [#allocation21], 512, 512, 32
        $region60: #{tpu_custom_call.1} parent=11 // pred_fallthru
          _
        // Predicated region
        $region61: #{tpu_custom_call.1} parent=11 // pred_check
          %p729 = pneg %p426
        $region62: #{tpu_custom_call.1} parent=11 // pred_check_branch
          %731 = sbr.rel (%p729) target = $region64
        $region63: #{tpu_custom_call.1} parent=11 // pred_region
          %s733 = ssub.s32 1024, 1024
          %734 = vsyncadd [#allocation21], %s733
          %s735 = sshll.u32 [#allocation22], 4
          %s736 = int_to_ptr.vmem [resolvable:$true] %s735
          %741 = dma.hbm_to_vmem [thread:$0]  %s16, 1024, %s736, [#allocation21], 512, 512, 32
        $region64: #{tpu_custom_call.1} parent=11 // pred_fallthru
          _
        // Predicated region
        $region65: #{tpu_custom_call.1} parent=11 // pred_check
          %p742 = pneg %p447
        $region66: #{tpu_custom_call.1} parent=11 // pred_check_branch
          %744 = sbr.rel (%p742) target = $region68
        $region67: #{tpu_custom_call.1} parent=11 // pred_region
          %s746 = ssub.s32 64, 64
          %747 = vsyncadd [#allocation24], %s746
          %s749 = sshll.u32 [#allocation23], 4
          %s750 = int_to_ptr.vmem [resolvable:$true] %s749
          %752 = dma.hbm_to_vmem [thread:$0]  %s17, 64, %s750, [#allocation24]
        $region68: #{tpu_custom_call.1} parent=11 // pred_fallthru
          _
        // Predicated region
        $region69: #{tpu_custom_call.1} parent=11 // pred_check
          %p753 = pneg %p468
        $region70: #{tpu_custom_call.1} parent=11 // pred_check_branch
          %755 = sbr.rel (%p753) target = $region72
        $region71: #{tpu_custom_call.1} parent=11 // pred_region
          %s757 = ssub.s32 64, 64
          %758 = vsyncadd [#allocation24], %s757
          %s760 = sshll.u32 [#allocation25], 4
          %s761 = int_to_ptr.vmem [resolvable:$true] %s760
          %763 = dma.hbm_to_vmem [thread:$0]  %s18, 64, %s761, [#allocation24]
        $region72: #{tpu_custom_call.1} parent=11 // pred_fallthru
          _
        // Predicated region
        $region73: #{tpu_custom_call.1} parent=11 // pred_check
          %p764 = pneg %p489
        $region74: #{tpu_custom_call.1} parent=11 // pred_check_branch
          %766 = sbr.rel (%p764) target = $region76
        $region75: #{tpu_custom_call.1} parent=11 // pred_region
          %s768 = ssub.s32 64, 64
          %769 = vsyncadd [#allocation27], %s768
          %s771 = sshll.u32 [#allocation26], 4
          %s772 = int_to_ptr.vmem [resolvable:$true] %s771
          %774 = dma.hbm_to_vmem [thread:$0]  %s19, 64, %s772, [#allocation27]
        $region76: #{tpu_custom_call.1} parent=11 // pred_fallthru
          _
        // Predicated region
        $region77: #{tpu_custom_call.1} parent=11 // pred_check
          %p775 = pneg %p510
        $region78: #{tpu_custom_call.1} parent=11 // pred_check_branch
          %777 = sbr.rel (%p775) target = $region80
        $region79: #{tpu_custom_call.1} parent=11 // pred_region
          %s779 = ssub.s32 64, 64
          %780 = vsyncadd [#allocation27], %s779
          %s782 = sshll.u32 [#allocation28], 4
          %s783 = int_to_ptr.vmem [resolvable:$true] %s782
          %785 = dma.hbm_to_vmem [thread:$0]  %s20, 64, %s783, [#allocation27]
        $region80: #{tpu_custom_call.1} parent=11 // pred_fallthru
          _
      $region12: #{tpu_custom_call.1} parent=5 // pred_fallthru
        _
      %p786 = scmp.lt.s32.totalorder %s49, 4
      // Predicated region
      $region81: #{tpu_custom_call.1} parent=5 // pred_check
        %p787 = pneg %p786
      $region82: #{tpu_custom_call.1} parent=5 // pred_check_branch
        %789 = sbr.rel (%p787) target = $region84
      $region83: #{tpu_custom_call.1} parent=5 // pred_region
        // Predicated region
        $region85: #{tpu_custom_call.1} parent=83 // pred_check
          %p790 = pneg %p90
        $region86: #{tpu_custom_call.1} parent=83 // pred_check_branch
          %792 = sbr.rel (%p790) target = $region88
        $region87: #{tpu_custom_call.1} parent=83 // pred_region
          %s793 = smul.u32 2, %s49
          %p794 = scmp.lt.s32.totalorder %s793, 7
          %s795 = scalar_select %p794, %s793, 7
          %s796 = smul.addr %s795, 8
          %s797 = scalar_lea.vmem %s1, %s796
          %s798 = smul.u32 2, %s49
        $region88: #{tpu_custom_call.1} parent=83 // pred_fallthru
          _
        // Predicated region
        $region89: #{tpu_custom_call.1} parent=83 // pred_check
          %p799 = pneg %p116
        $region90: #{tpu_custom_call.1} parent=83 // pred_check_branch
          %801 = sbr.rel (%p799) target = $region92
        $region91: #{tpu_custom_call.1} parent=83 // pred_region
          %s802 = sand.u32 %s106, 1
          %s803 = scalar_lea.sflag [#allocation3], %s802
          %s804 = sand.u32 %s106, 1
          %s805 = smul.addr %s804, 4
          %s806 = scalar_lea.vmem [#allocation2], %s805
          %s807 = smul.u32 4, %s49
          %s809 = ssub.s32 64, 64
          %810 = vsyncadd %s803, %s809
          %s811 = smul.addr %s807, 16
          %s812 = scalar_lea.hbm %s2, %s811
          %s814 = sshll.u32 %s806, 4
          %s815 = int_to_ptr.vmem [resolvable:$true] %s814
          %817 = dma.hbm_to_vmem [thread:$0]  %s812, 64, %s815, %s803
        $region92: #{tpu_custom_call.1} parent=83 // pred_fallthru
          _
        // Predicated region
        $region93: #{tpu_custom_call.1} parent=83 // pred_check
          %p818 = pneg %p142
        $region94: #{tpu_custom_call.1} parent=83 // pred_check_branch
          %820 = sbr.rel (%p818) target = $region96
        $region95: #{tpu_custom_call.1} parent=83 // pred_region
          %s821 = sand.u32 %s49, 1
          %s822 = scalar_lea.sflag [#allocation6], %s821
          %s823 = sand.u32 %s132, 1
          %s824 = smul.addr %s823, 256
          %s825 = scalar_lea.vmem [#allocation5], %s824
          %s826 = smul.u32 4, %s49
          %s828 = ssub.s32 4096, 4096
          %829 = vsyncadd %s822, %s828
          %s830 = smul.addr %s826, 128
          %s831 = scalar_lea.hbm %s3, %s830
          %s832 = sshll.u32 %s825, 4
          %s833 = int_to_ptr.vmem [resolvable:$true] %s832
          %838 = dma.hbm_to_vmem [thread:$0]  %s831, 4096, %s833, %s822, 2048, 512, 32
        $region96: #{tpu_custom_call.1} parent=83 // pred_fallthru
          _
        // Predicated region
        $region97: #{tpu_custom_call.1} parent=83 // pred_check
          %p839 = pneg %p168
        $region98: #{tpu_custom_call.1} parent=83 // pred_check_branch
          %841 = sbr.rel (%p839) target = $region100
        $region99: #{tpu_custom_call.1} parent=83 // pred_region
          %p842 = scmp.lt.s32.totalorder %s49, 3
          %s843 = scalar_select %p842, %s49, 3
          %s844 = smul.addr %s843, 8
          %s845 = smul.addr %s844, 8
          %s846 = scalar_lea.vmem %s4, %s845
        $region100: #{tpu_custom_call.1} parent=83 // pred_fallthru
          _
      $region84: #{tpu_custom_call.1} parent=5 // pred_fallthru
        _
      %p847 = scmp.le.s32.totalorder 1, %s49
      %p848 = scmp.lt.s32.totalorder %s49, 5
      %p849 = pnand %p847, %p848
      %p850 = pneg %p849
      // Predicated region
      $region101: #{tpu_custom_call.1} parent=5 // pred_check
        _
      $region102: #{tpu_custom_call.1} parent=5 // pred_check_branch
        %852 = sbr.rel (%p849) target = $region104
      $region103: #{tpu_custom_call.1} parent=5 // pred_region
        %s853 = ssub.s32 %s49, 1
        %s854 = sand.u32 %s109, 1
        %s855 = scalar_lea.sflag [#allocation3], %s854
        %s856 = sand.u32 %s109, 1
        %s857 = smul.addr %s856, 4
        %s858 = scalar_lea.vmem [#allocation2], %s857
        // Predicated region
        $region105: #{tpu_custom_call.1} parent=103 // pred_check
          %p859 = pneg %p122
        $region106: #{tpu_custom_call.1} parent=103 // pred_check_branch
          %861 = sbr.rel (%p859) target = $region108
        $region107: #{tpu_custom_call.1} parent=103 // pred_region
          %862 = dma.done %s855, 64
        $region108: #{tpu_custom_call.1} parent=103 // pred_fallthru
          _
        %s863 = sand.u32 %s54, 1
        %s864 = scalar_lea.sflag [#allocation6], %s863
        %s865 = sand.u32 %s135, 1
        %s866 = smul.addr %s865, 256
        %s867 = scalar_lea.vmem [#allocation5], %s866
        // Predicated region
        $region109: #{tpu_custom_call.1} parent=103 // pred_check
          %p868 = pneg %p148
        $region110: #{tpu_custom_call.1} parent=103 // pred_check_branch
          %870 = sbr.rel (%p868) target = $region112
        $region111: #{tpu_custom_call.1} parent=103 // pred_region
          %871 = dma.done %s864, 4096
        $region112: #{tpu_custom_call.1} parent=103 // pred_fallthru
          _
        // Predicated region
        $region113: #{tpu_custom_call.1} parent=103 // pred_check
          %p872 = pneg %p195
        $region114: #{tpu_custom_call.1} parent=103 // pred_check_branch
          %874 = sbr.rel (%p872) target = $region116
        $region115: #{tpu_custom_call.1} parent=103 // pred_region
          %875 = dma.done [#allocation6], 512
        $region116: #{tpu_custom_call.1} parent=103 // pred_fallthru
          _
        // Predicated region
        $region117: #{tpu_custom_call.1} parent=103 // pred_check
          %p876 = pneg %p216
        $region118: #{tpu_custom_call.1} parent=103 // pred_check_branch
          %878 = sbr.rel (%p876) target = $region120
        $region119: #{tpu_custom_call.1} parent=103 // pred_region
          %879 = dma.done [#allocation9], 16
        $region120: #{tpu_custom_call.1} parent=103 // pred_fallthru
          _
        // Predicated region
        $region121: #{tpu_custom_call.1} parent=103 // pred_check
          %p880 = pneg %p258
        $region122: #{tpu_custom_call.1} parent=103 // pred_check_branch
          %882 = sbr.rel (%p880) target = $region124
        $region123: #{tpu_custom_call.1} parent=103 // pred_region
          %883 = dma.done [#allocation9], 16
        $region124: #{tpu_custom_call.1} parent=103 // pred_fallthru
          _
        // Predicated region
        $region125: #{tpu_custom_call.1} parent=103 // pred_check
          %p884 = pneg %p279
        $region126: #{tpu_custom_call.1} parent=103 // pred_check_branch
          %886 = sbr.rel (%p884) target = $region128
        $region127: #{tpu_custom_call.1} parent=103 // pred_region
          %887 = dma.done [#allocation12], 256
        $region128: #{tpu_custom_call.1} parent=103 // pred_fallthru
          _
        // Predicated region
        $region129: #{tpu_custom_call.1} parent=103 // pred_check
          %p888 = pneg %p300
        $region130: #{tpu_custom_call.1} parent=103 // pred_check_branch
          %890 = sbr.rel (%p888) target = $region132
        $region131: #{tpu_custom_call.1} parent=103 // pred_region
          %891 = dma.done [#allocation12], 16
        $region132: #{tpu_custom_call.1} parent=103 // pred_fallthru
          _
        // Predicated region
        $region133: #{tpu_custom_call.1} parent=103 // pred_check
          %p892 = pneg %p321
        $region134: #{tpu_custom_call.1} parent=103 // pred_check_branch
          %894 = sbr.rel (%p892) target = $region136
        $region135: #{tpu_custom_call.1} parent=103 // pred_region
          %895 = dma.done [#allocation15], 65536
        $region136: #{tpu_custom_call.1} parent=103 // pred_fallthru
          _
        // Predicated region
        $region137: #{tpu_custom_call.1} parent=103 // pred_check
          %p896 = pneg %p342
        $region138: #{tpu_custom_call.1} parent=103 // pred_check_branch
          %898 = sbr.rel (%p896) target = $region140
        $region139: #{tpu_custom_call.1} parent=103 // pred_region
          %899 = dma.done [#allocation15], 128
        $region140: #{tpu_custom_call.1} parent=103 // pred_fallthru
          _
        // Predicated region
        $region141: #{tpu_custom_call.1} parent=103 // pred_check
          %p900 = pneg %p363
        $region142: #{tpu_custom_call.1} parent=103 // pred_check_branch
          %902 = sbr.rel (%p900) target = $region144
        $region143: #{tpu_custom_call.1} parent=103 // pred_region
          %903 = dma.done [#allocation18], 32768
        $region144: #{tpu_custom_call.1} parent=103 // pred_fallthru
          _
        // Predicated region
        $region145: #{tpu_custom_call.1} parent=103 // pred_check
          %p904 = pneg %p384
        $region146: #{tpu_custom_call.1} parent=103 // pred_check_branch
          %906 = sbr.rel (%p904) target = $region148
        $region147: #{tpu_custom_call.1} parent=103 // pred_region
          %907 = dma.done [#allocation18], 64
        $region148: #{tpu_custom_call.1} parent=103 // pred_fallthru
          _
        // Predicated region
        $region149: #{tpu_custom_call.1} parent=103 // pred_check
          %p908 = pneg %p405
        $region150: #{tpu_custom_call.1} parent=103 // pred_check_branch
          %910 = sbr.rel (%p908) target = $region152
        $region151: #{tpu_custom_call.1} parent=103 // pred_region
          %911 = dma.done [#allocation21], 2048
        $region152: #{tpu_custom_call.1} parent=103 // pred_fallthru
          _
        // Predicated region
        $region153: #{tpu_custom_call.1} parent=103 // pred_check
          %p912 = pneg %p426
        $region154: #{tpu_custom_call.1} parent=103 // pred_check_branch
          %914 = sbr.rel (%p912) target = $region156
        $region155: #{tpu_custom_call.1} parent=103 // pred_region
          %915 = dma.done [#allocation21], 1024
        $region156: #{tpu_custom_call.1} parent=103 // pred_fallthru
          _
        // Predicated region
        $region157: #{tpu_custom_call.1} parent=103 // pred_check
          %p916 = pneg %p447
        $region158: #{tpu_custom_call.1} parent=103 // pred_check_branch
          %918 = sbr.rel (%p916) target = $region160
        $region159: #{tpu_custom_call.1} parent=103 // pred_region
          %919 = dma.done [#allocation24], 64
        $region160: #{tpu_custom_call.1} parent=103 // pred_fallthru
          _
        // Predicated region
        $region161: #{tpu_custom_call.1} parent=103 // pred_check
          %p920 = pneg %p468
        $region162: #{tpu_custom_call.1} parent=103 // pred_check_branch
          %922 = sbr.rel (%p920) target = $region164
        $region163: #{tpu_custom_call.1} parent=103 // pred_region
          %923 = dma.done [#allocation24], 64
        $region164: #{tpu_custom_call.1} parent=103 // pred_fallthru
          _
        // Predicated region
        $region165: #{tpu_custom_call.1} parent=103 // pred_check
          %p924 = pneg %p489
        $region166: #{tpu_custom_call.1} parent=103 // pred_check_branch
          %926 = sbr.rel (%p924) target = $region168
        $region167: #{tpu_custom_call.1} parent=103 // pred_region
          %927 = dma.done [#allocation27], 64
        $region168: #{tpu_custom_call.1} parent=103 // pred_fallthru
          _
        // Predicated region
        $region169: #{tpu_custom_call.1} parent=103 // pred_check
          %p928 = pneg %p510
        $region170: #{tpu_custom_call.1} parent=103 // pred_check_branch
          %930 = sbr.rel (%p928) target = $region172
        $region171: #{tpu_custom_call.1} parent=103 // pred_region
          %931 = dma.done [#allocation27], 64
        $region172: #{tpu_custom_call.1} parent=103 // pred_fallthru
          _
        %p932 = pneg %p70
        %p933 = pneg %p67
        %s934 = smul.u32 2, %s54
        %p935 = scmp.lt.s32.totalorder %s934, 7
        %s936 = scalar_select %p935, %s934, 7
        %s937 = smul.addr %s936, 8
        %s938 = scalar_lea.vmem %s1, %s937
        %p939 = pneg %p96
        %p940 = pneg %p93
        %s941 = sand.u32 %s109, 1
        %s942 = scalar_lea.sflag [#allocation3], %s941
        %s943 = sand.u32 %s109, 1
        %s944 = smul.addr %s943, 4
        %s945 = scalar_lea.vmem [#allocation2], %s944
        %p946 = pneg %p122
        %p947 = pneg %p119
        %s948 = sand.u32 %s54, 1
        %s949 = scalar_lea.sflag [#allocation6], %s948
        %s950 = sand.u32 %s135, 1
        %s951 = smul.addr %s950, 256
        %s952 = scalar_lea.vmem [#allocation5], %s951
        %p953 = pneg %p148
        %p954 = pneg %p145
        %p955 = scmp.lt.s32.totalorder %s54, 3
        %s956 = scalar_select %p955, %s54, 3
        %s957 = smul.addr %s956, 8
        %s958 = smul.addr %s957, 8
        %s959 = scalar_lea.vmem %s4, %s958
        %p960 = pneg %p174
        %p961 = pneg %p171
        %p962 = pneg %p195
        %p963 = pneg %p192
        %p964 = pneg %p216
        %p965 = pneg %p213
        %p966 = pneg %p237
        %p967 = pneg %p234
        %p968 = pneg %p258
        %p969 = pneg %p255
        %p970 = pneg %p279
        %p971 = pneg %p276
        %p972 = pneg %p300
        %p973 = pneg %p297
        %p974 = pneg %p321
        %p975 = pneg %p318
        %p976 = pneg %p342
        %p977 = pneg %p339
        %p978 = pneg %p363
        %p979 = pneg %p360
        %p980 = pneg %p384
        %p981 = pneg %p381
        %p982 = pneg %p405
        %p983 = pneg %p402
        %p984 = pneg %p426
        %p985 = pneg %p423
        %p986 = pneg %p447
        %p987 = pneg %p444
        %p988 = pneg %p468
        %p989 = pneg %p465
        %p990 = pneg %p489
        %p991 = pneg %p486
        %p992 = pneg %p510
        %p993 = pneg %p507
        %p994 = pneg %p536
        %p995 = pneg %p533
        %s996 = sand.u32 %s523, 1
        %s997 = scalar_lea.sflag [#allocation4], %s996
        %s998 = sand.u32 %s523, 1
        %s999 = smul.addr %s998, 4
        %s1000 = scalar_lea.vmem [#allocation29], %s999
        %p1001 = pneg %p562
        %p1002 = pneg %p559
        %s1003 = sand.u32 %s549, 1
        %s1004 = scalar_lea.sflag [#allocation31], %s1003
        %s1005 = sand.u32 %s549, 1
        %s1006 = smul.addr %s1005, 256
        %s1007 = scalar_lea.vmem [#allocation30], %s1006
        %p1008 = pneg %p588
        %p1009 = pneg %p585
        %s1010 = smul.u32 2, %s54
        %p1011 = scmp.lt.s32.totalorder %s1010, 7
        %s1012 = scalar_select %p1011, %s1010, 7
        %s1013 = smul.addr %s1012, 8
        %s1014 = scalar_lea.vmem %s23, %s1013
        %s1015 = smul.u32 2, %s54
        %p1016 = scmp.lt.s32.totalorder %s1015, 7
        %s1017 = scalar_select %p1016, %s1015, 7
        %s1018 = smul.addr %s1017, 8
        %s1019 = scalar_lea.vmem %s1, %s1018
        %s1020 = smul.u32 2, %s54
        %s1021 = smul.u32 4, %s54
        %s1022 = smul.u32 4, %s54
        %p1023 = scmp.lt.s32.totalorder %s54, 3
        %s1024 = scalar_select %p1023, %s54, 3
        %s1025 = smul.addr %s1024, 8
        %s1026 = smul.addr %s1025, 8
        %s1027 = scalar_lea.vmem %s4, %s1026
        %s1028 = smul.u32 4, %s54
        %s1029 = smul.u32 2, %s54
        %p1030 = scmp.lt.s32.totalorder %s1029, 7
        %s1031 = scalar_select %p1030, %s1029, 7
        %s1032 = smul.addr %s1031, 8
        %s1033 = scalar_lea.vmem %s23, %s1032
        %s1034 = smul.u32 2, %s54
        %v1035 = vld [vmem:[%s0] sm:$0xff]
        %v1036 = vld [vmem:[%s0 + $0x8] sm:$0xff]
        %v1037 = vld [vmem:[%s0 + $0x10] sm:$0xff]
        %v1038 = vld [vmem:[%s0 + $0x18] sm:$0xff]
        %v1039 = vld [vmem:[%s0 + $0x20] sm:$0xff]
        %v1040 = vld [vmem:[%s0 + $0x28] sm:$0xff]
        %v1041 = vld [vmem:[%s0 + $0x30] sm:$0xff]
        %v1042 = vld [vmem:[%s0 + $0x38] sm:$0xff]
        %v1043 = vld [vmem:[%s1019] sm:$0xff]
        %v1044 = vld [vmem:[%s1019 + $0x8] sm:$0xff]
        %v1045 = vld [vmem:[%s858] sm:$0xf]
        %v1046 = vld [vmem:[%s867] sm:$0xff]
        %v1047 = vld [vmem:[%s867 + $0x8] sm:$0xff]
        %v1048 = vld [vmem:[%s867 + $0x10] sm:$0xff]
        %v1049 = vld [vmem:[%s867 + $0x18] sm:$0xff]
        %v1050 = vld [vmem:[%s867 + $0x20] sm:$0xff]
        %v1051 = vld [vmem:[%s867 + $0x28] sm:$0xff]
        %v1052 = vld [vmem:[%s867 + $0x30] sm:$0xff]
        %v1053 = vld [vmem:[%s867 + $0x38] sm:$0xff]
        %v1054 = vld [vmem:[%s867 + $0x40] sm:$0xff]
        %v1055 = vld [vmem:[%s867 + $0x48] sm:$0xff]
        %v1056 = vld [vmem:[%s867 + $0x50] sm:$0xff]
        %v1057 = vld [vmem:[%s867 + $0x58] sm:$0xff]
        %v1058 = vld [vmem:[%s867 + $0x60] sm:$0xff]
        %v1059 = vld [vmem:[%s867 + $0x68] sm:$0xff]
        %v1060 = vld [vmem:[%s867 + $0x70] sm:$0xff]
        %v1061 = vld [vmem:[%s867 + $0x78] sm:$0xff]
        %v1062 = vld [vmem:[%s867 + $0x80] sm:$0xff]
        %v1063 = vld [vmem:[%s867 + $0x88] sm:$0xff]
        %v1064 = vld [vmem:[%s867 + $0x90] sm:$0xff]
        %v1065 = vld [vmem:[%s867 + $0x98] sm:$0xff]
        %v1066 = vld [vmem:[%s867 + $0xa0] sm:$0xff]
        %v1067 = vld [vmem:[%s867 + $0xa8] sm:$0xff]
        %v1068 = vld [vmem:[%s867 + $0xb0] sm:$0xff]
        %v1069 = vld [vmem:[%s867 + $0xb8] sm:$0xff]
        %v1070 = vld [vmem:[%s867 + $0xc0] sm:$0xff]
        %v1071 = vld [vmem:[%s867 + $0xc8] sm:$0xff]
        %v1072 = vld [vmem:[%s867 + $0xd0] sm:$0xff]
        %v1073 = vld [vmem:[%s867 + $0xd8] sm:$0xff]
        %v1074 = vld [vmem:[%s867 + $0xe0] sm:$0xff]
        %v1075 = vld [vmem:[%s867 + $0xe8] sm:$0xff]
        %v1076 = vld [vmem:[%s867 + $0xf0] sm:$0xff]
        %v1077 = vld [vmem:[%s867 + $0xf8] sm:$0xff]
        %v1078 = vld [vmem:[%s1027] sm:$0xff]
        %v1079 = vld [vmem:[%s1027 + $0x8] sm:$0xff]
        %v1080 = vld [vmem:[%s1027 + $0x10] sm:$0xff]
        %v1081 = vld [vmem:[%s1027 + $0x18] sm:$0xff]
        %v1082 = vld [vmem:[%s1027 + $0x20] sm:$0xff]
        %v1083 = vld [vmem:[%s1027 + $0x28] sm:$0xff]
        %v1084 = vld [vmem:[%s1027 + $0x30] sm:$0xff]
        %v1085 = vld [vmem:[%s1027 + $0x38] sm:$0xff]
        %v1086 = vld [vmem:[#allocation7] sm:$0xff]
        %v1087 = vld [vmem:[#allocation7 + $0x8] sm:$0xff]
        %v1088 = vld [vmem:[#allocation7 + $0x10] sm:$0xff]
        %v1089 = vld [vmem:[#allocation7 + $0x18] sm:$0xff]
        %v1090 = vld [vmem:[#allocation8] sm:$0x1]
        %v1092 = vlaneseq
        %v1093 = vshrl.u32 %v1092, 7
        %v1094 = vsub.s32 0, %v1093
        %v1095 = vrot.slane %v1090, %v1094
        %vm1097 = vcmask 261120
        %v1099 = vsel %vm1097, %v1035, 0
        %v1102 = vsel %vm1097, %v1036, 0
        %v1105 = vsel %vm1097, %v1037, 0
        %v1108 = vsel %vm1097, %v1038, 0
        %v1111 = vsel %vm1097, %v1039, 0
        %v1114 = vsel %vm1097, %v1040, 0
        %v1117 = vsel %vm1097, %v1041, 0
        %v1120 = vsel %vm1097, %v1042, 0
        %1122 = vmatprep.subr.mxu0 0.0
        %1123 = vmatpush1.msra.mxu0 %v1086
        %1124 = vmatprep.subr.mxu0 0.0
        %1125 = vmatpush1.msra.mxu0 %v1087
        %1126 = vmatprep.subr.mxu0 0.0
        %1127 = vmatpush1.msra.mxu0 %v1088
        %1128 = vmatprep.subr.mxu0 0.0
        %1129 = vmatpush1.msra.mxu0 %v1089
        %1130 = vmatprep.subr.mxu0 0.0
        %1131 = vmatpush1.msra.mxu0 0.0
        %1132 = vmatprep.subr.mxu0 0.0
        %1133 = vmatpush1.msra.mxu0 0.0
        %1134 = vmatprep.subr.mxu0 0.0
        %1135 = vmatpush1.msra.mxu0 0.0
        %1136 = vmatprep.subr.mxu0 0.0
        %1137 = vmatpush1.msra.mxu0 0.0
        %1138 = vmatprep.subr.mxu0 0.0
        %1139 = vmatpush1.msra.mxu0 0.0
        %1140 = vmatprep.subr.mxu0 0.0
        %1141 = vmatpush1.msra.mxu0 0.0
        %1142 = vmatprep.subr.mxu0 0.0
        %1143 = vmatpush1.msra.mxu0 0.0
        %1144 = vmatprep.subr.mxu0 0.0
        %1145 = vmatpush1.msra.mxu0 0.0
        %1146 = vmatprep.subr.mxu0 0.0
        %1147 = vmatpush1.msra.mxu0 0.0
        %1148 = vmatprep.subr.mxu0 0.0
        %1149 = vmatpush1.msra.mxu0 0.0
        %1150 = vmatprep.subr.mxu0 0.0
        %1151 = vmatpush1.msra.mxu0 0.0
        %1152 = vmatprep.subr.mxu0 0.0
        %1153 = vmatpush1.msra.mxu0 0.0
        %1154 = vmatprep.subr.mxu0 0.0
        %1155 = vmatpush1.msra.mxu0 0.0
        %1156 = vmatprep.subr.mxu0 0.0
        %1157 = vmatpush1.msra.mxu0 0.0
        %1158 = vmatprep.subr.mxu0 0.0
        %1159 = vmatpush1.msra.mxu0 0.0
        %1160 = vmatprep.subr.mxu0 0.0
        %1161 = vmatpush1.msra.mxu0 0.0
        %1162 = vmatprep.subr.mxu0 0.0
        %1163 = vmatpush1.msra.mxu0 0.0
        %1164 = vmatprep.subr.mxu0 0.0
        %1165 = vmatpush1.msra.mxu0 0.0
        %1166 = vmatprep.subr.mxu0 0.0
        %1167 = vmatpush1.msra.mxu0 0.0
        %1168 = vmatprep.subr.mxu0 0.0
        %1169 = vmatpush1.msra.mxu0 0.0
        %1170 = vmatprep.subr.mxu0 0.0
        %1171 = vmatpush1.msra.mxu0 0.0
        %1172 = vmatprep.subr.mxu0 0.0
        %1173 = vmatpush1.msra.mxu0 0.0
        %1174 = vmatprep.subr.mxu0 0.0
        %1175 = vmatpush1.msra.mxu0 0.0
        %1176 = vmatprep.subr.mxu0 0.0
        %1177 = vmatpush1.msra.mxu0 0.0
        %1178 = vmatprep.subr.mxu0 0.0
        %1179 = vmatpush1.msra.mxu0 0.0
        %1180 = vmatprep.subr.mxu0 0.0
        %1181 = vmatpush1.msra.mxu0 0.0
        %1182 = vmatprep.subr.mxu0 0.0
        %1183 = vmatpush1.msra.mxu0 0.0
        %1184 = vmatprep.subr.mxu0 0.0
        %1185 = vmatpush1.msra.mxu0 0.0
        %1186 = vmatprep.mubr.f32.mxu0 0.0
        %1187 = vmatmul.mubr.f32.gmra.mrb[0].mxu0 %v1099
        %v1188 = vpop.f32.mrb[0].mxu0
        %v1189 = vadd.f32 %v1095, %v1188
        %v1190 = vpop.f32.mrb[0].mxu0
        %1191 = vmatprep.mubr.f32.mxu0 0.0
        %1192 = vmatmul.mubr.f32.gmra.mrb[0].mxu0 %v1102
        %v1193 = vpop.f32.mrb[0].mxu0
        %v1194 = vadd.f32 %v1095, %v1193
        %v1195 = vpop.f32.mrb[0].mxu0
        %1196 = vmatprep.mubr.f32.mxu0 0.0
        %1197 = vmatmul.mubr.f32.gmra.mrb[0].mxu0 %v1105
        %v1198 = vpop.f32.mrb[0].mxu0
        %v1199 = vadd.f32 %v1095, %v1198
        %v1200 = vpop.f32.mrb[0].mxu0
        %1201 = vmatprep.mubr.f32.mxu0 0.0
        %1202 = vmatmul.mubr.f32.gmra.mrb[0].mxu0 %v1108
        %v1203 = vpop.f32.mrb[0].mxu0
        %v1204 = vadd.f32 %v1095, %v1203
        %v1205 = vpop.f32.mrb[0].mxu0
        %1206 = vmatprep.mubr.f32.mxu0 0.0
        %1207 = vmatmul.mubr.f32.gmra.mrb[0].mxu0 %v1111
        %v1208 = vpop.f32.mrb[0].mxu0
        %v1209 = vadd.f32 %v1095, %v1208
        %v1210 = vpop.f32.mrb[0].mxu0
        %1211 = vmatprep.mubr.f32.mxu0 0.0
        %1212 = vmatmul.mubr.f32.gmra.mrb[0].mxu0 %v1114
        %v1213 = vpop.f32.mrb[0].mxu0
        %v1214 = vadd.f32 %v1095, %v1213
        %v1215 = vpop.f32.mrb[0].mxu0
        %1216 = vmatprep.mubr.f32.mxu0 0.0
        %1217 = vmatmul.mubr.f32.gmra.mrb[0].mxu0 %v1117
        %v1218 = vpop.f32.mrb[0].mxu0
        %v1219 = vadd.f32 %v1095, %v1218
        %v1220 = vpop.f32.mrb[0].mxu0
        %1221 = vmatprep.mubr.f32.mxu0 0.0
        %1222 = vmatmul.mubr.f32.gmra.mrb[0].mxu0 %v1120
        %v1223 = vpop.f32.mrb[0].mxu0
        %v1224 = vadd.f32 %v1095, %v1223
        %v1225 = vpop.f32.mrb[0].mxu0
        %1226 = vdwg.mxu0
        %v1227 = vmax.f32 %v1189, 0.0
        %v1228 = vmax.f32 %v1194, 0.0
        %v1229 = vmax.f32 %v1199, 0.0
        %v1230 = vmax.f32 %v1204, 0.0
        %v1231 = vmax.f32 %v1209, 0.0
        %v1232 = vmax.f32 %v1214, 0.0
        %v1233 = vmax.f32 %v1219, 0.0
        %v1234 = vmax.f32 %v1224, 0.0
        %v1235 = vld [vmem:[%s7] sm:$0xff]
        %v1236 = vld [vmem:[%s7 + $0x8] sm:$0xff]
        %v1237 = vld [vmem:[%s7 + $0x10] sm:$0xff]
        %v1238 = vld [vmem:[%s7 + $0x18] sm:$0xff]
        %v1239 = vld [vmem:[#allocation10] sm:$0x1]
        %v1241 = vlaneseq
        %v1242 = vshrl.u32 %v1241, 7
        %v1243 = vsub.s32 0, %v1242
        %v1244 = vrot.slane %v1239, %v1243
        %1254 = vrot.lane.b32.xlu0 %v1227, 64
        %v1255 = vpop.permute.xlu0 %1254
        %1256 = vrot.lane.b32.xlu0 %v1228, 64
        %v1257 = vpop.permute.xlu0 %1256
        %1258 = vrot.lane.b32.xlu0 %v1229, 64
        %v1259 = vpop.permute.xlu0 %1258
        %1260 = vrot.lane.b32.xlu0 %v1230, 64
        %v1261 = vpop.permute.xlu0 %1260
        %1262 = vrot.lane.b32.xlu0 %v1231, 64
        %v1263 = vpop.permute.xlu0 %1262
        %1264 = vrot.lane.b32.xlu0 %v1232, 64
        %v1265 = vpop.permute.xlu0 %1264
        %1266 = vrot.lane.b32.xlu0 %v1233, 64
        %v1267 = vpop.permute.xlu0 %1266
        %1268 = vrot.lane.b32.xlu0 %v1234, 64
        %v1269 = vpop.permute.xlu0 %1268
        %v1270 = vsel %vm1097, %v1255, 0
        %v1272 = vsel %vm1097, %v1257, 0
        %v1274 = vsel %vm1097, %v1259, 0
        %v1276 = vsel %vm1097, %v1261, 0
        %v1278 = vsel %vm1097, %v1263, 0
        %v1280 = vsel %vm1097, %v1265, 0
        %v1282 = vsel %vm1097, %v1267, 0
        %v1284 = vsel %vm1097, %v1269, 0
        %1286 = vmatprep.subr.mxu0 0.0
        %1287 = vmatpush1.msra.mxu0 %v1235
        %1288 = vmatprep.subr.mxu0 0.0
        %1289 = vmatpush1.msra.mxu0 %v1236
        %1290 = vmatprep.subr.mxu0 0.0
        %1291 = vmatpush1.msra.mxu0 %v1237
        %1292 = vmatprep.subr.mxu0 0.0
        %1293 = vmatpush1.msra.mxu0 %v1238
        %1294 = vmatprep.subr.mxu0 0.0
        %1295 = vmatpush1.msra.mxu0 0.0
        %1296 = vmatprep.subr.mxu0 0.0
        %1297 = vmatpush1.msra.mxu0 0.0
        %1298 = vmatprep.subr.mxu0 0.0
        %1299 = vmatpush1.msra.mxu0 0.0
        %1300 = vmatprep.subr.mxu0 0.0
        %1301 = vmatpush1.msra.mxu0 0.0
        %1302 = vmatprep.subr.mxu0 0.0
        %1303 = vmatpush1.msra.mxu0 0.0
        %1304 = vmatprep.subr.mxu0 0.0
        %1305 = vmatpush1.msra.mxu0 0.0
        %1306 = vmatprep.subr.mxu0 0.0
        %1307 = vmatpush1.msra.mxu0 0.0
        %1308 = vmatprep.subr.mxu0 0.0
        %1309 = vmatpush1.msra.mxu0 0.0
        %1310 = vmatprep.subr.mxu0 0.0
        %1311 = vmatpush1.msra.mxu0 0.0
        %1312 = vmatprep.subr.mxu0 0.0
        %1313 = vmatpush1.msra.mxu0 0.0
        %1314 = vmatprep.subr.mxu0 0.0
        %1315 = vmatpush1.msra.mxu0 0.0
        %1316 = vmatprep.subr.mxu0 0.0
        %1317 = vmatpush1.msra.mxu0 0.0
        %1318 = vmatprep.subr.mxu0 0.0
        %1319 = vmatpush1.msra.mxu0 0.0
        %1320 = vmatprep.subr.mxu0 0.0
        %1321 = vmatpush1.msra.mxu0 0.0
        %1322 = vmatprep.subr.mxu0 0.0
        %1323 = vmatpush1.msra.mxu0 0.0
        %1324 = vmatprep.subr.mxu0 0.0
        %1325 = vmatpush1.msra.mxu0 0.0
        %1326 = vmatprep.subr.mxu0 0.0
        %1327 = vmatpush1.msra.mxu0 0.0
        %1328 = vmatprep.subr.mxu0 0.0
        %1329 = vmatpush1.msra.mxu0 0.0
        %1330 = vmatprep.subr.mxu0 0.0
        %1331 = vmatpush1.msra.mxu0 0.0
        %1332 = vmatprep.subr.mxu0 0.0
        %1333 = vmatpush1.msra.mxu0 0.0
        %1334 = vmatprep.subr.mxu0 0.0
        %1335 = vmatpush1.msra.mxu0 0.0
        %1336 = vmatprep.subr.mxu0 0.0
        %1337 = vmatpush1.msra.mxu0 0.0
        %1338 = vmatprep.subr.mxu0 0.0
        %1339 = vmatpush1.msra.mxu0 0.0
        %1340 = vmatprep.subr.mxu0 0.0
        %1341 = vmatpush1.msra.mxu0 0.0
        %1342 = vmatprep.subr.mxu0 0.0
        %1343 = vmatpush1.msra.mxu0 0.0
        %1344 = vmatprep.subr.mxu0 0.0
        %1345 = vmatpush1.msra.mxu0 0.0
        %1346 = vmatprep.subr.mxu0 0.0
        %1347 = vmatpush1.msra.mxu0 0.0
        %1348 = vmatprep.subr.mxu0 0.0
        %1349 = vmatpush1.msra.mxu0 0.0
        %1350 = vmatprep.mubr.f32.mxu0 0.0
        %1351 = vmatmul.mubr.f32.gmra.mrb[0].mxu0 %v1270
        %v1352 = vpop.f32.mrb[0].mxu0
        %v1353 = vadd.f32 %v1244, %v1352
        %v1354 = vpop.f32.mrb[0].mxu0
        %1355 = vmatprep.mubr.f32.mxu0 0.0
        %1356 = vmatmul.mubr.f32.gmra.mrb[0].mxu0 %v1272
        %v1357 = vpop.f32.mrb[0].mxu0
        %v1358 = vadd.f32 %v1244, %v1357
        %v1359 = vpop.f32.mrb[0].mxu0
        %1360 = vmatprep.mubr.f32.mxu0 0.0
        %1361 = vmatmul.mubr.f32.gmra.mrb[0].mxu0 %v1274
        %v1362 = vpop.f32.mrb[0].mxu0
        %v1363 = vadd.f32 %v1244, %v1362
        %v1364 = vpop.f32.mrb[0].mxu0
        %1365 = vmatprep.mubr.f32.mxu0 0.0
        %1366 = vmatmul.mubr.f32.gmra.mrb[0].mxu0 %v1276
        %v1367 = vpop.f32.mrb[0].mxu0
        %v1368 = vadd.f32 %v1244, %v1367
        %v1369 = vpop.f32.mrb[0].mxu0
        %1370 = vmatprep.mubr.f32.mxu0 0.0
        %1371 = vmatmul.mubr.f32.gmra.mrb[0].mxu0 %v1278
        %v1372 = vpop.f32.mrb[0].mxu0
        %v1373 = vadd.f32 %v1244, %v1372
        %v1374 = vpop.f32.mrb[0].mxu0
        %1375 = vmatprep.mubr.f32.mxu0 0.0
        %1376 = vmatmul.mubr.f32.gmra.mrb[0].mxu0 %v1280
        %v1377 = vpop.f32.mrb[0].mxu0
        %v1378 = vadd.f32 %v1244, %v1377
        %v1379 = vpop.f32.mrb[0].mxu0
        %1380 = vmatprep.mubr.f32.mxu0 0.0
        %1381 = vmatmul.mubr.f32.gmra.mrb[0].mxu0 %v1282
        %v1382 = vpop.f32.mrb[0].mxu0
        %v1383 = vadd.f32 %v1244, %v1382
        %v1384 = vpop.f32.mrb[0].mxu0
        %1385 = vmatprep.mubr.f32.mxu0 0.0
        %1386 = vmatmul.mubr.f32.gmra.mrb[0].mxu0 %v1284
        %v1387 = vpop.f32.mrb[0].mxu0
        %v1388 = vadd.f32 %v1244, %v1387
        %v1389 = vpop.f32.mrb[0].mxu0
        %1390 = vdwg.mxu0
        %vm1391 = vcmask 130048
        %v1392 = vsel %vm1391, %v1353, -inf
        %1393 = vmax.xlane.f32.xlu0 %v1392
        %v1394 = vpop.xlane.xlu0 %1393
        %v1395 = vsel %vm1391, %v1358, -inf
        %1396 = vmax.xlane.f32.xlu0 %v1395
        %v1397 = vpop.xlane.xlu0 %1396
        %v1398 = vsel %vm1391, %v1363, -inf
        %1399 = vmax.xlane.f32.xlu0 %v1398
        %v1400 = vpop.xlane.xlu0 %1399
        %v1401 = vsel %vm1391, %v1368, -inf
        %1402 = vmax.xlane.f32.xlu0 %v1401
        %v1403 = vpop.xlane.xlu0 %1402
        %v1404 = vsel %vm1391, %v1373, -inf
        %1405 = vmax.xlane.f32.xlu0 %v1404
        %v1406 = vpop.xlane.xlu0 %1405
        %v1407 = vsel %vm1391, %v1378, -inf
        %1408 = vmax.xlane.f32.xlu0 %v1407
        %v1409 = vpop.xlane.xlu0 %1408
        %v1410 = vsel %vm1391, %v1383, -inf
        %1411 = vmax.xlane.f32.xlu0 %v1410
        %v1412 = vpop.xlane.xlu0 %1411
        %v1413 = vsel %vm1391, %v1388, -inf
        %1414 = vmax.xlane.f32.xlu0 %v1413
        %v1415 = vpop.xlane.xlu0 %1414
        %v1416 = vsub.f32 %v1353, %v1394
        %v1417 = vsub.f32 %v1358, %v1397
        %v1418 = vsub.f32 %v1363, %v1400
        %v1419 = vsub.f32 %v1368, %v1403
        %v1420 = vsub.f32 %v1373, %v1406
        %v1421 = vsub.f32 %v1378, %v1409
        %v1422 = vsub.f32 %v1383, %v1412
        %v1423 = vsub.f32 %v1388, %v1415
        %v1424 = vmul.f32 %v1416, 1.442695
        %v1425 = vpow.pop %v1424
        %v1426 = vmul.f32 %v1417, 1.442695
        %v1427 = vpow.pop %v1426
        %v1428 = vmul.f32 %v1418, 1.442695
        %v1429 = vpow.pop %v1428
        %v1430 = vmul.f32 %v1419, 1.442695
        %v1431 = vpow.pop %v1430
        %v1432 = vmul.f32 %v1420, 1.442695
        %v1433 = vpow.pop %v1432
        %v1434 = vmul.f32 %v1421, 1.442695
        %v1435 = vpow.pop %v1434
        %v1436 = vmul.f32 %v1422, 1.442695
        %v1437 = vpow.pop %v1436
        %v1438 = vmul.f32 %v1423, 1.442695
        %v1439 = vpow.pop %v1438
        %v1440 = vsel %vm1391, %v1425, 0.0
        %1441 = vadd.xlane.f32.xlu0 %v1440
        %v1442 = vpop.xlane.xlu0 %1441
        %v1443 = vsel %vm1391, %v1427, 0.0
        %1444 = vadd.xlane.f32.xlu0 %v1443
        %v1445 = vpop.xlane.xlu0 %1444
        %v1446 = vsel %vm1391, %v1429, 0.0
        %1447 = vadd.xlane.f32.xlu0 %v1446
        %v1448 = vpop.xlane.xlu0 %1447
        %v1449 = vsel %vm1391, %v1431, 0.0
        %1450 = vadd.xlane.f32.xlu0 %v1449
        %v1451 = vpop.xlane.xlu0 %1450
        %v1452 = vsel %vm1391, %v1433, 0.0
        %1453 = vadd.xlane.f32.xlu0 %v1452
        %v1454 = vpop.xlane.xlu0 %1453
        %v1455 = vsel %vm1391, %v1435, 0.0
        %1456 = vadd.xlane.f32.xlu0 %v1455
        %v1457 = vpop.xlane.xlu0 %1456
        %v1458 = vsel %vm1391, %v1437, 0.0
        %1459 = vadd.xlane.f32.xlu0 %v1458
        %v1460 = vpop.xlane.xlu0 %1459
        %v1461 = vsel %vm1391, %v1439, 0.0
        %1462 = vadd.xlane.f32.xlu0 %v1461
        %v1463 = vpop.xlane.xlu0 %1462
        %v1464 = vrcp.pop %v1442
        %v1465 = vrcp.pop %v1445
        %v1466 = vrcp.pop %v1448
        %v1467 = vrcp.pop %v1451
        %v1468 = vrcp.pop %v1454
        %v1469 = vrcp.pop %v1457
        %v1470 = vrcp.pop %v1460
        %v1471 = vrcp.pop %v1463
        %v1472 = vmul.f32 %v1425, %v1464
        %v1473 = vmul.f32 %v1427, %v1465
        %v1474 = vmul.f32 %v1429, %v1466
        %v1475 = vmul.f32 %v1431, %v1467
        %v1476 = vmul.f32 %v1433, %v1468
        %v1477 = vmul.f32 %v1435, %v1469
        %v1478 = vmul.f32 %v1437, %v1470
        %v1479 = vmul.f32 %v1439, %v1471
        %v1481 = vsel %vm1097, %v1043, 0
        %v1484 = vsel %vm1097, %v1044, 0
        %1486 = vmatprep.subr.mxu0 0.0
        %1487 = vmatpush1.msra.mxu0 %v1086
        %1488 = vmatprep.subr.mxu0 0.0
        %1489 = vmatpush1.msra.mxu0 %v1087
        %1490 = vmatprep.subr.mxu0 0.0
        %1491 = vmatpush1.msra.mxu0 %v1088
        %1492 = vmatprep.subr.mxu0 0.0
        %1493 = vmatpush1.msra.mxu0 %v1089
        %1494 = vmatprep.subr.mxu0 0.0
        %1495 = vmatpush1.msra.mxu0 0.0
        %1496 = vmatprep.subr.mxu0 0.0
        %1497 = vmatpush1.msra.mxu0 0.0
        %1498 = vmatprep.subr.mxu0 0.0
        %1499 = vmatpush1.msra.mxu0 0.0
        %1500 = vmatprep.subr.mxu0 0.0
        %1501 = vmatpush1.msra.mxu0 0.0
        %1502 = vmatprep.subr.mxu0 0.0
        %1503 = vmatpush1.msra.mxu0 0.0
        %1504 = vmatprep.subr.mxu0 0.0
        %1505 = vmatpush1.msra.mxu0 0.0
        %1506 = vmatprep.subr.mxu0 0.0
        %1507 = vmatpush1.msra.mxu0 0.0
        %1508 = vmatprep.subr.mxu0 0.0
        %1509 = vmatpush1.msra.mxu0 0.0
        %1510 = vmatprep.subr.mxu0 0.0
        %1511 = vmatpush1.msra.mxu0 0.0
        %1512 = vmatprep.subr.mxu0 0.0
        %1513 = vmatpush1.msra.mxu0 0.0
        %1514 = vmatprep.subr.mxu0 0.0
        %1515 = vmatpush1.msra.mxu0 0.0
        %1516 = vmatprep.subr.mxu0 0.0
        %1517 = vmatpush1.msra.mxu0 0.0
        %1518 = vmatprep.subr.mxu0 0.0
        %1519 = vmatpush1.msra.mxu0 0.0
        %1520 = vmatprep.subr.mxu0 0.0
        %1521 = vmatpush1.msra.mxu0 0.0
        %1522 = vmatprep.subr.mxu0 0.0
        %1523 = vmatpush1.msra.mxu0 0.0
        %1524 = vmatprep.subr.mxu0 0.0
        %1525 = vmatpush1.msra.mxu0 0.0
        %1526 = vmatprep.subr.mxu0 0.0
        %1527 = vmatpush1.msra.mxu0 0.0
        %1528 = vmatprep.subr.mxu0 0.0
        %1529 = vmatpush1.msra.mxu0 0.0
        %1530 = vmatprep.subr.mxu0 0.0
        %1531 = vmatpush1.msra.mxu0 0.0
        %1532 = vmatprep.subr.mxu0 0.0
        %1533 = vmatpush1.msra.mxu0 0.0
        %1534 = vmatprep.subr.mxu0 0.0
        %1535 = vmatpush1.msra.mxu0 0.0
        %1536 = vmatprep.subr.mxu0 0.0
        %1537 = vmatpush1.msra.mxu0 0.0
        %1538 = vmatprep.subr.mxu0 0.0
        %1539 = vmatpush1.msra.mxu0 0.0
        %1540 = vmatprep.subr.mxu0 0.0
        %1541 = vmatpush1.msra.mxu0 0.0
        %1542 = vmatprep.subr.mxu0 0.0
        %1543 = vmatpush1.msra.mxu0 0.0
        %1544 = vmatprep.subr.mxu0 0.0
        %1545 = vmatpush1.msra.mxu0 0.0
        %1546 = vmatprep.subr.mxu0 0.0
        %1547 = vmatpush1.msra.mxu0 0.0
        %1548 = vmatprep.subr.mxu0 0.0
        %1549 = vmatpush1.msra.mxu0 0.0
        %1550 = vmatprep.mubr.f32.mxu0 0.0
        %1551 = vmatmul.mubr.f32.gmra.mrb[0].mxu0 %v1481
        %v1552 = vpop.f32.mrb[0].mxu0
        %v1553 = vadd.f32 %v1095, %v1552
        %v1554 = vpop.f32.mrb[0].mxu0
        %1555 = vmatprep.mubr.f32.mxu0 0.0
        %1556 = vmatmul.mubr.f32.gmra.mrb[0].mxu0 %v1484
        %v1557 = vpop.f32.mrb[0].mxu0
        %v1558 = vadd.f32 %v1095, %v1557
        %v1559 = vpop.f32.mrb[0].mxu0
        %1560 = vdwg.mxu0
        %v1561 = vmax.f32 %v1553, 0.0
        %v1562 = vmax.f32 %v1558, 0.0
        %1565 = vrot.lane.b32.xlu0 %v1561, 64
        %v1566 = vpop.permute.xlu0 %1565
        %1567 = vrot.lane.b32.xlu0 %v1562, 64
        %v1568 = vpop.permute.xlu0 %1567
        %v1569 = vsel %vm1097, %v1566, 0
        %v1571 = vsel %vm1097, %v1568, 0
        %1573 = vmatprep.subr.mxu0 0.0
        %1574 = vmatpush1.msra.mxu0 %v1235
        %1575 = vmatprep.subr.mxu0 0.0
        %1576 = vmatpush1.msra.mxu0 %v1236
        %1577 = vmatprep.subr.mxu0 0.0
        %1578 = vmatpush1.msra.mxu0 %v1237
        %1579 = vmatprep.subr.mxu0 0.0
        %1580 = vmatpush1.msra.mxu0 %v1238
        %1581 = vmatprep.subr.mxu0 0.0
        %1582 = vmatpush1.msra.mxu0 0.0
        %1583 = vmatprep.subr.mxu0 0.0
        %1584 = vmatpush1.msra.mxu0 0.0
        %1585 = vmatprep.subr.mxu0 0.0
        %1586 = vmatpush1.msra.mxu0 0.0
        %1587 = vmatprep.subr.mxu0 0.0
        %1588 = vmatpush1.msra.mxu0 0.0
        %1589 = vmatprep.subr.mxu0 0.0
        %1590 = vmatpush1.msra.mxu0 0.0
        %1591 = vmatprep.subr.mxu0 0.0
        %1592 = vmatpush1.msra.mxu0 0.0
        %1593 = vmatprep.subr.mxu0 0.0
        %1594 = vmatpush1.msra.mxu0 0.0
        %1595 = vmatprep.subr.mxu0 0.0
        %1596 = vmatpush1.msra.mxu0 0.0
        %1597 = vmatprep.subr.mxu0 0.0
        %1598 = vmatpush1.msra.mxu0 0.0
        %1599 = vmatprep.subr.mxu0 0.0
        %1600 = vmatpush1.msra.mxu0 0.0
        %1601 = vmatprep.subr.mxu0 0.0
        %1602 = vmatpush1.msra.mxu0 0.0
        %1603 = vmatprep.subr.mxu0 0.0
        %1604 = vmatpush1.msra.mxu0 0.0
        %1605 = vmatprep.subr.mxu0 0.0
        %1606 = vmatpush1.msra.mxu0 0.0
        %1607 = vmatprep.subr.mxu0 0.0
        %1608 = vmatpush1.msra.mxu0 0.0
        %1609 = vmatprep.subr.mxu0 0.0
        %1610 = vmatpush1.msra.mxu0 0.0
        %1611 = vmatprep.subr.mxu0 0.0
        %1612 = vmatpush1.msra.mxu0 0.0
        %1613 = vmatprep.subr.mxu0 0.0
        %1614 = vmatpush1.msra.mxu0 0.0
        %1615 = vmatprep.subr.mxu0 0.0
        %1616 = vmatpush1.msra.mxu0 0.0
        %1617 = vmatprep.subr.mxu0 0.0
        %1618 = vmatpush1.msra.mxu0 0.0
        %1619 = vmatprep.subr.mxu0 0.0
        %1620 = vmatpush1.msra.mxu0 0.0
        %1621 = vmatprep.subr.mxu0 0.0
        %1622 = vmatpush1.msra.mxu0 0.0
        %1623 = vmatprep.subr.mxu0 0.0
        %1624 = vmatpush1.msra.mxu0 0.0
        %1625 = vmatprep.subr.mxu0 0.0
        %1626 = vmatpush1.msra.mxu0 0.0
        %1627 = vmatprep.subr.mxu0 0.0
        %1628 = vmatpush1.msra.mxu0 0.0
        %1629 = vmatprep.subr.mxu0 0.0
        %1630 = vmatpush1.msra.mxu0 0.0
        %1631 = vmatprep.subr.mxu0 0.0
        %1632 = vmatpush1.msra.mxu0 0.0
        %1633 = vmatprep.subr.mxu0 0.0
        %1634 = vmatpush1.msra.mxu0 0.0
        %1635 = vmatprep.subr.mxu0 0.0
        %1636 = vmatpush1.msra.mxu0 0.0
        %1637 = vmatprep.mubr.f32.mxu0 0.0
        %1638 = vmatmul.mubr.f32.gmra.mrb[0].mxu0 %v1569
        %v1639 = vpop.f32.mrb[0].mxu0
        %v1640 = vadd.f32 %v1244, %v1639
        %v1641 = vpop.f32.mrb[0].mxu0
        %1642 = vmatprep.mubr.f32.mxu0 0.0
        %1643 = vmatmul.mubr.f32.gmra.mrb[0].mxu0 %v1571
        %v1644 = vpop.f32.mrb[0].mxu0
        %v1645 = vadd.f32 %v1244, %v1644
        %v1646 = vpop.f32.mrb[0].mxu0
        %1647 = vdwg.mxu0
        %v1648 = vsel %vm1391, %v1640, -inf
        %1649 = vmax.xlane.f32.xlu0 %v1648
        %v1650 = vpop.xlane.xlu0 %1649
        %v1651 = vsel %vm1391, %v1645, -inf
        %1652 = vmax.xlane.f32.xlu0 %v1651
        %v1653 = vpop.xlane.xlu0 %1652
        %v1654 = vsub.f32 %v1640, %v1650
        %v1655 = vsub.f32 %v1645, %v1653
        %v1656 = vmul.f32 %v1654, 1.442695
        %v1657 = vpow.pop %v1656
        %v1658 = vmul.f32 %v1655, 1.442695
        %v1659 = vpow.pop %v1658
        %v1660 = vsel %vm1391, %v1657, 0.0
        %1661 = vadd.xlane.f32.xlu0 %v1660
        %v1662 = vpop.xlane.xlu0 %1661
        %v1663 = vsel %vm1391, %v1659, 0.0
        %1664 = vadd.xlane.f32.xlu0 %v1663
        %v1665 = vpop.xlane.xlu0 %1664
        %v1666 = vrcp.pop %v1662
        %v1667 = vrcp.pop %v1665
        %v1668 = vmul.f32 %v1657, %v1666
        %v1669 = vmul.f32 %v1659, %v1667
        %1670 = vst.msk [vmem:[%s1033] sm:$0xff] %vm1391, %v1668
        %1671 = vst.msk [vmem:[%s1033 + $0x8] sm:$0xff] %vm1391, %v1669
        %v1672 = vld [vmem:[#allocation14] sm:$0xff]
        %v1673 = vld [vmem:[#allocation14 + $0x8] sm:$0xff]
        %v1674 = vld [vmem:[#allocation14 + $0x10] sm:$0xff]
        %v1675 = vld [vmem:[#allocation14 + $0x18] sm:$0xff]
        %v1676 = vld [vmem:[#allocation14 + $0x20] sm:$0xff]
        %v1677 = vld [vmem:[#allocation14 + $0x28] sm:$0xff]
        %v1678 = vld [vmem:[#allocation14 + $0x30] sm:$0xff]
        %v1679 = vld [vmem:[#allocation14 + $0x38] sm:$0xff]
        %v1680 = vld [vmem:[#allocation14 + $0x40] sm:$0xff]
        %v1681 = vld [vmem:[#allocation14 + $0x48] sm:$0xff]
        %v1682 = vld [vmem:[#allocation14 + $0x50] sm:$0xff]
        %v1683 = vld [vmem:[#allocation14 + $0x58] sm:$0xff]
        %v1684 = vld [vmem:[#allocation14 + $0x60] sm:$0xff]
        %v1685 = vld [vmem:[#allocation14 + $0x68] sm:$0xff]
        %v1686 = vld [vmem:[#allocation14 + $0x70] sm:$0xff]
        %v1687 = vld [vmem:[#allocation14 + $0x78] sm:$0xff]
        %v1688 = vld [vmem:[#allocation14 + $0x80] sm:$0xff]
        %v1689 = vld [vmem:[#allocation14 + $0x88] sm:$0xff]
        %v1690 = vld [vmem:[#allocation14 + $0x90] sm:$0xff]
        %v1691 = vld [vmem:[#allocation14 + $0x98] sm:$0xff]
        %v1692 = vld [vmem:[#allocation14 + $0xa0] sm:$0xff]
        %v1693 = vld [vmem:[#allocation14 + $0xa8] sm:$0xff]
        %v1694 = vld [vmem:[#allocation14 + $0xb0] sm:$0xff]
        %v1695 = vld [vmem:[#allocation14 + $0xb8] sm:$0xff]
        %v1696 = vld [vmem:[#allocation14 + $0xc0] sm:$0xff]
        %v1697 = vld [vmem:[#allocation14 + $0xc8] sm:$0xff]
        %v1698 = vld [vmem:[#allocation14 + $0xd0] sm:$0xff]
        %v1699 = vld [vmem:[#allocation14 + $0xd8] sm:$0xff]
        %v1700 = vld [vmem:[#allocation14 + $0xe0] sm:$0xff]
        %v1701 = vld [vmem:[#allocation14 + $0xe8] sm:$0xff]
        %v1702 = vld [vmem:[#allocation14 + $0xf0] sm:$0xff]
        %v1703 = vld [vmem:[#allocation14 + $0xf8] sm:$0xff]
        %v1704 = vld [vmem:[#allocation14 + $0x100] sm:$0xff]
        %v1705 = vld [vmem:[#allocation14 + $0x108] sm:$0xff]
        %v1706 = vld [vmem:[#allocation14 + $0x110] sm:$0xff]
        %v1707 = vld [vmem:[#allocation14 + $0x118] sm:$0xff]
        %v1708 = vld [vmem:[#allocation14 + $0x120] sm:$0xff]
        %v1709 = vld [vmem:[#allocation14 + $0x128] sm:$0xff]
        %v1710 = vld [vmem:[#allocation14 + $0x130] sm:$0xff]
        %v1711 = vld [vmem:[#allocation14 + $0x138] sm:$0xff]
        %v1712 = vld [vmem:[#allocation14 + $0x140] sm:$0xff]
        %v1713 = vld [vmem:[#allocation14 + $0x148] sm:$0xff]
        %v1714 = vld [vmem:[#allocation14 + $0x150] sm:$0xff]
        %v1715 = vld [vmem:[#allocation14 + $0x158] sm:$0xff]
        %v1716 = vld [vmem:[#allocation14 + $0x160] sm:$0xff]
        %v1717 = vld [vmem:[#allocation14 + $0x168] sm:$0xff]
        %v1718 = vld [vmem:[#allocation14 + $0x170] sm:$0xff]
        %v1719 = vld [vmem:[#allocation14 + $0x178] sm:$0xff]
        %v1720 = vld [vmem:[#allocation14 + $0x180] sm:$0xff]
        %v1721 = vld [vmem:[#allocation14 + $0x188] sm:$0xff]
        %v1722 = vld [vmem:[#allocation14 + $0x190] sm:$0xff]
        %v1723 = vld [vmem:[#allocation14 + $0x198] sm:$0xff]
        %v1724 = vld [vmem:[#allocation14 + $0x1a0] sm:$0xff]
        %v1725 = vld [vmem:[#allocation14 + $0x1a8] sm:$0xff]
        %v1726 = vld [vmem:[#allocation14 + $0x1b0] sm:$0xff]
        %v1727 = vld [vmem:[#allocation14 + $0x1b8] sm:$0xff]
        %v1728 = vld [vmem:[#allocation14 + $0x1c0] sm:$0xff]
        %v1729 = vld [vmem:[#allocation14 + $0x1c8] sm:$0xff]
        %v1730 = vld [vmem:[#allocation14 + $0x1d0] sm:$0xff]
        %v1731 = vld [vmem:[#allocation14 + $0x1d8] sm:$0xff]
        %v1732 = vld [vmem:[#allocation14 + $0x1e0] sm:$0xff]
        %v1733 = vld [vmem:[#allocation14 + $0x1e8] sm:$0xff]
        %v1734 = vld [vmem:[#allocation14 + $0x1f0] sm:$0xff]
        %v1735 = vld [vmem:[#allocation14 + $0x1f8] sm:$0xff]
        %v1736 = vld [vmem:[#allocation14 + $0x200] sm:$0xff]
        %v1737 = vld [vmem:[#allocation14 + $0x208] sm:$0xff]
        %v1738 = vld [vmem:[#allocation14 + $0x210] sm:$0xff]
        %v1739 = vld [vmem:[#allocation14 + $0x218] sm:$0xff]
        %v1740 = vld [vmem:[#allocation14 + $0x220] sm:$0xff]
        %v1741 = vld [vmem:[#allocation14 + $0x228] sm:$0xff]
        %v1742 = vld [vmem:[#allocation14 + $0x230] sm:$0xff]
        %v1743 = vld [vmem:[#allocation14 + $0x238] sm:$0xff]
        %v1744 = vld [vmem:[#allocation14 + $0x240] sm:$0xff]
        %v1745 = vld [vmem:[#allocation14 + $0x248] sm:$0xff]
        %v1746 = vld [vmem:[#allocation14 + $0x250] sm:$0xff]
        %v1747 = vld [vmem:[#allocation14 + $0x258] sm:$0xff]
        %v1748 = vld [vmem:[#allocation14 + $0x260] sm:$0xff]
        %v1749 = vld [vmem:[#allocation14 + $0x268] sm:$0xff]
        %v1750 = vld [vmem:[#allocation14 + $0x270] sm:$0xff]
        %v1751 = vld [vmem:[#allocation14 + $0x278] sm:$0xff]
        %v1752 = vld [vmem:[#allocation14 + $0x280] sm:$0xff]
        %v1753 = vld [vmem:[#allocation14 + $0x288] sm:$0xff]
        %v1754 = vld [vmem:[#allocation14 + $0x290] sm:$0xff]
        %v1755 = vld [vmem:[#allocation14 + $0x298] sm:$0xff]
        %v1756 = vld [vmem:[#allocation14 + $0x2a0] sm:$0xff]
        %v1757 = vld [vmem:[#allocation14 + $0x2a8] sm:$0xff]
        %v1758 = vld [vmem:[#allocation14 + $0x2b0] sm:$0xff]
        %v1759 = vld [vmem:[#allocation14 + $0x2b8] sm:$0xff]
        %v1760 = vld [vmem:[#allocation14 + $0x2c0] sm:$0xff]
        %v1761 = vld [vmem:[#allocation14 + $0x2c8] sm:$0xff]
        %v1762 = vld [vmem:[#allocation14 + $0x2d0] sm:$0xff]
        %v1763 = vld [vmem:[#allocation14 + $0x2d8] sm:$0xff]
        %v1764 = vld [vmem:[#allocation14 + $0x2e0] sm:$0xff]
        %v1765 = vld [vmem:[#allocation14 + $0x2e8] sm:$0xff]
        %v1766 = vld [vmem:[#allocation14 + $0x2f0] sm:$0xff]
        %v1767 = vld [vmem:[#allocation14 + $0x2f8] sm:$0xff]
        %v1768 = vld [vmem:[#allocation14 + $0x300] sm:$0xff]
        %v1769 = vld [vmem:[#allocation14 + $0x308] sm:$0xff]
        %v1770 = vld [vmem:[#allocation14 + $0x310] sm:$0xff]
        %v1771 = vld [vmem:[#allocation14 + $0x318] sm:$0xff]
        %v1772 = vld [vmem:[#allocation14 + $0x320] sm:$0xff]
        %v1773 = vld [vmem:[#allocation14 + $0x328] sm:$0xff]
        %v1774 = vld [vmem:[#allocation14 + $0x330] sm:$0xff]
        %v1775 = vld [vmem:[#allocation14 + $0x338] sm:$0xff]
        %v1776 = vld [vmem:[#allocation14 + $0x340] sm:$0xff]
        %v1777 = vld [vmem:[#allocation14 + $0x348] sm:$0xff]
        %v1778 = vld [vmem:[#allocation14 + $0x350] sm:$0xff]
        %v1779 = vld [vmem:[#allocation14 + $0x358] sm:$0xff]
        %v1780 = vld [vmem:[#allocation14 + $0x360] sm:$0xff]
        %v1781 = vld [vmem:[#allocation14 + $0x368] sm:$0xff]
        %v1782 = vld [vmem:[#allocation14 + $0x370] sm:$0xff]
        %v1783 = vld [vmem:[#allocation14 + $0x378] sm:$0xff]
        %v1784 = vld [vmem:[#allocation14 + $0x380] sm:$0xff]
        %v1785 = vld [vmem:[#allocation14 + $0x388] sm:$0xff]
        %v1786 = vld [vmem:[#allocation14 + $0x390] sm:$0xff]
        %v1787 = vld [vmem:[#allocation14 + $0x398] sm:$0xff]
        %v1788 = vld [vmem:[#allocation14 + $0x3a0] sm:$0xff]
        %v1789 = vld [vmem:[#allocation14 + $0x3a8] sm:$0xff]
        %v1790 = vld [vmem:[#allocation14 + $0x3b0] sm:$0xff]
        %v1791 = vld [vmem:[#allocation14 + $0x3b8] sm:$0xff]
        %v1792 = vld [vmem:[#allocation14 + $0x3c0] sm:$0xff]
        %v1793 = vld [vmem:[#allocation14 + $0x3c8] sm:$0xff]
        %v1794 = vld [vmem:[#allocation14 + $0x3d0] sm:$0xff]
        %v1795 = vld [vmem:[#allocation14 + $0x3d8] sm:$0xff]
        %v1796 = vld [vmem:[#allocation14 + $0x3e0] sm:$0xff]
        %v1797 = vld [vmem:[#allocation14 + $0x3e8] sm:$0xff]
        %v1798 = vld [vmem:[#allocation14 + $0x3f0] sm:$0xff]
        %v1799 = vld [vmem:[#allocation14 + $0x3f8] sm:$0xff]
        %v1800 = vld [vmem:[#allocation14 + $0x400] sm:$0xff]
        %v1801 = vld [vmem:[#allocation14 + $0x408] sm:$0xff]
        %v1802 = vld [vmem:[#allocation14 + $0x410] sm:$0xff]
        %v1803 = vld [vmem:[#allocation14 + $0x418] sm:$0xff]
        %v1804 = vld [vmem:[#allocation14 + $0x420] sm:$0xff]
        %v1805 = vld [vmem:[#allocation14 + $0x428] sm:$0xff]
        %v1806 = vld [vmem:[#allocation14 + $0x430] sm:$0xff]
        %v1807 = vld [vmem:[#allocation14 + $0x438] sm:$0xff]
        %v1808 = vld [vmem:[#allocation14 + $0x440] sm:$0xff]
        %v1809 = vld [vmem:[#allocation14 + $0x448] sm:$0xff]
        %v1810 = vld [vmem:[#allocation14 + $0x450] sm:$0xff]
        %v1811 = vld [vmem:[#allocation14 + $0x458] sm:$0xff]
        %v1812 = vld [vmem:[#allocation14 + $0x460] sm:$0xff]
        %v1813 = vld [vmem:[#allocation14 + $0x468] sm:$0xff]
        %v1814 = vld [vmem:[#allocation14 + $0x470] sm:$0xff]
        %v1815 = vld [vmem:[#allocation14 + $0x478] sm:$0xff]
        %v1816 = vld [vmem:[#allocation14 + $0x480] sm:$0xff]
        %v1817 = vld [vmem:[#allocation14 + $0x488] sm:$0xff]
        %v1818 = vld [vmem:[#allocation14 + $0x490] sm:$0xff]
        %v1819 = vld [vmem:[#allocation14 + $0x498] sm:$0xff]
        %v1820 = vld [vmem:[#allocation14 + $0x4a0] sm:$0xff]
        %v1821 = vld [vmem:[#allocation14 + $0x4a8] sm:$0xff]
        %v1822 = vld [vmem:[#allocation14 + $0x4b0] sm:$0xff]
        %v1823 = vld [vmem:[#allocation14 + $0x4b8] sm:$0xff]
        %v1824 = vld [vmem:[#allocation14 + $0x4c0] sm:$0xff]
        %v1825 = vld [vmem:[#allocation14 + $0x4c8] sm:$0xff]
        %v1826 = vld [vmem:[#allocation14 + $0x4d0] sm:$0xff]
        %v1827 = vld [vmem:[#allocation14 + $0x4d8] sm:$0xff]
        %v1828 = vld [vmem:[#allocation14 + $0x4e0] sm:$0xff]
        %v1829 = vld [vmem:[#allocation14 + $0x4e8] sm:$0xff]
        %v1830 = vld [vmem:[#allocation14 + $0x4f0] sm:$0xff]
        %v1831 = vld [vmem:[#allocation14 + $0x4f8] sm:$0xff]
        %v1832 = vld [vmem:[#allocation14 + $0x500] sm:$0xff]
        %v1833 = vld [vmem:[#allocation14 + $0x508] sm:$0xff]
        %v1834 = vld [vmem:[#allocation14 + $0x510] sm:$0xff]
        %v1835 = vld [vmem:[#allocation14 + $0x518] sm:$0xff]
        %v1836 = vld [vmem:[#allocation14 + $0x520] sm:$0xff]
        %v1837 = vld [vmem:[#allocation14 + $0x528] sm:$0xff]
        %v1838 = vld [vmem:[#allocation14 + $0x530] sm:$0xff]
        %v1839 = vld [vmem:[#allocation14 + $0x538] sm:$0xff]
        %v1840 = vld [vmem:[#allocation14 + $0x540] sm:$0xff]
        %v1841 = vld [vmem:[#allocation14 + $0x548] sm:$0xff]
        %v1842 = vld [vmem:[#allocation14 + $0x550] sm:$0xff]
        %v1843 = vld [vmem:[#allocation14 + $0x558] sm:$0xff]
        %v1844 = vld [vmem:[#allocation14 + $0x560] sm:$0xff]
        %v1845 = vld [vmem:[#allocation14 + $0x568] sm:$0xff]
        %v1846 = vld [vmem:[#allocation14 + $0x570] sm:$0xff]
        %v1847 = vld [vmem:[#allocation14 + $0x578] sm:$0xff]
        %v1848 = vld [vmem:[#allocation14 + $0x580] sm:$0xff]
        %v1849 = vld [vmem:[#allocation14 + $0x588] sm:$0xff]
        %v1850 = vld [vmem:[#allocation14 + $0x590] sm:$0xff]
        %v1851 = vld [vmem:[#allocation14 + $0x598] sm:$0xff]
        %v1852 = vld [vmem:[#allocation14 + $0x5a0] sm:$0xff]
        %v1853 = vld [vmem:[#allocation14 + $0x5a8] sm:$0xff]
        %v1854 = vld [vmem:[#allocation14 + $0x5b0] sm:$0xff]
        %v1855 = vld [vmem:[#allocation14 + $0x5b8] sm:$0xff]
        %v1856 = vld [vmem:[#allocation14 + $0x5c0] sm:$0xff]
        %v1857 = vld [vmem:[#allocation14 + $0x5c8] sm:$0xff]
        %v1858 = vld [vmem:[#allocation14 + $0x5d0] sm:$0xff]
        %v1859 = vld [vmem:[#allocation14 + $0x5d8] sm:$0xff]
        %v1860 = vld [vmem:[#allocation14 + $0x5e0] sm:$0xff]
        %v1861 = vld [vmem:[#allocation14 + $0x5e8] sm:$0xff]
        %v1862 = vld [vmem:[#allocation14 + $0x5f0] sm:$0xff]
        %v1863 = vld [vmem:[#allocation14 + $0x5f8] sm:$0xff]
        %v1864 = vld [vmem:[#allocation14 + $0x600] sm:$0xff]
        %v1865 = vld [vmem:[#allocation14 + $0x608] sm:$0xff]
        %v1866 = vld [vmem:[#allocation14 + $0x610] sm:$0xff]
        %v1867 = vld [vmem:[#allocation14 + $0x618] sm:$0xff]
        %v1868 = vld [vmem:[#allocation14 + $0x620] sm:$0xff]
        %v1869 = vld [vmem:[#allocation14 + $0x628] sm:$0xff]
        %v1870 = vld [vmem:[#allocation14 + $0x630] sm:$0xff]
        %v1871 = vld [vmem:[#allocation14 + $0x638] sm:$0xff]
        %v1872 = vld [vmem:[#allocation14 + $0x640] sm:$0xff]
        %v1873 = vld [vmem:[#allocation14 + $0x648] sm:$0xff]
        %v1874 = vld [vmem:[#allocation14 + $0x650] sm:$0xff]
        %v1875 = vld [vmem:[#allocation14 + $0x658] sm:$0xff]
        %v1876 = vld [vmem:[#allocation14 + $0x660] sm:$0xff]
        %v1877 = vld [vmem:[#allocation14 + $0x668] sm:$0xff]
        %v1878 = vld [vmem:[#allocation14 + $0x670] sm:$0xff]
        %v1879 = vld [vmem:[#allocation14 + $0x678] sm:$0xff]
        %v1880 = vld [vmem:[#allocation14 + $0x680] sm:$0xff]
        %v1881 = vld [vmem:[#allocation14 + $0x688] sm:$0xff]
        %v1882 = vld [vmem:[#allocation14 + $0x690] sm:$0xff]
        %v1883 = vld [vmem:[#allocation14 + $0x698] sm:$0xff]
        %v1884 = vld [vmem:[#allocation14 + $0x6a0] sm:$0xff]
        %v1885 = vld [vmem:[#allocation14 + $0x6a8] sm:$0xff]
        %v1886 = vld [vmem:[#allocation14 + $0x6b0] sm:$0xff]
        %v1887 = vld [vmem:[#allocation14 + $0x6b8] sm:$0xff]
        %v1888 = vld [vmem:[#allocation14 + $0x6c0] sm:$0xff]
        %v1889 = vld [vmem:[#allocation14 + $0x6c8] sm:$0xff]
        %v1890 = vld [vmem:[#allocation14 + $0x6d0] sm:$0xff]
        %v1891 = vld [vmem:[#allocation14 + $0x6d8] sm:$0xff]
        %v1892 = vld [vmem:[#allocation14 + $0x6e0] sm:$0xff]
        %v1893 = vld [vmem:[#allocation14 + $0x6e8] sm:$0xff]
        %v1894 = vld [vmem:[#allocation14 + $0x6f0] sm:$0xff]
        %v1895 = vld [vmem:[#allocation14 + $0x6f8] sm:$0xff]
        %v1896 = vld [vmem:[#allocation14 + $0x700] sm:$0xff]
        %v1897 = vld [vmem:[#allocation14 + $0x708] sm:$0xff]
        %v1898 = vld [vmem:[#allocation14 + $0x710] sm:$0xff]
        %v1899 = vld [vmem:[#allocation14 + $0x718] sm:$0xff]
        %v1900 = vld [vmem:[#allocation14 + $0x720] sm:$0xff]
        %v1901 = vld [vmem:[#allocation14 + $0x728] sm:$0xff]
        %v1902 = vld [vmem:[#allocation14 + $0x730] sm:$0xff]
        %v1903 = vld [vmem:[#allocation14 + $0x738] sm:$0xff]
        %v1904 = vld [vmem:[#allocation14 + $0x740] sm:$0xff]
        %v1905 = vld [vmem:[#allocation14 + $0x748] sm:$0xff]
        %v1906 = vld [vmem:[#allocation14 + $0x750] sm:$0xff]
        %v1907 = vld [vmem:[#allocation14 + $0x758] sm:$0xff]
        %v1908 = vld [vmem:[#allocation14 + $0x760] sm:$0xff]
        %v1909 = vld [vmem:[#allocation14 + $0x768] sm:$0xff]
        %v1910 = vld [vmem:[#allocation14 + $0x770] sm:$0xff]
        %v1911 = vld [vmem:[#allocation14 + $0x778] sm:$0xff]
        %v1912 = vld [vmem:[#allocation14 + $0x780] sm:$0xff]
        %v1913 = vld [vmem:[#allocation14 + $0x788] sm:$0xff]
        %v1914 = vld [vmem:[#allocation14 + $0x790] sm:$0xff]
        %v1915 = vld [vmem:[#allocation14 + $0x798] sm:$0xff]
        %v1916 = vld [vmem:[#allocation14 + $0x7a0] sm:$0xff]
        %v1917 = vld [vmem:[#allocation14 + $0x7a8] sm:$0xff]
        %v1918 = vld [vmem:[#allocation14 + $0x7b0] sm:$0xff]
        %v1919 = vld [vmem:[#allocation14 + $0x7b8] sm:$0xff]
        %v1920 = vld [vmem:[#allocation14 + $0x7c0] sm:$0xff]
        %v1921 = vld [vmem:[#allocation14 + $0x7c8] sm:$0xff]
        %v1922 = vld [vmem:[#allocation14 + $0x7d0] sm:$0xff]
        %v1923 = vld [vmem:[#allocation14 + $0x7d8] sm:$0xff]
        %v1924 = vld [vmem:[#allocation14 + $0x7e0] sm:$0xff]
        %v1925 = vld [vmem:[#allocation14 + $0x7e8] sm:$0xff]
        %v1926 = vld [vmem:[#allocation14 + $0x7f0] sm:$0xff]
        %v1927 = vld [vmem:[#allocation14 + $0x7f8] sm:$0xff]
        %v1928 = vld [vmem:[#allocation14 + $0x800] sm:$0xff]
        %v1929 = vld [vmem:[#allocation14 + $0x808] sm:$0xff]
        %v1930 = vld [vmem:[#allocation14 + $0x810] sm:$0xff]
        %v1931 = vld [vmem:[#allocation14 + $0x818] sm:$0xff]
        %v1932 = vld [vmem:[#allocation14 + $0x820] sm:$0xff]
        %v1933 = vld [vmem:[#allocation14 + $0x828] sm:$0xff]
        %v1934 = vld [vmem:[#allocation14 + $0x830] sm:$0xff]
        %v1935 = vld [vmem:[#allocation14 + $0x838] sm:$0xff]
        %v1936 = vld [vmem:[#allocation14 + $0x840] sm:$0xff]
        %v1937 = vld [vmem:[#allocation14 + $0x848] sm:$0xff]
        %v1938 = vld [vmem:[#allocation14 + $0x850] sm:$0xff]
        %v1939 = vld [vmem:[#allocation14 + $0x858] sm:$0xff]
        %v1940 = vld [vmem:[#allocation14 + $0x860] sm:$0xff]
        %v1941 = vld [vmem:[#allocation14 + $0x868] sm:$0xff]
        %v1942 = vld [vmem:[#allocation14 + $0x870] sm:$0xff]
        %v1943 = vld [vmem:[#allocation14 + $0x878] sm:$0xff]
        %v1944 = vld [vmem:[#allocation14 + $0x880] sm:$0xff]
        %v1945 = vld [vmem:[#allocation14 + $0x888] sm:$0xff]
        %v1946 = vld [vmem:[#allocation14 + $0x890] sm:$0xff]
        %v1947 = vld [vmem:[#allocation14 + $0x898] sm:$0xff]
        %v1948 = vld [vmem:[#allocation14 + $0x8a0] sm:$0xff]
        %v1949 = vld [vmem:[#allocation14 + $0x8a8] sm:$0xff]
        %v1950 = vld [vmem:[#allocation14 + $0x8b0] sm:$0xff]
        %v1951 = vld [vmem:[#allocation14 + $0x8b8] sm:$0xff]
        %v1952 = vld [vmem:[#allocation14 + $0x8c0] sm:$0xff]
        %v1953 = vld [vmem:[#allocation14 + $0x8c8] sm:$0xff]
        %v1954 = vld [vmem:[#allocation14 + $0x8d0] sm:$0xff]
        %v1955 = vld [vmem:[#allocation14 + $0x8d8] sm:$0xff]
        %v1956 = vld [vmem:[#allocation14 + $0x8e0] sm:$0xff]
        %v1957 = vld [vmem:[#allocation14 + $0x8e8] sm:$0xff]
        %v1958 = vld [vmem:[#allocation14 + $0x8f0] sm:$0xff]
        %v1959 = vld [vmem:[#allocation14 + $0x8f8] sm:$0xff]
        %v1960 = vld [vmem:[#allocation14 + $0x900] sm:$0xff]
        %v1961 = vld [vmem:[#allocation14 + $0x908] sm:$0xff]
        %v1962 = vld [vmem:[#allocation14 + $0x910] sm:$0xff]
        %v1963 = vld [vmem:[#allocation14 + $0x918] sm:$0xff]
        %v1964 = vld [vmem:[#allocation14 + $0x920] sm:$0xff]
        %v1965 = vld [vmem:[#allocation14 + $0x928] sm:$0xff]
        %v1966 = vld [vmem:[#allocation14 + $0x930] sm:$0xff]
        %v1967 = vld [vmem:[#allocation14 + $0x938] sm:$0xff]
        %v1968 = vld [vmem:[#allocation14 + $0x940] sm:$0xff]
        %v1969 = vld [vmem:[#allocation14 + $0x948] sm:$0xff]
        %v1970 = vld [vmem:[#allocation14 + $0x950] sm:$0xff]
        %v1971 = vld [vmem:[#allocation14 + $0x958] sm:$0xff]
        %v1972 = vld [vmem:[#allocation14 + $0x960] sm:$0xff]
        %v1973 = vld [vmem:[#allocation14 + $0x968] sm:$0xff]
        %v1974 = vld [vmem:[#allocation14 + $0x970] sm:$0xff]
        %v1975 = vld [vmem:[#allocation14 + $0x978] sm:$0xff]
        %v1976 = vld [vmem:[#allocation14 + $0x980] sm:$0xff]
        %v1977 = vld [vmem:[#allocation14 + $0x988] sm:$0xff]
        %v1978 = vld [vmem:[#allocation14 + $0x990] sm:$0xff]
        %v1979 = vld [vmem:[#allocation14 + $0x998] sm:$0xff]
        %v1980 = vld [vmem:[#allocation14 + $0x9a0] sm:$0xff]
        %v1981 = vld [vmem:[#allocation14 + $0x9a8] sm:$0xff]
        %v1982 = vld [vmem:[#allocation14 + $0x9b0] sm:$0xff]
        %v1983 = vld [vmem:[#allocation14 + $0x9b8] sm:$0xff]
        %v1984 = vld [vmem:[#allocation14 + $0x9c0] sm:$0xff]
        %v1985 = vld [vmem:[#allocation14 + $0x9c8] sm:$0xff]
        %v1986 = vld [vmem:[#allocation14 + $0x9d0] sm:$0xff]
        %v1987 = vld [vmem:[#allocation14 + $0x9d8] sm:$0xff]
        %v1988 = vld [vmem:[#allocation14 + $0x9e0] sm:$0xff]
        %v1989 = vld [vmem:[#allocation14 + $0x9e8] sm:$0xff]
        %v1990 = vld [vmem:[#allocation14 + $0x9f0] sm:$0xff]
        %v1991 = vld [vmem:[#allocation14 + $0x9f8] sm:$0xff]
        %v1992 = vld [vmem:[#allocation14 + $0xa00] sm:$0xff]
        %v1993 = vld [vmem:[#allocation14 + $0xa08] sm:$0xff]
        %v1994 = vld [vmem:[#allocation14 + $0xa10] sm:$0xff]
        %v1995 = vld [vmem:[#allocation14 + $0xa18] sm:$0xff]
        %v1996 = vld [vmem:[#allocation14 + $0xa20] sm:$0xff]
        %v1997 = vld [vmem:[#allocation14 + $0xa28] sm:$0xff]
        %v1998 = vld [vmem:[#allocation14 + $0xa30] sm:$0xff]
        %v1999 = vld [vmem:[#allocation14 + $0xa38] sm:$0xff]
        %v2000 = vld [vmem:[#allocation14 + $0xa40] sm:$0xff]
        %v2001 = vld [vmem:[#allocation14 + $0xa48] sm:$0xff]
        %v2002 = vld [vmem:[#allocation14 + $0xa50] sm:$0xff]
        %v2003 = vld [vmem:[#allocation14 + $0xa58] sm:$0xff]
        %v2004 = vld [vmem:[#allocation14 + $0xa60] sm:$0xff]
        %v2005 = vld [vmem:[#allocation14 + $0xa68] sm:$0xff]
        %v2006 = vld [vmem:[#allocation14 + $0xa70] sm:$0xff]
        %v2007 = vld [vmem:[#allocation14 + $0xa78] sm:$0xff]
        %v2008 = vld [vmem:[#allocation14 + $0xa80] sm:$0xff]
        %v2009 = vld [vmem:[#allocation14 + $0xa88] sm:$0xff]
        %v2010 = vld [vmem:[#allocation14 + $0xa90] sm:$0xff]
        %v2011 = vld [vmem:[#allocation14 + $0xa98] sm:$0xff]
        %v2012 = vld [vmem:[#allocation14 + $0xaa0] sm:$0xff]
        %v2013 = vld [vmem:[#allocation14 + $0xaa8] sm:$0xff]
        %v2014 = vld [vmem:[#allocation14 + $0xab0] sm:$0xff]
        %v2015 = vld [vmem:[#allocation14 + $0xab8] sm:$0xff]
        %v2016 = vld [vmem:[#allocation14 + $0xac0] sm:$0xff]
        %v2017 = vld [vmem:[#allocation14 + $0xac8] sm:$0xff]
        %v2018 = vld [vmem:[#allocation14 + $0xad0] sm:$0xff]
        %v2019 = vld [vmem:[#allocation14 + $0xad8] sm:$0xff]
        %v2020 = vld [vmem:[#allocation14 + $0xae0] sm:$0xff]
        %v2021 = vld [vmem:[#allocation14 + $0xae8] sm:$0xff]
        %v2022 = vld [vmem:[#allocation14 + $0xaf0] sm:$0xff]
        %v2023 = vld [vmem:[#allocation14 + $0xaf8] sm:$0xff]
        %v2024 = vld [vmem:[#allocation14 + $0xb00] sm:$0xff]
        %v2025 = vld [vmem:[#allocation14 + $0xb08] sm:$0xff]
        %v2026 = vld [vmem:[#allocation14 + $0xb10] sm:$0xff]
        %v2027 = vld [vmem:[#allocation14 + $0xb18] sm:$0xff]
        %v2028 = vld [vmem:[#allocation14 + $0xb20] sm:$0xff]
        %v2029 = vld [vmem:[#allocation14 + $0xb28] sm:$0xff]
        %v2030 = vld [vmem:[#allocation14 + $0xb30] sm:$0xff]
        %v2031 = vld [vmem:[#allocation14 + $0xb38] sm:$0xff]
        %v2032 = vld [vmem:[#allocation14 + $0xb40] sm:$0xff]
        %v2033 = vld [vmem:[#allocation14 + $0xb48] sm:$0xff]
        %v2034 = vld [vmem:[#allocation14 + $0xb50] sm:$0xff]
        %v2035 = vld [vmem:[#allocation14 + $0xb58] sm:$0xff]
        %v2036 = vld [vmem:[#allocation14 + $0xb60] sm:$0xff]
        %v2037 = vld [vmem:[#allocation14 + $0xb68] sm:$0xff]
        %v2038 = vld [vmem:[#allocation14 + $0xb70] sm:$0xff]
        %v2039 = vld [vmem:[#allocation14 + $0xb78] sm:$0xff]
        %v2040 = vld [vmem:[#allocation14 + $0xb80] sm:$0xff]
        %v2041 = vld [vmem:[#allocation14 + $0xb88] sm:$0xff]
        %v2042 = vld [vmem:[#allocation14 + $0xb90] sm:$0xff]
        %v2043 = vld [vmem:[#allocation14 + $0xb98] sm:$0xff]
        %v2044 = vld [vmem:[#allocation14 + $0xba0] sm:$0xff]
        %v2045 = vld [vmem:[#allocation14 + $0xba8] sm:$0xff]
        %v2046 = vld [vmem:[#allocation14 + $0xbb0] sm:$0xff]
        %v2047 = vld [vmem:[#allocation14 + $0xbb8] sm:$0xff]
        %v2048 = vld [vmem:[#allocation14 + $0xbc0] sm:$0xff]
        %v2049 = vld [vmem:[#allocation14 + $0xbc8] sm:$0xff]
        %v2050 = vld [vmem:[#allocation14 + $0xbd0] sm:$0xff]
        %v2051 = vld [vmem:[#allocation14 + $0xbd8] sm:$0xff]
        %v2052 = vld [vmem:[#allocation14 + $0xbe0] sm:$0xff]
        %v2053 = vld [vmem:[#allocation14 + $0xbe8] sm:$0xff]
        %v2054 = vld [vmem:[#allocation14 + $0xbf0] sm:$0xff]
        %v2055 = vld [vmem:[#allocation14 + $0xbf8] sm:$0xff]
        %v2056 = vld [vmem:[#allocation14 + $0xc00] sm:$0xff]
        %v2057 = vld [vmem:[#allocation14 + $0xc08] sm:$0xff]
        %v2058 = vld [vmem:[#allocation14 + $0xc10] sm:$0xff]
        %v2059 = vld [vmem:[#allocation14 + $0xc18] sm:$0xff]
        %v2060 = vld [vmem:[#allocation14 + $0xc20] sm:$0xff]
        %v2061 = vld [vmem:[#allocation14 + $0xc28] sm:$0xff]
        %v2062 = vld [vmem:[#allocation14 + $0xc30] sm:$0xff]
        %v2063 = vld [vmem:[#allocation14 + $0xc38] sm:$0xff]
        %v2064 = vld [vmem:[#allocation14 + $0xc40] sm:$0xff]
        %v2065 = vld [vmem:[#allocation14 + $0xc48] sm:$0xff]
        %v2066 = vld [vmem:[#allocation14 + $0xc50] sm:$0xff]
        %v2067 = vld [vmem:[#allocation14 + $0xc58] sm:$0xff]
        %v2068 = vld [vmem:[#allocation14 + $0xc60] sm:$0xff]
        %v2069 = vld [vmem:[#allocation14 + $0xc68] sm:$0xff]
        %v2070 = vld [vmem:[#allocation14 + $0xc70] sm:$0xff]
        %v2071 = vld [vmem:[#allocation14 + $0xc78] sm:$0xff]
        %v2072 = vld [vmem:[#allocation14 + $0xc80] sm:$0xff]
        %v2073 = vld [vmem:[#allocation14 + $0xc88] sm:$0xff]
        %v2074 = vld [vmem:[#allocation14 + $0xc90] sm:$0xff]
        %v2075 = vld [vmem:[#allocation14 + $0xc98] sm:$0xff]
        %v2076 = vld [vmem:[#allocation14 + $0xca0] sm:$0xff]
        %v2077 = vld [vmem:[#allocation14 + $0xca8] sm:$0xff]
        %v2078 = vld [vmem:[#allocation14 + $0xcb0] sm:$0xff]
        %v2079 = vld [vmem:[#allocation14 + $0xcb8] sm:$0xff]
        %v2080 = vld [vmem:[#allocation14 + $0xcc0] sm:$0xff]
        %v2081 = vld [vmem:[#allocation14 + $0xcc8] sm:$0xff]
        %v2082 = vld [vmem:[#allocation14 + $0xcd0] sm:$0xff]
        %v2083 = vld [vmem:[#allocation14 + $0xcd8] sm:$0xff]
        %v2084 = vld [vmem:[#allocation14 + $0xce0] sm:$0xff]
        %v2085 = vld [vmem:[#allocation14 + $0xce8] sm:$0xff]
        %v2086 = vld [vmem:[#allocation14 + $0xcf0] sm:$0xff]
        %v2087 = vld [vmem:[#allocation14 + $0xcf8] sm:$0xff]
        %v2088 = vld [vmem:[#allocation14 + $0xd00] sm:$0xff]
        %v2089 = vld [vmem:[#allocation14 + $0xd08] sm:$0xff]
        %v2090 = vld [vmem:[#allocation14 + $0xd10] sm:$0xff]
        %v2091 = vld [vmem:[#allocation14 + $0xd18] sm:$0xff]
        %v2092 = vld [vmem:[#allocation14 + $0xd20] sm:$0xff]
        %v2093 = vld [vmem:[#allocation14 + $0xd28] sm:$0xff]
        %v2094 = vld [vmem:[#allocation14 + $0xd30] sm:$0xff]
        %v2095 = vld [vmem:[#allocation14 + $0xd38] sm:$0xff]
        %v2096 = vld [vmem:[#allocation14 + $0xd40] sm:$0xff]
        %v2097 = vld [vmem:[#allocation14 + $0xd48] sm:$0xff]
        %v2098 = vld [vmem:[#allocation14 + $0xd50] sm:$0xff]
        %v2099 = vld [vmem:[#allocation14 + $0xd58] sm:$0xff]
        %v2100 = vld [vmem:[#allocation14 + $0xd60] sm:$0xff]
        %v2101 = vld [vmem:[#allocation14 + $0xd68] sm:$0xff]
        %v2102 = vld [vmem:[#allocation14 + $0xd70] sm:$0xff]
        %v2103 = vld [vmem:[#allocation14 + $0xd78] sm:$0xff]
        %v2104 = vld [vmem:[#allocation14 + $0xd80] sm:$0xff]
        %v2105 = vld [vmem:[#allocation14 + $0xd88] sm:$0xff]
        %v2106 = vld [vmem:[#allocation14 + $0xd90] sm:$0xff]
        %v2107 = vld [vmem:[#allocation14 + $0xd98] sm:$0xff]
        %v2108 = vld [vmem:[#allocation14 + $0xda0] sm:$0xff]
        %v2109 = vld [vmem:[#allocation14 + $0xda8] sm:$0xff]
        %v2110 = vld [vmem:[#allocation14 + $0xdb0] sm:$0xff]
        %v2111 = vld [vmem:[#allocation14 + $0xdb8] sm:$0xff]
        %v2112 = vld [vmem:[#allocation14 + $0xdc0] sm:$0xff]
        %v2113 = vld [vmem:[#allocation14 + $0xdc8] sm:$0xff]
        %v2114 = vld [vmem:[#allocation14 + $0xdd0] sm:$0xff]
        %v2115 = vld [vmem:[#allocation14 + $0xdd8] sm:$0xff]
        %v2116 = vld [vmem:[#allocation14 + $0xde0] sm:$0xff]
        %v2117 = vld [vmem:[#allocation14 + $0xde8] sm:$0xff]
        %v2118 = vld [vmem:[#allocation14 + $0xdf0] sm:$0xff]
        %v2119 = vld [vmem:[#allocation14 + $0xdf8] sm:$0xff]
        %v2120 = vld [vmem:[#allocation14 + $0xe00] sm:$0xff]
        %v2121 = vld [vmem:[#allocation14 + $0xe08] sm:$0xff]
        %v2122 = vld [vmem:[#allocation14 + $0xe10] sm:$0xff]
        %v2123 = vld [vmem:[#allocation14 + $0xe18] sm:$0xff]
        %v2124 = vld [vmem:[#allocation14 + $0xe20] sm:$0xff]
        %v2125 = vld [vmem:[#allocation14 + $0xe28] sm:$0xff]
        %v2126 = vld [vmem:[#allocation14 + $0xe30] sm:$0xff]
        %v2127 = vld [vmem:[#allocation14 + $0xe38] sm:$0xff]
        %v2128 = vld [vmem:[#allocation14 + $0xe40] sm:$0xff]
        %v2129 = vld [vmem:[#allocation14 + $0xe48] sm:$0xff]
        %v2130 = vld [vmem:[#allocation14 + $0xe50] sm:$0xff]
        %v2131 = vld [vmem:[#allocation14 + $0xe58] sm:$0xff]
        %v2132 = vld [vmem:[#allocation14 + $0xe60] sm:$0xff]
        %v2133 = vld [vmem:[#allocation14 + $0xe68] sm:$0xff]
        %v2134 = vld [vmem:[#allocation14 + $0xe70] sm:$0xff]
        %v2135 = vld [vmem:[#allocation14 + $0xe78] sm:$0xff]
        %v2136 = vld [vmem:[#allocation14 + $0xe80] sm:$0xff]
        %v2137 = vld [vmem:[#allocation14 + $0xe88] sm:$0xff]
        %v2138 = vld [vmem:[#allocation14 + $0xe90] sm:$0xff]
        %v2139 = vld [vmem:[#allocation14 + $0xe98] sm:$0xff]
        %v2140 = vld [vmem:[#allocation14 + $0xea0] sm:$0xff]
        %v2141 = vld [vmem:[#allocation14 + $0xea8] sm:$0xff]
        %v2142 = vld [vmem:[#allocation14 + $0xeb0] sm:$0xff]
        %v2143 = vld [vmem:[#allocation14 + $0xeb8] sm:$0xff]
        %v2144 = vld [vmem:[#allocation14 + $0xec0] sm:$0xff]
        %v2145 = vld [vmem:[#allocation14 + $0xec8] sm:$0xff]
        %v2146 = vld [vmem:[#allocation14 + $0xed0] sm:$0xff]
        %v2147 = vld [vmem:[#allocation14 + $0xed8] sm:$0xff]
        %v2148 = vld [vmem:[#allocation14 + $0xee0] sm:$0xff]
        %v2149 = vld [vmem:[#allocation14 + $0xee8] sm:$0xff]
        %v2150 = vld [vmem:[#allocation14 + $0xef0] sm:$0xff]
        %v2151 = vld [vmem:[#allocation14 + $0xef8] sm:$0xff]
        %v2152 = vld [vmem:[#allocation14 + $0xf00] sm:$0xff]
        %v2153 = vld [vmem:[#allocation14 + $0xf08] sm:$0xff]
        %v2154 = vld [vmem:[#allocation14 + $0xf10] sm:$0xff]
        %v2155 = vld [vmem:[#allocation14 + $0xf18] sm:$0xff]
        %v2156 = vld [vmem:[#allocation14 + $0xf20] sm:$0xff]
        %v2157 = vld [vmem:[#allocation14 + $0xf28] sm:$0xff]
        %v2158 = vld [vmem:[#allocation14 + $0xf30] sm:$0xff]
        %v2159 = vld [vmem:[#allocation14 + $0xf38] sm:$0xff]
        %v2160 = vld [vmem:[#allocation14 + $0xf40] sm:$0xff]
        %v2161 = vld [vmem:[#allocation14 + $0xf48] sm:$0xff]
        %v2162 = vld [vmem:[#allocation14 + $0xf50] sm:$0xff]
        %v2163 = vld [vmem:[#allocation14 + $0xf58] sm:$0xff]
        %v2164 = vld [vmem:[#allocation14 + $0xf60] sm:$0xff]
        %v2165 = vld [vmem:[#allocation14 + $0xf68] sm:$0xff]
        %v2166 = vld [vmem:[#allocation14 + $0xf70] sm:$0xff]
        %v2167 = vld [vmem:[#allocation14 + $0xf78] sm:$0xff]
        %v2168 = vld [vmem:[#allocation14 + $0xf80] sm:$0xff]
        %v2169 = vld [vmem:[#allocation14 + $0xf88] sm:$0xff]
        %v2170 = vld [vmem:[#allocation14 + $0xf90] sm:$0xff]
        %v2171 = vld [vmem:[#allocation14 + $0xf98] sm:$0xff]
        %v2172 = vld [vmem:[#allocation14 + $0xfa0] sm:$0xff]
        %v2173 = vld [vmem:[#allocation14 + $0xfa8] sm:$0xff]
        %v2174 = vld [vmem:[#allocation14 + $0xfb0] sm:$0xff]
        %v2175 = vld [vmem:[#allocation14 + $0xfb8] sm:$0xff]
        %v2176 = vld [vmem:[#allocation14 + $0xfc0] sm:$0xff]
        %v2177 = vld [vmem:[#allocation14 + $0xfc8] sm:$0xff]
        %v2178 = vld [vmem:[#allocation14 + $0xfd0] sm:$0xff]
        %v2179 = vld [vmem:[#allocation14 + $0xfd8] sm:$0xff]
        %v2180 = vld [vmem:[#allocation14 + $0xfe0] sm:$0xff]
        %v2181 = vld [vmem:[#allocation14 + $0xfe8] sm:$0xff]
        %v2182 = vld [vmem:[#allocation14 + $0xff0] sm:$0xff]
        %v2183 = vld [vmem:[#allocation14 + $0xff8] sm:$0xff]
        %v2184 = vld [vmem:[#allocation16] sm:$0xff]
        %v2186 = vlaneseq
        %v2187 = vshrl.u32 %v2186, 7
        %v2188 = vsub.s32 0, %v2187
        %v2189 = vrot.slane %v1045, %v2188
        %v2190 = vlaneseq
        %v2191 = vshrl.u32 %v2190, 7
        %v2192 = vsub.s32 1, %v2191
        %v2193 = vrot.slane %v1045, %v2192
        %v2194 = vlaneseq
        %v2195 = vshrl.u32 %v2194, 7
        %v2196 = vsub.s32 2, %v2195
        %v2197 = vrot.slane %v1045, %v2196
        %v2198 = vlaneseq
        %v2199 = vshrl.u32 %v2198, 7
        %v2200 = vsub.s32 3, %v2199
        %v2201 = vrot.slane %v1045, %v2200
        %v2207 = vlaneseq
        %v2208 = vshrl.u32 %v2207, 7
        %v2209 = vsub.s32 0, %v2208
        %v2210 = vrot.slane %v2184, %v2209
        %v2211 = vlaneseq
        %v2212 = vshrl.u32 %v2211, 7
        %v2213 = vsub.s32 1, %v2212
        %v2214 = vrot.slane %v2184, %v2213
        %v2215 = vlaneseq
        %v2216 = vshrl.u32 %v2215, 7
        %v2217 = vsub.s32 2, %v2216
        %v2218 = vrot.slane %v2184, %v2217
        %v2219 = vlaneseq
        %v2220 = vshrl.u32 %v2219, 7
        %v2221 = vsub.s32 3, %v2220
        %v2222 = vrot.slane %v2184, %v2221
        %v2223 = vlaneseq
        %v2224 = vshrl.u32 %v2223, 7
        %v2225 = vsub.s32 4, %v2224
        %v2226 = vrot.slane %v2184, %v2225
        %v2227 = vlaneseq
        %v2228 = vshrl.u32 %v2227, 7
        %v2229 = vsub.s32 5, %v2228
        %v2230 = vrot.slane %v2184, %v2229
        %v2231 = vlaneseq
        %v2232 = vshrl.u32 %v2231, 7
        %v2233 = vsub.s32 6, %v2232
        %v2234 = vrot.slane %v2184, %v2233
        %v2235 = vlaneseq
        %v2236 = vshrl.u32 %v2235, 7
        %v2237 = vsub.s32 7, %v2236
        %v2238 = vrot.slane %v2184, %v2237
        %2247 = vmatprep.subr.mxu0 %v1673
        %2248 = vmatpush1.msra.mxu0 %v1672
        %2249 = vmatprep.subr.mxu0 %v1681
        %2250 = vmatpush1.msra.mxu0 %v1680
        %2251 = vmatprep.subr.mxu0 %v1689
        %2252 = vmatpush1.msra.mxu0 %v1688
        %2253 = vmatprep.subr.mxu0 %v1697
        %2254 = vmatpush1.msra.mxu0 %v1696
        %2255 = vmatprep.subr.mxu0 %v1705
        %2256 = vmatpush1.msra.mxu0 %v1704
        %2257 = vmatprep.subr.mxu0 %v1713
        %2258 = vmatpush1.msra.mxu0 %v1712
        %2259 = vmatprep.subr.mxu0 %v1721
        %2260 = vmatpush1.msra.mxu0 %v1720
        %2261 = vmatprep.subr.mxu0 %v1729
        %2262 = vmatpush1.msra.mxu0 %v1728
        %2263 = vmatprep.subr.mxu0 %v1737
        %2264 = vmatpush1.msra.mxu0 %v1736
        %2265 = vmatprep.subr.mxu0 %v1745
        %2266 = vmatpush1.msra.mxu0 %v1744
        %2267 = vmatprep.subr.mxu0 %v1753
        %2268 = vmatpush1.msra.mxu0 %v1752
        %2269 = vmatprep.subr.mxu0 %v1761
        %2270 = vmatpush1.msra.mxu0 %v1760
        %2271 = vmatprep.subr.mxu0 %v1769
        %2272 = vmatpush1.msra.mxu0 %v1768
        %2273 = vmatprep.subr.mxu0 %v1777
        %2274 = vmatpush1.msra.mxu0 %v1776
        %2275 = vmatprep.subr.mxu0 %v1785
        %2276 = vmatpush1.msra.mxu0 %v1784
        %2277 = vmatprep.subr.mxu0 %v1793
        %2278 = vmatpush1.msra.mxu0 %v1792
        %2279 = vmatprep.subr.mxu0 %v1801
        %2280 = vmatpush1.msra.mxu0 %v1800
        %2281 = vmatprep.subr.mxu0 %v1809
        %2282 = vmatpush1.msra.mxu0 %v1808
        %2283 = vmatprep.subr.mxu0 %v1817
        %2284 = vmatpush1.msra.mxu0 %v1816
        %2285 = vmatprep.subr.mxu0 %v1825
        %2286 = vmatpush1.msra.mxu0 %v1824
        %2287 = vmatprep.subr.mxu0 %v1833
        %2288 = vmatpush1.msra.mxu0 %v1832
        %2289 = vmatprep.subr.mxu0 %v1841
        %2290 = vmatpush1.msra.mxu0 %v1840
        %2291 = vmatprep.subr.mxu0 %v1849
        %2292 = vmatpush1.msra.mxu0 %v1848
        %2293 = vmatprep.subr.mxu0 %v1857
        %2294 = vmatpush1.msra.mxu0 %v1856
        %2295 = vmatprep.subr.mxu0 %v1865
        %2296 = vmatpush1.msra.mxu0 %v1864
        %2297 = vmatprep.subr.mxu0 %v1873
        %2298 = vmatpush1.msra.mxu0 %v1872
        %2299 = vmatprep.subr.mxu0 %v1881
        %2300 = vmatpush1.msra.mxu0 %v1880
        %2301 = vmatprep.subr.mxu0 %v1889
        %2302 = vmatpush1.msra.mxu0 %v1888
        %2303 = vmatprep.subr.mxu0 %v1897
        %2304 = vmatpush1.msra.mxu0 %v1896
        %2305 = vmatprep.subr.mxu0 %v1905
        %2306 = vmatpush1.msra.mxu0 %v1904
        %2307 = vmatprep.subr.mxu0 %v1913
        %2308 = vmatpush1.msra.mxu0 %v1912
        %2309 = vmatprep.subr.mxu0 %v1921
        %2310 = vmatpush1.msra.mxu0 %v1920
        %2311 = vmatprep.mubr.f32.mxu0 %v2193
        %2312 = vmatmul.mubr.f32.gmra.mrb[0].mxu0 %v2189
        %v2313 = vpop.f32.mrb[0].mxu0
        %v2314 = vadd.f32 %v2210, %v2313
        %v2315 = vpop.f32.mrb[0].mxu0
        %v2316 = vadd.f32 %v2214, %v2315
        %2317 = vdwg.mxu0
        %2318 = vmatprep.subr.mxu0 %v1929
        %2319 = vmatpush1.msra.mxu0 %v1928
        %2320 = vmatprep.subr.mxu0 %v1937
        %2321 = vmatpush1.msra.mxu0 %v1936
        %2322 = vmatprep.subr.mxu0 %v1945
        %2323 = vmatpush1.msra.mxu0 %v1944
        %2324 = vmatprep.subr.mxu0 %v1953
        %2325 = vmatpush1.msra.mxu0 %v1952
        %2326 = vmatprep.subr.mxu0 %v1961
        %2327 = vmatpush1.msra.mxu0 %v1960
        %2328 = vmatprep.subr.mxu0 %v1969
        %2329 = vmatpush1.msra.mxu0 %v1968
        %2330 = vmatprep.subr.mxu0 %v1977
        %2331 = vmatpush1.msra.mxu0 %v1976
        %2332 = vmatprep.subr.mxu0 %v1985
        %2333 = vmatpush1.msra.mxu0 %v1984
        %2334 = vmatprep.subr.mxu0 %v1993
        %2335 = vmatpush1.msra.mxu0 %v1992
        %2336 = vmatprep.subr.mxu0 %v2001
        %2337 = vmatpush1.msra.mxu0 %v2000
        %2338 = vmatprep.subr.mxu0 %v2009
        %2339 = vmatpush1.msra.mxu0 %v2008
        %2340 = vmatprep.subr.mxu0 %v2017
        %2341 = vmatpush1.msra.mxu0 %v2016
        %2342 = vmatprep.subr.mxu0 %v2025
        %2343 = vmatpush1.msra.mxu0 %v2024
        %2344 = vmatprep.subr.mxu0 %v2033
        %2345 = vmatpush1.msra.mxu0 %v2032
        %2346 = vmatprep.subr.mxu0 %v2041
        %2347 = vmatpush1.msra.mxu0 %v2040
        %2348 = vmatprep.subr.mxu0 %v2049
        %2349 = vmatpush1.msra.mxu0 %v2048
        %2350 = vmatprep.subr.mxu0 %v2057
        %2351 = vmatpush1.msra.mxu0 %v2056
        %2352 = vmatprep.subr.mxu0 %v2065
        %2353 = vmatpush1.msra.mxu0 %v2064
        %2354 = vmatprep.subr.mxu0 %v2073
        %2355 = vmatpush1.msra.mxu0 %v2072
        %2356 = vmatprep.subr.mxu0 %v2081
        %2357 = vmatpush1.msra.mxu0 %v2080
        %2358 = vmatprep.subr.mxu0 %v2089
        %2359 = vmatpush1.msra.mxu0 %v2088
        %2360 = vmatprep.subr.mxu0 %v2097
        %2361 = vmatpush1.msra.mxu0 %v2096
        %2362 = vmatprep.subr.mxu0 %v2105
        %2363 = vmatpush1.msra.mxu0 %v2104
        %2364 = vmatprep.subr.mxu0 %v2113
        %2365 = vmatpush1.msra.mxu0 %v2112
        %2366 = vmatprep.subr.mxu0 %v2121
        %2367 = vmatpush1.msra.mxu0 %v2120
        %2368 = vmatprep.subr.mxu0 %v2129
        %2369 = vmatpush1.msra.mxu0 %v2128
        %2370 = vmatprep.subr.mxu0 %v2137
        %2371 = vmatpush1.msra.mxu0 %v2136
        %2372 = vmatprep.subr.mxu0 %v2145
        %2373 = vmatpush1.msra.mxu0 %v2144
        %2374 = vmatprep.subr.mxu0 %v2153
        %2375 = vmatpush1.msra.mxu0 %v2152
        %2376 = vmatprep.subr.mxu0 %v2161
        %2377 = vmatpush1.msra.mxu0 %v2160
        %2378 = vmatprep.subr.mxu0 %v2169
        %2379 = vmatpush1.msra.mxu0 %v2168
        %2380 = vmatprep.subr.mxu0 %v2177
        %2381 = vmatpush1.msra.mxu0 %v2176
        %2382 = vmatprep.mubr.f32.mxu0 %v2201
        %2383 = vmatmul.mubr.f32.gmra.mrb[0].mxu0 %v2197
        %v2384 = vpop.f32.mrb[0].mxu0
        %v2385 = vadd.f32 %v2314, %v2384
        %v2386 = vpop.f32.mrb[0].mxu0
        %v2387 = vadd.f32 %v2316, %v2386
        %2388 = vdwg.mxu0
        %2389 = vmatprep.subr.mxu0 %v1675
        %2390 = vmatpush1.msra.mxu0 %v1674
        %2391 = vmatprep.subr.mxu0 %v1683
        %2392 = vmatpush1.msra.mxu0 %v1682
        %2393 = vmatprep.subr.mxu0 %v1691
        %2394 = vmatpush1.msra.mxu0 %v1690
        %2395 = vmatprep.subr.mxu0 %v1699
        %2396 = vmatpush1.msra.mxu0 %v1698
        %2397 = vmatprep.subr.mxu0 %v1707
        %2398 = vmatpush1.msra.mxu0 %v1706
        %2399 = vmatprep.subr.mxu0 %v1715
        %2400 = vmatpush1.msra.mxu0 %v1714
        %2401 = vmatprep.subr.mxu0 %v1723
        %2402 = vmatpush1.msra.mxu0 %v1722
        %2403 = vmatprep.subr.mxu0 %v1731
        %2404 = vmatpush1.msra.mxu0 %v1730
        %2405 = vmatprep.subr.mxu0 %v1739
        %2406 = vmatpush1.msra.mxu0 %v1738
        %2407 = vmatprep.subr.mxu0 %v1747
        %2408 = vmatpush1.msra.mxu0 %v1746
        %2409 = vmatprep.subr.mxu0 %v1755
        %2410 = vmatpush1.msra.mxu0 %v1754
        %2411 = vmatprep.subr.mxu0 %v1763
        %2412 = vmatpush1.msra.mxu0 %v1762
        %2413 = vmatprep.subr.mxu0 %v1771
        %2414 = vmatpush1.msra.mxu0 %v1770
        %2415 = vmatprep.subr.mxu0 %v1779
        %2416 = vmatpush1.msra.mxu0 %v1778
        %2417 = vmatprep.subr.mxu0 %v1787
        %2418 = vmatpush1.msra.mxu0 %v1786
        %2419 = vmatprep.subr.mxu0 %v1795
        %2420 = vmatpush1.msra.mxu0 %v1794
        %2421 = vmatprep.subr.mxu0 %v1803
        %2422 = vmatpush1.msra.mxu0 %v1802
        %2423 = vmatprep.subr.mxu0 %v1811
        %2424 = vmatpush1.msra.mxu0 %v1810
        %2425 = vmatprep.subr.mxu0 %v1819
        %2426 = vmatpush1.msra.mxu0 %v1818
        %2427 = vmatprep.subr.mxu0 %v1827
        %2428 = vmatpush1.msra.mxu0 %v1826
        %2429 = vmatprep.subr.mxu0 %v1835
        %2430 = vmatpush1.msra.mxu0 %v1834
        %2431 = vmatprep.subr.mxu0 %v1843
        %2432 = vmatpush1.msra.mxu0 %v1842
        %2433 = vmatprep.subr.mxu0 %v1851
        %2434 = vmatpush1.msra.mxu0 %v1850
        %2435 = vmatprep.subr.mxu0 %v1859
        %2436 = vmatpush1.msra.mxu0 %v1858
        %2437 = vmatprep.subr.mxu0 %v1867
        %2438 = vmatpush1.msra.mxu0 %v1866
        %2439 = vmatprep.subr.mxu0 %v1875
        %2440 = vmatpush1.msra.mxu0 %v1874
        %2441 = vmatprep.subr.mxu0 %v1883
        %2442 = vmatpush1.msra.mxu0 %v1882
        %2443 = vmatprep.subr.mxu0 %v1891
        %2444 = vmatpush1.msra.mxu0 %v1890
        %2445 = vmatprep.subr.mxu0 %v1899
        %2446 = vmatpush1.msra.mxu0 %v1898
        %2447 = vmatprep.subr.mxu0 %v1907
        %2448 = vmatpush1.msra.mxu0 %v1906
        %2449 = vmatprep.subr.mxu0 %v1915
        %2450 = vmatpush1.msra.mxu0 %v1914
        %2451 = vmatprep.subr.mxu0 %v1923
        %2452 = vmatpush1.msra.mxu0 %v1922
        %2453 = vmatprep.mubr.f32.mxu0 %v2193
        %2454 = vmatmul.mubr.f32.gmra.mrb[0].mxu0 %v2189
        %v2455 = vpop.f32.mrb[0].mxu0
        %v2456 = vadd.f32 %v2218, %v2455
        %v2457 = vpop.f32.mrb[0].mxu0
        %v2458 = vadd.f32 %v2222, %v2457
        %2459 = vdwg.mxu0
        %2460 = vmatprep.subr.mxu0 %v1931
        %2461 = vmatpush1.msra.mxu0 %v1930
        %2462 = vmatprep.subr.mxu0 %v1939
        %2463 = vmatpush1.msra.mxu0 %v1938
        %2464 = vmatprep.subr.mxu0 %v1947
        %2465 = vmatpush1.msra.mxu0 %v1946
        %2466 = vmatprep.subr.mxu0 %v1955
        %2467 = vmatpush1.msra.mxu0 %v1954
        %2468 = vmatprep.subr.mxu0 %v1963
        %2469 = vmatpush1.msra.mxu0 %v1962
        %2470 = vmatprep.subr.mxu0 %v1971
        %2471 = vmatpush1.msra.mxu0 %v1970
        %2472 = vmatprep.subr.mxu0 %v1979
        %2473 = vmatpush1.msra.mxu0 %v1978
        %2474 = vmatprep.subr.mxu0 %v1987
        %2475 = vmatpush1.msra.mxu0 %v1986
        %2476 = vmatprep.subr.mxu0 %v1995
        %2477 = vmatpush1.msra.mxu0 %v1994
        %2478 = vmatprep.subr.mxu0 %v2003
        %2479 = vmatpush1.msra.mxu0 %v2002
        %2480 = vmatprep.subr.mxu0 %v2011
        %2481 = vmatpush1.msra.mxu0 %v2010
        %2482 = vmatprep.subr.mxu0 %v2019
        %2483 = vmatpush1.msra.mxu0 %v2018
        %2484 = vmatprep.subr.mxu0 %v2027
        %2485 = vmatpush1.msra.mxu0 %v2026
        %2486 = vmatprep.subr.mxu0 %v2035
        %2487 = vmatpush1.msra.mxu0 %v2034
        %2488 = vmatprep.subr.mxu0 %v2043
        %2489 = vmatpush1.msra.mxu0 %v2042
        %2490 = vmatprep.subr.mxu0 %v2051
        %2491 = vmatpush1.msra.mxu0 %v2050
        %2492 = vmatprep.subr.mxu0 %v2059
        %2493 = vmatpush1.msra.mxu0 %v2058
        %2494 = vmatprep.subr.mxu0 %v2067
        %2495 = vmatpush1.msra.mxu0 %v2066
        %2496 = vmatprep.subr.mxu0 %v2075
        %2497 = vmatpush1.msra.mxu0 %v2074
        %2498 = vmatprep.subr.mxu0 %v2083
        %2499 = vmatpush1.msra.mxu0 %v2082
        %2500 = vmatprep.subr.mxu0 %v2091
        %2501 = vmatpush1.msra.mxu0 %v2090
        %2502 = vmatprep.subr.mxu0 %v2099
        %2503 = vmatpush1.msra.mxu0 %v2098
        %2504 = vmatprep.subr.mxu0 %v2107
        %2505 = vmatpush1.msra.mxu0 %v2106
        %2506 = vmatprep.subr.mxu0 %v2115
        %2507 = vmatpush1.msra.mxu0 %v2114
        %2508 = vmatprep.subr.mxu0 %v2123
        %2509 = vmatpush1.msra.mxu0 %v2122
        %2510 = vmatprep.subr.mxu0 %v2131
        %2511 = vmatpush1.msra.mxu0 %v2130
        %2512 = vmatprep.subr.mxu0 %v2139
        %2513 = vmatpush1.msra.mxu0 %v2138
        %2514 = vmatprep.subr.mxu0 %v2147
        %2515 = vmatpush1.msra.mxu0 %v2146
        %2516 = vmatprep.subr.mxu0 %v2155
        %2517 = vmatpush1.msra.mxu0 %v2154
        %2518 = vmatprep.subr.mxu0 %v2163
        %2519 = vmatpush1.msra.mxu0 %v2162
        %2520 = vmatprep.subr.mxu0 %v2171
        %2521 = vmatpush1.msra.mxu0 %v2170
        %2522 = vmatprep.subr.mxu0 %v2179
        %2523 = vmatpush1.msra.mxu0 %v2178
        %2524 = vmatprep.mubr.f32.mxu0 %v2201
        %2525 = vmatmul.mubr.f32.gmra.mrb[0].mxu0 %v2197
        %v2526 = vpop.f32.mrb[0].mxu0
        %v2527 = vadd.f32 %v2456, %v2526
        %v2528 = vpop.f32.mrb[0].mxu0
        %v2529 = vadd.f32 %v2458, %v2528
        %2530 = vdwg.mxu0
        %2531 = vmatprep.subr.mxu0 %v1677
        %2532 = vmatpush1.msra.mxu0 %v1676
        %2533 = vmatprep.subr.mxu0 %v1685
        %2534 = vmatpush1.msra.mxu0 %v1684
        %2535 = vmatprep.subr.mxu0 %v1693
        %2536 = vmatpush1.msra.mxu0 %v1692
        %2537 = vmatprep.subr.mxu0 %v1701
        %2538 = vmatpush1.msra.mxu0 %v1700
        %2539 = vmatprep.subr.mxu0 %v1709
        %2540 = vmatpush1.msra.mxu0 %v1708
        %2541 = vmatprep.subr.mxu0 %v1717
        %2542 = vmatpush1.msra.mxu0 %v1716
        %2543 = vmatprep.subr.mxu0 %v1725
        %2544 = vmatpush1.msra.mxu0 %v1724
        %2545 = vmatprep.subr.mxu0 %v1733
        %2546 = vmatpush1.msra.mxu0 %v1732
        %2547 = vmatprep.subr.mxu0 %v1741
        %2548 = vmatpush1.msra.mxu0 %v1740
        %2549 = vmatprep.subr.mxu0 %v1749
        %2550 = vmatpush1.msra.mxu0 %v1748
        %2551 = vmatprep.subr.mxu0 %v1757
        %2552 = vmatpush1.msra.mxu0 %v1756
        %2553 = vmatprep.subr.mxu0 %v1765
        %2554 = vmatpush1.msra.mxu0 %v1764
        %2555 = vmatprep.subr.mxu0 %v1773
        %2556 = vmatpush1.msra.mxu0 %v1772
        %2557 = vmatprep.subr.mxu0 %v1781
        %2558 = vmatpush1.msra.mxu0 %v1780
        %2559 = vmatprep.subr.mxu0 %v1789
        %2560 = vmatpush1.msra.mxu0 %v1788
        %2561 = vmatprep.subr.mxu0 %v1797
        %2562 = vmatpush1.msra.mxu0 %v1796
        %2563 = vmatprep.subr.mxu0 %v1805
        %2564 = vmatpush1.msra.mxu0 %v1804
        %2565 = vmatprep.subr.mxu0 %v1813
        %2566 = vmatpush1.msra.mxu0 %v1812
        %2567 = vmatprep.subr.mxu0 %v1821
        %2568 = vmatpush1.msra.mxu0 %v1820
        %2569 = vmatprep.subr.mxu0 %v1829
        %2570 = vmatpush1.msra.mxu0 %v1828
        %2571 = vmatprep.subr.mxu0 %v1837
        %2572 = vmatpush1.msra.mxu0 %v1836
        %2573 = vmatprep.subr.mxu0 %v1845
        %2574 = vmatpush1.msra.mxu0 %v1844
        %2575 = vmatprep.subr.mxu0 %v1853
        %2576 = vmatpush1.msra.mxu0 %v1852
        %2577 = vmatprep.subr.mxu0 %v1861
        %2578 = vmatpush1.msra.mxu0 %v1860
        %2579 = vmatprep.subr.mxu0 %v1869
        %2580 = vmatpush1.msra.mxu0 %v1868
        %2581 = vmatprep.subr.mxu0 %v1877
        %2582 = vmatpush1.msra.mxu0 %v1876
        %2583 = vmatprep.subr.mxu0 %v1885
        %2584 = vmatpush1.msra.mxu0 %v1884
        %2585 = vmatprep.subr.mxu0 %v1893
        %2586 = vmatpush1.msra.mxu0 %v1892
        %2587 = vmatprep.subr.mxu0 %v1901
        %2588 = vmatpush1.msra.mxu0 %v1900
        %2589 = vmatprep.subr.mxu0 %v1909
        %2590 = vmatpush1.msra.mxu0 %v1908
        %2591 = vmatprep.subr.mxu0 %v1917
        %2592 = vmatpush1.msra.mxu0 %v1916
        %2593 = vmatprep.subr.mxu0 %v1925
        %2594 = vmatpush1.msra.mxu0 %v1924
        %2595 = vmatprep.mubr.f32.mxu0 %v2193
        %2596 = vmatmul.mubr.f32.gmra.mrb[0].mxu0 %v2189
        %v2597 = vpop.f32.mrb[0].mxu0
        %v2598 = vadd.f32 %v2226, %v2597
        %v2599 = vpop.f32.mrb[0].mxu0
        %v2600 = vadd.f32 %v2230, %v2599
        %2601 = vdwg.mxu0
        %2602 = vmatprep.subr.mxu0 %v1933
        %2603 = vmatpush1.msra.mxu0 %v1932
        %2604 = vmatprep.subr.mxu0 %v1941
        %2605 = vmatpush1.msra.mxu0 %v1940
        %2606 = vmatprep.subr.mxu0 %v1949
        %2607 = vmatpush1.msra.mxu0 %v1948
        %2608 = vmatprep.subr.mxu0 %v1957
        %2609 = vmatpush1.msra.mxu0 %v1956
        %2610 = vmatprep.subr.mxu0 %v1965
        %2611 = vmatpush1.msra.mxu0 %v1964
        %2612 = vmatprep.subr.mxu0 %v1973
        %2613 = vmatpush1.msra.mxu0 %v1972
        %2614 = vmatprep.subr.mxu0 %v1981
        %2615 = vmatpush1.msra.mxu0 %v1980
        %2616 = vmatprep.subr.mxu0 %v1989
        %2617 = vmatpush1.msra.mxu0 %v1988
        %2618 = vmatprep.subr.mxu0 %v1997
        %2619 = vmatpush1.msra.mxu0 %v1996
        %2620 = vmatprep.subr.mxu0 %v2005
        %2621 = vmatpush1.msra.mxu0 %v2004
        %2622 = vmatprep.subr.mxu0 %v2013
        %2623 = vmatpush1.msra.mxu0 %v2012
        %2624 = vmatprep.subr.mxu0 %v2021
        %2625 = vmatpush1.msra.mxu0 %v2020
        %2626 = vmatprep.subr.mxu0 %v2029
        %2627 = vmatpush1.msra.mxu0 %v2028
        %2628 = vmatprep.subr.mxu0 %v2037
        %2629 = vmatpush1.msra.mxu0 %v2036
        %2630 = vmatprep.subr.mxu0 %v2045
        %2631 = vmatpush1.msra.mxu0 %v2044
        %2632 = vmatprep.subr.mxu0 %v2053
        %2633 = vmatpush1.msra.mxu0 %v2052
        %2634 = vmatprep.subr.mxu0 %v2061
        %2635 = vmatpush1.msra.mxu0 %v2060
        %2636 = vmatprep.subr.mxu0 %v2069
        %2637 = vmatpush1.msra.mxu0 %v2068
        %2638 = vmatprep.subr.mxu0 %v2077
        %2639 = vmatpush1.msra.mxu0 %v2076
        %2640 = vmatprep.subr.mxu0 %v2085
        %2641 = vmatpush1.msra.mxu0 %v2084
        %2642 = vmatprep.subr.mxu0 %v2093
        %2643 = vmatpush1.msra.mxu0 %v2092
        %2644 = vmatprep.subr.mxu0 %v2101
        %2645 = vmatpush1.msra.mxu0 %v2100
        %2646 = vmatprep.subr.mxu0 %v2109
        %2647 = vmatpush1.msra.mxu0 %v2108
        %2648 = vmatprep.subr.mxu0 %v2117
        %2649 = vmatpush1.msra.mxu0 %v2116
        %2650 = vmatprep.subr.mxu0 %v2125
        %2651 = vmatpush1.msra.mxu0 %v2124
        %2652 = vmatprep.subr.mxu0 %v2133
        %2653 = vmatpush1.msra.mxu0 %v2132
        %2654 = vmatprep.subr.mxu0 %v2141
        %2655 = vmatpush1.msra.mxu0 %v2140
        %2656 = vmatprep.subr.mxu0 %v2149
        %2657 = vmatpush1.msra.mxu0 %v2148
        %2658 = vmatprep.subr.mxu0 %v2157
        %2659 = vmatpush1.msra.mxu0 %v2156
        %2660 = vmatprep.subr.mxu0 %v2165
        %2661 = vmatpush1.msra.mxu0 %v2164
        %2662 = vmatprep.subr.mxu0 %v2173
        %2663 = vmatpush1.msra.mxu0 %v2172
        %2664 = vmatprep.subr.mxu0 %v2181
        %2665 = vmatpush1.msra.mxu0 %v2180
        %2666 = vmatprep.mubr.f32.mxu0 %v2201
        %2667 = vmatmul.mubr.f32.gmra.mrb[0].mxu0 %v2197
        %v2668 = vpop.f32.mrb[0].mxu0
        %v2669 = vadd.f32 %v2598, %v2668
        %v2670 = vpop.f32.mrb[0].mxu0
        %v2671 = vadd.f32 %v2600, %v2670
        %2672 = vdwg.mxu0
        %2673 = vmatprep.subr.mxu0 %v1679
        %2674 = vmatpush1.msra.mxu0 %v1678
        %2675 = vmatprep.subr.mxu0 %v1687
        %2676 = vmatpush1.msra.mxu0 %v1686
        %2677 = vmatprep.subr.mxu0 %v1695
        %2678 = vmatpush1.msra.mxu0 %v1694
        %2679 = vmatprep.subr.mxu0 %v1703
        %2680 = vmatpush1.msra.mxu0 %v1702
        %2681 = vmatprep.subr.mxu0 %v1711
        %2682 = vmatpush1.msra.mxu0 %v1710
        %2683 = vmatprep.subr.mxu0 %v1719
        %2684 = vmatpush1.msra.mxu0 %v1718
        %2685 = vmatprep.subr.mxu0 %v1727
        %2686 = vmatpush1.msra.mxu0 %v1726
        %2687 = vmatprep.subr.mxu0 %v1735
        %2688 = vmatpush1.msra.mxu0 %v1734
        %2689 = vmatprep.subr.mxu0 %v1743
        %2690 = vmatpush1.msra.mxu0 %v1742
        %2691 = vmatprep.subr.mxu0 %v1751
        %2692 = vmatpush1.msra.mxu0 %v1750
        %2693 = vmatprep.subr.mxu0 %v1759
        %2694 = vmatpush1.msra.mxu0 %v1758
        %2695 = vmatprep.subr.mxu0 %v1767
        %2696 = vmatpush1.msra.mxu0 %v1766
        %2697 = vmatprep.subr.mxu0 %v1775
        %2698 = vmatpush1.msra.mxu0 %v1774
        %2699 = vmatprep.subr.mxu0 %v1783
        %2700 = vmatpush1.msra.mxu0 %v1782
        %2701 = vmatprep.subr.mxu0 %v1791
        %2702 = vmatpush1.msra.mxu0 %v1790
        %2703 = vmatprep.subr.mxu0 %v1799
        %2704 = vmatpush1.msra.mxu0 %v1798
        %2705 = vmatprep.subr.mxu0 %v1807
        %2706 = vmatpush1.msra.mxu0 %v1806
        %2707 = vmatprep.subr.mxu0 %v1815
        %2708 = vmatpush1.msra.mxu0 %v1814
        %2709 = vmatprep.subr.mxu0 %v1823
        %2710 = vmatpush1.msra.mxu0 %v1822
        %2711 = vmatprep.subr.mxu0 %v1831
        %2712 = vmatpush1.msra.mxu0 %v1830
        %2713 = vmatprep.subr.mxu0 %v1839
        %2714 = vmatpush1.msra.mxu0 %v1838
        %2715 = vmatprep.subr.mxu0 %v1847
        %2716 = vmatpush1.msra.mxu0 %v1846
        %2717 = vmatprep.subr.mxu0 %v1855
        %2718 = vmatpush1.msra.mxu0 %v1854
        %2719 = vmatprep.subr.mxu0 %v1863
        %2720 = vmatpush1.msra.mxu0 %v1862
        %2721 = vmatprep.subr.mxu0 %v1871
        %2722 = vmatpush1.msra.mxu0 %v1870
        %2723 = vmatprep.subr.mxu0 %v1879
        %2724 = vmatpush1.msra.mxu0 %v1878
        %2725 = vmatprep.subr.mxu0 %v1887
        %2726 = vmatpush1.msra.mxu0 %v1886
        %2727 = vmatprep.subr.mxu0 %v1895
        %2728 = vmatpush1.msra.mxu0 %v1894
        %2729 = vmatprep.subr.mxu0 %v1903
        %2730 = vmatpush1.msra.mxu0 %v1902
        %2731 = vmatprep.subr.mxu0 %v1911
        %2732 = vmatpush1.msra.mxu0 %v1910
        %2733 = vmatprep.subr.mxu0 %v1919
        %2734 = vmatpush1.msra.mxu0 %v1918
        %2735 = vmatprep.subr.mxu0 %v1927
        %2736 = vmatpush1.msra.mxu0 %v1926
        %2737 = vmatprep.mubr.f32.mxu0 %v2193
        %2738 = vmatmul.mubr.f32.gmra.mrb[0].mxu0 %v2189
        %v2739 = vpop.f32.mrb[0].mxu0
        %v2740 = vadd.f32 %v2234, %v2739
        %v2741 = vpop.f32.mrb[0].mxu0
        %v2742 = vadd.f32 %v2238, %v2741
        %2743 = vdwg.mxu0
        %2744 = vmatprep.subr.mxu0 %v1935
        %2745 = vmatpush1.msra.mxu0 %v1934
        %2746 = vmatprep.subr.mxu0 %v1943
        %2747 = vmatpush1.msra.mxu0 %v1942
        %2748 = vmatprep.subr.mxu0 %v1951
        %2749 = vmatpush1.msra.mxu0 %v1950
        %2750 = vmatprep.subr.mxu0 %v1959
        %2751 = vmatpush1.msra.mxu0 %v1958
        %2752 = vmatprep.subr.mxu0 %v1967
        %2753 = vmatpush1.msra.mxu0 %v1966
        %2754 = vmatprep.subr.mxu0 %v1975
        %2755 = vmatpush1.msra.mxu0 %v1974
        %2756 = vmatprep.subr.mxu0 %v1983
        %2757 = vmatpush1.msra.mxu0 %v1982
        %2758 = vmatprep.subr.mxu0 %v1991
        %2759 = vmatpush1.msra.mxu0 %v1990
        %2760 = vmatprep.subr.mxu0 %v1999
        %2761 = vmatpush1.msra.mxu0 %v1998
        %2762 = vmatprep.subr.mxu0 %v2007
        %2763 = vmatpush1.msra.mxu0 %v2006
        %2764 = vmatprep.subr.mxu0 %v2015
        %2765 = vmatpush1.msra.mxu0 %v2014
        %2766 = vmatprep.subr.mxu0 %v2023
        %2767 = vmatpush1.msra.mxu0 %v2022
        %2768 = vmatprep.subr.mxu0 %v2031
        %2769 = vmatpush1.msra.mxu0 %v2030
        %2770 = vmatprep.subr.mxu0 %v2039
        %2771 = vmatpush1.msra.mxu0 %v2038
        %2772 = vmatprep.subr.mxu0 %v2047
        %2773 = vmatpush1.msra.mxu0 %v2046
        %2774 = vmatprep.subr.mxu0 %v2055
        %2775 = vmatpush1.msra.mxu0 %v2054
        %2776 = vmatprep.subr.mxu0 %v2063
        %2777 = vmatpush1.msra.mxu0 %v2062
        %2778 = vmatprep.subr.mxu0 %v2071
        %2779 = vmatpush1.msra.mxu0 %v2070
        %2780 = vmatprep.subr.mxu0 %v2079
        %2781 = vmatpush1.msra.mxu0 %v2078
        %2782 = vmatprep.subr.mxu0 %v2087
        %2783 = vmatpush1.msra.mxu0 %v2086
        %2784 = vmatprep.subr.mxu0 %v2095
        %2785 = vmatpush1.msra.mxu0 %v2094
        %2786 = vmatprep.subr.mxu0 %v2103
        %2787 = vmatpush1.msra.mxu0 %v2102
        %2788 = vmatprep.subr.mxu0 %v2111
        %2789 = vmatpush1.msra.mxu0 %v2110
        %2790 = vmatprep.subr.mxu0 %v2119
        %2791 = vmatpush1.msra.mxu0 %v2118
        %2792 = vmatprep.subr.mxu0 %v2127
        %2793 = vmatpush1.msra.mxu0 %v2126
        %2794 = vmatprep.subr.mxu0 %v2135
        %2795 = vmatpush1.msra.mxu0 %v2134
        %2796 = vmatprep.subr.mxu0 %v2143
        %2797 = vmatpush1.msra.mxu0 %v2142
        %2798 = vmatprep.subr.mxu0 %v2151
        %2799 = vmatpush1.msra.mxu0 %v2150
        %2800 = vmatprep.subr.mxu0 %v2159
        %2801 = vmatpush1.msra.mxu0 %v2158
        %2802 = vmatprep.subr.mxu0 %v2167
        %2803 = vmatpush1.msra.mxu0 %v2166
        %2804 = vmatprep.subr.mxu0 %v2175
        %2805 = vmatpush1.msra.mxu0 %v2174
        %2806 = vmatprep.subr.mxu0 %v2183
        %2807 = vmatpush1.msra.mxu0 %v2182
        %2808 = vmatprep.mubr.f32.mxu0 %v2201
        %2809 = vmatmul.mubr.f32.gmra.mrb[0].mxu0 %v2197
        %v2810 = vpop.f32.mrb[0].mxu0
        %v2811 = vadd.f32 %v2740, %v2810
        %v2812 = vpop.f32.mrb[0].mxu0
        %v2813 = vadd.f32 %v2742, %v2812
        %2814 = vdwg.mxu0
        %v2815 = vld [vmem:[#allocation17] sm:$0xff]
        %v2816 = vld [vmem:[#allocation17 + $0x8] sm:$0xff]
        %v2817 = vld [vmem:[#allocation17 + $0x10] sm:$0xff]
        %v2818 = vld [vmem:[#allocation17 + $0x18] sm:$0xff]
        %v2819 = vld [vmem:[#allocation17 + $0x20] sm:$0xff]
        %v2820 = vld [vmem:[#allocation17 + $0x28] sm:$0xff]
        %v2821 = vld [vmem:[#allocation17 + $0x30] sm:$0xff]
        %v2822 = vld [vmem:[#allocation17 + $0x38] sm:$0xff]
        %v2823 = vld [vmem:[#allocation17 + $0x40] sm:$0xff]
        %v2824 = vld [vmem:[#allocation17 + $0x48] sm:$0xff]
        %v2825 = vld [vmem:[#allocation17 + $0x50] sm:$0xff]
        %v2826 = vld [vmem:[#allocation17 + $0x58] sm:$0xff]
        %v2827 = vld [vmem:[#allocation17 + $0x60] sm:$0xff]
        %v2828 = vld [vmem:[#allocation17 + $0x68] sm:$0xff]
        %v2829 = vld [vmem:[#allocation17 + $0x70] sm:$0xff]
        %v2830 = vld [vmem:[#allocation17 + $0x78] sm:$0xff]
        %v2831 = vld [vmem:[#allocation17 + $0x80] sm:$0xff]
        %v2832 = vld [vmem:[#allocation17 + $0x88] sm:$0xff]
        %v2833 = vld [vmem:[#allocation17 + $0x90] sm:$0xff]
        %v2834 = vld [vmem:[#allocation17 + $0x98] sm:$0xff]
        %v2835 = vld [vmem:[#allocation17 + $0xa0] sm:$0xff]
        %v2836 = vld [vmem:[#allocation17 + $0xa8] sm:$0xff]
        %v2837 = vld [vmem:[#allocation17 + $0xb0] sm:$0xff]
        %v2838 = vld [vmem:[#allocation17 + $0xb8] sm:$0xff]
        %v2839 = vld [vmem:[#allocation17 + $0xc0] sm:$0xff]
        %v2840 = vld [vmem:[#allocation17 + $0xc8] sm:$0xff]
        %v2841 = vld [vmem:[#allocation17 + $0xd0] sm:$0xff]
        %v2842 = vld [vmem:[#allocation17 + $0xd8] sm:$0xff]
        %v2843 = vld [vmem:[#allocation17 + $0xe0] sm:$0xff]
        %v2844 = vld [vmem:[#allocation17 + $0xe8] sm:$0xff]
        %v2845 = vld [vmem:[#allocation17 + $0xf0] sm:$0xff]
        %v2846 = vld [vmem:[#allocation17 + $0xf8] sm:$0xff]
        %v2847 = vld [vmem:[#allocation17 + $0x100] sm:$0xff]
        %v2848 = vld [vmem:[#allocation17 + $0x108] sm:$0xff]
        %v2849 = vld [vmem:[#allocation17 + $0x110] sm:$0xff]
        %v2850 = vld [vmem:[#allocation17 + $0x118] sm:$0xff]
        %v2851 = vld [vmem:[#allocation17 + $0x120] sm:$0xff]
        %v2852 = vld [vmem:[#allocation17 + $0x128] sm:$0xff]
        %v2853 = vld [vmem:[#allocation17 + $0x130] sm:$0xff]
        %v2854 = vld [vmem:[#allocation17 + $0x138] sm:$0xff]
        %v2855 = vld [vmem:[#allocation17 + $0x140] sm:$0xff]
        %v2856 = vld [vmem:[#allocation17 + $0x148] sm:$0xff]
        %v2857 = vld [vmem:[#allocation17 + $0x150] sm:$0xff]
        %v2858 = vld [vmem:[#allocation17 + $0x158] sm:$0xff]
        %v2859 = vld [vmem:[#allocation17 + $0x160] sm:$0xff]
        %v2860 = vld [vmem:[#allocation17 + $0x168] sm:$0xff]
        %v2861 = vld [vmem:[#allocation17 + $0x170] sm:$0xff]
        %v2862 = vld [vmem:[#allocation17 + $0x178] sm:$0xff]
        %v2863 = vld [vmem:[#allocation17 + $0x180] sm:$0xff]
        %v2864 = vld [vmem:[#allocation17 + $0x188] sm:$0xff]
        %v2865 = vld [vmem:[#allocation17 + $0x190] sm:$0xff]
        %v2866 = vld [vmem:[#allocation17 + $0x198] sm:$0xff]
        %v2867 = vld [vmem:[#allocation17 + $0x1a0] sm:$0xff]
        %v2868 = vld [vmem:[#allocation17 + $0x1a8] sm:$0xff]
        %v2869 = vld [vmem:[#allocation17 + $0x1b0] sm:$0xff]
        %v2870 = vld [vmem:[#allocation17 + $0x1b8] sm:$0xff]
        %v2871 = vld [vmem:[#allocation17 + $0x1c0] sm:$0xff]
        %v2872 = vld [vmem:[#allocation17 + $0x1c8] sm:$0xff]
        %v2873 = vld [vmem:[#allocation17 + $0x1d0] sm:$0xff]
        %v2874 = vld [vmem:[#allocation17 + $0x1d8] sm:$0xff]
        %v2875 = vld [vmem:[#allocation17 + $0x1e0] sm:$0xff]
        %v2876 = vld [vmem:[#allocation17 + $0x1e8] sm:$0xff]
        %v2877 = vld [vmem:[#allocation17 + $0x1f0] sm:$0xff]
        %v2878 = vld [vmem:[#allocation17 + $0x1f8] sm:$0xff]
        %v2879 = vld [vmem:[#allocation17 + $0x200] sm:$0xff]
        %v2880 = vld [vmem:[#allocation17 + $0x208] sm:$0xff]
        %v2881 = vld [vmem:[#allocation17 + $0x210] sm:$0xff]
        %v2882 = vld [vmem:[#allocation17 + $0x218] sm:$0xff]
        %v2883 = vld [vmem:[#allocation17 + $0x220] sm:$0xff]
        %v2884 = vld [vmem:[#allocation17 + $0x228] sm:$0xff]
        %v2885 = vld [vmem:[#allocation17 + $0x230] sm:$0xff]
        %v2886 = vld [vmem:[#allocation17 + $0x238] sm:$0xff]
        %v2887 = vld [vmem:[#allocation17 + $0x240] sm:$0xff]
        %v2888 = vld [vmem:[#allocation17 + $0x248] sm:$0xff]
        %v2889 = vld [vmem:[#allocation17 + $0x250] sm:$0xff]
        %v2890 = vld [vmem:[#allocation17 + $0x258] sm:$0xff]
        %v2891 = vld [vmem:[#allocation17 + $0x260] sm:$0xff]
        %v2892 = vld [vmem:[#allocation17 + $0x268] sm:$0xff]
        %v2893 = vld [vmem:[#allocation17 + $0x270] sm:$0xff]
        %v2894 = vld [vmem:[#allocation17 + $0x278] sm:$0xff]
        %v2895 = vld [vmem:[#allocation17 + $0x280] sm:$0xff]
        %v2896 = vld [vmem:[#allocation17 + $0x288] sm:$0xff]
        %v2897 = vld [vmem:[#allocation17 + $0x290] sm:$0xff]
        %v2898 = vld [vmem:[#allocation17 + $0x298] sm:$0xff]
        %v2899 = vld [vmem:[#allocation17 + $0x2a0] sm:$0xff]
        %v2900 = vld [vmem:[#allocation17 + $0x2a8] sm:$0xff]
        %v2901 = vld [vmem:[#allocation17 + $0x2b0] sm:$0xff]
        %v2902 = vld [vmem:[#allocation17 + $0x2b8] sm:$0xff]
        %v2903 = vld [vmem:[#allocation17 + $0x2c0] sm:$0xff]
        %v2904 = vld [vmem:[#allocation17 + $0x2c8] sm:$0xff]
        %v2905 = vld [vmem:[#allocation17 + $0x2d0] sm:$0xff]
        %v2906 = vld [vmem:[#allocation17 + $0x2d8] sm:$0xff]
        %v2907 = vld [vmem:[#allocation17 + $0x2e0] sm:$0xff]
        %v2908 = vld [vmem:[#allocation17 + $0x2e8] sm:$0xff]
        %v2909 = vld [vmem:[#allocation17 + $0x2f0] sm:$0xff]
        %v2910 = vld [vmem:[#allocation17 + $0x2f8] sm:$0xff]
        %v2911 = vld [vmem:[#allocation17 + $0x300] sm:$0xff]
        %v2912 = vld [vmem:[#allocation17 + $0x308] sm:$0xff]
        %v2913 = vld [vmem:[#allocation17 + $0x310] sm:$0xff]
        %v2914 = vld [vmem:[#allocation17 + $0x318] sm:$0xff]
        %v2915 = vld [vmem:[#allocation17 + $0x320] sm:$0xff]
        %v2916 = vld [vmem:[#allocation17 + $0x328] sm:$0xff]
        %v2917 = vld [vmem:[#allocation17 + $0x330] sm:$0xff]
        %v2918 = vld [vmem:[#allocation17 + $0x338] sm:$0xff]
        %v2919 = vld [vmem:[#allocation17 + $0x340] sm:$0xff]
        %v2920 = vld [vmem:[#allocation17 + $0x348] sm:$0xff]
        %v2921 = vld [vmem:[#allocation17 + $0x350] sm:$0xff]
        %v2922 = vld [vmem:[#allocation17 + $0x358] sm:$0xff]
        %v2923 = vld [vmem:[#allocation17 + $0x360] sm:$0xff]
        %v2924 = vld [vmem:[#allocation17 + $0x368] sm:$0xff]
        %v2925 = vld [vmem:[#allocation17 + $0x370] sm:$0xff]
        %v2926 = vld [vmem:[#allocation17 + $0x378] sm:$0xff]
        %v2927 = vld [vmem:[#allocation17 + $0x380] sm:$0xff]
        %v2928 = vld [vmem:[#allocation17 + $0x388] sm:$0xff]
        %v2929 = vld [vmem:[#allocation17 + $0x390] sm:$0xff]
        %v2930 = vld [vmem:[#allocation17 + $0x398] sm:$0xff]
        %v2931 = vld [vmem:[#allocation17 + $0x3a0] sm:$0xff]
        %v2932 = vld [vmem:[#allocation17 + $0x3a8] sm:$0xff]
        %v2933 = vld [vmem:[#allocation17 + $0x3b0] sm:$0xff]
        %v2934 = vld [vmem:[#allocation17 + $0x3b8] sm:$0xff]
        %v2935 = vld [vmem:[#allocation17 + $0x3c0] sm:$0xff]
        %v2936 = vld [vmem:[#allocation17 + $0x3c8] sm:$0xff]
        %v2937 = vld [vmem:[#allocation17 + $0x3d0] sm:$0xff]
        %v2938 = vld [vmem:[#allocation17 + $0x3d8] sm:$0xff]
        %v2939 = vld [vmem:[#allocation17 + $0x3e0] sm:$0xff]
        %v2940 = vld [vmem:[#allocation17 + $0x3e8] sm:$0xff]
        %v2941 = vld [vmem:[#allocation17 + $0x3f0] sm:$0xff]
        %v2942 = vld [vmem:[#allocation17 + $0x3f8] sm:$0xff]
        %v2943 = vld [vmem:[#allocation17 + $0x400] sm:$0xff]
        %v2944 = vld [vmem:[#allocation17 + $0x408] sm:$0xff]
        %v2945 = vld [vmem:[#allocation17 + $0x410] sm:$0xff]
        %v2946 = vld [vmem:[#allocation17 + $0x418] sm:$0xff]
        %v2947 = vld [vmem:[#allocation17 + $0x420] sm:$0xff]
        %v2948 = vld [vmem:[#allocation17 + $0x428] sm:$0xff]
        %v2949 = vld [vmem:[#allocation17 + $0x430] sm:$0xff]
        %v2950 = vld [vmem:[#allocation17 + $0x438] sm:$0xff]
        %v2951 = vld [vmem:[#allocation17 + $0x440] sm:$0xff]
        %v2952 = vld [vmem:[#allocation17 + $0x448] sm:$0xff]
        %v2953 = vld [vmem:[#allocation17 + $0x450] sm:$0xff]
        %v2954 = vld [vmem:[#allocation17 + $0x458] sm:$0xff]
        %v2955 = vld [vmem:[#allocation17 + $0x460] sm:$0xff]
        %v2956 = vld [vmem:[#allocation17 + $0x468] sm:$0xff]
        %v2957 = vld [vmem:[#allocation17 + $0x470] sm:$0xff]
        %v2958 = vld [vmem:[#allocation17 + $0x478] sm:$0xff]
        %v2959 = vld [vmem:[#allocation17 + $0x480] sm:$0xff]
        %v2960 = vld [vmem:[#allocation17 + $0x488] sm:$0xff]
        %v2961 = vld [vmem:[#allocation17 + $0x490] sm:$0xff]
        %v2962 = vld [vmem:[#allocation17 + $0x498] sm:$0xff]
        %v2963 = vld [vmem:[#allocation17 + $0x4a0] sm:$0xff]
        %v2964 = vld [vmem:[#allocation17 + $0x4a8] sm:$0xff]
        %v2965 = vld [vmem:[#allocation17 + $0x4b0] sm:$0xff]
        %v2966 = vld [vmem:[#allocation17 + $0x4b8] sm:$0xff]
        %v2967 = vld [vmem:[#allocation17 + $0x4c0] sm:$0xff]
        %v2968 = vld [vmem:[#allocation17 + $0x4c8] sm:$0xff]
        %v2969 = vld [vmem:[#allocation17 + $0x4d0] sm:$0xff]
        %v2970 = vld [vmem:[#allocation17 + $0x4d8] sm:$0xff]
        %v2971 = vld [vmem:[#allocation17 + $0x4e0] sm:$0xff]
        %v2972 = vld [vmem:[#allocation17 + $0x4e8] sm:$0xff]
        %v2973 = vld [vmem:[#allocation17 + $0x4f0] sm:$0xff]
        %v2974 = vld [vmem:[#allocation17 + $0x4f8] sm:$0xff]
        %v2975 = vld [vmem:[#allocation17 + $0x500] sm:$0xff]
        %v2976 = vld [vmem:[#allocation17 + $0x508] sm:$0xff]
        %v2977 = vld [vmem:[#allocation17 + $0x510] sm:$0xff]
        %v2978 = vld [vmem:[#allocation17 + $0x518] sm:$0xff]
        %v2979 = vld [vmem:[#allocation17 + $0x520] sm:$0xff]
        %v2980 = vld [vmem:[#allocation17 + $0x528] sm:$0xff]
        %v2981 = vld [vmem:[#allocation17 + $0x530] sm:$0xff]
        %v2982 = vld [vmem:[#allocation17 + $0x538] sm:$0xff]
        %v2983 = vld [vmem:[#allocation17 + $0x540] sm:$0xff]
        %v2984 = vld [vmem:[#allocation17 + $0x548] sm:$0xff]
        %v2985 = vld [vmem:[#allocation17 + $0x550] sm:$0xff]
        %v2986 = vld [vmem:[#allocation17 + $0x558] sm:$0xff]
        %v2987 = vld [vmem:[#allocation17 + $0x560] sm:$0xff]
        %v2988 = vld [vmem:[#allocation17 + $0x568] sm:$0xff]
        %v2989 = vld [vmem:[#allocation17 + $0x570] sm:$0xff]
        %v2990 = vld [vmem:[#allocation17 + $0x578] sm:$0xff]
        %v2991 = vld [vmem:[#allocation17 + $0x580] sm:$0xff]
        %v2992 = vld [vmem:[#allocation17 + $0x588] sm:$0xff]
        %v2993 = vld [vmem:[#allocation17 + $0x590] sm:$0xff]
        %v2994 = vld [vmem:[#allocation17 + $0x598] sm:$0xff]
        %v2995 = vld [vmem:[#allocation17 + $0x5a0] sm:$0xff]
        %v2996 = vld [vmem:[#allocation17 + $0x5a8] sm:$0xff]
        %v2997 = vld [vmem:[#allocation17 + $0x5b0] sm:$0xff]
        %v2998 = vld [vmem:[#allocation17 + $0x5b8] sm:$0xff]
        %v2999 = vld [vmem:[#allocation17 + $0x5c0] sm:$0xff]
        %v3000 = vld [vmem:[#allocation17 + $0x5c8] sm:$0xff]
        %v3001 = vld [vmem:[#allocation17 + $0x5d0] sm:$0xff]
        %v3002 = vld [vmem:[#allocation17 + $0x5d8] sm:$0xff]
        %v3003 = vld [vmem:[#allocation17 + $0x5e0] sm:$0xff]
        %v3004 = vld [vmem:[#allocation17 + $0x5e8] sm:$0xff]
        %v3005 = vld [vmem:[#allocation17 + $0x5f0] sm:$0xff]
        %v3006 = vld [vmem:[#allocation17 + $0x5f8] sm:$0xff]
        %v3007 = vld [vmem:[#allocation17 + $0x600] sm:$0xff]
        %v3008 = vld [vmem:[#allocation17 + $0x608] sm:$0xff]
        %v3009 = vld [vmem:[#allocation17 + $0x610] sm:$0xff]
        %v3010 = vld [vmem:[#allocation17 + $0x618] sm:$0xff]
        %v3011 = vld [vmem:[#allocation17 + $0x620] sm:$0xff]
        %v3012 = vld [vmem:[#allocation17 + $0x628] sm:$0xff]
        %v3013 = vld [vmem:[#allocation17 + $0x630] sm:$0xff]
        %v3014 = vld [vmem:[#allocation17 + $0x638] sm:$0xff]
        %v3015 = vld [vmem:[#allocation17 + $0x640] sm:$0xff]
        %v3016 = vld [vmem:[#allocation17 + $0x648] sm:$0xff]
        %v3017 = vld [vmem:[#allocation17 + $0x650] sm:$0xff]
        %v3018 = vld [vmem:[#allocation17 + $0x658] sm:$0xff]
        %v3019 = vld [vmem:[#allocation17 + $0x660] sm:$0xff]
        %v3020 = vld [vmem:[#allocation17 + $0x668] sm:$0xff]
        %v3021 = vld [vmem:[#allocation17 + $0x670] sm:$0xff]
        %v3022 = vld [vmem:[#allocation17 + $0x678] sm:$0xff]
        %v3023 = vld [vmem:[#allocation17 + $0x680] sm:$0xff]
        %v3024 = vld [vmem:[#allocation17 + $0x688] sm:$0xff]
        %v3025 = vld [vmem:[#allocation17 + $0x690] sm:$0xff]
        %v3026 = vld [vmem:[#allocation17 + $0x698] sm:$0xff]
        %v3027 = vld [vmem:[#allocation17 + $0x6a0] sm:$0xff]
        %v3028 = vld [vmem:[#allocation17 + $0x6a8] sm:$0xff]
        %v3029 = vld [vmem:[#allocation17 + $0x6b0] sm:$0xff]
        %v3030 = vld [vmem:[#allocation17 + $0x6b8] sm:$0xff]
        %v3031 = vld [vmem:[#allocation17 + $0x6c0] sm:$0xff]
        %v3032 = vld [vmem:[#allocation17 + $0x6c8] sm:$0xff]
        %v3033 = vld [vmem:[#allocation17 + $0x6d0] sm:$0xff]
        %v3034 = vld [vmem:[#allocation17 + $0x6d8] sm:$0xff]
        %v3035 = vld [vmem:[#allocation17 + $0x6e0] sm:$0xff]
        %v3036 = vld [vmem:[#allocation17 + $0x6e8] sm:$0xff]
        %v3037 = vld [vmem:[#allocation17 + $0x6f0] sm:$0xff]
        %v3038 = vld [vmem:[#allocation17 + $0x6f8] sm:$0xff]
        %v3039 = vld [vmem:[#allocation17 + $0x700] sm:$0xff]
        %v3040 = vld [vmem:[#allocation17 + $0x708] sm:$0xff]
        %v3041 = vld [vmem:[#allocation17 + $0x710] sm:$0xff]
        %v3042 = vld [vmem:[#allocation17 + $0x718] sm:$0xff]
        %v3043 = vld [vmem:[#allocation17 + $0x720] sm:$0xff]
        %v3044 = vld [vmem:[#allocation17 + $0x728] sm:$0xff]
        %v3045 = vld [vmem:[#allocation17 + $0x730] sm:$0xff]
        %v3046 = vld [vmem:[#allocation17 + $0x738] sm:$0xff]
        %v3047 = vld [vmem:[#allocation17 + $0x740] sm:$0xff]
        %v3048 = vld [vmem:[#allocation17 + $0x748] sm:$0xff]
        %v3049 = vld [vmem:[#allocation17 + $0x750] sm:$0xff]
        %v3050 = vld [vmem:[#allocation17 + $0x758] sm:$0xff]
        %v3051 = vld [vmem:[#allocation17 + $0x760] sm:$0xff]
        %v3052 = vld [vmem:[#allocation17 + $0x768] sm:$0xff]
        %v3053 = vld [vmem:[#allocation17 + $0x770] sm:$0xff]
        %v3054 = vld [vmem:[#allocation17 + $0x778] sm:$0xff]
        %v3055 = vld [vmem:[#allocation17 + $0x780] sm:$0xff]
        %v3056 = vld [vmem:[#allocation17 + $0x788] sm:$0xff]
        %v3057 = vld [vmem:[#allocation17 + $0x790] sm:$0xff]
        %v3058 = vld [vmem:[#allocation17 + $0x798] sm:$0xff]
        %v3059 = vld [vmem:[#allocation17 + $0x7a0] sm:$0xff]
        %v3060 = vld [vmem:[#allocation17 + $0x7a8] sm:$0xff]
        %v3061 = vld [vmem:[#allocation17 + $0x7b0] sm:$0xff]
        %v3062 = vld [vmem:[#allocation17 + $0x7b8] sm:$0xff]
        %v3063 = vld [vmem:[#allocation17 + $0x7c0] sm:$0xff]
        %v3064 = vld [vmem:[#allocation17 + $0x7c8] sm:$0xff]
        %v3065 = vld [vmem:[#allocation17 + $0x7d0] sm:$0xff]
        %v3066 = vld [vmem:[#allocation17 + $0x7d8] sm:$0xff]
        %v3067 = vld [vmem:[#allocation17 + $0x7e0] sm:$0xff]
        %v3068 = vld [vmem:[#allocation17 + $0x7e8] sm:$0xff]
        %v3069 = vld [vmem:[#allocation17 + $0x7f0] sm:$0xff]
        %v3070 = vld [vmem:[#allocation17 + $0x7f8] sm:$0xff]
        %v3071 = vld [vmem:[#allocation19] sm:$0xf]
        %v3073 = vlaneseq
        %v3074 = vshrl.u32 %v3073, 7
        %v3075 = vsub.s32 0, %v3074
        %v3076 = vrot.slane %v3071, %v3075
        %v3077 = vlaneseq
        %v3078 = vshrl.u32 %v3077, 7
        %v3079 = vsub.s32 1, %v3078
        %v3080 = vrot.slane %v3071, %v3079
        %v3081 = vlaneseq
        %v3082 = vshrl.u32 %v3081, 7
        %v3083 = vsub.s32 2, %v3082
        %v3084 = vrot.slane %v3071, %v3083
        %v3085 = vlaneseq
        %v3086 = vshrl.u32 %v3085, 7
        %v3087 = vsub.s32 3, %v3086
        %v3088 = vrot.slane %v3071, %v3087
        %3093 = vmatprep.subr.mxu0 %v2816
        %3094 = vmatpush1.msra.mxu0 %v2815
        %3095 = vmatprep.subr.mxu0 %v2820
        %3096 = vmatpush1.msra.mxu0 %v2819
        %3097 = vmatprep.subr.mxu0 %v2824
        %3098 = vmatpush1.msra.mxu0 %v2823
        %3099 = vmatprep.subr.mxu0 %v2828
        %3100 = vmatpush1.msra.mxu0 %v2827
        %3101 = vmatprep.subr.mxu0 %v2832
        %3102 = vmatpush1.msra.mxu0 %v2831
        %3103 = vmatprep.subr.mxu0 %v2836
        %3104 = vmatpush1.msra.mxu0 %v2835
        %3105 = vmatprep.subr.mxu0 %v2840
        %3106 = vmatpush1.msra.mxu0 %v2839
        %3107 = vmatprep.subr.mxu0 %v2844
        %3108 = vmatpush1.msra.mxu0 %v2843
        %3109 = vmatprep.subr.mxu0 %v2848
        %3110 = vmatpush1.msra.mxu0 %v2847
        %3111 = vmatprep.subr.mxu0 %v2852
        %3112 = vmatpush1.msra.mxu0 %v2851
        %3113 = vmatprep.subr.mxu0 %v2856
        %3114 = vmatpush1.msra.mxu0 %v2855
        %3115 = vmatprep.subr.mxu0 %v2860
        %3116 = vmatpush1.msra.mxu0 %v2859
        %3117 = vmatprep.subr.mxu0 %v2864
        %3118 = vmatpush1.msra.mxu0 %v2863
        %3119 = vmatprep.subr.mxu0 %v2868
        %3120 = vmatpush1.msra.mxu0 %v2867
        %3121 = vmatprep.subr.mxu0 %v2872
        %3122 = vmatpush1.msra.mxu0 %v2871
        %3123 = vmatprep.subr.mxu0 %v2876
        %3124 = vmatpush1.msra.mxu0 %v2875
        %3125 = vmatprep.subr.mxu0 %v2880
        %3126 = vmatpush1.msra.mxu0 %v2879
        %3127 = vmatprep.subr.mxu0 %v2884
        %3128 = vmatpush1.msra.mxu0 %v2883
        %3129 = vmatprep.subr.mxu0 %v2888
        %3130 = vmatpush1.msra.mxu0 %v2887
        %3131 = vmatprep.subr.mxu0 %v2892
        %3132 = vmatpush1.msra.mxu0 %v2891
        %3133 = vmatprep.subr.mxu0 %v2896
        %3134 = vmatpush1.msra.mxu0 %v2895
        %3135 = vmatprep.subr.mxu0 %v2900
        %3136 = vmatpush1.msra.mxu0 %v2899
        %3137 = vmatprep.subr.mxu0 %v2904
        %3138 = vmatpush1.msra.mxu0 %v2903
        %3139 = vmatprep.subr.mxu0 %v2908
        %3140 = vmatpush1.msra.mxu0 %v2907
        %3141 = vmatprep.subr.mxu0 %v2912
        %3142 = vmatpush1.msra.mxu0 %v2911
        %3143 = vmatprep.subr.mxu0 %v2916
        %3144 = vmatpush1.msra.mxu0 %v2915
        %3145 = vmatprep.subr.mxu0 %v2920
        %3146 = vmatpush1.msra.mxu0 %v2919
        %3147 = vmatprep.subr.mxu0 %v2924
        %3148 = vmatpush1.msra.mxu0 %v2923
        %3149 = vmatprep.subr.mxu0 %v2928
        %3150 = vmatpush1.msra.mxu0 %v2927
        %3151 = vmatprep.subr.mxu0 %v2932
        %3152 = vmatpush1.msra.mxu0 %v2931
        %3153 = vmatprep.subr.mxu0 %v2936
        %3154 = vmatpush1.msra.mxu0 %v2935
        %3155 = vmatprep.subr.mxu0 %v2940
        %3156 = vmatpush1.msra.mxu0 %v2939
        %3157 = vmatprep.mubr.f32.mxu0 %v1047
        %3158 = vmatmul.mubr.f32.gmra.mrb[0].mxu0 %v1046
        %v3159 = vpop.f32.mrb[0].mxu0
        %v3160 = vadd.f32 %v3076, %v3159
        %v3161 = vpop.f32.mrb[0].mxu0
        %v3162 = vadd.f32 %v3080, %v3161
        %3163 = vmatprep.mubr.f32.mxu0 %v1051
        %3164 = vmatmul.mubr.f32.gmra.mrb[0].mxu0 %v1050
        %v3165 = vpop.f32.mrb[0].mxu0
        %v3166 = vadd.f32 %v3076, %v3165
        %v3167 = vpop.f32.mrb[0].mxu0
        %v3168 = vadd.f32 %v3080, %v3167
        %3169 = vmatprep.mubr.f32.mxu0 %v1055
        %3170 = vmatmul.mubr.f32.gmra.mrb[0].mxu0 %v1054
        %v3171 = vpop.f32.mrb[0].mxu0
        %v3172 = vadd.f32 %v3076, %v3171
        %v3173 = vpop.f32.mrb[0].mxu0
        %v3174 = vadd.f32 %v3080, %v3173
        %3175 = vmatprep.mubr.f32.mxu0 %v1059
        %3176 = vmatmul.mubr.f32.gmra.mrb[0].mxu0 %v1058
        %v3177 = vpop.f32.mrb[0].mxu0
        %v3178 = vadd.f32 %v3076, %v3177
        %v3179 = vpop.f32.mrb[0].mxu0
        %v3180 = vadd.f32 %v3080, %v3179
        %3181 = vmatprep.mubr.f32.mxu0 %v1063
        %3182 = vmatmul.mubr.f32.gmra.mrb[0].mxu0 %v1062
        %v3183 = vpop.f32.mrb[0].mxu0
        %v3184 = vadd.f32 %v3076, %v3183
        %v3185 = vpop.f32.mrb[0].mxu0
        %v3186 = vadd.f32 %v3080, %v3185
        %3187 = vmatprep.mubr.f32.mxu0 %v1067
        %3188 = vmatmul.mubr.f32.gmra.mrb[0].mxu0 %v1066
        %v3189 = vpop.f32.mrb[0].mxu0
        %v3190 = vadd.f32 %v3076, %v3189
        %v3191 = vpop.f32.mrb[0].mxu0
        %v3192 = vadd.f32 %v3080, %v3191
        %3193 = vmatprep.mubr.f32.mxu0 %v1071
        %3194 = vmatmul.mubr.f32.gmra.mrb[0].mxu0 %v1070
        %v3195 = vpop.f32.mrb[0].mxu0
        %v3196 = vadd.f32 %v3076, %v3195
        %v3197 = vpop.f32.mrb[0].mxu0
        %v3198 = vadd.f32 %v3080, %v3197
        %3199 = vmatprep.mubr.f32.mxu0 %v1075
        %3200 = vmatmul.mubr.f32.gmra.mrb[0].mxu0 %v1074
        %v3201 = vpop.f32.mrb[0].mxu0
        %v3202 = vadd.f32 %v3076, %v3201
        %v3203 = vpop.f32.mrb[0].mxu0
        %v3204 = vadd.f32 %v3080, %v3203
        %3205 = vdwg.mxu0
        %3206 = vmatprep.subr.mxu0 %v2944
        %3207 = vmatpush1.msra.mxu0 %v2943
        %3208 = vmatprep.subr.mxu0 %v2948
        %3209 = vmatpush1.msra.mxu0 %v2947
        %3210 = vmatprep.subr.mxu0 %v2952
        %3211 = vmatpush1.msra.mxu0 %v2951
        %3212 = vmatprep.subr.mxu0 %v2956
        %3213 = vmatpush1.msra.mxu0 %v2955
        %3214 = vmatprep.subr.mxu0 %v2960
        %3215 = vmatpush1.msra.mxu0 %v2959
        %3216 = vmatprep.subr.mxu0 %v2964
        %3217 = vmatpush1.msra.mxu0 %v2963
        %3218 = vmatprep.subr.mxu0 %v2968
        %3219 = vmatpush1.msra.mxu0 %v2967
        %3220 = vmatprep.subr.mxu0 %v2972
        %3221 = vmatpush1.msra.mxu0 %v2971
        %3222 = vmatprep.subr.mxu0 %v2976
        %3223 = vmatpush1.msra.mxu0 %v2975
        %3224 = vmatprep.subr.mxu0 %v2980
        %3225 = vmatpush1.msra.mxu0 %v2979
        %3226 = vmatprep.subr.mxu0 %v2984
        %3227 = vmatpush1.msra.mxu0 %v2983
        %3228 = vmatprep.subr.mxu0 %v2988
        %3229 = vmatpush1.msra.mxu0 %v2987
        %3230 = vmatprep.subr.mxu0 %v2992
        %3231 = vmatpush1.msra.mxu0 %v2991
        %3232 = vmatprep.subr.mxu0 %v2996
        %3233 = vmatpush1.msra.mxu0 %v2995
        %3234 = vmatprep.subr.mxu0 %v3000
        %3235 = vmatpush1.msra.mxu0 %v2999
        %3236 = vmatprep.subr.mxu0 %v3004
        %3237 = vmatpush1.msra.mxu0 %v3003
        %3238 = vmatprep.subr.mxu0 %v3008
        %3239 = vmatpush1.msra.mxu0 %v3007
        %3240 = vmatprep.subr.mxu0 %v3012
        %3241 = vmatpush1.msra.mxu0 %v3011
        %3242 = vmatprep.subr.mxu0 %v3016
        %3243 = vmatpush1.msra.mxu0 %v3015
        %3244 = vmatprep.subr.mxu0 %v3020
        %3245 = vmatpush1.msra.mxu0 %v3019
        %3246 = vmatprep.subr.mxu0 %v3024
        %3247 = vmatpush1.msra.mxu0 %v3023
        %3248 = vmatprep.subr.mxu0 %v3028
        %3249 = vmatpush1.msra.mxu0 %v3027
        %3250 = vmatprep.subr.mxu0 %v3032
        %3251 = vmatpush1.msra.mxu0 %v3031
        %3252 = vmatprep.subr.mxu0 %v3036
        %3253 = vmatpush1.msra.mxu0 %v3035
        %3254 = vmatprep.subr.mxu0 %v3040
        %3255 = vmatpush1.msra.mxu0 %v3039
        %3256 = vmatprep.subr.mxu0 %v3044
        %3257 = vmatpush1.msra.mxu0 %v3043
        %3258 = vmatprep.subr.mxu0 %v3048
        %3259 = vmatpush1.msra.mxu0 %v3047
        %3260 = vmatprep.subr.mxu0 %v3052
        %3261 = vmatpush1.msra.mxu0 %v3051
        %3262 = vmatprep.subr.mxu0 %v3056
        %3263 = vmatpush1.msra.mxu0 %v3055
        %3264 = vmatprep.subr.mxu0 %v3060
        %3265 = vmatpush1.msra.mxu0 %v3059
        %3266 = vmatprep.subr.mxu0 %v3064
        %3267 = vmatpush1.msra.mxu0 %v3063
        %3268 = vmatprep.subr.mxu0 %v3068
        %3269 = vmatpush1.msra.mxu0 %v3067
        %3270 = vmatprep.mubr.f32.mxu0 %v1049
        %3271 = vmatmul.mubr.f32.gmra.mrb[0].mxu0 %v1048
        %v3272 = vpop.f32.mrb[0].mxu0
        %v3273 = vadd.f32 %v3160, %v3272
        %v3274 = vpop.f32.mrb[0].mxu0
        %v3275 = vadd.f32 %v3162, %v3274
        %3276 = vmatprep.mubr.f32.mxu0 %v1053
        %3277 = vmatmul.mubr.f32.gmra.mrb[0].mxu0 %v1052
        %v3278 = vpop.f32.mrb[0].mxu0
        %v3279 = vadd.f32 %v3166, %v3278
        %v3280 = vpop.f32.mrb[0].mxu0
        %v3281 = vadd.f32 %v3168, %v3280
        %3282 = vmatprep.mubr.f32.mxu0 %v1057
        %3283 = vmatmul.mubr.f32.gmra.mrb[0].mxu0 %v1056
        %v3284 = vpop.f32.mrb[0].mxu0
        %v3285 = vadd.f32 %v3172, %v3284
        %v3286 = vpop.f32.mrb[0].mxu0
        %v3287 = vadd.f32 %v3174, %v3286
        %3288 = vmatprep.mubr.f32.mxu0 %v1061
        %3289 = vmatmul.mubr.f32.gmra.mrb[0].mxu0 %v1060
        %v3290 = vpop.f32.mrb[0].mxu0
        %v3291 = vadd.f32 %v3178, %v3290
        %v3292 = vpop.f32.mrb[0].mxu0
        %v3293 = vadd.f32 %v3180, %v3292
        %3294 = vmatprep.mubr.f32.mxu0 %v1065
        %3295 = vmatmul.mubr.f32.gmra.mrb[0].mxu0 %v1064
        %v3296 = vpop.f32.mrb[0].mxu0
        %v3297 = vadd.f32 %v3184, %v3296
        %v3298 = vpop.f32.mrb[0].mxu0
        %v3299 = vadd.f32 %v3186, %v3298
        %3300 = vmatprep.mubr.f32.mxu0 %v1069
        %3301 = vmatmul.mubr.f32.gmra.mrb[0].mxu0 %v1068
        %v3302 = vpop.f32.mrb[0].mxu0
        %v3303 = vadd.f32 %v3190, %v3302
        %v3304 = vpop.f32.mrb[0].mxu0
        %v3305 = vadd.f32 %v3192, %v3304
        %3306 = vmatprep.mubr.f32.mxu0 %v1073
        %3307 = vmatmul.mubr.f32.gmra.mrb[0].mxu0 %v1072
        %v3308 = vpop.f32.mrb[0].mxu0
        %v3309 = vadd.f32 %v3196, %v3308
        %v3310 = vpop.f32.mrb[0].mxu0
        %v3311 = vadd.f32 %v3198, %v3310
        %3312 = vmatprep.mubr.f32.mxu0 %v1077
        %3313 = vmatmul.mubr.f32.gmra.mrb[0].mxu0 %v1076
        %v3314 = vpop.f32.mrb[0].mxu0
        %v3315 = vadd.f32 %v3202, %v3314
        %v3316 = vpop.f32.mrb[0].mxu0
        %v3317 = vadd.f32 %v3204, %v3316
        %3318 = vdwg.mxu0
        %3319 = vmatprep.subr.mxu0 %v2818
        %3320 = vmatpush1.msra.mxu0 %v2817
        %3321 = vmatprep.subr.mxu0 %v2822
        %3322 = vmatpush1.msra.mxu0 %v2821
        %3323 = vmatprep.subr.mxu0 %v2826
        %3324 = vmatpush1.msra.mxu0 %v2825
        %3325 = vmatprep.subr.mxu0 %v2830
        %3326 = vmatpush1.msra.mxu0 %v2829
        %3327 = vmatprep.subr.mxu0 %v2834
        %3328 = vmatpush1.msra.mxu0 %v2833
        %3329 = vmatprep.subr.mxu0 %v2838
        %3330 = vmatpush1.msra.mxu0 %v2837
        %3331 = vmatprep.subr.mxu0 %v2842
        %3332 = vmatpush1.msra.mxu0 %v2841
        %3333 = vmatprep.subr.mxu0 %v2846
        %3334 = vmatpush1.msra.mxu0 %v2845
        %3335 = vmatprep.subr.mxu0 %v2850
        %3336 = vmatpush1.msra.mxu0 %v2849
        %3337 = vmatprep.subr.mxu0 %v2854
        %3338 = vmatpush1.msra.mxu0 %v2853
        %3339 = vmatprep.subr.mxu0 %v2858
        %3340 = vmatpush1.msra.mxu0 %v2857
        %3341 = vmatprep.subr.mxu0 %v2862
        %3342 = vmatpush1.msra.mxu0 %v2861
        %3343 = vmatprep.subr.mxu0 %v2866
        %3344 = vmatpush1.msra.mxu0 %v2865
        %3345 = vmatprep.subr.mxu0 %v2870
        %3346 = vmatpush1.msra.mxu0 %v2869
        %3347 = vmatprep.subr.mxu0 %v2874
        %3348 = vmatpush1.msra.mxu0 %v2873
        %3349 = vmatprep.subr.mxu0 %v2878
        %3350 = vmatpush1.msra.mxu0 %v2877
        %3351 = vmatprep.subr.mxu0 %v2882
        %3352 = vmatpush1.msra.mxu0 %v2881
        %3353 = vmatprep.subr.mxu0 %v2886
        %3354 = vmatpush1.msra.mxu0 %v2885
        %3355 = vmatprep.subr.mxu0 %v2890
        %3356 = vmatpush1.msra.mxu0 %v2889
        %3357 = vmatprep.subr.mxu0 %v2894
        %3358 = vmatpush1.msra.mxu0 %v2893
        %3359 = vmatprep.subr.mxu0 %v2898
        %3360 = vmatpush1.msra.mxu0 %v2897
        %3361 = vmatprep.subr.mxu0 %v2902
        %3362 = vmatpush1.msra.mxu0 %v2901
        %3363 = vmatprep.subr.mxu0 %v2906
        %3364 = vmatpush1.msra.mxu0 %v2905
        %3365 = vmatprep.subr.mxu0 %v2910
        %3366 = vmatpush1.msra.mxu0 %v2909
        %3367 = vmatprep.subr.mxu0 %v2914
        %3368 = vmatpush1.msra.mxu0 %v2913
        %3369 = vmatprep.subr.mxu0 %v2918
        %3370 = vmatpush1.msra.mxu0 %v2917
        %3371 = vmatprep.subr.mxu0 %v2922
        %3372 = vmatpush1.msra.mxu0 %v2921
        %3373 = vmatprep.subr.mxu0 %v2926
        %3374 = vmatpush1.msra.mxu0 %v2925
        %3375 = vmatprep.subr.mxu0 %v2930
        %3376 = vmatpush1.msra.mxu0 %v2929
        %3377 = vmatprep.subr.mxu0 %v2934
        %3378 = vmatpush1.msra.mxu0 %v2933
        %3379 = vmatprep.subr.mxu0 %v2938
        %3380 = vmatpush1.msra.mxu0 %v2937
        %3381 = vmatprep.subr.mxu0 %v2942
        %3382 = vmatpush1.msra.mxu0 %v2941
        %3383 = vmatprep.mubr.f32.mxu0 %v1047
        %3384 = vmatmul.mubr.f32.gmra.mrb[0].mxu0 %v1046
        %v3385 = vpop.f32.mrb[0].mxu0
        %v3386 = vadd.f32 %v3084, %v3385
        %v3387 = vpop.f32.mrb[0].mxu0
        %v3388 = vadd.f32 %v3088, %v3387
        %3389 = vmatprep.mubr.f32.mxu0 %v1051
        %3390 = vmatmul.mubr.f32.gmra.mrb[0].mxu0 %v1050
        %v3391 = vpop.f32.mrb[0].mxu0
        %v3392 = vadd.f32 %v3084, %v3391
        %v3393 = vpop.f32.mrb[0].mxu0
        %v3394 = vadd.f32 %v3088, %v3393
        %3395 = vmatprep.mubr.f32.mxu0 %v1055
        %3396 = vmatmul.mubr.f32.gmra.mrb[0].mxu0 %v1054
        %v3397 = vpop.f32.mrb[0].mxu0
        %v3398 = vadd.f32 %v3084, %v3397
        %v3399 = vpop.f32.mrb[0].mxu0
        %v3400 = vadd.f32 %v3088, %v3399
        %3401 = vmatprep.mubr.f32.mxu0 %v1059
        %3402 = vmatmul.mubr.f32.gmra.mrb[0].mxu0 %v1058
        %v3403 = vpop.f32.mrb[0].mxu0
        %v3404 = vadd.f32 %v3084, %v3403
        %v3405 = vpop.f32.mrb[0].mxu0
        %v3406 = vadd.f32 %v3088, %v3405
        %3407 = vmatprep.mubr.f32.mxu0 %v1063
        %3408 = vmatmul.mubr.f32.gmra.mrb[0].mxu0 %v1062
        %v3409 = vpop.f32.mrb[0].mxu0
        %v3410 = vadd.f32 %v3084, %v3409
        %v3411 = vpop.f32.mrb[0].mxu0
        %v3412 = vadd.f32 %v3088, %v3411
        %3413 = vmatprep.mubr.f32.mxu0 %v1067
        %3414 = vmatmul.mubr.f32.gmra.mrb[0].mxu0 %v1066
        %v3415 = vpop.f32.mrb[0].mxu0
        %v3416 = vadd.f32 %v3084, %v3415
        %v3417 = vpop.f32.mrb[0].mxu0
        %v3418 = vadd.f32 %v3088, %v3417
        %3419 = vmatprep.mubr.f32.mxu0 %v1071
        %3420 = vmatmul.mubr.f32.gmra.mrb[0].mxu0 %v1070
        %v3421 = vpop.f32.mrb[0].mxu0
        %v3422 = vadd.f32 %v3084, %v3421
        %v3423 = vpop.f32.mrb[0].mxu0
        %v3424 = vadd.f32 %v3088, %v3423
        %3425 = vmatprep.mubr.f32.mxu0 %v1075
        %3426 = vmatmul.mubr.f32.gmra.mrb[0].mxu0 %v1074
        %v3427 = vpop.f32.mrb[0].mxu0
        %v3428 = vadd.f32 %v3084, %v3427
        %v3429 = vpop.f32.mrb[0].mxu0
        %v3430 = vadd.f32 %v3088, %v3429
        %3431 = vdwg.mxu0
        %3432 = vmatprep.subr.mxu0 %v2946
        %3433 = vmatpush1.msra.mxu0 %v2945
        %3434 = vmatprep.subr.mxu0 %v2950
        %3435 = vmatpush1.msra.mxu0 %v2949
        %3436 = vmatprep.subr.mxu0 %v2954
        %3437 = vmatpush1.msra.mxu0 %v2953
        %3438 = vmatprep.subr.mxu0 %v2958
        %3439 = vmatpush1.msra.mxu0 %v2957
        %3440 = vmatprep.subr.mxu0 %v2962
        %3441 = vmatpush1.msra.mxu0 %v2961
        %3442 = vmatprep.subr.mxu0 %v2966
        %3443 = vmatpush1.msra.mxu0 %v2965
        %3444 = vmatprep.subr.mxu0 %v2970
        %3445 = vmatpush1.msra.mxu0 %v2969
        %3446 = vmatprep.subr.mxu0 %v2974
        %3447 = vmatpush1.msra.mxu0 %v2973
        %3448 = vmatprep.subr.mxu0 %v2978
        %3449 = vmatpush1.msra.mxu0 %v2977
        %3450 = vmatprep.subr.mxu0 %v2982
        %3451 = vmatpush1.msra.mxu0 %v2981
        %3452 = vmatprep.subr.mxu0 %v2986
        %3453 = vmatpush1.msra.mxu0 %v2985
        %3454 = vmatprep.subr.mxu0 %v2990
        %3455 = vmatpush1.msra.mxu0 %v2989
        %3456 = vmatprep.subr.mxu0 %v2994
        %3457 = vmatpush1.msra.mxu0 %v2993
        %3458 = vmatprep.subr.mxu0 %v2998
        %3459 = vmatpush1.msra.mxu0 %v2997
        %3460 = vmatprep.subr.mxu0 %v3002
        %3461 = vmatpush1.msra.mxu0 %v3001
        %3462 = vmatprep.subr.mxu0 %v3006
        %3463 = vmatpush1.msra.mxu0 %v3005
        %3464 = vmatprep.subr.mxu0 %v3010
        %3465 = vmatpush1.msra.mxu0 %v3009
        %3466 = vmatprep.subr.mxu0 %v3014
        %3467 = vmatpush1.msra.mxu0 %v3013
        %3468 = vmatprep.subr.mxu0 %v3018
        %3469 = vmatpush1.msra.mxu0 %v3017
        %3470 = vmatprep.subr.mxu0 %v3022
        %3471 = vmatpush1.msra.mxu0 %v3021
        %3472 = vmatprep.subr.mxu0 %v3026
        %3473 = vmatpush1.msra.mxu0 %v3025
        %3474 = vmatprep.subr.mxu0 %v3030
        %3475 = vmatpush1.msra.mxu0 %v3029
        %3476 = vmatprep.subr.mxu0 %v3034
        %3477 = vmatpush1.msra.mxu0 %v3033
        %3478 = vmatprep.subr.mxu0 %v3038
        %3479 = vmatpush1.msra.mxu0 %v3037
        %3480 = vmatprep.subr.mxu0 %v3042
        %3481 = vmatpush1.msra.mxu0 %v3041
        %3482 = vmatprep.subr.mxu0 %v3046
        %3483 = vmatpush1.msra.mxu0 %v3045
        %3484 = vmatprep.subr.mxu0 %v3050
        %3485 = vmatpush1.msra.mxu0 %v3049
        %3486 = vmatprep.subr.mxu0 %v3054
        %3487 = vmatpush1.msra.mxu0 %v3053
        %3488 = vmatprep.subr.mxu0 %v3058
        %3489 = vmatpush1.msra.mxu0 %v3057
        %3490 = vmatprep.subr.mxu0 %v3062
        %3491 = vmatpush1.msra.mxu0 %v3061
        %3492 = vmatprep.subr.mxu0 %v3066
        %3493 = vmatpush1.msra.mxu0 %v3065
        %3494 = vmatprep.subr.mxu0 %v3070
        %3495 = vmatpush1.msra.mxu0 %v3069
        %3496 = vmatprep.mubr.f32.mxu0 %v1049
        %3497 = vmatmul.mubr.f32.gmra.mrb[0].mxu0 %v1048
        %v3498 = vpop.f32.mrb[0].mxu0
        %v3499 = vadd.f32 %v3386, %v3498
        %v3500 = vpop.f32.mrb[0].mxu0
        %v3501 = vadd.f32 %v3388, %v3500
        %3502 = vmatprep.mubr.f32.mxu0 %v1053
        %3503 = vmatmul.mubr.f32.gmra.mrb[0].mxu0 %v1052
        %v3504 = vpop.f32.mrb[0].mxu0
        %v3505 = vadd.f32 %v3392, %v3504
        %v3506 = vpop.f32.mrb[0].mxu0
        %v3507 = vadd.f32 %v3394, %v3506
        %3508 = vmatprep.mubr.f32.mxu0 %v1057
        %3509 = vmatmul.mubr.f32.gmra.mrb[0].mxu0 %v1056
        %v3510 = vpop.f32.mrb[0].mxu0
        %v3511 = vadd.f32 %v3398, %v3510
        %v3512 = vpop.f32.mrb[0].mxu0
        %v3513 = vadd.f32 %v3400, %v3512
        %3514 = vmatprep.mubr.f32.mxu0 %v1061
        %3515 = vmatmul.mubr.f32.gmra.mrb[0].mxu0 %v1060
        %v3516 = vpop.f32.mrb[0].mxu0
        %v3517 = vadd.f32 %v3404, %v3516
        %v3518 = vpop.f32.mrb[0].mxu0
        %v3519 = vadd.f32 %v3406, %v3518
        %3520 = vmatprep.mubr.f32.mxu0 %v1065
        %3521 = vmatmul.mubr.f32.gmra.mrb[0].mxu0 %v1064
        %v3522 = vpop.f32.mrb[0].mxu0
        %v3523 = vadd.f32 %v3410, %v3522
        %v3524 = vpop.f32.mrb[0].mxu0
        %v3525 = vadd.f32 %v3412, %v3524
        %3526 = vmatprep.mubr.f32.mxu0 %v1069
        %3527 = vmatmul.mubr.f32.gmra.mrb[0].mxu0 %v1068
        %v3528 = vpop.f32.mrb[0].mxu0
        %v3529 = vadd.f32 %v3416, %v3528
        %v3530 = vpop.f32.mrb[0].mxu0
        %v3531 = vadd.f32 %v3418, %v3530
        %3532 = vmatprep.mubr.f32.mxu0 %v1073
        %3533 = vmatmul.mubr.f32.gmra.mrb[0].mxu0 %v1072
        %v3534 = vpop.f32.mrb[0].mxu0
        %v3535 = vadd.f32 %v3422, %v3534
        %v3536 = vpop.f32.mrb[0].mxu0
        %v3537 = vadd.f32 %v3424, %v3536
        %3538 = vmatprep.mubr.f32.mxu0 %v1077
        %3539 = vmatmul.mubr.f32.gmra.mrb[0].mxu0 %v1076
        %v3540 = vpop.f32.mrb[0].mxu0
        %v3541 = vadd.f32 %v3428, %v3540
        %v3542 = vpop.f32.mrb[0].mxu0
        %v3543 = vadd.f32 %v3430, %v3542
        %3544 = vdwg.mxu0
        %v3545 = vld [vmem:[#allocation20] sm:$0xff]
        %v3546 = vld [vmem:[#allocation20 + $0x8] sm:$0xff]
        %v3547 = vld [vmem:[#allocation20 + $0x10] sm:$0xff]
        %v3548 = vld [vmem:[#allocation20 + $0x18] sm:$0xff]
        %v3549 = vld [vmem:[#allocation20 + $0x20] sm:$0xff]
        %v3550 = vld [vmem:[#allocation20 + $0x28] sm:$0xff]
        %v3551 = vld [vmem:[#allocation20 + $0x30] sm:$0xff]
        %v3552 = vld [vmem:[#allocation20 + $0x38] sm:$0xff]
        %v3553 = vld [vmem:[#allocation20 + $0x40] sm:$0xff]
        %v3554 = vld [vmem:[#allocation20 + $0x48] sm:$0xff]
        %v3555 = vld [vmem:[#allocation20 + $0x50] sm:$0xff]
        %v3556 = vld [vmem:[#allocation20 + $0x58] sm:$0xff]
        %v3557 = vld [vmem:[#allocation20 + $0x60] sm:$0xff]
        %v3558 = vld [vmem:[#allocation20 + $0x68] sm:$0xff]
        %v3559 = vld [vmem:[#allocation20 + $0x70] sm:$0xff]
        %v3560 = vld [vmem:[#allocation20 + $0x78] sm:$0xff]
        %3569 = vrot.lane.b32.xlu0 %v1189, 96
        %v3570 = vpop.permute.xlu0 %3569
        %3571 = vrot.lane.b32.xlu0 %v1194, 96
        %v3572 = vpop.permute.xlu0 %3571
        %3573 = vrot.lane.b32.xlu0 %v1199, 96
        %v3574 = vpop.permute.xlu0 %3573
        %3575 = vrot.lane.b32.xlu0 %v1204, 96
        %v3576 = vpop.permute.xlu0 %3575
        %3577 = vrot.lane.b32.xlu0 %v1209, 96
        %v3578 = vpop.permute.xlu0 %3577
        %3579 = vrot.lane.b32.xlu0 %v1214, 96
        %v3580 = vpop.permute.xlu0 %3579
        %3581 = vrot.lane.b32.xlu0 %v1219, 96
        %v3582 = vpop.permute.xlu0 %3581
        %3583 = vrot.lane.b32.xlu0 %v1224, 96
        %v3584 = vpop.permute.xlu0 %3583
        %v3585 = vsel %vm1097, %v3570, 0
        %v3587 = vsel %vm1097, %v3572, 0
        %v3589 = vsel %vm1097, %v3574, 0
        %v3591 = vsel %vm1097, %v3576, 0
        %v3593 = vsel %vm1097, %v3578, 0
        %v3595 = vsel %vm1097, %v3580, 0
        %v3597 = vsel %vm1097, %v3582, 0
        %v3599 = vsel %vm1097, %v3584, 0
        %3601 = vmatprep.subr.mxu0 %v3546
        %3602 = vmatpush1.msra.mxu0 %v3545
        %3603 = vmatprep.subr.mxu0 %v3550
        %3604 = vmatpush1.msra.mxu0 %v3549
        %3605 = vmatprep.subr.mxu0 %v3554
        %3606 = vmatpush1.msra.mxu0 %v3553
        %3607 = vmatprep.subr.mxu0 %v3558
        %3608 = vmatpush1.msra.mxu0 %v3557
        %3609 = vmatprep.subr.mxu0 0.0
        %3610 = vmatpush1.msra.mxu0 0.0
        %3611 = vmatprep.subr.mxu0 0.0
        %3612 = vmatpush1.msra.mxu0 0.0
        %3613 = vmatprep.subr.mxu0 0.0
        %3614 = vmatpush1.msra.mxu0 0.0
        %3615 = vmatprep.subr.mxu0 0.0
        %3616 = vmatpush1.msra.mxu0 0.0
        %3617 = vmatprep.subr.mxu0 0.0
        %3618 = vmatpush1.msra.mxu0 0.0
        %3619 = vmatprep.subr.mxu0 0.0
        %3620 = vmatpush1.msra.mxu0 0.0
        %3621 = vmatprep.subr.mxu0 0.0
        %3622 = vmatpush1.msra.mxu0 0.0
        %3623 = vmatprep.subr.mxu0 0.0
        %3624 = vmatpush1.msra.mxu0 0.0
        %3625 = vmatprep.subr.mxu0 0.0
        %3626 = vmatpush1.msra.mxu0 0.0
        %3627 = vmatprep.subr.mxu0 0.0
        %3628 = vmatpush1.msra.mxu0 0.0
        %3629 = vmatprep.subr.mxu0 0.0
        %3630 = vmatpush1.msra.mxu0 0.0
        %3631 = vmatprep.subr.mxu0 0.0
        %3632 = vmatpush1.msra.mxu0 0.0
        %3633 = vmatprep.subr.mxu0 0.0
        %3634 = vmatpush1.msra.mxu0 0.0
        %3635 = vmatprep.subr.mxu0 0.0
        %3636 = vmatpush1.msra.mxu0 0.0
        %3637 = vmatprep.subr.mxu0 0.0
        %3638 = vmatpush1.msra.mxu0 0.0
        %3639 = vmatprep.subr.mxu0 0.0
        %3640 = vmatpush1.msra.mxu0 0.0
        %3641 = vmatprep.subr.mxu0 0.0
        %3642 = vmatpush1.msra.mxu0 0.0
        %3643 = vmatprep.subr.mxu0 0.0
        %3644 = vmatpush1.msra.mxu0 0.0
        %3645 = vmatprep.subr.mxu0 0.0
        %3646 = vmatpush1.msra.mxu0 0.0
        %3647 = vmatprep.subr.mxu0 0.0
        %3648 = vmatpush1.msra.mxu0 0.0
        %3649 = vmatprep.subr.mxu0 0.0
        %3650 = vmatpush1.msra.mxu0 0.0
        %3651 = vmatprep.subr.mxu0 0.0
        %3652 = vmatpush1.msra.mxu0 0.0
        %3653 = vmatprep.subr.mxu0 0.0
        %3654 = vmatpush1.msra.mxu0 0.0
        %3655 = vmatprep.subr.mxu0 0.0
        %3656 = vmatpush1.msra.mxu0 0.0
        %3657 = vmatprep.subr.mxu0 0.0
        %3658 = vmatpush1.msra.mxu0 0.0
        %3659 = vmatprep.subr.mxu0 0.0
        %3660 = vmatpush1.msra.mxu0 0.0
        %3661 = vmatprep.subr.mxu0 0.0
        %3662 = vmatpush1.msra.mxu0 0.0
        %3663 = vmatprep.subr.mxu0 0.0
        %3664 = vmatpush1.msra.mxu0 0.0
        %3665 = vmatprep.mubr.f32.mxu0 0.0
        %3666 = vmatmul.mubr.f32.gmra.mrb[0].mxu0 %v3585
        %v3667 = vpop.f32.mrb[0].mxu0
        %v3668 = vadd.f32 0.0, %v3667
        %v3669 = vpop.f32.mrb[0].mxu0
        %v3670 = vadd.f32 0.0, %v3669
        %3671 = vmatprep.mubr.f32.mxu0 0.0
        %3672 = vmatmul.mubr.f32.gmra.mrb[0].mxu0 %v3587
        %v3673 = vpop.f32.mrb[0].mxu0
        %v3674 = vadd.f32 0.0, %v3673
        %v3675 = vpop.f32.mrb[0].mxu0
        %v3676 = vadd.f32 0.0, %v3675
        %3677 = vmatprep.mubr.f32.mxu0 0.0
        %3678 = vmatmul.mubr.f32.gmra.mrb[0].mxu0 %v3589
        %v3679 = vpop.f32.mrb[0].mxu0
        %v3680 = vadd.f32 0.0, %v3679
        %v3681 = vpop.f32.mrb[0].mxu0
        %v3682 = vadd.f32 0.0, %v3681
        %3683 = vmatprep.mubr.f32.mxu0 0.0
        %3684 = vmatmul.mubr.f32.gmra.mrb[0].mxu0 %v3591
        %v3685 = vpop.f32.mrb[0].mxu0
        %v3686 = vadd.f32 0.0, %v3685
        %v3687 = vpop.f32.mrb[0].mxu0
        %v3688 = vadd.f32 0.0, %v3687
        %3689 = vmatprep.mubr.f32.mxu0 0.0
        %3690 = vmatmul.mubr.f32.gmra.mrb[0].mxu0 %v3593
        %v3691 = vpop.f32.mrb[0].mxu0
        %v3692 = vadd.f32 0.0, %v3691
        %v3693 = vpop.f32.mrb[0].mxu0
        %v3694 = vadd.f32 0.0, %v3693
        %3695 = vmatprep.mubr.f32.mxu0 0.0
        %3696 = vmatmul.mubr.f32.gmra.mrb[0].mxu0 %v3595
        %v3697 = vpop.f32.mrb[0].mxu0
        %v3698 = vadd.f32 0.0, %v3697
        %v3699 = vpop.f32.mrb[0].mxu0
        %v3700 = vadd.f32 0.0, %v3699
        %3701 = vmatprep.mubr.f32.mxu0 0.0
        %3702 = vmatmul.mubr.f32.gmra.mrb[0].mxu0 %v3597
        %v3703 = vpop.f32.mrb[0].mxu0
        %v3704 = vadd.f32 0.0, %v3703
        %v3705 = vpop.f32.mrb[0].mxu0
        %v3706 = vadd.f32 0.0, %v3705
        %3707 = vmatprep.mubr.f32.mxu0 0.0
        %3708 = vmatmul.mubr.f32.gmra.mrb[0].mxu0 %v3599
        %v3709 = vpop.f32.mrb[0].mxu0
        %v3710 = vadd.f32 0.0, %v3709
        %v3711 = vpop.f32.mrb[0].mxu0
        %v3712 = vadd.f32 0.0, %v3711
        %3713 = vdwg.mxu0
        %3714 = vmatprep.subr.mxu0 %v3548
        %3715 = vmatpush1.msra.mxu0 %v3547
        %3716 = vmatprep.subr.mxu0 %v3552
        %3717 = vmatpush1.msra.mxu0 %v3551
        %3718 = vmatprep.subr.mxu0 %v3556
        %3719 = vmatpush1.msra.mxu0 %v3555
        %3720 = vmatprep.subr.mxu0 %v3560
        %3721 = vmatpush1.msra.mxu0 %v3559
        %3722 = vmatprep.subr.mxu0 0.0
        %3723 = vmatpush1.msra.mxu0 0.0
        %3724 = vmatprep.subr.mxu0 0.0
        %3725 = vmatpush1.msra.mxu0 0.0
        %3726 = vmatprep.subr.mxu0 0.0
        %3727 = vmatpush1.msra.mxu0 0.0
        %3728 = vmatprep.subr.mxu0 0.0
        %3729 = vmatpush1.msra.mxu0 0.0
        %3730 = vmatprep.subr.mxu0 0.0
        %3731 = vmatpush1.msra.mxu0 0.0
        %3732 = vmatprep.subr.mxu0 0.0
        %3733 = vmatpush1.msra.mxu0 0.0
        %3734 = vmatprep.subr.mxu0 0.0
        %3735 = vmatpush1.msra.mxu0 0.0
        %3736 = vmatprep.subr.mxu0 0.0
        %3737 = vmatpush1.msra.mxu0 0.0
        %3738 = vmatprep.subr.mxu0 0.0
        %3739 = vmatpush1.msra.mxu0 0.0
        %3740 = vmatprep.subr.mxu0 0.0
        %3741 = vmatpush1.msra.mxu0 0.0
        %3742 = vmatprep.subr.mxu0 0.0
        %3743 = vmatpush1.msra.mxu0 0.0
        %3744 = vmatprep.subr.mxu0 0.0
        %3745 = vmatpush1.msra.mxu0 0.0
        %3746 = vmatprep.subr.mxu0 0.0
        %3747 = vmatpush1.msra.mxu0 0.0
        %3748 = vmatprep.subr.mxu0 0.0
        %3749 = vmatpush1.msra.mxu0 0.0
        %3750 = vmatprep.subr.mxu0 0.0
        %3751 = vmatpush1.msra.mxu0 0.0
        %3752 = vmatprep.subr.mxu0 0.0
        %3753 = vmatpush1.msra.mxu0 0.0
        %3754 = vmatprep.subr.mxu0 0.0
        %3755 = vmatpush1.msra.mxu0 0.0
        %3756 = vmatprep.subr.mxu0 0.0
        %3757 = vmatpush1.msra.mxu0 0.0
        %3758 = vmatprep.subr.mxu0 0.0
        %3759 = vmatpush1.msra.mxu0 0.0
        %3760 = vmatprep.subr.mxu0 0.0
        %3761 = vmatpush1.msra.mxu0 0.0
        %3762 = vmatprep.subr.mxu0 0.0
        %3763 = vmatpush1.msra.mxu0 0.0
        %3764 = vmatprep.subr.mxu0 0.0
        %3765 = vmatpush1.msra.mxu0 0.0
        %3766 = vmatprep.subr.mxu0 0.0
        %3767 = vmatpush1.msra.mxu0 0.0
        %3768 = vmatprep.subr.mxu0 0.0
        %3769 = vmatpush1.msra.mxu0 0.0
        %3770 = vmatprep.subr.mxu0 0.0
        %3771 = vmatpush1.msra.mxu0 0.0
        %3772 = vmatprep.subr.mxu0 0.0
        %3773 = vmatpush1.msra.mxu0 0.0
        %3774 = vmatprep.subr.mxu0 0.0
        %3775 = vmatpush1.msra.mxu0 0.0
        %3776 = vmatprep.subr.mxu0 0.0
        %3777 = vmatpush1.msra.mxu0 0.0
        %3778 = vmatprep.mubr.f32.mxu0 0.0
        %3779 = vmatmul.mubr.f32.gmra.mrb[0].mxu0 %v3585
        %v3780 = vpop.f32.mrb[0].mxu0
        %v3781 = vadd.f32 0.0, %v3780
        %v3782 = vpop.f32.mrb[0].mxu0
        %v3783 = vadd.f32 0.0, %v3782
        %3784 = vmatprep.mubr.f32.mxu0 0.0
        %3785 = vmatmul.mubr.f32.gmra.mrb[0].mxu0 %v3587
        %v3786 = vpop.f32.mrb[0].mxu0
        %v3787 = vadd.f32 0.0, %v3786
        %v3788 = vpop.f32.mrb[0].mxu0
        %v3789 = vadd.f32 0.0, %v3788
        %3790 = vmatprep.mubr.f32.mxu0 0.0
        %3791 = vmatmul.mubr.f32.gmra.mrb[0].mxu0 %v3589
        %v3792 = vpop.f32.mrb[0].mxu0
        %v3793 = vadd.f32 0.0, %v3792
        %v3794 = vpop.f32.mrb[0].mxu0
        %v3795 = vadd.f32 0.0, %v3794
        %3796 = vmatprep.mubr.f32.mxu0 0.0
        %3797 = vmatmul.mubr.f32.gmra.mrb[0].mxu0 %v3591
        %v3798 = vpop.f32.mrb[0].mxu0
        %v3799 = vadd.f32 0.0, %v3798
        %v3800 = vpop.f32.mrb[0].mxu0
        %v3801 = vadd.f32 0.0, %v3800
        %3802 = vmatprep.mubr.f32.mxu0 0.0
        %3803 = vmatmul.mubr.f32.gmra.mrb[0].mxu0 %v3593
        %v3804 = vpop.f32.mrb[0].mxu0
        %v3805 = vadd.f32 0.0, %v3804
        %v3806 = vpop.f32.mrb[0].mxu0
        %v3807 = vadd.f32 0.0, %v3806
        %3808 = vmatprep.mubr.f32.mxu0 0.0
        %3809 = vmatmul.mubr.f32.gmra.mrb[0].mxu0 %v3595
        %v3810 = vpop.f32.mrb[0].mxu0
        %v3811 = vadd.f32 0.0, %v3810
        %v3812 = vpop.f32.mrb[0].mxu0
        %v3813 = vadd.f32 0.0, %v3812
        %3814 = vmatprep.mubr.f32.mxu0 0.0
        %3815 = vmatmul.mubr.f32.gmra.mrb[0].mxu0 %v3597
        %v3816 = vpop.f32.mrb[0].mxu0
        %v3817 = vadd.f32 0.0, %v3816
        %v3818 = vpop.f32.mrb[0].mxu0
        %v3819 = vadd.f32 0.0, %v3818
        %3820 = vmatprep.mubr.f32.mxu0 0.0
        %3821 = vmatmul.mubr.f32.gmra.mrb[0].mxu0 %v3599
        %v3822 = vpop.f32.mrb[0].mxu0
        %v3823 = vadd.f32 0.0, %v3822
        %v3824 = vpop.f32.mrb[0].mxu0
        %v3825 = vadd.f32 0.0, %v3824
        %3826 = vdwg.mxu0
        %v3827 = vadd.f32 %v3273, %v3668
        %v3828 = vadd.f32 %v3275, %v3670
        %v3829 = vadd.f32 %v3499, %v3781
        %v3830 = vadd.f32 %v3501, %v3783
        %v3831 = vadd.f32 %v3279, %v3674
        %v3832 = vadd.f32 %v3281, %v3676
        %v3833 = vadd.f32 %v3505, %v3787
        %v3834 = vadd.f32 %v3507, %v3789
        %v3835 = vadd.f32 %v3285, %v3680
        %v3836 = vadd.f32 %v3287, %v3682
        %v3837 = vadd.f32 %v3511, %v3793
        %v3838 = vadd.f32 %v3513, %v3795
        %v3839 = vadd.f32 %v3291, %v3686
        %v3840 = vadd.f32 %v3293, %v3688
        %v3841 = vadd.f32 %v3517, %v3799
        %v3842 = vadd.f32 %v3519, %v3801
        %v3843 = vadd.f32 %v3297, %v3692
        %v3844 = vadd.f32 %v3299, %v3694
        %v3845 = vadd.f32 %v3523, %v3805
        %v3846 = vadd.f32 %v3525, %v3807
        %v3847 = vadd.f32 %v3303, %v3698
        %v3848 = vadd.f32 %v3305, %v3700
        %v3849 = vadd.f32 %v3529, %v3811
        %v3850 = vadd.f32 %v3531, %v3813
        %v3851 = vadd.f32 %v3309, %v3704
        %v3852 = vadd.f32 %v3311, %v3706
        %v3853 = vadd.f32 %v3535, %v3817
        %v3854 = vadd.f32 %v3537, %v3819
        %v3855 = vadd.f32 %v3315, %v3710
        %v3856 = vadd.f32 %v3317, %v3712
        %v3857 = vadd.f32 %v3541, %v3823
        %v3858 = vadd.f32 %v3543, %v3825
        %v3859 = vlaneseq
        %v3860 = vshrl.u32 %v3859, 7
        %v3861 = vsub.s32 0, %v3860
        %v3862 = vrot.slane %v2669, %v3861
        %v3863 = vlaneseq
        %v3864 = vshrl.u32 %v3863, 7
        %v3865 = vsub.s32 0, %v3864
        %v3866 = vrot.slane %v2671, %v3865
        %v3867 = vlaneseq
        %v3868 = vshrl.u32 %v3867, 7
        %v3869 = vsub.s32 0, %v3868
        %v3870 = vrot.slane %v2811, %v3869
        %v3871 = vlaneseq
        %v3872 = vshrl.u32 %v3871, 7
        %v3873 = vsub.s32 0, %v3872
        %v3874 = vrot.slane %v2813, %v3873
        %v3875 = vadd.f32 %v3827, %v3862
        %v3876 = vadd.f32 %v3828, %v3866
        %v3877 = vadd.f32 %v3829, %v3870
        %v3878 = vadd.f32 %v3830, %v3874
        %v3879 = vadd.f32 %v3831, %v3862
        %v3880 = vadd.f32 %v3832, %v3866
        %v3881 = vadd.f32 %v3833, %v3870
        %v3882 = vadd.f32 %v3834, %v3874
        %v3883 = vadd.f32 %v3835, %v3862
        %v3884 = vadd.f32 %v3836, %v3866
        %v3885 = vadd.f32 %v3837, %v3870
        %v3886 = vadd.f32 %v3838, %v3874
        %v3887 = vadd.f32 %v3839, %v3862
        %v3888 = vadd.f32 %v3840, %v3866
        %v3889 = vadd.f32 %v3841, %v3870
        %v3890 = vadd.f32 %v3842, %v3874
        %v3891 = vadd.f32 %v3843, %v3862
        %v3892 = vadd.f32 %v3844, %v3866
        %v3893 = vadd.f32 %v3845, %v3870
        %v3894 = vadd.f32 %v3846, %v3874
        %v3895 = vadd.f32 %v3847, %v3862
        %v3896 = vadd.f32 %v3848, %v3866
        %v3897 = vadd.f32 %v3849, %v3870
        %v3898 = vadd.f32 %v3850, %v3874
        %v3899 = vadd.f32 %v3851, %v3862
        %v3900 = vadd.f32 %v3852, %v3866
        %v3901 = vadd.f32 %v3853, %v3870
        %v3902 = vadd.f32 %v3854, %v3874
        %v3903 = vadd.f32 %v3855, %v3862
        %v3904 = vadd.f32 %v3856, %v3866
        %v3905 = vadd.f32 %v3857, %v3870
        %v3906 = vadd.f32 %v3858, %v3874
        %v3907 = vsub.f32 0.0, %v3875
        %v3908 = vsub.f32 0.0, %v3876
        %v3909 = vsub.f32 0.0, %v3877
        %v3910 = vsub.f32 0.0, %v3878
        %v3911 = vsub.f32 0.0, %v3879
        %v3912 = vsub.f32 0.0, %v3880
        %v3913 = vsub.f32 0.0, %v3881
        %v3914 = vsub.f32 0.0, %v3882
        %v3915 = vsub.f32 0.0, %v3883
        %v3916 = vsub.f32 0.0, %v3884
        %v3917 = vsub.f32 0.0, %v3885
        %v3918 = vsub.f32 0.0, %v3886
        %v3919 = vsub.f32 0.0, %v3887
        %v3920 = vsub.f32 0.0, %v3888
        %v3921 = vsub.f32 0.0, %v3889
        %v3922 = vsub.f32 0.0, %v3890
        %v3923 = vsub.f32 0.0, %v3891
        %v3924 = vsub.f32 0.0, %v3892
        %v3925 = vsub.f32 0.0, %v3893
        %v3926 = vsub.f32 0.0, %v3894
        %v3927 = vsub.f32 0.0, %v3895
        %v3928 = vsub.f32 0.0, %v3896
        %v3929 = vsub.f32 0.0, %v3897
        %v3930 = vsub.f32 0.0, %v3898
        %v3931 = vsub.f32 0.0, %v3899
        %v3932 = vsub.f32 0.0, %v3900
        %v3933 = vsub.f32 0.0, %v3901
        %v3934 = vsub.f32 0.0, %v3902
        %v3935 = vsub.f32 0.0, %v3903
        %v3936 = vsub.f32 0.0, %v3904
        %v3937 = vsub.f32 0.0, %v3905
        %v3938 = vsub.f32 0.0, %v3906
        %v3939 = vmul.f32 %v3907, 1.442695
        %v3940 = vpow.pop %v3939
        %v3941 = vmul.f32 %v3908, 1.442695
        %v3942 = vpow.pop %v3941
        %v3943 = vmul.f32 %v3909, 1.442695
        %v3944 = vpow.pop %v3943
        %v3945 = vmul.f32 %v3910, 1.442695
        %v3946 = vpow.pop %v3945
        %v3947 = vmul.f32 %v3911, 1.442695
        %v3948 = vpow.pop %v3947
        %v3949 = vmul.f32 %v3912, 1.442695
        %v3950 = vpow.pop %v3949
        %v3951 = vmul.f32 %v3913, 1.442695
        %v3952 = vpow.pop %v3951
        %v3953 = vmul.f32 %v3914, 1.442695
        %v3954 = vpow.pop %v3953
        %v3955 = vmul.f32 %v3915, 1.442695
        %v3956 = vpow.pop %v3955
        %v3957 = vmul.f32 %v3916, 1.442695
        %v3958 = vpow.pop %v3957
        %v3959 = vmul.f32 %v3917, 1.442695
        %v3960 = vpow.pop %v3959
        %v3961 = vmul.f32 %v3918, 1.442695
        %v3962 = vpow.pop %v3961
        %v3963 = vmul.f32 %v3919, 1.442695
        %v3964 = vpow.pop %v3963
        %v3965 = vmul.f32 %v3920, 1.442695
        %v3966 = vpow.pop %v3965
        %v3967 = vmul.f32 %v3921, 1.442695
        %v3968 = vpow.pop %v3967
        %v3969 = vmul.f32 %v3922, 1.442695
        %v3970 = vpow.pop %v3969
        %v3971 = vmul.f32 %v3923, 1.442695
        %v3972 = vpow.pop %v3971
        %v3973 = vmul.f32 %v3924, 1.442695
        %v3974 = vpow.pop %v3973
        %v3975 = vmul.f32 %v3925, 1.442695
        %v3976 = vpow.pop %v3975
        %v3977 = vmul.f32 %v3926, 1.442695
        %v3978 = vpow.pop %v3977
        %v3979 = vmul.f32 %v3927, 1.442695
        %v3980 = vpow.pop %v3979
        %v3981 = vmul.f32 %v3928, 1.442695
        %v3982 = vpow.pop %v3981
        %v3983 = vmul.f32 %v3929, 1.442695
        %v3984 = vpow.pop %v3983
        %v3985 = vmul.f32 %v3930, 1.442695
        %v3986 = vpow.pop %v3985
        %v3987 = vmul.f32 %v3931, 1.442695
        %v3988 = vpow.pop %v3987
        %v3989 = vmul.f32 %v3932, 1.442695
        %v3990 = vpow.pop %v3989
        %v3991 = vmul.f32 %v3933, 1.442695
        %v3992 = vpow.pop %v3991
        %v3993 = vmul.f32 %v3934, 1.442695
        %v3994 = vpow.pop %v3993
        %v3995 = vmul.f32 %v3935, 1.442695
        %v3996 = vpow.pop %v3995
        %v3997 = vmul.f32 %v3936, 1.442695
        %v3998 = vpow.pop %v3997
        %v3999 = vmul.f32 %v3937, 1.442695
        %v4000 = vpow.pop %v3999
        %v4001 = vmul.f32 %v3938, 1.442695
        %v4002 = vpow.pop %v4001
        %v4003 = vadd.f32 %v3940, 1.0
        %v4004 = vadd.f32 %v3942, 1.0
        %v4005 = vadd.f32 %v3944, 1.0
        %v4006 = vadd.f32 %v3946, 1.0
        %v4007 = vadd.f32 %v3948, 1.0
        %v4008 = vadd.f32 %v3950, 1.0
        %v4009 = vadd.f32 %v3952, 1.0
        %v4010 = vadd.f32 %v3954, 1.0
        %v4011 = vadd.f32 %v3956, 1.0
        %v4012 = vadd.f32 %v3958, 1.0
        %v4013 = vadd.f32 %v3960, 1.0
        %v4014 = vadd.f32 %v3962, 1.0
        %v4015 = vadd.f32 %v3964, 1.0
        %v4016 = vadd.f32 %v3966, 1.0
        %v4017 = vadd.f32 %v3968, 1.0
        %v4018 = vadd.f32 %v3970, 1.0
        %v4019 = vadd.f32 %v3972, 1.0
        %v4020 = vadd.f32 %v3974, 1.0
        %v4021 = vadd.f32 %v3976, 1.0
        %v4022 = vadd.f32 %v3978, 1.0
        %v4023 = vadd.f32 %v3980, 1.0
        %v4024 = vadd.f32 %v3982, 1.0
        %v4025 = vadd.f32 %v3984, 1.0
        %v4026 = vadd.f32 %v3986, 1.0
        %v4027 = vadd.f32 %v3988, 1.0
        %v4028 = vadd.f32 %v3990, 1.0
        %v4029 = vadd.f32 %v3992, 1.0
        %v4030 = vadd.f32 %v3994, 1.0
        %v4031 = vadd.f32 %v3996, 1.0
        %v4032 = vadd.f32 %v3998, 1.0
        %v4033 = vadd.f32 %v4000, 1.0
        %v4034 = vadd.f32 %v4002, 1.0
        %v4035 = vrcp.pop %v4003
        %v4036 = vrcp.pop %v4004
        %v4037 = vrcp.pop %v4005
        %v4038 = vrcp.pop %v4006
        %v4039 = vrcp.pop %v4007
        %v4040 = vrcp.pop %v4008
        %v4041 = vrcp.pop %v4009
        %v4042 = vrcp.pop %v4010
        %v4043 = vrcp.pop %v4011
        %v4044 = vrcp.pop %v4012
        %v4045 = vrcp.pop %v4013
        %v4046 = vrcp.pop %v4014
        %v4047 = vrcp.pop %v4015
        %v4048 = vrcp.pop %v4016
        %v4049 = vrcp.pop %v4017
        %v4050 = vrcp.pop %v4018
        %v4051 = vrcp.pop %v4019
        %v4052 = vrcp.pop %v4020
        %v4053 = vrcp.pop %v4021
        %v4054 = vrcp.pop %v4022
        %v4055 = vrcp.pop %v4023
        %v4056 = vrcp.pop %v4024
        %v4057 = vrcp.pop %v4025
        %v4058 = vrcp.pop %v4026
        %v4059 = vrcp.pop %v4027
        %v4060 = vrcp.pop %v4028
        %v4061 = vrcp.pop %v4029
        %v4062 = vrcp.pop %v4030
        %v4063 = vrcp.pop %v4031
        %v4064 = vrcp.pop %v4032
        %v4065 = vrcp.pop %v4033
        %v4066 = vrcp.pop %v4034
        %v4067 = vld [vmem:[#allocation11] sm:$0xff]
        %v4068 = vld [vmem:[#allocation11 + $0x8] sm:$0xff]
        %v4069 = vld [vmem:[#allocation13] sm:$0x1]
        %v4071 = vlaneseq
        %v4072 = vshrl.u32 %v4071, 7
        %v4073 = vsub.s32 0, %v4072
        %v4074 = vrot.slane %v4069, %v4073
        %v4077 = vsel %vm1391, %v1472, 0
        %v4080 = vsel %vm1391, %v1473, 0
        %v4083 = vsel %vm1391, %v1474, 0
        %v4086 = vsel %vm1391, %v1475, 0
        %v4089 = vsel %vm1391, %v1476, 0
        %v4092 = vsel %vm1391, %v1477, 0
        %v4095 = vsel %vm1391, %v1478, 0
        %v4098 = vsel %vm1391, %v1479, 0
        %4100 = vmatprep.subr.mxu0 0.0
        %4101 = vmatpush1.msra.mxu0 %v4067
        %4102 = vmatprep.subr.mxu0 0.0
        %4103 = vmatpush1.msra.mxu0 %v4068
        %4104 = vmatprep.subr.mxu0 0.0
        %4105 = vmatpush1.msra.mxu0 0.0
        %4106 = vmatprep.subr.mxu0 0.0
        %4107 = vmatpush1.msra.mxu0 0.0
        %4108 = vmatprep.subr.mxu0 0.0
        %4109 = vmatpush1.msra.mxu0 0.0
        %4110 = vmatprep.subr.mxu0 0.0
        %4111 = vmatpush1.msra.mxu0 0.0
        %4112 = vmatprep.subr.mxu0 0.0
        %4113 = vmatpush1.msra.mxu0 0.0
        %4114 = vmatprep.subr.mxu0 0.0
        %4115 = vmatpush1.msra.mxu0 0.0
        %4116 = vmatprep.subr.mxu0 0.0
        %4117 = vmatpush1.msra.mxu0 0.0
        %4118 = vmatprep.subr.mxu0 0.0
        %4119 = vmatpush1.msra.mxu0 0.0
        %4120 = vmatprep.subr.mxu0 0.0
        %4121 = vmatpush1.msra.mxu0 0.0
        %4122 = vmatprep.subr.mxu0 0.0
        %4123 = vmatpush1.msra.mxu0 0.0
        %4124 = vmatprep.subr.mxu0 0.0
        %4125 = vmatpush1.msra.mxu0 0.0
        %4126 = vmatprep.subr.mxu0 0.0
        %4127 = vmatpush1.msra.mxu0 0.0
        %4128 = vmatprep.subr.mxu0 0.0
        %4129 = vmatpush1.msra.mxu0 0.0
        %4130 = vmatprep.subr.mxu0 0.0
        %4131 = vmatpush1.msra.mxu0 0.0
        %4132 = vmatprep.subr.mxu0 0.0
        %4133 = vmatpush1.msra.mxu0 0.0
        %4134 = vmatprep.subr.mxu0 0.0
        %4135 = vmatpush1.msra.mxu0 0.0
        %4136 = vmatprep.subr.mxu0 0.0
        %4137 = vmatpush1.msra.mxu0 0.0
        %4138 = vmatprep.subr.mxu0 0.0
        %4139 = vmatpush1.msra.mxu0 0.0
        %4140 = vmatprep.subr.mxu0 0.0
        %4141 = vmatpush1.msra.mxu0 0.0
        %4142 = vmatprep.subr.mxu0 0.0
        %4143 = vmatpush1.msra.mxu0 0.0
        %4144 = vmatprep.subr.mxu0 0.0
        %4145 = vmatpush1.msra.mxu0 0.0
        %4146 = vmatprep.subr.mxu0 0.0
        %4147 = vmatpush1.msra.mxu0 0.0
        %4148 = vmatprep.subr.mxu0 0.0
        %4149 = vmatpush1.msra.mxu0 0.0
        %4150 = vmatprep.subr.mxu0 0.0
        %4151 = vmatpush1.msra.mxu0 0.0
        %4152 = vmatprep.subr.mxu0 0.0
        %4153 = vmatpush1.msra.mxu0 0.0
        %4154 = vmatprep.subr.mxu0 0.0
        %4155 = vmatpush1.msra.mxu0 0.0
        %4156 = vmatprep.subr.mxu0 0.0
        %4157 = vmatpush1.msra.mxu0 0.0
        %4158 = vmatprep.subr.mxu0 0.0
        %4159 = vmatpush1.msra.mxu0 0.0
        %4160 = vmatprep.subr.mxu0 0.0
        %4161 = vmatpush1.msra.mxu0 0.0
        %4162 = vmatprep.subr.mxu0 0.0
        %4163 = vmatpush1.msra.mxu0 0.0
        %4164 = vmatprep.mubr.f32.mxu0 0.0
        %4165 = vmatmul.mubr.f32.gmra.mrb[0].mxu0 %v4077
        %v4166 = vpop.f32.mrb[0].mxu0
        %v4167 = vadd.f32 %v4074, %v4166
        %v4168 = vpop.f32.mrb[0].mxu0
        %4169 = vmatprep.mubr.f32.mxu0 0.0
        %4170 = vmatmul.mubr.f32.gmra.mrb[0].mxu0 %v4080
        %v4171 = vpop.f32.mrb[0].mxu0
        %v4172 = vadd.f32 %v4074, %v4171
        %v4173 = vpop.f32.mrb[0].mxu0
        %4174 = vmatprep.mubr.f32.mxu0 0.0
        %4175 = vmatmul.mubr.f32.gmra.mrb[0].mxu0 %v4083
        %v4176 = vpop.f32.mrb[0].mxu0
        %v4177 = vadd.f32 %v4074, %v4176
        %v4178 = vpop.f32.mrb[0].mxu0
        %4179 = vmatprep.mubr.f32.mxu0 0.0
        %4180 = vmatmul.mubr.f32.gmra.mrb[0].mxu0 %v4086
        %v4181 = vpop.f32.mrb[0].mxu0
        %v4182 = vadd.f32 %v4074, %v4181
        %v4183 = vpop.f32.mrb[0].mxu0
        %4184 = vmatprep.mubr.f32.mxu0 0.0
        %4185 = vmatmul.mubr.f32.gmra.mrb[0].mxu0 %v4089
        %v4186 = vpop.f32.mrb[0].mxu0
        %v4187 = vadd.f32 %v4074, %v4186
        %v4188 = vpop.f32.mrb[0].mxu0
        %4189 = vmatprep.mubr.f32.mxu0 0.0
        %4190 = vmatmul.mubr.f32.gmra.mrb[0].mxu0 %v4092
        %v4191 = vpop.f32.mrb[0].mxu0
        %v4192 = vadd.f32 %v4074, %v4191
        %v4193 = vpop.f32.mrb[0].mxu0
        %4194 = vmatprep.mubr.f32.mxu0 0.0
        %4195 = vmatmul.mubr.f32.gmra.mrb[0].mxu0 %v4095
        %v4196 = vpop.f32.mrb[0].mxu0
        %v4197 = vadd.f32 %v4074, %v4196
        %v4198 = vpop.f32.mrb[0].mxu0
        %4199 = vmatprep.mubr.f32.mxu0 0.0
        %4200 = vmatmul.mubr.f32.gmra.mrb[0].mxu0 %v4098
        %v4201 = vpop.f32.mrb[0].mxu0
        %v4202 = vadd.f32 %v4074, %v4201
        %v4203 = vpop.f32.mrb[0].mxu0
        %4204 = vdwg.mxu0
        %v4206 = vsel %vm1391, %v1668, 0
        %v4209 = vsel %vm1391, %v1669, 0
        %4211 = vmatprep.subr.mxu0 0.0
        %4212 = vmatpush1.msra.mxu0 %v4067
        %4213 = vmatprep.subr.mxu0 0.0
        %4214 = vmatpush1.msra.mxu0 %v4068
        %4215 = vmatprep.subr.mxu0 0.0
        %4216 = vmatpush1.msra.mxu0 0.0
        %4217 = vmatprep.subr.mxu0 0.0
        %4218 = vmatpush1.msra.mxu0 0.0
        %4219 = vmatprep.subr.mxu0 0.0
        %4220 = vmatpush1.msra.mxu0 0.0
        %4221 = vmatprep.subr.mxu0 0.0
        %4222 = vmatpush1.msra.mxu0 0.0
        %4223 = vmatprep.subr.mxu0 0.0
        %4224 = vmatpush1.msra.mxu0 0.0
        %4225 = vmatprep.subr.mxu0 0.0
        %4226 = vmatpush1.msra.mxu0 0.0
        %4227 = vmatprep.subr.mxu0 0.0
        %4228 = vmatpush1.msra.mxu0 0.0
        %4229 = vmatprep.subr.mxu0 0.0
        %4230 = vmatpush1.msra.mxu0 0.0
        %4231 = vmatprep.subr.mxu0 0.0
        %4232 = vmatpush1.msra.mxu0 0.0
        %4233 = vmatprep.subr.mxu0 0.0
        %4234 = vmatpush1.msra.mxu0 0.0
        %4235 = vmatprep.subr.mxu0 0.0
        %4236 = vmatpush1.msra.mxu0 0.0
        %4237 = vmatprep.subr.mxu0 0.0
        %4238 = vmatpush1.msra.mxu0 0.0
        %4239 = vmatprep.subr.mxu0 0.0
        %4240 = vmatpush1.msra.mxu0 0.0
        %4241 = vmatprep.subr.mxu0 0.0
        %4242 = vmatpush1.msra.mxu0 0.0
        %4243 = vmatprep.subr.mxu0 0.0
        %4244 = vmatpush1.msra.mxu0 0.0
        %4245 = vmatprep.subr.mxu0 0.0
        %4246 = vmatpush1.msra.mxu0 0.0
        %4247 = vmatprep.subr.mxu0 0.0
        %4248 = vmatpush1.msra.mxu0 0.0
        %4249 = vmatprep.subr.mxu0 0.0
        %4250 = vmatpush1.msra.mxu0 0.0
        %4251 = vmatprep.subr.mxu0 0.0
        %4252 = vmatpush1.msra.mxu0 0.0
        %4253 = vmatprep.subr.mxu0 0.0
        %4254 = vmatpush1.msra.mxu0 0.0
        %4255 = vmatprep.subr.mxu0 0.0
        %4256 = vmatpush1.msra.mxu0 0.0
        %4257 = vmatprep.subr.mxu0 0.0
        %4258 = vmatpush1.msra.mxu0 0.0
        %4259 = vmatprep.subr.mxu0 0.0
        %4260 = vmatpush1.msra.mxu0 0.0
        %4261 = vmatprep.subr.mxu0 0.0
        %4262 = vmatpush1.msra.mxu0 0.0
        %4263 = vmatprep.subr.mxu0 0.0
        %4264 = vmatpush1.msra.mxu0 0.0
        %4265 = vmatprep.subr.mxu0 0.0
        %4266 = vmatpush1.msra.mxu0 0.0
        %4267 = vmatprep.subr.mxu0 0.0
        %4268 = vmatpush1.msra.mxu0 0.0
        %4269 = vmatprep.subr.mxu0 0.0
        %4270 = vmatpush1.msra.mxu0 0.0
        %4271 = vmatprep.subr.mxu0 0.0
        %4272 = vmatpush1.msra.mxu0 0.0
        %4273 = vmatprep.subr.mxu0 0.0
        %4274 = vmatpush1.msra.mxu0 0.0
        %4275 = vmatprep.mubr.f32.mxu0 0.0
        %4276 = vmatmul.mubr.f32.gmra.mrb[0].mxu0 %v4206
        %v4277 = vpop.f32.mrb[0].mxu0
        %v4278 = vadd.f32 0.0, %v4277
        %v4279 = vpop.f32.mrb[0].mxu0
        %4280 = vmatprep.mubr.f32.mxu0 0.0
        %4281 = vmatmul.mubr.f32.gmra.mrb[0].mxu0 %v4209
        %v4282 = vpop.f32.mrb[0].mxu0
        %v4283 = vadd.f32 0.0, %v4282
        %v4284 = vpop.f32.mrb[0].mxu0
        %4285 = vdwg.mxu0
        %4286 = vxpose.xlu0.b32.start [1/16] %v4278, 128
        %4287 = vxpose.xlu0.b32.cont [2/16] %v4283, 128
        %4288 = vxpose.xlu0.b32.cont [3/16] 0.0, 128
        %4289 = vxpose.xlu0.b32.cont [4/16] 0.0, 128
        %4290 = vxpose.xlu0.b32.cont [5/16] 0.0, 128
        %4291 = vxpose.xlu0.b32.cont [6/16] 0.0, 128
        %4292 = vxpose.xlu0.b32.cont [7/16] 0.0, 128
        %4293 = vxpose.xlu0.b32.cont [8/16] 0.0, 128
        %4294 = vxpose.xlu0.b32.cont [9/16] 0.0, 128
        %4295 = vxpose.xlu0.b32.cont [10/16] 0.0, 128
        %4296 = vxpose.xlu0.b32.cont [11/16] 0.0, 128
        %4297 = vxpose.xlu0.b32.cont [12/16] 0.0, 128
        %4298 = vxpose.xlu0.b32.cont [13/16] 0.0, 128
        %4299 = vxpose.xlu0.b32.cont [14/16] 0.0, 128
        %4300 = vxpose.xlu0.b32.cont [15/16] 0.0, 128
        %4301 = vxpose.xlu0.b32.end [16/16] 0.0, 128
        %v4302 = vpop.trf.xlu0
        %v4303 = vpop.trf.xlu0
        %v4304 = vpop.trf.xlu0
        %v4305 = vpop.trf.xlu0
        %v4306 = vpop.trf.xlu0
        %v4307 = vpop.trf.xlu0
        %v4308 = vpop.trf.xlu0
        %v4309 = vpop.trf.xlu0
        %v4310 = vpop.trf.xlu0
        %v4311 = vpop.trf.xlu0
        %v4312 = vpop.trf.xlu0
        %v4313 = vpop.trf.xlu0
        %v4314 = vpop.trf.xlu0
        %v4315 = vpop.trf.xlu0
        %v4316 = vpop.trf.xlu0
        %v4317 = vpop.trf.xlu0
        %v4319 = vsel %vm1391, %v4167, 0
        %v4322 = vsel %vm1391, %v4172, 0
        %v4325 = vsel %vm1391, %v4177, 0
        %v4328 = vsel %vm1391, %v4182, 0
        %v4331 = vsel %vm1391, %v4187, 0
        %v4334 = vsel %vm1391, %v4192, 0
        %v4337 = vsel %vm1391, %v4197, 0
        %v4340 = vsel %vm1391, %v4202, 0
        %4342 = vmatprep.subr.mxu0 0.0
        %4343 = vmatpush1.msra.mxu0 %v4302
        %4344 = vmatprep.subr.mxu0 0.0
        %4345 = vmatpush1.msra.mxu0 %v4303
        %4346 = vmatprep.subr.mxu0 0.0
        %4347 = vmatpush1.msra.mxu0 0.0
        %4348 = vmatprep.subr.mxu0 0.0
        %4349 = vmatpush1.msra.mxu0 0.0
        %4350 = vmatprep.subr.mxu0 0.0
        %4351 = vmatpush1.msra.mxu0 0.0
        %4352 = vmatprep.subr.mxu0 0.0
        %4353 = vmatpush1.msra.mxu0 0.0
        %4354 = vmatprep.subr.mxu0 0.0
        %4355 = vmatpush1.msra.mxu0 0.0
        %4356 = vmatprep.subr.mxu0 0.0
        %4357 = vmatpush1.msra.mxu0 0.0
        %4358 = vmatprep.subr.mxu0 0.0
        %4359 = vmatpush1.msra.mxu0 0.0
        %4360 = vmatprep.subr.mxu0 0.0
        %4361 = vmatpush1.msra.mxu0 0.0
        %4362 = vmatprep.subr.mxu0 0.0
        %4363 = vmatpush1.msra.mxu0 0.0
        %4364 = vmatprep.subr.mxu0 0.0
        %4365 = vmatpush1.msra.mxu0 0.0
        %4366 = vmatprep.subr.mxu0 0.0
        %4367 = vmatpush1.msra.mxu0 0.0
        %4368 = vmatprep.subr.mxu0 0.0
        %4369 = vmatpush1.msra.mxu0 0.0
        %4370 = vmatprep.subr.mxu0 0.0
        %4371 = vmatpush1.msra.mxu0 0.0
        %4372 = vmatprep.subr.mxu0 0.0
        %4373 = vmatpush1.msra.mxu0 0.0
        %4374 = vmatprep.subr.mxu0 0.0
        %4375 = vmatpush1.msra.mxu0 0.0
        %4376 = vmatprep.subr.mxu0 0.0
        %4377 = vmatpush1.msra.mxu0 0.0
        %4378 = vmatprep.subr.mxu0 0.0
        %4379 = vmatpush1.msra.mxu0 0.0
        %4380 = vmatprep.subr.mxu0 0.0
        %4381 = vmatpush1.msra.mxu0 0.0
        %4382 = vmatprep.subr.mxu0 0.0
        %4383 = vmatpush1.msra.mxu0 0.0
        %4384 = vmatprep.subr.mxu0 0.0
        %4385 = vmatpush1.msra.mxu0 0.0
        %4386 = vmatprep.subr.mxu0 0.0
        %4387 = vmatpush1.msra.mxu0 0.0
        %4388 = vmatprep.subr.mxu0 0.0
        %4389 = vmatpush1.msra.mxu0 0.0
        %4390 = vmatprep.subr.mxu0 0.0
        %4391 = vmatpush1.msra.mxu0 0.0
        %4392 = vmatprep.subr.mxu0 0.0
        %4393 = vmatpush1.msra.mxu0 0.0
        %4394 = vmatprep.subr.mxu0 0.0
        %4395 = vmatpush1.msra.mxu0 0.0
        %4396 = vmatprep.subr.mxu0 0.0
        %4397 = vmatpush1.msra.mxu0 0.0
        %4398 = vmatprep.subr.mxu0 0.0
        %4399 = vmatpush1.msra.mxu0 0.0
        %4400 = vmatprep.subr.mxu0 0.0
        %4401 = vmatpush1.msra.mxu0 0.0
        %4402 = vmatprep.subr.mxu0 0.0
        %4403 = vmatpush1.msra.mxu0 0.0
        %4404 = vmatprep.subr.mxu0 0.0
        %4405 = vmatpush1.msra.mxu0 0.0
        %4406 = vmatprep.mubr.f32.mxu0 0.0
        %4407 = vmatmul.mubr.f32.gmra.mrb[0].mxu0 %v4319
        %v4408 = vpop.f32.mrb[0].mxu0
        %v4409 = vadd.f32 0.0, %v4408
        %v4410 = vpop.f32.mrb[0].mxu0
        %4411 = vmatprep.mubr.f32.mxu0 0.0
        %4412 = vmatmul.mubr.f32.gmra.mrb[0].mxu0 %v4322
        %v4413 = vpop.f32.mrb[0].mxu0
        %v4414 = vadd.f32 0.0, %v4413
        %v4415 = vpop.f32.mrb[0].mxu0
        %4416 = vmatprep.mubr.f32.mxu0 0.0
        %4417 = vmatmul.mubr.f32.gmra.mrb[0].mxu0 %v4325
        %v4418 = vpop.f32.mrb[0].mxu0
        %v4419 = vadd.f32 0.0, %v4418
        %v4420 = vpop.f32.mrb[0].mxu0
        %4421 = vmatprep.mubr.f32.mxu0 0.0
        %4422 = vmatmul.mubr.f32.gmra.mrb[0].mxu0 %v4328
        %v4423 = vpop.f32.mrb[0].mxu0
        %v4424 = vadd.f32 0.0, %v4423
        %v4425 = vpop.f32.mrb[0].mxu0
        %4426 = vmatprep.mubr.f32.mxu0 0.0
        %4427 = vmatmul.mubr.f32.gmra.mrb[0].mxu0 %v4331
        %v4428 = vpop.f32.mrb[0].mxu0
        %v4429 = vadd.f32 0.0, %v4428
        %v4430 = vpop.f32.mrb[0].mxu0
        %4431 = vmatprep.mubr.f32.mxu0 0.0
        %4432 = vmatmul.mubr.f32.gmra.mrb[0].mxu0 %v4334
        %v4433 = vpop.f32.mrb[0].mxu0
        %v4434 = vadd.f32 0.0, %v4433
        %v4435 = vpop.f32.mrb[0].mxu0
        %4436 = vmatprep.mubr.f32.mxu0 0.0
        %4437 = vmatmul.mubr.f32.gmra.mrb[0].mxu0 %v4337
        %v4438 = vpop.f32.mrb[0].mxu0
        %v4439 = vadd.f32 0.0, %v4438
        %v4440 = vpop.f32.mrb[0].mxu0
        %4441 = vmatprep.mubr.f32.mxu0 0.0
        %4442 = vmatmul.mubr.f32.gmra.mrb[0].mxu0 %v4340
        %v4443 = vpop.f32.mrb[0].mxu0
        %v4444 = vadd.f32 0.0, %v4443
        %v4445 = vpop.f32.mrb[0].mxu0
        %4446 = vdwg.mxu0
        %v4447 = vmul.f32 %v4167, %v4167
        %v4448 = vmul.f32 %v4172, %v4172
        %v4449 = vmul.f32 %v4177, %v4177
        %v4450 = vmul.f32 %v4182, %v4182
        %v4451 = vmul.f32 %v4187, %v4187
        %v4452 = vmul.f32 %v4192, %v4192
        %v4453 = vmul.f32 %v4197, %v4197
        %v4454 = vmul.f32 %v4202, %v4202
        %v4455 = vsel %vm1391, %v4447, 0.0
        %4456 = vadd.xlane.f32.xlu0 %v4455
        %v4457 = vpop.xlane.xlu0 %4456
        %v4458 = vsel %vm1391, %v4448, 0.0
        %4459 = vadd.xlane.f32.xlu0 %v4458
        %v4460 = vpop.xlane.xlu0 %4459
        %v4461 = vsel %vm1391, %v4449, 0.0
        %4462 = vadd.xlane.f32.xlu0 %v4461
        %v4463 = vpop.xlane.xlu0 %4462
        %v4464 = vsel %vm1391, %v4450, 0.0
        %4465 = vadd.xlane.f32.xlu0 %v4464
        %v4466 = vpop.xlane.xlu0 %4465
        %v4467 = vsel %vm1391, %v4451, 0.0
        %4468 = vadd.xlane.f32.xlu0 %v4467
        %v4469 = vpop.xlane.xlu0 %4468
        %v4470 = vsel %vm1391, %v4452, 0.0
        %4471 = vadd.xlane.f32.xlu0 %v4470
        %v4472 = vpop.xlane.xlu0 %4471
        %v4473 = vsel %vm1391, %v4453, 0.0
        %4474 = vadd.xlane.f32.xlu0 %v4473
        %v4475 = vpop.xlane.xlu0 %4474
        %v4476 = vsel %vm1391, %v4454, 0.0
        %4477 = vadd.xlane.f32.xlu0 %v4476
        %v4478 = vpop.xlane.xlu0 %4477
        %v4479 = vmul.f32 %v4302, %v4302
        %v4480 = vmul.f32 %v4303, %v4303
        %v4481 = vsel %vm1391, %v4479, 0.0
        %v4482 = vsel %vm1391, %v4480, 0.0
        %v4483 = vadd.f32 %v4481, %v4482
        %v4484 = vrot.slane %v4483, 4
        %v4485 = vadd.f32 %v4483, %v4484
        %v4486 = vrot.slane %v4485, 2
        %v4487 = vadd.f32 %v4485, %v4486
        %v4488 = vrot.slane %v4487, 1
        %v4489 = vadd.f32 %v4487, %v4488
        %v4490 = vadd.f32 %v4457, %v4489
        %v4491 = vadd.f32 %v4460, %v4489
        %v4492 = vadd.f32 %v4463, %v4489
        %v4493 = vadd.f32 %v4466, %v4489
        %v4494 = vadd.f32 %v4469, %v4489
        %v4495 = vadd.f32 %v4472, %v4489
        %v4496 = vadd.f32 %v4475, %v4489
        %v4497 = vadd.f32 %v4478, %v4489
        %v4498 = vmul.f32 %v4409, 2.0
        %v4499 = vmul.f32 %v4414, 2.0
        %v4500 = vmul.f32 %v4419, 2.0
        %v4501 = vmul.f32 %v4424, 2.0
        %v4502 = vmul.f32 %v4429, 2.0
        %v4503 = vmul.f32 %v4434, 2.0
        %v4504 = vmul.f32 %v4439, 2.0
        %v4505 = vmul.f32 %v4444, 2.0
        %v4506 = vsub.f32 %v4490, %v4498
        %v4507 = vsub.f32 %v4491, %v4499
        %v4508 = vsub.f32 %v4492, %v4500
        %v4509 = vsub.f32 %v4493, %v4501
        %v4510 = vsub.f32 %v4494, %v4502
        %v4511 = vsub.f32 %v4495, %v4503
        %v4512 = vsub.f32 %v4496, %v4504
        %v4513 = vsub.f32 %v4497, %v4505
        %v4514 = vmax.f32 %v4506, 0.0
        %v4515 = vmax.f32 %v4507, 0.0
        %v4516 = vmax.f32 %v4508, 0.0
        %v4517 = vmax.f32 %v4509, 0.0
        %v4518 = vmax.f32 %v4510, 0.0
        %v4519 = vmax.f32 %v4511, 0.0
        %v4520 = vmax.f32 %v4512, 0.0
        %v4521 = vmax.f32 %v4513, 0.0
        %v4522 = vrsqrt.pop %v4514
        %v4523 = vmul.f32 %v4514, %v4522
        %vm4524 = vcmp.eq.f32.partialorder %v4514, inf
        %v4525 = vsel %vm4524, %v4514, %v4523
        %vm4526 = vcmp.eq.f32.partialorder %v4514, 0.0
        %v4527 = vand.u32 %v4514, 2147483648
        %v4528 = vsel %vm4526, %v4527, %v4525
        %v4529 = vrsqrt.pop %v4515
        %v4530 = vmul.f32 %v4515, %v4529
        %vm4531 = vcmp.eq.f32.partialorder %v4515, inf
        %v4532 = vsel %vm4531, %v4515, %v4530
        %vm4533 = vcmp.eq.f32.partialorder %v4515, 0.0
        %v4534 = vand.u32 %v4515, 2147483648
        %v4535 = vsel %vm4533, %v4534, %v4532
        %v4536 = vrsqrt.pop %v4516
        %v4537 = vmul.f32 %v4516, %v4536
        %vm4538 = vcmp.eq.f32.partialorder %v4516, inf
        %v4539 = vsel %vm4538, %v4516, %v4537
        %vm4540 = vcmp.eq.f32.partialorder %v4516, 0.0
        %v4541 = vand.u32 %v4516, 2147483648
        %v4542 = vsel %vm4540, %v4541, %v4539
        %v4543 = vrsqrt.pop %v4517
        %v4544 = vmul.f32 %v4517, %v4543
        %vm4545 = vcmp.eq.f32.partialorder %v4517, inf
        %v4546 = vsel %vm4545, %v4517, %v4544
        %vm4547 = vcmp.eq.f32.partialorder %v4517, 0.0
        %v4548 = vand.u32 %v4517, 2147483648
        %v4549 = vsel %vm4547, %v4548, %v4546
        %v4550 = vrsqrt.pop %v4518
        %v4551 = vmul.f32 %v4518, %v4550
        %vm4552 = vcmp.eq.f32.partialorder %v4518, inf
        %v4553 = vsel %vm4552, %v4518, %v4551
        %vm4554 = vcmp.eq.f32.partialorder %v4518, 0.0
        %v4555 = vand.u32 %v4518, 2147483648
        %v4556 = vsel %vm4554, %v4555, %v4553
        %v4557 = vrsqrt.pop %v4519
        %v4558 = vmul.f32 %v4519, %v4557
        %vm4559 = vcmp.eq.f32.partialorder %v4519, inf
        %v4560 = vsel %vm4559, %v4519, %v4558
        %vm4561 = vcmp.eq.f32.partialorder %v4519, 0.0
        %v4562 = vand.u32 %v4519, 2147483648
        %v4563 = vsel %vm4561, %v4562, %v4560
        %v4564 = vrsqrt.pop %v4520
        %v4565 = vmul.f32 %v4520, %v4564
        %vm4566 = vcmp.eq.f32.partialorder %v4520, inf
        %v4567 = vsel %vm4566, %v4520, %v4565
        %vm4568 = vcmp.eq.f32.partialorder %v4520, 0.0
        %v4569 = vand.u32 %v4520, 2147483648
        %v4570 = vsel %vm4568, %v4569, %v4567
        %v4571 = vrsqrt.pop %v4521
        %v4572 = vmul.f32 %v4521, %v4571
        %vm4573 = vcmp.eq.f32.partialorder %v4521, inf
        %v4574 = vsel %vm4573, %v4521, %v4572
        %vm4575 = vcmp.eq.f32.partialorder %v4521, 0.0
        %v4576 = vand.u32 %v4521, 2147483648
        %v4577 = vsel %vm4575, %v4576, %v4574
        %v4578 = vsub.f32 0.0, %v4528
        %v4579 = vsub.f32 0.0, %v4535
        %v4580 = vsub.f32 0.0, %v4542
        %v4581 = vsub.f32 0.0, %v4549
        %v4582 = vsub.f32 0.0, %v4556
        %v4583 = vsub.f32 0.0, %v4563
        %v4584 = vsub.f32 0.0, %v4570
        %v4585 = vsub.f32 0.0, %v4577
        %v4586 = vmul.f32 %v4578, 0.5
        %v4587 = vmul.f32 %v4579, 0.5
        %v4588 = vmul.f32 %v4580, 0.5
        %v4589 = vmul.f32 %v4581, 0.5
        %v4590 = vmul.f32 %v4582, 0.5
        %v4591 = vmul.f32 %v4583, 0.5
        %v4592 = vmul.f32 %v4584, 0.5
        %v4593 = vmul.f32 %v4585, 0.5
        %v4594 = vmul.f32 %v4586, 1.442695
        %v4595 = vpow.pop %v4594
        %v4596 = vmul.f32 %v4587, 1.442695
        %v4597 = vpow.pop %v4596
        %v4598 = vmul.f32 %v4588, 1.442695
        %v4599 = vpow.pop %v4598
        %v4600 = vmul.f32 %v4589, 1.442695
        %v4601 = vpow.pop %v4600
        %v4602 = vmul.f32 %v4590, 1.442695
        %v4603 = vpow.pop %v4602
        %v4604 = vmul.f32 %v4591, 1.442695
        %v4605 = vpow.pop %v4604
        %v4606 = vmul.f32 %v4592, 1.442695
        %v4607 = vpow.pop %v4606
        %v4608 = vmul.f32 %v4593, 1.442695
        %v4609 = vpow.pop %v4608
        %v4610 = vsub.f32 0.0, %v4595
        %v4611 = vsub.f32 0.0, %v4597
        %v4612 = vsub.f32 0.0, %v4599
        %v4613 = vsub.f32 0.0, %v4601
        %v4614 = vsub.f32 0.0, %v4603
        %v4615 = vsub.f32 0.0, %v4605
        %v4616 = vsub.f32 0.0, %v4607
        %v4617 = vsub.f32 0.0, %v4609
        %v4618 = vmul.f32 %v4610, 1.442695
        %v4619 = vpow.pop %v4618
        %v4620 = vmul.f32 %v4611, 1.442695
        %v4621 = vpow.pop %v4620
        %v4622 = vmul.f32 %v4612, 1.442695
        %v4623 = vpow.pop %v4622
        %v4624 = vmul.f32 %v4613, 1.442695
        %v4625 = vpow.pop %v4624
        %v4626 = vmul.f32 %v4614, 1.442695
        %v4627 = vpow.pop %v4626
        %v4628 = vmul.f32 %v4615, 1.442695
        %v4629 = vpow.pop %v4628
        %v4630 = vmul.f32 %v4616, 1.442695
        %v4631 = vpow.pop %v4630
        %v4632 = vmul.f32 %v4617, 1.442695
        %v4633 = vpow.pop %v4632
        %v4634 = vadd.f32 %v4619, 1.0
        %v4635 = vadd.f32 %v4621, 1.0
        %v4636 = vadd.f32 %v4623, 1.0
        %v4637 = vadd.f32 %v4625, 1.0
        %v4638 = vadd.f32 %v4627, 1.0
        %v4639 = vadd.f32 %v4629, 1.0
        %v4640 = vadd.f32 %v4631, 1.0
        %v4641 = vadd.f32 %v4633, 1.0
        %v4642 = vrcp.pop %v4634
        %v4643 = vrcp.pop %v4635
        %v4644 = vrcp.pop %v4636
        %v4645 = vrcp.pop %v4637
        %v4646 = vrcp.pop %v4638
        %v4647 = vrcp.pop %v4639
        %v4648 = vrcp.pop %v4640
        %v4649 = vrcp.pop %v4641
        %v4650 = vld [vmem:[#allocation22] sm:$0xff]
        %v4651 = vld [vmem:[#allocation22 + $0x8] sm:$0xff]
        %v4652 = vld [vmem:[#allocation22 + $0x10] sm:$0xff]
        %v4653 = vld [vmem:[#allocation22 + $0x18] sm:$0xff]
        %v4654 = vld [vmem:[#allocation22 + $0x20] sm:$0xff]
        %v4655 = vld [vmem:[#allocation22 + $0x28] sm:$0xff]
        %v4656 = vld [vmem:[#allocation22 + $0x30] sm:$0xff]
        %v4657 = vld [vmem:[#allocation22 + $0x38] sm:$0xff]
        %v4659 = vsel %vm1391, %v1078, 0
        %v4662 = vsel %vm1391, %v1079, 0
        %v4665 = vsel %vm1391, %v1080, 0
        %v4668 = vsel %vm1391, %v1081, 0
        %v4671 = vsel %vm1391, %v1082, 0
        %v4674 = vsel %vm1391, %v1083, 0
        %v4677 = vsel %vm1391, %v1084, 0
        %v4680 = vsel %vm1391, %v1085, 0
        %4682 = vmatprep.subr.mxu0 %v4651
        %4683 = vmatpush1.msra.mxu0 %v4650
        %4684 = vmatprep.subr.mxu0 %v4655
        %4685 = vmatpush1.msra.mxu0 %v4654
        %4686 = vmatprep.subr.mxu0 0.0
        %4687 = vmatpush1.msra.mxu0 0.0
        %4688 = vmatprep.subr.mxu0 0.0
        %4689 = vmatpush1.msra.mxu0 0.0
        %4690 = vmatprep.subr.mxu0 0.0
        %4691 = vmatpush1.msra.mxu0 0.0
        %4692 = vmatprep.subr.mxu0 0.0
        %4693 = vmatpush1.msra.mxu0 0.0
        %4694 = vmatprep.subr.mxu0 0.0
        %4695 = vmatpush1.msra.mxu0 0.0
        %4696 = vmatprep.subr.mxu0 0.0
        %4697 = vmatpush1.msra.mxu0 0.0
        %4698 = vmatprep.subr.mxu0 0.0
        %4699 = vmatpush1.msra.mxu0 0.0
        %4700 = vmatprep.subr.mxu0 0.0
        %4701 = vmatpush1.msra.mxu0 0.0
        %4702 = vmatprep.subr.mxu0 0.0
        %4703 = vmatpush1.msra.mxu0 0.0
        %4704 = vmatprep.subr.mxu0 0.0
        %4705 = vmatpush1.msra.mxu0 0.0
        %4706 = vmatprep.subr.mxu0 0.0
        %4707 = vmatpush1.msra.mxu0 0.0
        %4708 = vmatprep.subr.mxu0 0.0
        %4709 = vmatpush1.msra.mxu0 0.0
        %4710 = vmatprep.subr.mxu0 0.0
        %4711 = vmatpush1.msra.mxu0 0.0
        %4712 = vmatprep.subr.mxu0 0.0
        %4713 = vmatpush1.msra.mxu0 0.0
        %4714 = vmatprep.subr.mxu0 0.0
        %4715 = vmatpush1.msra.mxu0 0.0
        %4716 = vmatprep.subr.mxu0 0.0
        %4717 = vmatpush1.msra.mxu0 0.0
        %4718 = vmatprep.subr.mxu0 0.0
        %4719 = vmatpush1.msra.mxu0 0.0
        %4720 = vmatprep.subr.mxu0 0.0
        %4721 = vmatpush1.msra.mxu0 0.0
        %4722 = vmatprep.subr.mxu0 0.0
        %4723 = vmatpush1.msra.mxu0 0.0
        %4724 = vmatprep.subr.mxu0 0.0
        %4725 = vmatpush1.msra.mxu0 0.0
        %4726 = vmatprep.subr.mxu0 0.0
        %4727 = vmatpush1.msra.mxu0 0.0
        %4728 = vmatprep.subr.mxu0 0.0
        %4729 = vmatpush1.msra.mxu0 0.0
        %4730 = vmatprep.subr.mxu0 0.0
        %4731 = vmatpush1.msra.mxu0 0.0
        %4732 = vmatprep.subr.mxu0 0.0
        %4733 = vmatpush1.msra.mxu0 0.0
        %4734 = vmatprep.subr.mxu0 0.0
        %4735 = vmatpush1.msra.mxu0 0.0
        %4736 = vmatprep.subr.mxu0 0.0
        %4737 = vmatpush1.msra.mxu0 0.0
        %4738 = vmatprep.subr.mxu0 0.0
        %4739 = vmatpush1.msra.mxu0 0.0
        %4740 = vmatprep.subr.mxu0 0.0
        %4741 = vmatpush1.msra.mxu0 0.0
        %4742 = vmatprep.subr.mxu0 0.0
        %4743 = vmatpush1.msra.mxu0 0.0
        %4744 = vmatprep.subr.mxu0 0.0
        %4745 = vmatpush1.msra.mxu0 0.0
        %4746 = vmatprep.mubr.f32.mxu0 0.0
        %4747 = vmatmul.mubr.f32.gmra.mrb[0].mxu0 %v4659
        %v4748 = vpop.f32.mrb[0].mxu0
        %v4749 = vadd.f32 0.0, %v4748
        %v4750 = vpop.f32.mrb[0].mxu0
        %v4751 = vadd.f32 0.0, %v4750
        %4752 = vmatprep.mubr.f32.mxu0 0.0
        %4753 = vmatmul.mubr.f32.gmra.mrb[0].mxu0 %v4662
        %v4754 = vpop.f32.mrb[0].mxu0
        %v4755 = vadd.f32 0.0, %v4754
        %v4756 = vpop.f32.mrb[0].mxu0
        %v4757 = vadd.f32 0.0, %v4756
        %4758 = vmatprep.mubr.f32.mxu0 0.0
        %4759 = vmatmul.mubr.f32.gmra.mrb[0].mxu0 %v4665
        %v4760 = vpop.f32.mrb[0].mxu0
        %v4761 = vadd.f32 0.0, %v4760
        %v4762 = vpop.f32.mrb[0].mxu0
        %v4763 = vadd.f32 0.0, %v4762
        %4764 = vmatprep.mubr.f32.mxu0 0.0
        %4765 = vmatmul.mubr.f32.gmra.mrb[0].mxu0 %v4668
        %v4766 = vpop.f32.mrb[0].mxu0
        %v4767 = vadd.f32 0.0, %v4766
        %v4768 = vpop.f32.mrb[0].mxu0
        %v4769 = vadd.f32 0.0, %v4768
        %4770 = vmatprep.mubr.f32.mxu0 0.0
        %4771 = vmatmul.mubr.f32.gmra.mrb[0].mxu0 %v4671
        %v4772 = vpop.f32.mrb[0].mxu0
        %v4773 = vadd.f32 0.0, %v4772
        %v4774 = vpop.f32.mrb[0].mxu0
        %v4775 = vadd.f32 0.0, %v4774
        %4776 = vmatprep.mubr.f32.mxu0 0.0
        %4777 = vmatmul.mubr.f32.gmra.mrb[0].mxu0 %v4674
        %v4778 = vpop.f32.mrb[0].mxu0
        %v4779 = vadd.f32 0.0, %v4778
        %v4780 = vpop.f32.mrb[0].mxu0
        %v4781 = vadd.f32 0.0, %v4780
        %4782 = vmatprep.mubr.f32.mxu0 0.0
        %4783 = vmatmul.mubr.f32.gmra.mrb[0].mxu0 %v4677
        %v4784 = vpop.f32.mrb[0].mxu0
        %v4785 = vadd.f32 0.0, %v4784
        %v4786 = vpop.f32.mrb[0].mxu0
        %v4787 = vadd.f32 0.0, %v4786
        %4788 = vmatprep.mubr.f32.mxu0 0.0
        %4789 = vmatmul.mubr.f32.gmra.mrb[0].mxu0 %v4680
        %v4790 = vpop.f32.mrb[0].mxu0
        %v4791 = vadd.f32 0.0, %v4790
        %v4792 = vpop.f32.mrb[0].mxu0
        %v4793 = vadd.f32 0.0, %v4792
        %4794 = vdwg.mxu0
        %4795 = vmatprep.subr.mxu0 %v4653
        %4796 = vmatpush1.msra.mxu0 %v4652
        %4797 = vmatprep.subr.mxu0 %v4657
        %4798 = vmatpush1.msra.mxu0 %v4656
        %4799 = vmatprep.subr.mxu0 0.0
        %4800 = vmatpush1.msra.mxu0 0.0
        %4801 = vmatprep.subr.mxu0 0.0
        %4802 = vmatpush1.msra.mxu0 0.0
        %4803 = vmatprep.subr.mxu0 0.0
        %4804 = vmatpush1.msra.mxu0 0.0
        %4805 = vmatprep.subr.mxu0 0.0
        %4806 = vmatpush1.msra.mxu0 0.0
        %4807 = vmatprep.subr.mxu0 0.0
        %4808 = vmatpush1.msra.mxu0 0.0
        %4809 = vmatprep.subr.mxu0 0.0
        %4810 = vmatpush1.msra.mxu0 0.0
        %4811 = vmatprep.subr.mxu0 0.0
        %4812 = vmatpush1.msra.mxu0 0.0
        %4813 = vmatprep.subr.mxu0 0.0
        %4814 = vmatpush1.msra.mxu0 0.0
        %4815 = vmatprep.subr.mxu0 0.0
        %4816 = vmatpush1.msra.mxu0 0.0
        %4817 = vmatprep.subr.mxu0 0.0
        %4818 = vmatpush1.msra.mxu0 0.0
        %4819 = vmatprep.subr.mxu0 0.0
        %4820 = vmatpush1.msra.mxu0 0.0
        %4821 = vmatprep.subr.mxu0 0.0
        %4822 = vmatpush1.msra.mxu0 0.0
        %4823 = vmatprep.subr.mxu0 0.0
        %4824 = vmatpush1.msra.mxu0 0.0
        %4825 = vmatprep.subr.mxu0 0.0
        %4826 = vmatpush1.msra.mxu0 0.0
        %4827 = vmatprep.subr.mxu0 0.0
        %4828 = vmatpush1.msra.mxu0 0.0
        %4829 = vmatprep.subr.mxu0 0.0
        %4830 = vmatpush1.msra.mxu0 0.0
        %4831 = vmatprep.subr.mxu0 0.0
        %4832 = vmatpush1.msra.mxu0 0.0
        %4833 = vmatprep.subr.mxu0 0.0
        %4834 = vmatpush1.msra.mxu0 0.0
        %4835 = vmatprep.subr.mxu0 0.0
        %4836 = vmatpush1.msra.mxu0 0.0
        %4837 = vmatprep.subr.mxu0 0.0
        %4838 = vmatpush1.msra.mxu0 0.0
        %4839 = vmatprep.subr.mxu0 0.0
        %4840 = vmatpush1.msra.mxu0 0.0
        %4841 = vmatprep.subr.mxu0 0.0
        %4842 = vmatpush1.msra.mxu0 0.0
        %4843 = vmatprep.subr.mxu0 0.0
        %4844 = vmatpush1.msra.mxu0 0.0
        %4845 = vmatprep.subr.mxu0 0.0
        %4846 = vmatpush1.msra.mxu0 0.0
        %4847 = vmatprep.subr.mxu0 0.0
        %4848 = vmatpush1.msra.mxu0 0.0
        %4849 = vmatprep.subr.mxu0 0.0
        %4850 = vmatpush1.msra.mxu0 0.0
        %4851 = vmatprep.subr.mxu0 0.0
        %4852 = vmatpush1.msra.mxu0 0.0
        %4853 = vmatprep.subr.mxu0 0.0
        %4854 = vmatpush1.msra.mxu0 0.0
        %4855 = vmatprep.subr.mxu0 0.0
        %4856 = vmatpush1.msra.mxu0 0.0
        %4857 = vmatprep.subr.mxu0 0.0
        %4858 = vmatpush1.msra.mxu0 0.0
        %4859 = vmatprep.mubr.f32.mxu0 0.0
        %4860 = vmatmul.mubr.f32.gmra.mrb[0].mxu0 %v4659
        %v4861 = vpop.f32.mrb[0].mxu0
        %v4862 = vadd.f32 0.0, %v4861
        %v4863 = vpop.f32.mrb[0].mxu0
        %v4864 = vadd.f32 0.0, %v4863
        %4865 = vmatprep.mubr.f32.mxu0 0.0
        %4866 = vmatmul.mubr.f32.gmra.mrb[0].mxu0 %v4662
        %v4867 = vpop.f32.mrb[0].mxu0
        %v4868 = vadd.f32 0.0, %v4867
        %v4869 = vpop.f32.mrb[0].mxu0
        %v4870 = vadd.f32 0.0, %v4869
        %4871 = vmatprep.mubr.f32.mxu0 0.0
        %4872 = vmatmul.mubr.f32.gmra.mrb[0].mxu0 %v4665
        %v4873 = vpop.f32.mrb[0].mxu0
        %v4874 = vadd.f32 0.0, %v4873
        %v4875 = vpop.f32.mrb[0].mxu0
        %v4876 = vadd.f32 0.0, %v4875
        %4877 = vmatprep.mubr.f32.mxu0 0.0
        %4878 = vmatmul.mubr.f32.gmra.mrb[0].mxu0 %v4668
        %v4879 = vpop.f32.mrb[0].mxu0
        %v4880 = vadd.f32 0.0, %v4879
        %v4881 = vpop.f32.mrb[0].mxu0
        %v4882 = vadd.f32 0.0, %v4881
        %4883 = vmatprep.mubr.f32.mxu0 0.0
        %4884 = vmatmul.mubr.f32.gmra.mrb[0].mxu0 %v4671
        %v4885 = vpop.f32.mrb[0].mxu0
        %v4886 = vadd.f32 0.0, %v4885
        %v4887 = vpop.f32.mrb[0].mxu0
        %v4888 = vadd.f32 0.0, %v4887
        %4889 = vmatprep.mubr.f32.mxu0 0.0
        %4890 = vmatmul.mubr.f32.gmra.mrb[0].mxu0 %v4674
        %v4891 = vpop.f32.mrb[0].mxu0
        %v4892 = vadd.f32 0.0, %v4891
        %v4893 = vpop.f32.mrb[0].mxu0
        %v4894 = vadd.f32 0.0, %v4893
        %4895 = vmatprep.mubr.f32.mxu0 0.0
        %4896 = vmatmul.mubr.f32.gmra.mrb[0].mxu0 %v4677
        %v4897 = vpop.f32.mrb[0].mxu0
        %v4898 = vadd.f32 0.0, %v4897
        %v4899 = vpop.f32.mrb[0].mxu0
        %v4900 = vadd.f32 0.0, %v4899
        %4901 = vmatprep.mubr.f32.mxu0 0.0
        %4902 = vmatmul.mubr.f32.gmra.mrb[0].mxu0 %v4680
        %v4903 = vpop.f32.mrb[0].mxu0
        %v4904 = vadd.f32 0.0, %v4903
        %v4905 = vpop.f32.mrb[0].mxu0
        %v4906 = vadd.f32 0.0, %v4905
        %4907 = vdwg.mxu0
        %v4909 = vsel %vm1391, %v4642, 0
        %v4912 = vsel %vm1391, %v4643, 0
        %v4915 = vsel %vm1391, %v4644, 0
        %v4918 = vsel %vm1391, %v4645, 0
        %v4921 = vsel %vm1391, %v4646, 0
        %v4924 = vsel %vm1391, %v4647, 0
        %v4927 = vsel %vm1391, %v4648, 0
        %v4930 = vsel %vm1391, %v4649, 0
        %4932 = vmatprep.subr.mxu0 %v4651
        %4933 = vmatpush1.msra.mxu0 %v4650
        %4934 = vmatprep.subr.mxu0 %v4655
        %4935 = vmatpush1.msra.mxu0 %v4654
        %4936 = vmatprep.subr.mxu0 0.0
        %4937 = vmatpush1.msra.mxu0 0.0
        %4938 = vmatprep.subr.mxu0 0.0
        %4939 = vmatpush1.msra.mxu0 0.0
        %4940 = vmatprep.subr.mxu0 0.0
        %4941 = vmatpush1.msra.mxu0 0.0
        %4942 = vmatprep.subr.mxu0 0.0
        %4943 = vmatpush1.msra.mxu0 0.0
        %4944 = vmatprep.subr.mxu0 0.0
        %4945 = vmatpush1.msra.mxu0 0.0
        %4946 = vmatprep.subr.mxu0 0.0
        %4947 = vmatpush1.msra.mxu0 0.0
        %4948 = vmatprep.subr.mxu0 0.0
        %4949 = vmatpush1.msra.mxu0 0.0
        %4950 = vmatprep.subr.mxu0 0.0
        %4951 = vmatpush1.msra.mxu0 0.0
        %4952 = vmatprep.subr.mxu0 0.0
        %4953 = vmatpush1.msra.mxu0 0.0
        %4954 = vmatprep.subr.mxu0 0.0
        %4955 = vmatpush1.msra.mxu0 0.0
        %4956 = vmatprep.subr.mxu0 0.0
        %4957 = vmatpush1.msra.mxu0 0.0
        %4958 = vmatprep.subr.mxu0 0.0
        %4959 = vmatpush1.msra.mxu0 0.0
        %4960 = vmatprep.subr.mxu0 0.0
        %4961 = vmatpush1.msra.mxu0 0.0
        %4962 = vmatprep.subr.mxu0 0.0
        %4963 = vmatpush1.msra.mxu0 0.0
        %4964 = vmatprep.subr.mxu0 0.0
        %4965 = vmatpush1.msra.mxu0 0.0
        %4966 = vmatprep.subr.mxu0 0.0
        %4967 = vmatpush1.msra.mxu0 0.0
        %4968 = vmatprep.subr.mxu0 0.0
        %4969 = vmatpush1.msra.mxu0 0.0
        %4970 = vmatprep.subr.mxu0 0.0
        %4971 = vmatpush1.msra.mxu0 0.0
        %4972 = vmatprep.subr.mxu0 0.0
        %4973 = vmatpush1.msra.mxu0 0.0
        %4974 = vmatprep.subr.mxu0 0.0
        %4975 = vmatpush1.msra.mxu0 0.0
        %4976 = vmatprep.subr.mxu0 0.0
        %4977 = vmatpush1.msra.mxu0 0.0
        %4978 = vmatprep.subr.mxu0 0.0
        %4979 = vmatpush1.msra.mxu0 0.0
        %4980 = vmatprep.subr.mxu0 0.0
        %4981 = vmatpush1.msra.mxu0 0.0
        %4982 = vmatprep.subr.mxu0 0.0
        %4983 = vmatpush1.msra.mxu0 0.0
        %4984 = vmatprep.subr.mxu0 0.0
        %4985 = vmatpush1.msra.mxu0 0.0
        %4986 = vmatprep.subr.mxu0 0.0
        %4987 = vmatpush1.msra.mxu0 0.0
        %4988 = vmatprep.subr.mxu0 0.0
        %4989 = vmatpush1.msra.mxu0 0.0
        %4990 = vmatprep.subr.mxu0 0.0
        %4991 = vmatpush1.msra.mxu0 0.0
        %4992 = vmatprep.subr.mxu0 0.0
        %4993 = vmatpush1.msra.mxu0 0.0
        %4994 = vmatprep.subr.mxu0 0.0
        %4995 = vmatpush1.msra.mxu0 0.0
        %4996 = vmatprep.mubr.f32.mxu0 0.0
        %4997 = vmatmul.mubr.f32.gmra.mrb[0].mxu0 %v4909
        %v4998 = vpop.f32.mrb[0].mxu0
        %v4999 = vadd.f32 0.0, %v4998
        %v5000 = vpop.f32.mrb[0].mxu0
        %v5001 = vadd.f32 0.0, %v5000
        %5002 = vmatprep.mubr.f32.mxu0 0.0
        %5003 = vmatmul.mubr.f32.gmra.mrb[0].mxu0 %v4912
        %v5004 = vpop.f32.mrb[0].mxu0
        %v5005 = vadd.f32 0.0, %v5004
        %v5006 = vpop.f32.mrb[0].mxu0
        %v5007 = vadd.f32 0.0, %v5006
        %5008 = vmatprep.mubr.f32.mxu0 0.0
        %5009 = vmatmul.mubr.f32.gmra.mrb[0].mxu0 %v4915
        %v5010 = vpop.f32.mrb[0].mxu0
        %v5011 = vadd.f32 0.0, %v5010
        %v5012 = vpop.f32.mrb[0].mxu0
        %v5013 = vadd.f32 0.0, %v5012
        %5014 = vmatprep.mubr.f32.mxu0 0.0
        %5015 = vmatmul.mubr.f32.gmra.mrb[0].mxu0 %v4918
        %v5016 = vpop.f32.mrb[0].mxu0
        %v5017 = vadd.f32 0.0, %v5016
        %v5018 = vpop.f32.mrb[0].mxu0
        %v5019 = vadd.f32 0.0, %v5018
        %5020 = vmatprep.mubr.f32.mxu0 0.0
        %5021 = vmatmul.mubr.f32.gmra.mrb[0].mxu0 %v4921
        %v5022 = vpop.f32.mrb[0].mxu0
        %v5023 = vadd.f32 0.0, %v5022
        %v5024 = vpop.f32.mrb[0].mxu0
        %v5025 = vadd.f32 0.0, %v5024
        %5026 = vmatprep.mubr.f32.mxu0 0.0
        %5027 = vmatmul.mubr.f32.gmra.mrb[0].mxu0 %v4924
        %v5028 = vpop.f32.mrb[0].mxu0
        %v5029 = vadd.f32 0.0, %v5028
        %v5030 = vpop.f32.mrb[0].mxu0
        %v5031 = vadd.f32 0.0, %v5030
        %5032 = vmatprep.mubr.f32.mxu0 0.0
        %5033 = vmatmul.mubr.f32.gmra.mrb[0].mxu0 %v4927
        %v5034 = vpop.f32.mrb[0].mxu0
        %v5035 = vadd.f32 0.0, %v5034
        %v5036 = vpop.f32.mrb[0].mxu0
        %v5037 = vadd.f32 0.0, %v5036
        %5038 = vmatprep.mubr.f32.mxu0 0.0
        %5039 = vmatmul.mubr.f32.gmra.mrb[0].mxu0 %v4930
        %v5040 = vpop.f32.mrb[0].mxu0
        %v5041 = vadd.f32 0.0, %v5040
        %v5042 = vpop.f32.mrb[0].mxu0
        %v5043 = vadd.f32 0.0, %v5042
        %5044 = vdwg.mxu0
        %5045 = vmatprep.subr.mxu0 %v4653
        %5046 = vmatpush1.msra.mxu0 %v4652
        %5047 = vmatprep.subr.mxu0 %v4657
        %5048 = vmatpush1.msra.mxu0 %v4656
        %5049 = vmatprep.subr.mxu0 0.0
        %5050 = vmatpush1.msra.mxu0 0.0
        %5051 = vmatprep.subr.mxu0 0.0
        %5052 = vmatpush1.msra.mxu0 0.0
        %5053 = vmatprep.subr.mxu0 0.0
        %5054 = vmatpush1.msra.mxu0 0.0
        %5055 = vmatprep.subr.mxu0 0.0
        %5056 = vmatpush1.msra.mxu0 0.0
        %5057 = vmatprep.subr.mxu0 0.0
        %5058 = vmatpush1.msra.mxu0 0.0
        %5059 = vmatprep.subr.mxu0 0.0
        %5060 = vmatpush1.msra.mxu0 0.0
        %5061 = vmatprep.subr.mxu0 0.0
        %5062 = vmatpush1.msra.mxu0 0.0
        %5063 = vmatprep.subr.mxu0 0.0
        %5064 = vmatpush1.msra.mxu0 0.0
        %5065 = vmatprep.subr.mxu0 0.0
        %5066 = vmatpush1.msra.mxu0 0.0
        %5067 = vmatprep.subr.mxu0 0.0
        %5068 = vmatpush1.msra.mxu0 0.0
        %5069 = vmatprep.subr.mxu0 0.0
        %5070 = vmatpush1.msra.mxu0 0.0
        %5071 = vmatprep.subr.mxu0 0.0
        %5072 = vmatpush1.msra.mxu0 0.0
        %5073 = vmatprep.subr.mxu0 0.0
        %5074 = vmatpush1.msra.mxu0 0.0
        %5075 = vmatprep.subr.mxu0 0.0
        %5076 = vmatpush1.msra.mxu0 0.0
        %5077 = vmatprep.subr.mxu0 0.0
        %5078 = vmatpush1.msra.mxu0 0.0
        %5079 = vmatprep.subr.mxu0 0.0
        %5080 = vmatpush1.msra.mxu0 0.0
        %5081 = vmatprep.subr.mxu0 0.0
        %5082 = vmatpush1.msra.mxu0 0.0
        %5083 = vmatprep.subr.mxu0 0.0
        %5084 = vmatpush1.msra.mxu0 0.0
        %5085 = vmatprep.subr.mxu0 0.0
        %5086 = vmatpush1.msra.mxu0 0.0
        %5087 = vmatprep.subr.mxu0 0.0
        %5088 = vmatpush1.msra.mxu0 0.0
        %5089 = vmatprep.subr.mxu0 0.0
        %5090 = vmatpush1.msra.mxu0 0.0
        %5091 = vmatprep.subr.mxu0 0.0
        %5092 = vmatpush1.msra.mxu0 0.0
        %5093 = vmatprep.subr.mxu0 0.0
        %5094 = vmatpush1.msra.mxu0 0.0
        %5095 = vmatprep.subr.mxu0 0.0
        %5096 = vmatpush1.msra.mxu0 0.0
        %5097 = vmatprep.subr.mxu0 0.0
        %5098 = vmatpush1.msra.mxu0 0.0
        %5099 = vmatprep.subr.mxu0 0.0
        %5100 = vmatpush1.msra.mxu0 0.0
        %5101 = vmatprep.subr.mxu0 0.0
        %5102 = vmatpush1.msra.mxu0 0.0
        %5103 = vmatprep.subr.mxu0 0.0
        %5104 = vmatpush1.msra.mxu0 0.0
        %5105 = vmatprep.subr.mxu0 0.0
        %5106 = vmatpush1.msra.mxu0 0.0
        %5107 = vmatprep.subr.mxu0 0.0
        %5108 = vmatpush1.msra.mxu0 0.0
        %5109 = vmatprep.mubr.f32.mxu0 0.0
        %5110 = vmatmul.mubr.f32.gmra.mrb[0].mxu0 %v4909
        %v5111 = vpop.f32.mrb[0].mxu0
        %v5112 = vadd.f32 0.0, %v5111
        %v5113 = vpop.f32.mrb[0].mxu0
        %v5114 = vadd.f32 0.0, %v5113
        %5115 = vmatprep.mubr.f32.mxu0 0.0
        %5116 = vmatmul.mubr.f32.gmra.mrb[0].mxu0 %v4912
        %v5117 = vpop.f32.mrb[0].mxu0
        %v5118 = vadd.f32 0.0, %v5117
        %v5119 = vpop.f32.mrb[0].mxu0
        %v5120 = vadd.f32 0.0, %v5119
        %5121 = vmatprep.mubr.f32.mxu0 0.0
        %5122 = vmatmul.mubr.f32.gmra.mrb[0].mxu0 %v4915
        %v5123 = vpop.f32.mrb[0].mxu0
        %v5124 = vadd.f32 0.0, %v5123
        %v5125 = vpop.f32.mrb[0].mxu0
        %v5126 = vadd.f32 0.0, %v5125
        %5127 = vmatprep.mubr.f32.mxu0 0.0
        %5128 = vmatmul.mubr.f32.gmra.mrb[0].mxu0 %v4918
        %v5129 = vpop.f32.mrb[0].mxu0
        %v5130 = vadd.f32 0.0, %v5129
        %v5131 = vpop.f32.mrb[0].mxu0
        %v5132 = vadd.f32 0.0, %v5131
        %5133 = vmatprep.mubr.f32.mxu0 0.0
        %5134 = vmatmul.mubr.f32.gmra.mrb[0].mxu0 %v4921
        %v5135 = vpop.f32.mrb[0].mxu0
        %v5136 = vadd.f32 0.0, %v5135
        %v5137 = vpop.f32.mrb[0].mxu0
        %v5138 = vadd.f32 0.0, %v5137
        %5139 = vmatprep.mubr.f32.mxu0 0.0
        %5140 = vmatmul.mubr.f32.gmra.mrb[0].mxu0 %v4924
        %v5141 = vpop.f32.mrb[0].mxu0
        %v5142 = vadd.f32 0.0, %v5141
        %v5143 = vpop.f32.mrb[0].mxu0
        %v5144 = vadd.f32 0.0, %v5143
        %5145 = vmatprep.mubr.f32.mxu0 0.0
        %5146 = vmatmul.mubr.f32.gmra.mrb[0].mxu0 %v4927
        %v5147 = vpop.f32.mrb[0].mxu0
        %v5148 = vadd.f32 0.0, %v5147
        %v5149 = vpop.f32.mrb[0].mxu0
        %v5150 = vadd.f32 0.0, %v5149
        %5151 = vmatprep.mubr.f32.mxu0 0.0
        %5152 = vmatmul.mubr.f32.gmra.mrb[0].mxu0 %v4930
        %v5153 = vpop.f32.mrb[0].mxu0
        %v5154 = vadd.f32 0.0, %v5153
        %v5155 = vpop.f32.mrb[0].mxu0
        %v5156 = vadd.f32 0.0, %v5155
        %5157 = vdwg.mxu0
        %v5158 = vsel %vm1097, %v1189, 0
        %v5160 = vsel %vm1097, %v1194, 0
        %v5162 = vsel %vm1097, %v1199, 0
        %v5164 = vsel %vm1097, %v1204, 0
        %v5166 = vsel %vm1097, %v1209, 0
        %v5168 = vsel %vm1097, %v1214, 0
        %v5170 = vsel %vm1097, %v1219, 0
        %v5172 = vsel %vm1097, %v1224, 0
        %5174 = vmatprep.subr.mxu0 %v3546
        %5175 = vmatpush1.msra.mxu0 %v3545
        %5176 = vmatprep.subr.mxu0 %v3550
        %5177 = vmatpush1.msra.mxu0 %v3549
        %5178 = vmatprep.subr.mxu0 %v3554
        %5179 = vmatpush1.msra.mxu0 %v3553
        %5180 = vmatprep.subr.mxu0 %v3558
        %5181 = vmatpush1.msra.mxu0 %v3557
        %5182 = vmatprep.subr.mxu0 0.0
        %5183 = vmatpush1.msra.mxu0 0.0
        %5184 = vmatprep.subr.mxu0 0.0
        %5185 = vmatpush1.msra.mxu0 0.0
        %5186 = vmatprep.subr.mxu0 0.0
        %5187 = vmatpush1.msra.mxu0 0.0
        %5188 = vmatprep.subr.mxu0 0.0
        %5189 = vmatpush1.msra.mxu0 0.0
        %5190 = vmatprep.subr.mxu0 0.0
        %5191 = vmatpush1.msra.mxu0 0.0
        %5192 = vmatprep.subr.mxu0 0.0
        %5193 = vmatpush1.msra.mxu0 0.0
        %5194 = vmatprep.subr.mxu0 0.0
        %5195 = vmatpush1.msra.mxu0 0.0
        %5196 = vmatprep.subr.mxu0 0.0
        %5197 = vmatpush1.msra.mxu0 0.0
        %5198 = vmatprep.subr.mxu0 0.0
        %5199 = vmatpush1.msra.mxu0 0.0
        %5200 = vmatprep.subr.mxu0 0.0
        %5201 = vmatpush1.msra.mxu0 0.0
        %5202 = vmatprep.subr.mxu0 0.0
        %5203 = vmatpush1.msra.mxu0 0.0
        %5204 = vmatprep.subr.mxu0 0.0
        %5205 = vmatpush1.msra.mxu0 0.0
        %5206 = vmatprep.subr.mxu0 0.0
        %5207 = vmatpush1.msra.mxu0 0.0
        %5208 = vmatprep.subr.mxu0 0.0
        %5209 = vmatpush1.msra.mxu0 0.0
        %5210 = vmatprep.subr.mxu0 0.0
        %5211 = vmatpush1.msra.mxu0 0.0
        %5212 = vmatprep.subr.mxu0 0.0
        %5213 = vmatpush1.msra.mxu0 0.0
        %5214 = vmatprep.subr.mxu0 0.0
        %5215 = vmatpush1.msra.mxu0 0.0
        %5216 = vmatprep.subr.mxu0 0.0
        %5217 = vmatpush1.msra.mxu0 0.0
        %5218 = vmatprep.subr.mxu0 0.0
        %5219 = vmatpush1.msra.mxu0 0.0
        %5220 = vmatprep.subr.mxu0 0.0
        %5221 = vmatpush1.msra.mxu0 0.0
        %5222 = vmatprep.subr.mxu0 0.0
        %5223 = vmatpush1.msra.mxu0 0.0
        %5224 = vmatprep.subr.mxu0 0.0
        %5225 = vmatpush1.msra.mxu0 0.0
        %5226 = vmatprep.subr.mxu0 0.0
        %5227 = vmatpush1.msra.mxu0 0.0
        %5228 = vmatprep.subr.mxu0 0.0
        %5229 = vmatpush1.msra.mxu0 0.0
        %5230 = vmatprep.subr.mxu0 0.0
        %5231 = vmatpush1.msra.mxu0 0.0
        %5232 = vmatprep.subr.mxu0 0.0
        %5233 = vmatpush1.msra.mxu0 0.0
        %5234 = vmatprep.subr.mxu0 0.0
        %5235 = vmatpush1.msra.mxu0 0.0
        %5236 = vmatprep.subr.mxu0 0.0
        %5237 = vmatpush1.msra.mxu0 0.0
        %5238 = vmatprep.mubr.f32.mxu0 0.0
        %5239 = vmatmul.mubr.f32.gmra.mrb[0].mxu0 %v5158
        %v5240 = vpop.f32.mrb[0].mxu0
        %v5241 = vadd.f32 0.0, %v5240
        %v5242 = vpop.f32.mrb[0].mxu0
        %v5243 = vadd.f32 0.0, %v5242
        %5244 = vmatprep.mubr.f32.mxu0 0.0
        %5245 = vmatmul.mubr.f32.gmra.mrb[0].mxu0 %v5160
        %v5246 = vpop.f32.mrb[0].mxu0
        %v5247 = vadd.f32 0.0, %v5246
        %v5248 = vpop.f32.mrb[0].mxu0
        %v5249 = vadd.f32 0.0, %v5248
        %5250 = vmatprep.mubr.f32.mxu0 0.0
        %5251 = vmatmul.mubr.f32.gmra.mrb[0].mxu0 %v5162
        %v5252 = vpop.f32.mrb[0].mxu0
        %v5253 = vadd.f32 0.0, %v5252
        %v5254 = vpop.f32.mrb[0].mxu0
        %v5255 = vadd.f32 0.0, %v5254
        %5256 = vmatprep.mubr.f32.mxu0 0.0
        %5257 = vmatmul.mubr.f32.gmra.mrb[0].mxu0 %v5164
        %v5258 = vpop.f32.mrb[0].mxu0
        %v5259 = vadd.f32 0.0, %v5258
        %v5260 = vpop.f32.mrb[0].mxu0
        %v5261 = vadd.f32 0.0, %v5260
        %5262 = vmatprep.mubr.f32.mxu0 0.0
        %5263 = vmatmul.mubr.f32.gmra.mrb[0].mxu0 %v5166
        %v5264 = vpop.f32.mrb[0].mxu0
        %v5265 = vadd.f32 0.0, %v5264
        %v5266 = vpop.f32.mrb[0].mxu0
        %v5267 = vadd.f32 0.0, %v5266
        %5268 = vmatprep.mubr.f32.mxu0 0.0
        %5269 = vmatmul.mubr.f32.gmra.mrb[0].mxu0 %v5168
        %v5270 = vpop.f32.mrb[0].mxu0
        %v5271 = vadd.f32 0.0, %v5270
        %v5272 = vpop.f32.mrb[0].mxu0
        %v5273 = vadd.f32 0.0, %v5272
        %5274 = vmatprep.mubr.f32.mxu0 0.0
        %5275 = vmatmul.mubr.f32.gmra.mrb[0].mxu0 %v5170
        %v5276 = vpop.f32.mrb[0].mxu0
        %v5277 = vadd.f32 0.0, %v5276
        %v5278 = vpop.f32.mrb[0].mxu0
        %v5279 = vadd.f32 0.0, %v5278
        %5280 = vmatprep.mubr.f32.mxu0 0.0
        %5281 = vmatmul.mubr.f32.gmra.mrb[0].mxu0 %v5172
        %v5282 = vpop.f32.mrb[0].mxu0
        %v5283 = vadd.f32 0.0, %v5282
        %v5284 = vpop.f32.mrb[0].mxu0
        %v5285 = vadd.f32 0.0, %v5284
        %5286 = vdwg.mxu0
        %5287 = vmatprep.subr.mxu0 %v3548
        %5288 = vmatpush1.msra.mxu0 %v3547
        %5289 = vmatprep.subr.mxu0 %v3552
        %5290 = vmatpush1.msra.mxu0 %v3551
        %5291 = vmatprep.subr.mxu0 %v3556
        %5292 = vmatpush1.msra.mxu0 %v3555
        %5293 = vmatprep.subr.mxu0 %v3560
        %5294 = vmatpush1.msra.mxu0 %v3559
        %5295 = vmatprep.subr.mxu0 0.0
        %5296 = vmatpush1.msra.mxu0 0.0
        %5297 = vmatprep.subr.mxu0 0.0
        %5298 = vmatpush1.msra.mxu0 0.0
        %5299 = vmatprep.subr.mxu0 0.0
        %5300 = vmatpush1.msra.mxu0 0.0
        %5301 = vmatprep.subr.mxu0 0.0
        %5302 = vmatpush1.msra.mxu0 0.0
        %5303 = vmatprep.subr.mxu0 0.0
        %5304 = vmatpush1.msra.mxu0 0.0
        %5305 = vmatprep.subr.mxu0 0.0
        %5306 = vmatpush1.msra.mxu0 0.0
        %5307 = vmatprep.subr.mxu0 0.0
        %5308 = vmatpush1.msra.mxu0 0.0
        %5309 = vmatprep.subr.mxu0 0.0
        %5310 = vmatpush1.msra.mxu0 0.0
        %5311 = vmatprep.subr.mxu0 0.0
        %5312 = vmatpush1.msra.mxu0 0.0
        %5313 = vmatprep.subr.mxu0 0.0
        %5314 = vmatpush1.msra.mxu0 0.0
        %5315 = vmatprep.subr.mxu0 0.0
        %5316 = vmatpush1.msra.mxu0 0.0
        %5317 = vmatprep.subr.mxu0 0.0
        %5318 = vmatpush1.msra.mxu0 0.0
        %5319 = vmatprep.subr.mxu0 0.0
        %5320 = vmatpush1.msra.mxu0 0.0
        %5321 = vmatprep.subr.mxu0 0.0
        %5322 = vmatpush1.msra.mxu0 0.0
        %5323 = vmatprep.subr.mxu0 0.0
        %5324 = vmatpush1.msra.mxu0 0.0
        %5325 = vmatprep.subr.mxu0 0.0
        %5326 = vmatpush1.msra.mxu0 0.0
        %5327 = vmatprep.subr.mxu0 0.0
        %5328 = vmatpush1.msra.mxu0 0.0
        %5329 = vmatprep.subr.mxu0 0.0
        %5330 = vmatpush1.msra.mxu0 0.0
        %5331 = vmatprep.subr.mxu0 0.0
        %5332 = vmatpush1.msra.mxu0 0.0
        %5333 = vmatprep.subr.mxu0 0.0
        %5334 = vmatpush1.msra.mxu0 0.0
        %5335 = vmatprep.subr.mxu0 0.0
        %5336 = vmatpush1.msra.mxu0 0.0
        %5337 = vmatprep.subr.mxu0 0.0
        %5338 = vmatpush1.msra.mxu0 0.0
        %5339 = vmatprep.subr.mxu0 0.0
        %5340 = vmatpush1.msra.mxu0 0.0
        %5341 = vmatprep.subr.mxu0 0.0
        %5342 = vmatpush1.msra.mxu0 0.0
        %5343 = vmatprep.subr.mxu0 0.0
        %5344 = vmatpush1.msra.mxu0 0.0
        %5345 = vmatprep.subr.mxu0 0.0
        %5346 = vmatpush1.msra.mxu0 0.0
        %5347 = vmatprep.subr.mxu0 0.0
        %5348 = vmatpush1.msra.mxu0 0.0
        %5349 = vmatprep.subr.mxu0 0.0
        %5350 = vmatpush1.msra.mxu0 0.0
        %5351 = vmatprep.mubr.f32.mxu0 0.0
        %5352 = vmatmul.mubr.f32.gmra.mrb[0].mxu0 %v5158
        %v5353 = vpop.f32.mrb[0].mxu0
        %v5354 = vadd.f32 0.0, %v5353
        %v5355 = vpop.f32.mrb[0].mxu0
        %v5356 = vadd.f32 0.0, %v5355
        %5357 = vmatprep.mubr.f32.mxu0 0.0
        %5358 = vmatmul.mubr.f32.gmra.mrb[0].mxu0 %v5160
        %v5359 = vpop.f32.mrb[0].mxu0
        %v5360 = vadd.f32 0.0, %v5359
        %v5361 = vpop.f32.mrb[0].mxu0
        %v5362 = vadd.f32 0.0, %v5361
        %5363 = vmatprep.mubr.f32.mxu0 0.0
        %5364 = vmatmul.mubr.f32.gmra.mrb[0].mxu0 %v5162
        %v5365 = vpop.f32.mrb[0].mxu0
        %v5366 = vadd.f32 0.0, %v5365
        %v5367 = vpop.f32.mrb[0].mxu0
        %v5368 = vadd.f32 0.0, %v5367
        %5369 = vmatprep.mubr.f32.mxu0 0.0
        %5370 = vmatmul.mubr.f32.gmra.mrb[0].mxu0 %v5164
        %v5371 = vpop.f32.mrb[0].mxu0
        %v5372 = vadd.f32 0.0, %v5371
        %v5373 = vpop.f32.mrb[0].mxu0
        %v5374 = vadd.f32 0.0, %v5373
        %5375 = vmatprep.mubr.f32.mxu0 0.0
        %5376 = vmatmul.mubr.f32.gmra.mrb[0].mxu0 %v5166
        %v5377 = vpop.f32.mrb[0].mxu0
        %v5378 = vadd.f32 0.0, %v5377
        %v5379 = vpop.f32.mrb[0].mxu0
        %v5380 = vadd.f32 0.0, %v5379
        %5381 = vmatprep.mubr.f32.mxu0 0.0
        %5382 = vmatmul.mubr.f32.gmra.mrb[0].mxu0 %v5168
        %v5383 = vpop.f32.mrb[0].mxu0
        %v5384 = vadd.f32 0.0, %v5383
        %v5385 = vpop.f32.mrb[0].mxu0
        %v5386 = vadd.f32 0.0, %v5385
        %5387 = vmatprep.mubr.f32.mxu0 0.0
        %5388 = vmatmul.mubr.f32.gmra.mrb[0].mxu0 %v5170
        %v5389 = vpop.f32.mrb[0].mxu0
        %v5390 = vadd.f32 0.0, %v5389
        %v5391 = vpop.f32.mrb[0].mxu0
        %v5392 = vadd.f32 0.0, %v5391
        %5393 = vmatprep.mubr.f32.mxu0 0.0
        %5394 = vmatmul.mubr.f32.gmra.mrb[0].mxu0 %v5172
        %v5395 = vpop.f32.mrb[0].mxu0
        %v5396 = vadd.f32 0.0, %v5395
        %v5397 = vpop.f32.mrb[0].mxu0
        %v5398 = vadd.f32 0.0, %v5397
        %5399 = vdwg.mxu0
        %v5400 = vmul.f32 %v4749, %v4035
        %v5401 = vmul.f32 %v4751, %v4036
        %v5402 = vmul.f32 %v4862, %v4037
        %v5403 = vmul.f32 %v4864, %v4038
        %v5404 = vmul.f32 %v4755, %v4039
        %v5405 = vmul.f32 %v4757, %v4040
        %v5406 = vmul.f32 %v4868, %v4041
        %v5407 = vmul.f32 %v4870, %v4042
        %v5408 = vmul.f32 %v4761, %v4043
        %v5409 = vmul.f32 %v4763, %v4044
        %v5410 = vmul.f32 %v4874, %v4045
        %v5411 = vmul.f32 %v4876, %v4046
        %v5412 = vmul.f32 %v4767, %v4047
        %v5413 = vmul.f32 %v4769, %v4048
        %v5414 = vmul.f32 %v4880, %v4049
        %v5415 = vmul.f32 %v4882, %v4050
        %v5416 = vmul.f32 %v4773, %v4051
        %v5417 = vmul.f32 %v4775, %v4052
        %v5418 = vmul.f32 %v4886, %v4053
        %v5419 = vmul.f32 %v4888, %v4054
        %v5420 = vmul.f32 %v4779, %v4055
        %v5421 = vmul.f32 %v4781, %v4056
        %v5422 = vmul.f32 %v4892, %v4057
        %v5423 = vmul.f32 %v4894, %v4058
        %v5424 = vmul.f32 %v4785, %v4059
        %v5425 = vmul.f32 %v4787, %v4060
        %v5426 = vmul.f32 %v4898, %v4061
        %v5427 = vmul.f32 %v4900, %v4062
        %v5428 = vmul.f32 %v4791, %v4063
        %v5429 = vmul.f32 %v4793, %v4064
        %v5430 = vmul.f32 %v4904, %v4065
        %v5431 = vmul.f32 %v4906, %v4066
        %v5432 = vadd.f32 %v5400, %v5404
        %v5433 = vadd.f32 %v5432, %v5408
        %v5434 = vadd.f32 %v5433, %v5412
        %v5435 = vadd.f32 %v5434, %v5416
        %v5436 = vadd.f32 %v5435, %v5420
        %v5437 = vadd.f32 %v5436, %v5424
        %v5438 = vadd.f32 %v5437, %v5428
        %v5439 = vrot.slane %v5438, 4
        %v5440 = vadd.f32 %v5438, %v5439
        %v5441 = vrot.slane %v5440, 2
        %v5442 = vadd.f32 %v5440, %v5441
        %v5443 = vrot.slane %v5442, 1
        %v5444 = vadd.f32 %v5442, %v5443
        %v5445 = vadd.f32 %v5401, %v5405
        %v5446 = vadd.f32 %v5445, %v5409
        %v5447 = vadd.f32 %v5446, %v5413
        %v5448 = vadd.f32 %v5447, %v5417
        %v5449 = vadd.f32 %v5448, %v5421
        %v5450 = vadd.f32 %v5449, %v5425
        %v5451 = vadd.f32 %v5450, %v5429
        %v5452 = vrot.slane %v5451, 4
        %v5453 = vadd.f32 %v5451, %v5452
        %v5454 = vrot.slane %v5453, 2
        %v5455 = vadd.f32 %v5453, %v5454
        %v5456 = vrot.slane %v5455, 1
        %v5457 = vadd.f32 %v5455, %v5456
        %v5458 = vadd.f32 %v5402, %v5406
        %v5459 = vadd.f32 %v5458, %v5410
        %v5460 = vadd.f32 %v5459, %v5414
        %v5461 = vadd.f32 %v5460, %v5418
        %v5462 = vadd.f32 %v5461, %v5422
        %v5463 = vadd.f32 %v5462, %v5426
        %v5464 = vadd.f32 %v5463, %v5430
        %v5465 = vrot.slane %v5464, 4
        %v5466 = vadd.f32 %v5464, %v5465
        %v5467 = vrot.slane %v5466, 2
        %v5468 = vadd.f32 %v5466, %v5467
        %v5469 = vrot.slane %v5468, 1
        %v5470 = vadd.f32 %v5468, %v5469
        %v5471 = vadd.f32 %v5403, %v5407
        %v5472 = vadd.f32 %v5471, %v5411
        %v5473 = vadd.f32 %v5472, %v5415
        %v5474 = vadd.f32 %v5473, %v5419
        %v5475 = vadd.f32 %v5474, %v5423
        %v5476 = vadd.f32 %v5475, %v5427
        %v5477 = vadd.f32 %v5476, %v5431
        %v5478 = vrot.slane %v5477, 4
        %v5479 = vadd.f32 %v5477, %v5478
        %v5480 = vrot.slane %v5479, 2
        %v5481 = vadd.f32 %v5479, %v5480
        %v5482 = vrot.slane %v5481, 1
        %v5483 = vadd.f32 %v5481, %v5482
        %v5484 = vmul.f32 %v5400, %v4999
        %v5485 = vmul.f32 %v5401, %v5001
        %v5486 = vmul.f32 %v5402, %v5112
        %v5487 = vmul.f32 %v5403, %v5114
        %v5488 = vmul.f32 %v5404, %v5005
        %v5489 = vmul.f32 %v5405, %v5007
        %v5490 = vmul.f32 %v5406, %v5118
        %v5491 = vmul.f32 %v5407, %v5120
        %v5492 = vmul.f32 %v5408, %v5011
        %v5493 = vmul.f32 %v5409, %v5013
        %v5494 = vmul.f32 %v5410, %v5124
        %v5495 = vmul.f32 %v5411, %v5126
        %v5496 = vmul.f32 %v5412, %v5017
        %v5497 = vmul.f32 %v5413, %v5019
        %v5498 = vmul.f32 %v5414, %v5130
        %v5499 = vmul.f32 %v5415, %v5132
        %v5500 = vmul.f32 %v5416, %v5023
        %v5501 = vmul.f32 %v5417, %v5025
        %v5502 = vmul.f32 %v5418, %v5136
        %v5503 = vmul.f32 %v5419, %v5138
        %v5504 = vmul.f32 %v5420, %v5029
        %v5505 = vmul.f32 %v5421, %v5031
        %v5506 = vmul.f32 %v5422, %v5142
        %v5507 = vmul.f32 %v5423, %v5144
        %v5508 = vmul.f32 %v5424, %v5035
        %v5509 = vmul.f32 %v5425, %v5037
        %v5510 = vmul.f32 %v5426, %v5148
        %v5511 = vmul.f32 %v5427, %v5150
        %v5512 = vmul.f32 %v5428, %v5041
        %v5513 = vmul.f32 %v5429, %v5043
        %v5514 = vmul.f32 %v5430, %v5154
        %v5515 = vmul.f32 %v5431, %v5156
        %v5516 = vmul.f32 %v5484, %v5241
        %v5517 = vmul.f32 %v5485, %v5243
        %v5518 = vmul.f32 %v5486, %v5354
        %v5519 = vmul.f32 %v5487, %v5356
        %v5520 = vmul.f32 %v5488, %v5247
        %v5521 = vmul.f32 %v5489, %v5249
        %v5522 = vmul.f32 %v5490, %v5360
        %v5523 = vmul.f32 %v5491, %v5362
        %v5524 = vmul.f32 %v5492, %v5253
        %v5525 = vmul.f32 %v5493, %v5255
        %v5526 = vmul.f32 %v5494, %v5366
        %v5527 = vmul.f32 %v5495, %v5368
        %v5528 = vmul.f32 %v5496, %v5259
        %v5529 = vmul.f32 %v5497, %v5261
        %v5530 = vmul.f32 %v5498, %v5372
        %v5531 = vmul.f32 %v5499, %v5374
        %v5532 = vmul.f32 %v5500, %v5265
        %v5533 = vmul.f32 %v5501, %v5267
        %v5534 = vmul.f32 %v5502, %v5378
        %v5535 = vmul.f32 %v5503, %v5380
        %v5536 = vmul.f32 %v5504, %v5271
        %v5537 = vmul.f32 %v5505, %v5273
        %v5538 = vmul.f32 %v5506, %v5384
        %v5539 = vmul.f32 %v5507, %v5386
        %v5540 = vmul.f32 %v5508, %v5277
        %v5541 = vmul.f32 %v5509, %v5279
        %v5542 = vmul.f32 %v5510, %v5390
        %v5543 = vmul.f32 %v5511, %v5392
        %v5544 = vmul.f32 %v5512, %v5283
        %v5545 = vmul.f32 %v5513, %v5285
        %v5546 = vmul.f32 %v5514, %v5396
        %v5547 = vmul.f32 %v5515, %v5398
        %v5548 = vadd.f32 %v5516, %v5520
        %v5549 = vadd.f32 %v5548, %v5524
        %v5550 = vadd.f32 %v5549, %v5528
        %v5551 = vadd.f32 %v5550, %v5532
        %v5552 = vadd.f32 %v5551, %v5536
        %v5553 = vadd.f32 %v5552, %v5540
        %v5554 = vadd.f32 %v5553, %v5544
        %v5555 = vrot.slane %v5554, 4
        %v5556 = vadd.f32 %v5554, %v5555
        %v5557 = vrot.slane %v5556, 2
        %v5558 = vadd.f32 %v5556, %v5557
        %v5559 = vrot.slane %v5558, 1
        %v5560 = vadd.f32 %v5558, %v5559
        %v5561 = vadd.f32 %v5517, %v5521
        %v5562 = vadd.f32 %v5561, %v5525
        %v5563 = vadd.f32 %v5562, %v5529
        %v5564 = vadd.f32 %v5563, %v5533
        %v5565 = vadd.f32 %v5564, %v5537
        %v5566 = vadd.f32 %v5565, %v5541
        %v5567 = vadd.f32 %v5566, %v5545
        %v5568 = vrot.slane %v5567, 4
        %v5569 = vadd.f32 %v5567, %v5568
        %v5570 = vrot.slane %v5569, 2
        %v5571 = vadd.f32 %v5569, %v5570
        %v5572 = vrot.slane %v5571, 1
        %v5573 = vadd.f32 %v5571, %v5572
        %v5574 = vadd.f32 %v5518, %v5522
        %v5575 = vadd.f32 %v5574, %v5526
        %v5576 = vadd.f32 %v5575, %v5530
        %v5577 = vadd.f32 %v5576, %v5534
        %v5578 = vadd.f32 %v5577, %v5538
        %v5579 = vadd.f32 %v5578, %v5542
        %v5580 = vadd.f32 %v5579, %v5546
        %v5581 = vrot.slane %v5580, 4
        %v5582 = vadd.f32 %v5580, %v5581
        %v5583 = vrot.slane %v5582, 2
        %v5584 = vadd.f32 %v5582, %v5583
        %v5585 = vrot.slane %v5584, 1
        %v5586 = vadd.f32 %v5584, %v5585
        %v5587 = vadd.f32 %v5519, %v5523
        %v5588 = vadd.f32 %v5587, %v5527
        %v5589 = vadd.f32 %v5588, %v5531
        %v5590 = vadd.f32 %v5589, %v5535
        %v5591 = vadd.f32 %v5590, %v5539
        %v5592 = vadd.f32 %v5591, %v5543
        %v5593 = vadd.f32 %v5592, %v5547
        %v5594 = vrot.slane %v5593, 4
        %v5595 = vadd.f32 %v5593, %v5594
        %v5596 = vrot.slane %v5595, 2
        %v5597 = vadd.f32 %v5595, %v5596
        %v5598 = vrot.slane %v5597, 1
        %v5599 = vadd.f32 %v5597, %v5598
        %v5600 = vmul.f32 %v1078, %v4642
        %v5601 = vmul.f32 %v1079, %v4643
        %v5602 = vmul.f32 %v1080, %v4644
        %v5603 = vmul.f32 %v1081, %v4645
        %v5604 = vmul.f32 %v1082, %v4646
        %v5605 = vmul.f32 %v1083, %v4647
        %v5606 = vmul.f32 %v1084, %v4648
        %v5607 = vmul.f32 %v1085, %v4649
        %v5608 = vsel %vm1391, %v5600, 0.0
        %v5609 = vsel %vm1391, %v5601, 0.0
        %v5610 = vadd.f32 %v5608, %v5609
        %v5611 = vsel %vm1391, %v5602, 0.0
        %v5612 = vadd.f32 %v5610, %v5611
        %v5613 = vsel %vm1391, %v5603, 0.0
        %v5614 = vadd.f32 %v5612, %v5613
        %v5615 = vsel %vm1391, %v5604, 0.0
        %v5616 = vadd.f32 %v5614, %v5615
        %v5617 = vsel %vm1391, %v5605, 0.0
        %v5618 = vadd.f32 %v5616, %v5617
        %v5619 = vsel %vm1391, %v5606, 0.0
        %v5620 = vadd.f32 %v5618, %v5619
        %v5621 = vsel %vm1391, %v5607, 0.0
        %v5622 = vadd.f32 %v5620, %v5621
        %v5623 = vrot.slane %v5622, 4
        %v5624 = vadd.f32 %v5622, %v5623
        %v5625 = vrot.slane %v5624, 2
        %v5626 = vadd.f32 %v5624, %v5625
        %v5627 = vrot.slane %v5626, 1
        %v5628 = vadd.f32 %v5626, %v5627
        %v5629 = vadd.f32 %v5444, 1e-06
        %v5630 = vadd.f32 %v5457, 1e-06
        %v5631 = vadd.f32 %v5470, 1e-06
        %v5632 = vadd.f32 %v5483, 1e-06
        %v5634 = vsel %vm1391, %v5628, 0
        %5636 = vmatprep.subr.mxu0 %v4651
        %5637 = vmatpush1.msra.mxu0 %v4650
        %5638 = vmatprep.subr.mxu0 %v4655
        %5639 = vmatpush1.msra.mxu0 %v4654
        %5640 = vmatprep.subr.mxu0 0.0
        %5641 = vmatpush1.msra.mxu0 0.0
        %5642 = vmatprep.subr.mxu0 0.0
        %5643 = vmatpush1.msra.mxu0 0.0
        %5644 = vmatprep.subr.mxu0 0.0
        %5645 = vmatpush1.msra.mxu0 0.0
        %5646 = vmatprep.subr.mxu0 0.0
        %5647 = vmatpush1.msra.mxu0 0.0
        %5648 = vmatprep.subr.mxu0 0.0
        %5649 = vmatpush1.msra.mxu0 0.0
        %5650 = vmatprep.subr.mxu0 0.0
        %5651 = vmatpush1.msra.mxu0 0.0
        %5652 = vmatprep.subr.mxu0 0.0
        %5653 = vmatpush1.msra.mxu0 0.0
        %5654 = vmatprep.subr.mxu0 0.0
        %5655 = vmatpush1.msra.mxu0 0.0
        %5656 = vmatprep.subr.mxu0 0.0
        %5657 = vmatpush1.msra.mxu0 0.0
        %5658 = vmatprep.subr.mxu0 0.0
        %5659 = vmatpush1.msra.mxu0 0.0
        %5660 = vmatprep.subr.mxu0 0.0
        %5661 = vmatpush1.msra.mxu0 0.0
        %5662 = vmatprep.subr.mxu0 0.0
        %5663 = vmatpush1.msra.mxu0 0.0
        %5664 = vmatprep.subr.mxu0 0.0
        %5665 = vmatpush1.msra.mxu0 0.0
        %5666 = vmatprep.subr.mxu0 0.0
        %5667 = vmatpush1.msra.mxu0 0.0
        %5668 = vmatprep.subr.mxu0 0.0
        %5669 = vmatpush1.msra.mxu0 0.0
        %5670 = vmatprep.subr.mxu0 0.0
        %5671 = vmatpush1.msra.mxu0 0.0
        %5672 = vmatprep.subr.mxu0 0.0
        %5673 = vmatpush1.msra.mxu0 0.0
        %5674 = vmatprep.subr.mxu0 0.0
        %5675 = vmatpush1.msra.mxu0 0.0
        %5676 = vmatprep.subr.mxu0 0.0
        %5677 = vmatpush1.msra.mxu0 0.0
        %5678 = vmatprep.subr.mxu0 0.0
        %5679 = vmatpush1.msra.mxu0 0.0
        %5680 = vmatprep.subr.mxu0 0.0
        %5681 = vmatpush1.msra.mxu0 0.0
        %5682 = vmatprep.subr.mxu0 0.0
        %5683 = vmatpush1.msra.mxu0 0.0
        %5684 = vmatprep.subr.mxu0 0.0
        %5685 = vmatpush1.msra.mxu0 0.0
        %5686 = vmatprep.subr.mxu0 0.0
        %5687 = vmatpush1.msra.mxu0 0.0
        %5688 = vmatprep.subr.mxu0 0.0
        %5689 = vmatpush1.msra.mxu0 0.0
        %5690 = vmatprep.subr.mxu0 0.0
        %5691 = vmatpush1.msra.mxu0 0.0
        %5692 = vmatprep.subr.mxu0 0.0
        %5693 = vmatpush1.msra.mxu0 0.0
        %5694 = vmatprep.subr.mxu0 0.0
        %5695 = vmatpush1.msra.mxu0 0.0
        %5696 = vmatprep.subr.mxu0 0.0
        %5697 = vmatpush1.msra.mxu0 0.0
        %5698 = vmatprep.subr.mxu0 0.0
        %5699 = vmatpush1.msra.mxu0 0.0
        %5700 = vmatprep.mubr.f32.mxu0 0.0
        %5701 = vmatmul.mubr.f32.gmra.mrb[0].mxu0 %v5634
        %v5702 = vpop.f32.mrb[0].mxu0
        %v5703 = vadd.f32 1e-06, %v5702
        %v5704 = vpop.f32.mrb[0].mxu0
        %v5705 = vadd.f32 1e-06, %v5704
        %5706 = vdwg.mxu0
        %5707 = vmatprep.subr.mxu0 %v4653
        %5708 = vmatpush1.msra.mxu0 %v4652
        %5709 = vmatprep.subr.mxu0 %v4657
        %5710 = vmatpush1.msra.mxu0 %v4656
        %5711 = vmatprep.subr.mxu0 0.0
        %5712 = vmatpush1.msra.mxu0 0.0
        %5713 = vmatprep.subr.mxu0 0.0
        %5714 = vmatpush1.msra.mxu0 0.0
        %5715 = vmatprep.subr.mxu0 0.0
        %5716 = vmatpush1.msra.mxu0 0.0
        %5717 = vmatprep.subr.mxu0 0.0
        %5718 = vmatpush1.msra.mxu0 0.0
        %5719 = vmatprep.subr.mxu0 0.0
        %5720 = vmatpush1.msra.mxu0 0.0
        %5721 = vmatprep.subr.mxu0 0.0
        %5722 = vmatpush1.msra.mxu0 0.0
        %5723 = vmatprep.subr.mxu0 0.0
        %5724 = vmatpush1.msra.mxu0 0.0
        %5725 = vmatprep.subr.mxu0 0.0
        %5726 = vmatpush1.msra.mxu0 0.0
        %5727 = vmatprep.subr.mxu0 0.0
        %5728 = vmatpush1.msra.mxu0 0.0
        %5729 = vmatprep.subr.mxu0 0.0
        %5730 = vmatpush1.msra.mxu0 0.0
        %5731 = vmatprep.subr.mxu0 0.0
        %5732 = vmatpush1.msra.mxu0 0.0
        %5733 = vmatprep.subr.mxu0 0.0
        %5734 = vmatpush1.msra.mxu0 0.0
        %5735 = vmatprep.subr.mxu0 0.0
        %5736 = vmatpush1.msra.mxu0 0.0
        %5737 = vmatprep.subr.mxu0 0.0
        %5738 = vmatpush1.msra.mxu0 0.0
        %5739 = vmatprep.subr.mxu0 0.0
        %5740 = vmatpush1.msra.mxu0 0.0
        %5741 = vmatprep.subr.mxu0 0.0
        %5742 = vmatpush1.msra.mxu0 0.0
        %5743 = vmatprep.subr.mxu0 0.0
        %5744 = vmatpush1.msra.mxu0 0.0
        %5745 = vmatprep.subr.mxu0 0.0
        %5746 = vmatpush1.msra.mxu0 0.0
        %5747 = vmatprep.subr.mxu0 0.0
        %5748 = vmatpush1.msra.mxu0 0.0
        %5749 = vmatprep.subr.mxu0 0.0
        %5750 = vmatpush1.msra.mxu0 0.0
        %5751 = vmatprep.subr.mxu0 0.0
        %5752 = vmatpush1.msra.mxu0 0.0
        %5753 = vmatprep.subr.mxu0 0.0
        %5754 = vmatpush1.msra.mxu0 0.0
        %5755 = vmatprep.subr.mxu0 0.0
        %5756 = vmatpush1.msra.mxu0 0.0
        %5757 = vmatprep.subr.mxu0 0.0
        %5758 = vmatpush1.msra.mxu0 0.0
        %5759 = vmatprep.subr.mxu0 0.0
        %5760 = vmatpush1.msra.mxu0 0.0
        %5761 = vmatprep.subr.mxu0 0.0
        %5762 = vmatpush1.msra.mxu0 0.0
        %5763 = vmatprep.subr.mxu0 0.0
        %5764 = vmatpush1.msra.mxu0 0.0
        %5765 = vmatprep.subr.mxu0 0.0
        %5766 = vmatpush1.msra.mxu0 0.0
        %5767 = vmatprep.subr.mxu0 0.0
        %5768 = vmatpush1.msra.mxu0 0.0
        %5769 = vmatprep.subr.mxu0 0.0
        %5770 = vmatpush1.msra.mxu0 0.0
        %5771 = vmatprep.mubr.f32.mxu0 0.0
        %5772 = vmatmul.mubr.f32.gmra.mrb[0].mxu0 %v5634
        %v5773 = vpop.f32.mrb[0].mxu0
        %v5774 = vadd.f32 1e-06, %v5773
        %v5775 = vpop.f32.mrb[0].mxu0
        %v5776 = vadd.f32 1e-06, %v5775
        %5777 = vdwg.mxu0
        %v5778 = vmul.f32 %v5629, %v5703
        %v5779 = vmul.f32 %v5630, %v5705
        %v5780 = vmul.f32 %v5631, %v5774
        %v5781 = vmul.f32 %v5632, %v5776
        %v5782 = vrcp.pop %v5778
        %v5783 = vrcp.pop %v5779
        %v5784 = vrcp.pop %v5780
        %v5785 = vrcp.pop %v5781
        %v5786 = vmul.f32 %v5560, %v5782
        %v5787 = vmul.f32 %v5573, %v5783
        %v5788 = vmul.f32 %v5586, %v5784
        %v5789 = vmul.f32 %v5599, %v5785
        %v5790 = vadd.f32 %v2385, %v5786
        %v5791 = vadd.f32 %v2387, %v5787
        %v5792 = vadd.f32 %v2527, %v5788
        %v5793 = vadd.f32 %v2529, %v5789
        %v5794 = vld [vmem:[#allocation23] sm:$0xf]
        %v5796 = vlaneseq
        %v5797 = vshrl.u32 %v5796, 7
        %v5798 = vsub.s32 0, %v5797
        %v5799 = vrot.slane %v5794, %v5798
        %v5800 = vlaneseq
        %v5801 = vshrl.u32 %v5800, 7
        %v5802 = vsub.s32 1, %v5801
        %v5803 = vrot.slane %v5794, %v5802
        %v5804 = vlaneseq
        %v5805 = vshrl.u32 %v5804, 7
        %v5806 = vsub.s32 2, %v5805
        %v5807 = vrot.slane %v5794, %v5806
        %v5808 = vlaneseq
        %v5809 = vshrl.u32 %v5808, 7
        %v5810 = vsub.s32 3, %v5809
        %v5811 = vrot.slane %v5794, %v5810
        %v5816 = vmul.f32 %v5790, %v5799
        %v5817 = vmul.f32 %v5791, %v5803
        %v5818 = vmul.f32 %v5792, %v5807
        %v5819 = vmul.f32 %v5793, %v5811
        %v5820 = vld [vmem:[#allocation25] sm:$0xf]
        %v5822 = vlaneseq
        %v5823 = vshrl.u32 %v5822, 7
        %v5824 = vsub.s32 0, %v5823
        %v5825 = vrot.slane %v5820, %v5824
        %v5826 = vlaneseq
        %v5827 = vshrl.u32 %v5826, 7
        %v5828 = vsub.s32 1, %v5827
        %v5829 = vrot.slane %v5820, %v5828
        %v5830 = vlaneseq
        %v5831 = vshrl.u32 %v5830, 7
        %v5832 = vsub.s32 2, %v5831
        %v5833 = vrot.slane %v5820, %v5832
        %v5834 = vlaneseq
        %v5835 = vshrl.u32 %v5834, 7
        %v5836 = vsub.s32 3, %v5835
        %v5837 = vrot.slane %v5820, %v5836
        %v5842 = vadd.f32 %v5816, %v5825
        %v5843 = vadd.f32 %v5817, %v5829
        %v5844 = vadd.f32 %v5818, %v5833
        %v5845 = vadd.f32 %v5819, %v5837
        %v5846 = vmax.f32 %v5842, 0.0
        %v5847 = vmax.f32 %v5843, 0.0
        %v5848 = vmax.f32 %v5844, 0.0
        %v5849 = vmax.f32 %v5845, 0.0
        %v5854 = vcombine.low %v5846, %v5847
        %v5855 = vcombine.low %v5848, %v5849
        %v5857 = vunpack.c.l.s4 1966171168
        %v5858 = vunpack.c.0.s8 %v5857
        %v5859 = vlaneseq
        %v5860 = vshrl.u32 %v5859, 7
        %v5861 = vsub.s32 %v5858, %v5860
        %v5862 = vrot.slane %v5854, %v5861
        %v5864 = vunpack.c.l.s4 1966171168
        %v5865 = vunpack.c.0.s8 %v5864
        %v5866 = vlaneseq
        %v5867 = vshrl.u32 %v5866, 7
        %v5868 = vsub.s32 %v5865, %v5867
        %v5869 = vrot.slane %v5855, %v5868
        %v5870 = vcombine.low %v5862, %v5869
        %v5872 = vunpack.c.l.s4 1966171168
        %v5873 = vunpack.c.0.s8 %v5872
        %v5874 = vlaneseq
        %v5875 = vshrl.u32 %v5874, 7
        %v5876 = vsub.s32 %v5873, %v5875
        %v5877 = vrot.slane %v5870, %v5876
        %v5879 = vlaneseq
        %vm5880 = vcmp.ge.s32.totalorder %v5879, 0
        %vm5881 = vcmp.lt.s32.totalorder %v5879, 512
        %vm5882 = vmand %vm5880, %vm5881
        %5883 = vst.msk [vmem:[%s1000] sm:$0xf] %vm5882, %v5877
        %v5884 = vld [vmem:[#allocation26] sm:$0xf]
        %v5886 = vlaneseq
        %v5887 = vshrl.u32 %v5886, 7
        %v5888 = vsub.s32 0, %v5887
        %v5889 = vrot.slane %v5884, %v5888
        %v5890 = vlaneseq
        %v5891 = vshrl.u32 %v5890, 7
        %v5892 = vsub.s32 1, %v5891
        %v5893 = vrot.slane %v5884, %v5892
        %v5894 = vlaneseq
        %v5895 = vshrl.u32 %v5894, 7
        %v5896 = vsub.s32 2, %v5895
        %v5897 = vrot.slane %v5884, %v5896
        %v5898 = vlaneseq
        %v5899 = vshrl.u32 %v5898, 7
        %v5900 = vsub.s32 3, %v5899
        %v5901 = vrot.slane %v5884, %v5900
        %v5906 = vmul.f32 %v3875, %v5889
        %v5907 = vmul.f32 %v3876, %v5893
        %v5908 = vmul.f32 %v3877, %v5897
        %v5909 = vmul.f32 %v3878, %v5901
        %v5910 = vmul.f32 %v3879, %v5889
        %v5911 = vmul.f32 %v3880, %v5893
        %v5912 = vmul.f32 %v3881, %v5897
        %v5913 = vmul.f32 %v3882, %v5901
        %v5914 = vmul.f32 %v3883, %v5889
        %v5915 = vmul.f32 %v3884, %v5893
        %v5916 = vmul.f32 %v3885, %v5897
        %v5917 = vmul.f32 %v3886, %v5901
        %v5918 = vmul.f32 %v3887, %v5889
        %v5919 = vmul.f32 %v3888, %v5893
        %v5920 = vmul.f32 %v3889, %v5897
        %v5921 = vmul.f32 %v3890, %v5901
        %v5922 = vmul.f32 %v3891, %v5889
        %v5923 = vmul.f32 %v3892, %v5893
        %v5924 = vmul.f32 %v3893, %v5897
        %v5925 = vmul.f32 %v3894, %v5901
        %v5926 = vmul.f32 %v3895, %v5889
        %v5927 = vmul.f32 %v3896, %v5893
        %v5928 = vmul.f32 %v3897, %v5897
        %v5929 = vmul.f32 %v3898, %v5901
        %v5930 = vmul.f32 %v3899, %v5889
        %v5931 = vmul.f32 %v3900, %v5893
        %v5932 = vmul.f32 %v3901, %v5897
        %v5933 = vmul.f32 %v3902, %v5901
        %v5934 = vmul.f32 %v3903, %v5889
        %v5935 = vmul.f32 %v3904, %v5893
        %v5936 = vmul.f32 %v3905, %v5897
        %v5937 = vmul.f32 %v3906, %v5901
        %v5938 = vld [vmem:[#allocation28] sm:$0xf]
        %v5940 = vlaneseq
        %v5941 = vshrl.u32 %v5940, 7
        %v5942 = vsub.s32 0, %v5941
        %v5943 = vrot.slane %v5938, %v5942
        %v5944 = vlaneseq
        %v5945 = vshrl.u32 %v5944, 7
        %v5946 = vsub.s32 1, %v5945
        %v5947 = vrot.slane %v5938, %v5946
        %v5948 = vlaneseq
        %v5949 = vshrl.u32 %v5948, 7
        %v5950 = vsub.s32 2, %v5949
        %v5951 = vrot.slane %v5938, %v5950
        %v5952 = vlaneseq
        %v5953 = vshrl.u32 %v5952, 7
        %v5954 = vsub.s32 3, %v5953
        %v5955 = vrot.slane %v5938, %v5954
        %v5960 = vadd.f32 %v5906, %v5943
        %v5961 = vadd.f32 %v5907, %v5947
        %v5962 = vadd.f32 %v5908, %v5951
        %v5963 = vadd.f32 %v5909, %v5955
        %v5964 = vadd.f32 %v5910, %v5943
        %v5965 = vadd.f32 %v5911, %v5947
        %v5966 = vadd.f32 %v5912, %v5951
        %v5967 = vadd.f32 %v5913, %v5955
        %v5968 = vadd.f32 %v5914, %v5943
        %v5969 = vadd.f32 %v5915, %v5947
        %v5970 = vadd.f32 %v5916, %v5951
        %v5971 = vadd.f32 %v5917, %v5955
        %v5972 = vadd.f32 %v5918, %v5943
        %v5973 = vadd.f32 %v5919, %v5947
        %v5974 = vadd.f32 %v5920, %v5951
        %v5975 = vadd.f32 %v5921, %v5955
        %v5976 = vadd.f32 %v5922, %v5943
        %v5977 = vadd.f32 %v5923, %v5947
        %v5978 = vadd.f32 %v5924, %v5951
        %v5979 = vadd.f32 %v5925, %v5955
        %v5980 = vadd.f32 %v5926, %v5943
        %v5981 = vadd.f32 %v5927, %v5947
        %v5982 = vadd.f32 %v5928, %v5951
        %v5983 = vadd.f32 %v5929, %v5955
        %v5984 = vadd.f32 %v5930, %v5943
        %v5985 = vadd.f32 %v5931, %v5947
        %v5986 = vadd.f32 %v5932, %v5951
        %v5987 = vadd.f32 %v5933, %v5955
        %v5988 = vadd.f32 %v5934, %v5943
        %v5989 = vadd.f32 %v5935, %v5947
        %v5990 = vadd.f32 %v5936, %v5951
        %v5991 = vadd.f32 %v5937, %v5955
        %v5992 = vmax.f32 %v5960, 0.0
        %v5993 = vmax.f32 %v5961, 0.0
        %v5994 = vmax.f32 %v5962, 0.0
        %v5995 = vmax.f32 %v5963, 0.0
        %v5996 = vmax.f32 %v5964, 0.0
        %v5997 = vmax.f32 %v5965, 0.0
        %v5998 = vmax.f32 %v5966, 0.0
        %v5999 = vmax.f32 %v5967, 0.0
        %v6000 = vmax.f32 %v5968, 0.0
        %v6001 = vmax.f32 %v5969, 0.0
        %v6002 = vmax.f32 %v5970, 0.0
        %v6003 = vmax.f32 %v5971, 0.0
        %v6004 = vmax.f32 %v5972, 0.0
        %v6005 = vmax.f32 %v5973, 0.0
        %v6006 = vmax.f32 %v5974, 0.0
        %v6007 = vmax.f32 %v5975, 0.0
        %v6008 = vmax.f32 %v5976, 0.0
        %v6009 = vmax.f32 %v5977, 0.0
        %v6010 = vmax.f32 %v5978, 0.0
        %v6011 = vmax.f32 %v5979, 0.0
        %v6012 = vmax.f32 %v5980, 0.0
        %v6013 = vmax.f32 %v5981, 0.0
        %v6014 = vmax.f32 %v5982, 0.0
        %v6015 = vmax.f32 %v5983, 0.0
        %v6016 = vmax.f32 %v5984, 0.0
        %v6017 = vmax.f32 %v5985, 0.0
        %v6018 = vmax.f32 %v5986, 0.0
        %v6019 = vmax.f32 %v5987, 0.0
        %v6020 = vmax.f32 %v5988, 0.0
        %v6021 = vmax.f32 %v5989, 0.0
        %v6022 = vmax.f32 %v5990, 0.0
        %v6023 = vmax.f32 %v5991, 0.0
        %6024 = vst [vmem:[%s1007] sm:$0xff] %v5992
        %6025 = vst [vmem:[%s1007 + $0x8] sm:$0xff] %v5993
        %6026 = vst [vmem:[%s1007 + $0x10] sm:$0xff] %v5994
        %6027 = vst [vmem:[%s1007 + $0x18] sm:$0xff] %v5995
        %6028 = vst [vmem:[%s1007 + $0x20] sm:$0xff] %v5996
        %6029 = vst [vmem:[%s1007 + $0x28] sm:$0xff] %v5997
        %6030 = vst [vmem:[%s1007 + $0x30] sm:$0xff] %v5998
        %6031 = vst [vmem:[%s1007 + $0x38] sm:$0xff] %v5999
        %6032 = vst [vmem:[%s1007 + $0x40] sm:$0xff] %v6000
        %6033 = vst [vmem:[%s1007 + $0x48] sm:$0xff] %v6001
        %6034 = vst [vmem:[%s1007 + $0x50] sm:$0xff] %v6002
        %6035 = vst [vmem:[%s1007 + $0x58] sm:$0xff] %v6003
        %6036 = vst [vmem:[%s1007 + $0x60] sm:$0xff] %v6004
        %6037 = vst [vmem:[%s1007 + $0x68] sm:$0xff] %v6005
        %6038 = vst [vmem:[%s1007 + $0x70] sm:$0xff] %v6006
        %6039 = vst [vmem:[%s1007 + $0x78] sm:$0xff] %v6007
        %6040 = vst [vmem:[%s1007 + $0x80] sm:$0xff] %v6008
        %6041 = vst [vmem:[%s1007 + $0x88] sm:$0xff] %v6009
        %6042 = vst [vmem:[%s1007 + $0x90] sm:$0xff] %v6010
        %6043 = vst [vmem:[%s1007 + $0x98] sm:$0xff] %v6011
        %6044 = vst [vmem:[%s1007 + $0xa0] sm:$0xff] %v6012
        %6045 = vst [vmem:[%s1007 + $0xa8] sm:$0xff] %v6013
        %6046 = vst [vmem:[%s1007 + $0xb0] sm:$0xff] %v6014
        %6047 = vst [vmem:[%s1007 + $0xb8] sm:$0xff] %v6015
        %6048 = vst [vmem:[%s1007 + $0xc0] sm:$0xff] %v6016
        %6049 = vst [vmem:[%s1007 + $0xc8] sm:$0xff] %v6017
        %6050 = vst [vmem:[%s1007 + $0xd0] sm:$0xff] %v6018
        %6051 = vst [vmem:[%s1007 + $0xd8] sm:$0xff] %v6019
        %6052 = vst [vmem:[%s1007 + $0xe0] sm:$0xff] %v6020
        %6053 = vst [vmem:[%s1007 + $0xe8] sm:$0xff] %v6021
        %6054 = vst [vmem:[%s1007 + $0xf0] sm:$0xff] %v6022
        %6055 = vst [vmem:[%s1007 + $0xf8] sm:$0xff] %v6023
        %s6056 = sand.u32 %s523, 1
        %s6057 = scalar_lea.sflag [#allocation4], %s6056
        %s6058 = sand.u32 %s523, 1
        %s6059 = smul.addr %s6058, 4
        %s6060 = scalar_lea.vmem [#allocation29], %s6059
        %s6061 = sand.u32 %s549, 1
        %s6062 = scalar_lea.sflag [#allocation31], %s6061
        %s6063 = sand.u32 %s549, 1
        %s6064 = smul.addr %s6063, 256
        %s6065 = scalar_lea.vmem [#allocation30], %s6064
        %s6066 = smul.u32 2, %s54
        %p6067 = scmp.lt.s32.totalorder %s6066, 7
        %s6068 = scalar_select %p6067, %s6066, 7
        %s6069 = smul.addr %s6068, 8
        %s6070 = scalar_lea.vmem %s23, %s6069
        // Predicated region
        $region173: #{tpu_custom_call.1} parent=103 // pred_check
          %p6071 = pneg %p533
        $region174: #{tpu_custom_call.1} parent=103 // pred_check_branch
          %6073 = sbr.rel (%p6071) target = $region176
        $region175: #{tpu_custom_call.1} parent=103 // pred_region
          %s6075 = ssub.s32 64, 64
          %6076 = vsyncadd %s6057, %s6075
          %s6077 = smul.addr %s54, 4
          %s6078 = smul.addr %s6077, 16
          %s6079 = scalar_lea.hbm %s21, %s6078
          %s6081 = sshll.u32 %s6060, 4
          %s6082 = int_to_ptr.vmem [resolvable:$true] %s6081
          %6084 = dma.vmem_to_hbm [thread:$0]  %s6082, 64, %s6079, %s6057
        $region176: #{tpu_custom_call.1} parent=103 // pred_fallthru
          _
        // Predicated region
        $region177: #{tpu_custom_call.1} parent=103 // pred_check
          %p6085 = pneg %p559
        $region178: #{tpu_custom_call.1} parent=103 // pred_check_branch
          %6087 = sbr.rel (%p6085) target = $region180
        $region179: #{tpu_custom_call.1} parent=103 // pred_region
          %s6088 = smul.u32 4, %s54
          %s6090 = ssub.s32 4096, 4096
          %6091 = vsyncadd %s6062, %s6090
          %s6092 = smul.addr %s6088, 128
          %s6093 = scalar_lea.hbm %s22, %s6092
          %s6094 = sshll.u32 %s6065, 4
          %s6095 = int_to_ptr.vmem [resolvable:$true] %s6094
          %6100 = dma.vmem_to_hbm [thread:$0]  %s6095, 4096, %s6093, %s6062, 512, 2048, 32
        $region180: #{tpu_custom_call.1} parent=103 // pred_fallthru
          _
        // Predicated region
        $region181: #{tpu_custom_call.1} parent=103 // pred_check
          %p6101 = pneg %p585
        $region182: #{tpu_custom_call.1} parent=103 // pred_check_branch
          %6103 = sbr.rel (%p6101) target = $region184
        $region183: #{tpu_custom_call.1} parent=103 // pred_region
          %s6104 = smul.u32 2, %s54
        $region184: #{tpu_custom_call.1} parent=103 // pred_fallthru
          _
      $region104: #{tpu_custom_call.1} parent=5 // pred_fallthru
        _
      %p6105 = scmp.le.s32.totalorder 2, %s49
      // Predicated region
      $region185: #{tpu_custom_call.1} parent=5 // pred_check
        %p6106 = pneg %p6105
      $region186: #{tpu_custom_call.1} parent=5 // pred_check_branch
        %6108 = sbr.rel (%p6106) target = $region188
      $region187: #{tpu_custom_call.1} parent=5 // pred_region
        %s6109 = ssub.s32 %s49, 2
        // Predicated region
        $region189: #{tpu_custom_call.1} parent=187 // pred_check
          %p6110 = pneg %p539
        $region190: #{tpu_custom_call.1} parent=187 // pred_check_branch
          %6112 = sbr.rel (%p6110) target = $region192
        $region191: #{tpu_custom_call.1} parent=187 // pred_region
          %s6113 = sand.u32 %s524, 1
          %s6114 = scalar_lea.sflag [#allocation4], %s6113
          %s6115 = sand.u32 %s524, 1
          %s6116 = smul.addr %s6115, 4
          %s6117 = scalar_lea.vmem [#allocation29], %s6116
          %6118 = dma.done %s6114, 64
        $region192: #{tpu_custom_call.1} parent=187 // pred_fallthru
          _
        // Predicated region
        $region193: #{tpu_custom_call.1} parent=187 // pred_check
          %p6119 = pneg %p565
        $region194: #{tpu_custom_call.1} parent=187 // pred_check_branch
          %6121 = sbr.rel (%p6119) target = $region196
        $region195: #{tpu_custom_call.1} parent=187 // pred_region
          %s6122 = sand.u32 %s550, 1
          %s6123 = scalar_lea.sflag [#allocation31], %s6122
          %s6124 = sand.u32 %s550, 1
          %s6125 = smul.addr %s6124, 256
          %s6126 = scalar_lea.vmem [#allocation30], %s6125
          %6127 = dma.done %s6123, 4096
        $region196: #{tpu_custom_call.1} parent=187 // pred_fallthru
          _
        // Predicated region
        $region197: #{tpu_custom_call.1} parent=187 // pred_check
          %p6128 = pneg %p591
        $region198: #{tpu_custom_call.1} parent=187 // pred_check_branch
          %6130 = sbr.rel (%p6128) target = $region200
        $region199: #{tpu_custom_call.1} parent=187 // pred_region
          %s6131 = smul.u32 2, %s55
          %p6132 = scmp.lt.s32.totalorder %s6131, 7
          %s6133 = scalar_select %p6132, %s6131, 7
          %s6134 = smul.addr %s6133, 8
          %s6135 = scalar_lea.vmem %s23, %s6134
        $region200: #{tpu_custom_call.1} parent=187 // pred_fallthru
          _
      $region188: #{tpu_custom_call.1} parent=5 // pred_fallthru
        _
    $region6: #{tpu_custom_call.1} parent=1 // loop_footer
      %s53 = sadd.s32 1, %s49
    $region7: #{tpu_custom_call.1} parent=1 // loop_footer_branch
      %48 = sbr.rel target = $region3
    $region8: #{tpu_custom_call.1} parent=1 // loop_exit
      _
    %6136 = vsyncpa [#allocation3], 1
    %s6137 = scalar_lea.sflag [#allocation3], 1
    %6138 = vsyncpa %s6137, 1
    %6139 = vsyncpa [#allocation6], 1
    %s6140 = scalar_lea.sflag [#allocation6], 1
    %6141 = vsyncpa %s6140, 1
    %6142 = vsyncpa [#allocation9], 1
    %6143 = vsyncpa [#allocation12], 1
    %6144 = vsyncpa [#allocation15], 1
    %6145 = vsyncpa [#allocation18], 1
    %6146 = vsyncpa [#allocation21], 1
    %6147 = vsyncpa [#allocation24], 1
    %6148 = vsyncpa [#allocation27], 1
    %6149 = vsyncpa [#allocation4], 1
    %s6150 = scalar_lea.sflag [#allocation4], 1
    %6151 = vsyncpa %s6150, 1
    %6152 = vsyncpa [#allocation31], 1
    %s6153 = scalar_lea.sflag [#allocation31], 1
    %6154 = vsyncpa %s6153, 1

</llo_original>
